<compile_context>
chip_gen: v7x
topology: tpu7x:2x2x1
jax: 0.10.0
libtpu: 0.0.40
codegen_flags: <defaults>
</compile_context>

<pallas_src>
import functools

import numpy as np
import jax
import jax.numpy as jnp
from jax.experimental import pallas as pl
from jax.experimental.pallas import tpu as pltpu


# ---------------------------------------------------------------------------
# Pallas kernels
# ---------------------------------------------------------------------------
def _conv_pool_kernel(w_ref, p_ref, b_ref, s00_ref, s01_ref, s10_ref, s11_ref,
                      o_ref, *, relu_in, relu_out):
    """One sample: out = maxpool2x2( relu?( W @ relu?(patches^T) + b ) ).

    w_ref:   (Cout, K)        bf16
    p_ref:   (K, H*W)         bf16   (transposed im2col patches, lane-dense)
    b_ref:   (Cout, 1)        f32
    s*_ref:  (H*W, H*W//4)    f32    one-hot 2x2-window selection matrices
    o_ref:   (Cout, H*W//4)   f32
    """
    p = p_ref[...]
    if relu_in:
        p = jnp.maximum(p, 0)
    t = jnp.dot(w_ref[...], p, preferred_element_type=jnp.float32) + b_ref[...]
    if relu_out:
        t = jnp.maximum(t, 0.0)
    p00 = jnp.dot(t, s00_ref[...], preferred_element_type=jnp.float32)
    p01 = jnp.dot(t, s01_ref[...], preferred_element_type=jnp.float32)
    p10 = jnp.dot(t, s10_ref[...], preferred_element_type=jnp.float32)
    p11 = jnp.dot(t, s11_ref[...], preferred_element_type=jnp.float32)
    o_ref[...] = jnp.maximum(jnp.maximum(p00, p01),
                             jnp.maximum(p10, p11)).astype(o_ref.dtype)


def _conv_residual_kernel(w_ref, p_ref, b_ref, r_ref,
                          s00_ref, s01_ref, s10_ref, s11_ref, o_ref):
    """One sample: out = relu( (W @ patches^T + b) + maxpool2x2(residual_src) ).

    r_ref: (Cr, Sr) f32 -> pooled in-kernel to (Cr, Sr//4) and added.
    """
    t = jnp.dot(w_ref[...], p_ref[...],
                preferred_element_type=jnp.float32) + b_ref[...]
    r = r_ref[...]
    r00 = jnp.dot(r, s00_ref[...], preferred_element_type=jnp.float32)
    r01 = jnp.dot(r, s01_ref[...], preferred_element_type=jnp.float32)
    r10 = jnp.dot(r, s10_ref[...], preferred_element_type=jnp.float32)
    r11 = jnp.dot(r, s11_ref[...], preferred_element_type=jnp.float32)
    res = jnp.maximum(jnp.maximum(r00, r01), jnp.maximum(r10, r11))
    o_ref[...] = jnp.maximum(t + res, 0.0).astype(o_ref.dtype)


def _mlp_kernel(x_ref, w1_ref, b1_ref, w2_ref, b2_ref, w3_ref, b3_ref, o_ref):
    """Fused fc1(relu) -> fc2(relu) -> fc3, all intermediates kept in VMEM."""
    h = jnp.dot(x_ref[...], w1_ref[...],
                preferred_element_type=jnp.float32) + b1_ref[...]
    h = jnp.maximum(h, 0.0).astype(jnp.bfloat16)
    h = jnp.dot(h, w2_ref[...], preferred_element_type=jnp.float32) + b2_ref[...]
    h = jnp.maximum(h, 0.0).astype(jnp.bfloat16)
    out = jnp.dot(h, w3_ref[...], preferred_element_type=jnp.float32) + b3_ref[...]
    o_ref[...] = out.astype(o_ref.dtype)


# ---------------------------------------------------------------------------
# Wrappers (pallas_call plumbing)
# ---------------------------------------------------------------------------
@functools.lru_cache(maxsize=None)
def _pool_selectors(H, W):
    """Four (H*W, (H/2)*(W/2)) one-hot matrices; column o picks window member (dy,dx)."""
    Ho, Wo = H // 2, W // 2
    sels = []
    for dy in range(2):
        for dx in range(2):
            s = np.zeros((H * W, Ho * Wo), np.float32)
            for yo in range(Ho):
                for xo in range(Wo):
                    s[(2 * yo + dy) * W + (2 * xo + dx), yo * Wo + xo] = 1.0
            sels.append(jnp.asarray(s))
    return tuple(sels)


def build_patches_T(x, k=5, pad=2):
    """x: (B, C, H, W) -> transposed patches (B, C*k*k, H*W); row order (c, ky, kx)."""
    B, C, H, W = x.shape
    xp = jnp.pad(x, ((0, 0), (0, 0), (pad, pad), (pad, pad)))
    cols = [xp[:, :, ky:ky + H, kx:kx + W] for ky in range(k) for kx in range(k)]
    p = jnp.stack(cols, axis=2)                       # (B, C, k*k, H, W)
    return p.reshape(B, C * k * k, H * W)             # row-major merges: free


def conv_pool(P, wm, bias, *, H, W, cout, relu_in, relu_out):
    """Conv(5x5,'same') [+optional ReLUs] + fused MaxPool2d(2,2).

    P: (B, K, H*W) bf16, wm: (cout, K) bf16, bias: (cout, 1) f32
    -> (B, cout, (H//2)*(W//2)) f32, channel-major per sample.
    """
    B, K, S = P.shape
    assert S == H * W
    So = (H // 2) * (W // 2)
    s00, s01, s10, s11 = _pool_selectors(H, W)
    kernel = functools.partial(_conv_pool_kernel, relu_in=relu_in, relu_out=relu_out)
    sel_spec = pl.BlockSpec((S, So), lambda b: (0, 0))
    return pl.pallas_call(
        kernel,
        out_shape=jax.ShapeDtypeStruct((B, cout, So), jnp.float32),
        grid=(B,),
        in_specs=[
            pl.BlockSpec((cout, K), lambda b: (0, 0)),
            pl.BlockSpec((None, K, S), lambda b: (b, 0, 0)),
            pl.BlockSpec((cout, 1), lambda b: (0, 0)),
            sel_spec, sel_spec, sel_spec, sel_spec,
        ],
        out_specs=pl.BlockSpec((None, cout, So), lambda b: (b, 0, 0)),
        compiler_params=pltpu.CompilerParams(dimension_semantics=("parallel",)),
    )(wm, P, bias, s00, s01, s10, s11)


def conv_residual(P, wm, bias, res_src, *, res_h, res_w, cout):
    """Conv(5x5,'same') + bias + (in-kernel pooled residual) + ReLU.

    P: (B, K, S) bf16 with S = (res_h//2)*(res_w//2); res_src: (B, Cr, res_h*res_w) f32.
    """
    B, K, S = P.shape
    Cr, Sr = res_src.shape[1], res_src.shape[2]
    assert Sr == res_h * res_w and S == (res_h // 2) * (res_w // 2) and Cr == cout
    s00, s01, s10, s11 = _pool_selectors(res_h, res_w)
    sel_spec = pl.BlockSpec((Sr, S), lambda b: (0, 0))
    return pl.pallas_call(
        _conv_residual_kernel,
        out_shape=jax.ShapeDtypeStruct((B, cout, S), jnp.float32),
        grid=(B,),
        in_specs=[
            pl.BlockSpec((cout, K), lambda b: (0, 0)),
            pl.BlockSpec((None, K, S), lambda b: (b, 0, 0)),
            pl.BlockSpec((cout, 1), lambda b: (0, 0)),
            pl.BlockSpec((None, Cr, Sr), lambda b: (b, 0, 0)),
            sel_spec, sel_spec, sel_spec, sel_spec,
        ],
        out_specs=pl.BlockSpec((None, cout, S), lambda b: (b, 0, 0)),
        compiler_params=pltpu.CompilerParams(dimension_semantics=("parallel",)),
    )(wm, P, bias, res_src, s00, s01, s10, s11)


def mlp(x, params):
    """Fused fc1(1024->64)+ReLU -> fc2(64->32)+ReLU -> fc3(32->10)."""
    B = x.shape[0]
    return pl.pallas_call(
        _mlp_kernel,
        out_shape=jax.ShapeDtypeStruct((B, 10), jnp.float32),
        grid=(1,),
        in_specs=[
            pl.BlockSpec((B, 1024), lambda i: (0, 0)),
            pl.BlockSpec((1024, 64), lambda i: (0, 0)),
            pl.BlockSpec((1, 64), lambda i: (0, 0)),
            pl.BlockSpec((64, 32), lambda i: (0, 0)),
            pl.BlockSpec((1, 32), lambda i: (0, 0)),
            pl.BlockSpec((32, 10), lambda i: (0, 0)),
            pl.BlockSpec((1, 10), lambda i: (0, 0)),
        ],
        out_specs=pl.BlockSpec((B, 10), lambda i: (0, 0)),
        compiler_params=pltpu.CompilerParams(dimension_semantics=("arbitrary",)),
    )(x, params["fc1_w"], params["fc1_b"], params["fc2_w"], params["fc2_b"],
      params["fc3_w"], params["fc3_b"])


# ---------------------------------------------------------------------------
# Parameters
# ---------------------------------------------------------------------------
def init_params(key):
    """PyTorch-layout parameters (Conv: (Cout,Cin,5,5), Linear: (out,in))."""
    keys = jax.random.split(key, 12)

    def rnd(k, shape, scale):
        return (scale * jax.random.normal(k, shape)).astype(jnp.float32)

    p = {}
    p["conv1_w"] = rnd(keys[0], (16, 3, 5, 5), 0.10)
    p["conv1_b"] = rnd(keys[1], (16,), 0.10)
    p["conv2_w"] = rnd(keys[2], (32, 16, 5, 5), 0.05)
    p["conv2_b"] = rnd(keys[3], (32,), 0.05)
    p["conv3_w"] = rnd(keys[4], (16, 32, 5, 5), 0.05)
    p["conv3_b"] = rnd(keys[5], (16,), 0.05)
    p["fc1_w"] = rnd(keys[6], (64, 1024), 0.03)
    p["fc1_b"] = rnd(keys[7], (64,), 0.03)
    p["fc2_w"] = rnd(keys[8], (32, 64), 0.10)
    p["fc2_b"] = rnd(keys[9], (32,), 0.10)
    p["fc3_w"] = rnd(keys[10], (10, 32), 0.10)
    p["fc3_b"] = rnd(keys[11], (10,), 0.10)
    return p


def prepare_params(p):
    """One-time weight re-layout/casts so the forward pass does none."""
    q = {}
    q["conv1_w"] = p["conv1_w"].reshape(16, 3 * 25).astype(jnp.bfloat16)
    q["conv1_b"] = p["conv1_b"].reshape(16, 1).astype(jnp.float32)
    q["conv2_w"] = p["conv2_w"].reshape(32, 16 * 25).astype(jnp.bfloat16)
    q["conv2_b"] = p["conv2_b"].reshape(32, 1).astype(jnp.float32)
    q["conv3_w"] = p["conv3_w"].reshape(16, 32 * 25).astype(jnp.bfloat16)
    q["conv3_b"] = p["conv3_b"].reshape(16, 1).astype(jnp.float32)
    q["fc1_w"] = p["fc1_w"].T.astype(jnp.bfloat16)          # (1024, 64)
    q["fc1_b"] = p["fc1_b"].reshape(1, 64).astype(jnp.float32)
    q["fc2_w"] = p["fc2_w"].T.astype(jnp.bfloat16)           # (64, 32)
    q["fc2_b"] = p["fc2_b"].reshape(1, 32).astype(jnp.float32)
    q["fc3_w"] = p["fc3_w"].T.astype(jnp.bfloat16)           # (32, 10)
    q["fc3_b"] = p["fc3_b"].reshape(1, 10).astype(jnp.float32)
    return q


# ---------------------------------------------------------------------------
# Forward pass (ResidualCNN semantics)
# ---------------------------------------------------------------------------
@jax.jit
def residual_cnn_forward(params, x):
    # x: (B, 3, 32, 32) NCHW float32
    B = x.shape[0]

    # conv1 (raw, no relu) + fused pool -> p1 = pool(conv1_out), (B, 16, 16*16)
    P1 = build_patches_T(x.astype(jnp.bfloat16))                      # (B, 75, 1024)
    p1 = conv_pool(P1, params["conv1_w"], params["conv1_b"],
                   H=32, W=32, cout=16, relu_in=False, relu_out=False)

    # conv2 on relu(p1) (relu fused on the patch load), + relu + fused pool
    # (relu o pool == pool o relu, so relu(p1) == pool(relu(conv1_out)))
    P2 = build_patches_T(p1.reshape(B, 16, 16, 16).astype(jnp.bfloat16))  # (B, 400, 256)
    c2 = conv_pool(P2, params["conv2_w"], params["conv2_b"],
                   H=16, W=16, cout=32, relu_in=True, relu_out=True)      # (B, 32, 64)

    # conv3 + residual (= pool(p1), pooled in-kernel from raw p1) + relu
    P3 = build_patches_T(c2.reshape(B, 32, 8, 8).astype(jnp.bfloat16))    # (B, 800, 64)
    x3 = conv_residual(P3, params["conv3_w"], params["conv3_b"], p1,
                       res_h=16, res_w=16, cout=16)                       # (B, 16, 64)

    # channel-major per-sample layout flattens exactly like torch's .view(B, -1)
    flat = x3.reshape(B, 16 * 64).astype(jnp.bfloat16)                    # (B, 1024)
    return mlp(flat, params)                                              # (B, 10)


if __name__ == "__main__":
    key = jax.random.PRNGKey(0)
    pkey, xkey = jax.random.split(key)
    params = prepare_params(init_params(pkey))
    x = jax.random.normal(xkey, (2, 3, 32, 32), dtype=jnp.float32)
    out = residual_cnn_forward(params, x)
    out = jax.block_until_ready(out)
    assert out.shape == (2, 10) and out.dtype == jnp.float32
    print("KERNEL_OK")
</pallas_src>

<mosaic_0001>
module attributes {stable_mosaic.version = 11 : i64} {
  func.func @_conv_pool_kernel(%arg0: i32, %arg1: memref<16x75xbf16, #tpu.memory_space<vmem>>, %arg2: memref<1x75x1024xbf16, #tpu.memory_space<vmem>>, %arg3: memref<16x1xf32, #tpu.memory_space<vmem>>, %arg4: memref<1024x256xf32, #tpu.memory_space<vmem>>, %arg5: memref<1024x256xf32, #tpu.memory_space<vmem>>, %arg6: memref<1024x256xf32, #tpu.memory_space<vmem>>, %arg7: memref<1024x256xf32, #tpu.memory_space<vmem>>, %arg8: memref<1x16x256xf32, #tpu.memory_space<vmem>>) attributes {dimension_semantics = [#tpu.dimension_semantics<parallel>], iteration_bounds = array<i64: 2>, scalar_prefetch = 0 : i64, scratch_operands = 0 : i64, tpu.core_type = #tpu.core_type<tc>, window_params = [{pipeline_mode = #tpu.pipeline_mode<synchronous>, transform_indices = @transform_0, window_bounds = array<i64: 16, 75>}, {transform_indices = @transform_1, window_bounds = array<i64: 1, 75, 1024>}, {pipeline_mode = #tpu.pipeline_mode<synchronous>, transform_indices = @transform_2, window_bounds = array<i64: 16, 1>}, {pipeline_mode = #tpu.pipeline_mode<synchronous>, transform_indices = @transform_3, window_bounds = array<i64: 1024, 256>}, {pipeline_mode = #tpu.pipeline_mode<synchronous>, transform_indices = @transform_4, window_bounds = array<i64: 1024, 256>}, {pipeline_mode = #tpu.pipeline_mode<synchronous>, transform_indices = @transform_5, window_bounds = array<i64: 1024, 256>}, {pipeline_mode = #tpu.pipeline_mode<synchronous>, transform_indices = @transform_6, window_bounds = array<i64: 1024, 256>}, {transform_indices = @transform_7, window_bounds = array<i64: 1, 16, 256>}]} {
    %c0 = arith.constant 0 : index
    %c0_0 = arith.constant 0 : index
    %c0_1 = arith.constant 0 : index
    %0 = vector.load %arg2[%c0, %c0_0, %c0_1] : memref<1x75x1024xbf16, #tpu.memory_space<vmem>>, vector<1x75x1024xbf16>
    %1 = vector.shape_cast %0 : vector<1x75x1024xbf16> to vector<75x1024xbf16>
    %c0_2 = arith.constant 0 : index
    %c0_3 = arith.constant 0 : index
    %2 = vector.load %arg1[%c0_2, %c0_3] : memref<16x75xbf16, #tpu.memory_space<vmem>>, vector<16x75xbf16>
    %cst = arith.constant dense<0.000000e+00> : vector<16x1024xf32>
    %3 = tpu.matmul %2, %1, %cst {dimension_numbers = #tpu.dot_dimension_numbers<[1], [0], [0], [1], [0, 0, 1, 1], [], []>} : vector<16x75xbf16>, vector<75x1024xbf16>, vector<16x1024xf32> -> vector<16x1024xf32>
    %c0_4 = arith.constant 0 : index
    %c0_5 = arith.constant 0 : index
    %4 = vector.load %arg3[%c0_4, %c0_5] : memref<16x1xf32, #tpu.memory_space<vmem>>, vector<16x1xf32>
    %5 = vector.broadcast %4 : vector<16x1xf32> to vector<16x1024xf32>
    %6 = arith.addf %3, %5 : vector<16x1024xf32>
    %c0_6 = arith.constant 0 : index
    %c0_7 = arith.constant 0 : index
    %7 = vector.load %arg4[%c0_6, %c0_7] : memref<1024x256xf32, #tpu.memory_space<vmem>>, vector<1024x256xf32>
    %cst_8 = arith.constant dense<0.000000e+00> : vector<16x256xf32>
    %8 = tpu.matmul %6, %7, %cst_8 {dimension_numbers = #tpu.dot_dimension_numbers<[1], [0], [0], [1], [0, 0, 1, 1], [], []>} : vector<16x1024xf32>, vector<1024x256xf32>, vector<16x256xf32> -> vector<16x256xf32>
    %c0_9 = arith.constant 0 : index
    %c0_10 = arith.constant 0 : index
    %9 = vector.load %arg5[%c0_9, %c0_10] : memref<1024x256xf32, #tpu.memory_space<vmem>>, vector<1024x256xf32>
    %cst_11 = arith.constant dense<0.000000e+00> : vector<16x256xf32>
    %10 = tpu.matmul %6, %9, %cst_11 {dimension_numbers = #tpu.dot_dimension_numbers<[1], [0], [0], [1], [0, 0, 1, 1], [], []>} : vector<16x1024xf32>, vector<1024x256xf32>, vector<16x256xf32> -> vector<16x256xf32>
    %c0_12 = arith.constant 0 : index
    %c0_13 = arith.constant 0 : index
    %11 = vector.load %arg6[%c0_12, %c0_13] : memref<1024x256xf32, #tpu.memory_space<vmem>>, vector<1024x256xf32>
    %cst_14 = arith.constant dense<0.000000e+00> : vector<16x256xf32>
    %12 = tpu.matmul %6, %11, %cst_14 {dimension_numbers = #tpu.dot_dimension_numbers<[1], [0], [0], [1], [0, 0, 1, 1], [], []>} : vector<16x1024xf32>, vector<1024x256xf32>, vector<16x256xf32> -> vector<16x256xf32>
    %c0_15 = arith.constant 0 : index
    %c0_16 = arith.constant 0 : index
    %13 = vector.load %arg7[%c0_15, %c0_16] : memref<1024x256xf32, #tpu.memory_space<vmem>>, vector<1024x256xf32>
    %cst_17 = arith.constant dense<0.000000e+00> : vector<16x256xf32>
    %14 = tpu.matmul %6, %13, %cst_17 {dimension_numbers = #tpu.dot_dimension_numbers<[1], [0], [0], [1], [0, 0, 1, 1], [], []>} : vector<16x1024xf32>, vector<1024x256xf32>, vector<16x256xf32> -> vector<16x256xf32>
    %15 = arith.maximumf %8, %10 : vector<16x256xf32>
    %16 = arith.maximumf %12, %14 : vector<16x256xf32>
    %17 = arith.maximumf %15, %16 : vector<16x256xf32>
    %c0_18 = arith.constant 0 : index
    %c0_19 = arith.constant 0 : index
    %c0_20 = arith.constant 0 : index
    %18 = vector.load %arg8[%c0_18, %c0_19, %c0_20] : memref<1x16x256xf32, #tpu.memory_space<vmem>>, vector<1x16x256xf32>
    %19 = vector.shape_cast %18 : vector<1x16x256xf32> to vector<16x256xf32>
    %20 = vector.shape_cast %17 : vector<16x256xf32> to vector<1x16x256xf32>
    tpu.vector_store %arg8[%c0_18, %c0_19, %c0_20], %20 {strides = array<i32>} : memref<1x16x256xf32, #tpu.memory_space<vmem>>, vector<1x16x256xf32>,
    return
  }
  func.func @transform_0(%arg0: i32) -> (i32, i32) {
    %c0_i32 = arith.constant 0 : i32
    %c0_i32_0 = arith.constant 0 : i32
    %c0_i32_1 = arith.constant 0 : i32
    return %c0_i32, %c0_i32_0 : i32, i32
  }
  func.func @transform_1(%arg0: i32) -> (i32, i32, i32) {
    %c0_i32 = arith.constant 0 : i32
    %c0_i32_0 = arith.constant 0 : i32
    %c0_i32_1 = arith.constant 0 : i32
    return %arg0, %c0_i32, %c0_i32_0 : i32, i32, i32
  }
  func.func @transform_2(%arg0: i32) -> (i32, i32) {
    %c0_i32 = arith.constant 0 : i32
    %c0_i32_0 = arith.constant 0 : i32
    %c0_i32_1 = arith.constant 0 : i32
    return %c0_i32, %c0_i32_0 : i32, i32
  }
  func.func @transform_3(%arg0: i32) -> (i32, i32) {
    %c0_i32 = arith.constant 0 : i32
    %c0_i32_0 = arith.constant 0 : i32
    %c0_i32_1 = arith.constant 0 : i32
    return %c0_i32, %c0_i32_0 : i32, i32
  }
  func.func @transform_4(%arg0: i32) -> (i32, i32) {
    %c0_i32 = arith.constant 0 : i32
    %c0_i32_0 = arith.constant 0 : i32
    %c0_i32_1 = arith.constant 0 : i32
    return %c0_i32, %c0_i32_0 : i32, i32
  }
  func.func @transform_5(%arg0: i32) -> (i32, i32) {
    %c0_i32 = arith.constant 0 : i32
    %c0_i32_0 = arith.constant 0 : i32
    %c0_i32_1 = arith.constant 0 : i32
    return %c0_i32, %c0_i32_0 : i32, i32
  }
  func.func @transform_6(%arg0: i32) -> (i32, i32) {
    %c0_i32 = arith.constant 0 : i32
    %c0_i32_0 = arith.constant 0 : i32
    %c0_i32_1 = arith.constant 0 : i32
    return %c0_i32, %c0_i32_0 : i32, i32
  }
  func.func @transform_7(%arg0: i32) -> (i32, i32, i32) {
    %c0_i32 = arith.constant 0 : i32
    %c0_i32_0 = arith.constant 0 : i32
    %c0_i32_1 = arith.constant 0 : i32
    return %arg0, %c0_i32, %c0_i32_0 : i32, i32, i32
  }
}

module attributes {stable_mosaic.version = 11 : i64} {
  func.func @_conv_pool_kernel(%arg0: i32, %arg1: memref<32x400xbf16, #tpu.memory_space<vmem>>, %arg2: memref<1x400x256xbf16, #tpu.memory_space<vmem>>, %arg3: memref<32x1xf32, #tpu.memory_space<vmem>>, %arg4: memref<256x64xf32, #tpu.memory_space<vmem>>, %arg5: memref<256x64xf32, #tpu.memory_space<vmem>>, %arg6: memref<256x64xf32, #tpu.memory_space<vmem>>, %arg7: memref<256x64xf32, #tpu.memory_space<vmem>>, %arg8: memref<1x32x64xf32, #tpu.memory_space<vmem>>) attributes {dimension_semantics = [#tpu.dimension_semantics<parallel>], iteration_bounds = array<i64: 2>, scalar_prefetch = 0 : i64, scratch_operands = 0 : i64, tpu.core_type = #tpu.core_type<tc>, window_params = [{pipeline_mode = #tpu.pipeline_mode<synchronous>, transform_indices = @transform_0, window_bounds = array<i64: 32, 400>}, {transform_indices = @transform_1, window_bounds = array<i64: 1, 400, 256>}, {pipeline_mode = #tpu.pipeline_mode<synchronous>, transform_indices = @transform_2, window_bounds = array<i64: 32, 1>}, {pipeline_mode = #tpu.pipeline_mode<synchronous>, transform_indices = @transform_3, window_bounds = array<i64: 256, 64>}, {pipeline_mode = #tpu.pipeline_mode<synchronous>, transform_indices = @transform_4, window_bounds = array<i64: 256, 64>}, {pipeline_mode = #tpu.pipeline_mode<synchronous>, transform_indices = @transform_5, window_bounds = array<i64: 256, 64>}, {pipeline_mode = #tpu.pipeline_mode<synchronous>, transform_indices = @transform_6, window_bounds = array<i64: 256, 64>}, {transform_indices = @transform_7, window_bounds = array<i64: 1, 32, 64>}]} {
    %c0 = arith.constant 0 : index
    %c0_0 = arith.constant 0 : index
    %c0_1 = arith.constant 0 : index
    %0 = vector.load %arg2[%c0, %c0_0, %c0_1] : memref<1x400x256xbf16, #tpu.memory_space<vmem>>, vector<1x400x256xbf16>
    %1 = vector.shape_cast %0 : vector<1x400x256xbf16> to vector<400x256xbf16>
    %cst = arith.constant 0.000000e+00 : bf16
    %2 = vector.broadcast %cst : bf16 to vector<400x256xbf16>
    %3 = arith.maximumf %1, %2 : vector<400x256xbf16>
    %c0_2 = arith.constant 0 : index
    %c0_3 = arith.constant 0 : index
    %4 = vector.load %arg1[%c0_2, %c0_3] : memref<32x400xbf16, #tpu.memory_space<vmem>>, vector<32x400xbf16>
    %cst_4 = arith.constant dense<0.000000e+00> : vector<32x256xf32>
    %5 = tpu.matmul %4, %3, %cst_4 {dimension_numbers = #tpu.dot_dimension_numbers<[1], [0], [0], [1], [0, 0, 1, 1], [], []>} : vector<32x400xbf16>, vector<400x256xbf16>, vector<32x256xf32> -> vector<32x256xf32>
    %c0_5 = arith.constant 0 : index
    %c0_6 = arith.constant 0 : index
    %6 = vector.load %arg3[%c0_5, %c0_6] : memref<32x1xf32, #tpu.memory_space<vmem>>, vector<32x1xf32>
    %7 = vector.broadcast %6 : vector<32x1xf32> to vector<32x256xf32>
    %8 = arith.addf %5, %7 : vector<32x256xf32>
    %cst_7 = arith.constant 0.000000e+00 : f32
    %9 = vector.broadcast %cst_7 : f32 to vector<32x256xf32>
    %10 = arith.maximumf %8, %9 : vector<32x256xf32>
    %c0_8 = arith.constant 0 : index
    %c0_9 = arith.constant 0 : index
    %11 = vector.load %arg4[%c0_8, %c0_9] : memref<256x64xf32, #tpu.memory_space<vmem>>, vector<256x64xf32>
    %cst_10 = arith.constant dense<0.000000e+00> : vector<32x64xf32>
    %12 = tpu.matmul %10, %11, %cst_10 {dimension_numbers = #tpu.dot_dimension_numbers<[1], [0], [0], [1], [0, 0, 1, 1], [], []>} : vector<32x256xf32>, vector<256x64xf32>, vector<32x64xf32> -> vector<32x64xf32>
    %c0_11 = arith.constant 0 : index
    %c0_12 = arith.constant 0 : index
    %13 = vector.load %arg5[%c0_11, %c0_12] : memref<256x64xf32, #tpu.memory_space<vmem>>, vector<256x64xf32>
    %cst_13 = arith.constant dense<0.000000e+00> : vector<32x64xf32>
    %14 = tpu.matmul %10, %13, %cst_13 {dimension_numbers = #tpu.dot_dimension_numbers<[1], [0], [0], [1], [0, 0, 1, 1], [], []>} : vector<32x256xf32>, vector<256x64xf32>, vector<32x64xf32> -> vector<32x64xf32>
    %c0_14 = arith.constant 0 : index
    %c0_15 = arith.constant 0 : index
    %15 = vector.load %arg6[%c0_14, %c0_15] : memref<256x64xf32, #tpu.memory_space<vmem>>, vector<256x64xf32>
    %cst_16 = arith.constant dense<0.000000e+00> : vector<32x64xf32>
    %16 = tpu.matmul %10, %15, %cst_16 {dimension_numbers = #tpu.dot_dimension_numbers<[1], [0], [0], [1], [0, 0, 1, 1], [], []>} : vector<32x256xf32>, vector<256x64xf32>, vector<32x64xf32> -> vector<32x64xf32>
    %c0_17 = arith.constant 0 : index
    %c0_18 = arith.constant 0 : index
    %17 = vector.load %arg7[%c0_17, %c0_18] : memref<256x64xf32, #tpu.memory_space<vmem>>, vector<256x64xf32>
    %cst_19 = arith.constant dense<0.000000e+00> : vector<32x64xf32>
    %18 = tpu.matmul %10, %17, %cst_19 {dimension_numbers = #tpu.dot_dimension_numbers<[1], [0], [0], [1], [0, 0, 1, 1], [], []>} : vector<32x256xf32>, vector<256x64xf32>, vector<32x64xf32> -> vector<32x64xf32>
    %19 = arith.maximumf %12, %14 : vector<32x64xf32>
    %20 = arith.maximumf %16, %18 : vector<32x64xf32>
    %21 = arith.maximumf %19, %20 : vector<32x64xf32>
    %c0_20 = arith.constant 0 : index
    %c0_21 = arith.constant 0 : index
    %c0_22 = arith.constant 0 : index
    %22 = vector.load %arg8[%c0_20, %c0_21, %c0_22] : memref<1x32x64xf32, #tpu.memory_space<vmem>>, vector<1x32x64xf32>
    %23 = vector.shape_cast %22 : vector<1x32x64xf32> to vector<32x64xf32>
    %24 = vector.shape_cast %21 : vector<32x64xf32> to vector<1x32x64xf32>
    tpu.vector_store %arg8[%c0_20, %c0_21, %c0_22], %24 {strides = array<i32>} : memref<1x32x64xf32, #tpu.memory_space<vmem>>, vector<1x32x64xf32>,
    return
  }
  func.func @transform_0(%arg0: i32) -> (i32, i32) {
    %c0_i32 = arith.constant 0 : i32
    %c0_i32_0 = arith.constant 0 : i32
    %c0_i32_1 = arith.constant 0 : i32
    return %c0_i32, %c0_i32_0 : i32, i32
  }
  func.func @transform_1(%arg0: i32) -> (i32, i32, i32) {
    %c0_i32 = arith.constant 0 : i32
    %c0_i32_0 = arith.constant 0 : i32
    %c0_i32_1 = arith.constant 0 : i32
    return %arg0, %c0_i32, %c0_i32_0 : i32, i32, i32
  }
  func.func @transform_2(%arg0: i32) -> (i32, i32) {
    %c0_i32 = arith.constant 0 : i32
    %c0_i32_0 = arith.constant 0 : i32
    %c0_i32_1 = arith.constant 0 : i32
    return %c0_i32, %c0_i32_0 : i32, i32
  }
  func.func @transform_3(%arg0: i32) -> (i32, i32) {
    %c0_i32 = arith.constant 0 : i32
    %c0_i32_0 = arith.constant 0 : i32
    %c0_i32_1 = arith.constant 0 : i32
    return %c0_i32, %c0_i32_0 : i32, i32
  }
  func.func @transform_4(%arg0: i32) -> (i32, i32) {
    %c0_i32 = arith.constant 0 : i32
    %c0_i32_0 = arith.constant 0 : i32
    %c0_i32_1 = arith.constant 0 : i32
    return %c0_i32, %c0_i32_0 : i32, i32
  }
  func.func @transform_5(%arg0: i32) -> (i32, i32) {
    %c0_i32 = arith.constant 0 : i32
    %c0_i32_0 = arith.constant 0 : i32
    %c0_i32_1 = arith.constant 0 : i32
    return %c0_i32, %c0_i32_0 : i32, i32
  }
  func.func @transform_6(%arg0: i32) -> (i32, i32) {
    %c0_i32 = arith.constant 0 : i32
    %c0_i32_0 = arith.constant 0 : i32
    %c0_i32_1 = arith.constant 0 : i32
    return %c0_i32, %c0_i32_0 : i32, i32
  }
  func.func @transform_7(%arg0: i32) -> (i32, i32, i32) {
    %c0_i32 = arith.constant 0 : i32
    %c0_i32_0 = arith.constant 0 : i32
    %c0_i32_1 = arith.constant 0 : i32
    return %arg0, %c0_i32, %c0_i32_0 : i32, i32, i32
  }
}

module attributes {stable_mosaic.version = 11 : i64} {
  func.func @_conv_residual_kernel(%arg0: i32, %arg1: memref<16x800xbf16, #tpu.memory_space<vmem>>, %arg2: memref<1x800x64xbf16, #tpu.memory_space<vmem>>, %arg3: memref<16x1xf32, #tpu.memory_space<vmem>>, %arg4: memref<1x16x256xf32, #tpu.memory_space<vmem>>, %arg5: memref<256x64xf32, #tpu.memory_space<vmem>>, %arg6: memref<256x64xf32, #tpu.memory_space<vmem>>, %arg7: memref<256x64xf32, #tpu.memory_space<vmem>>, %arg8: memref<256x64xf32, #tpu.memory_space<vmem>>, %arg9: memref<1x16x64xf32, #tpu.memory_space<vmem>>) attributes {dimension_semantics = [#tpu.dimension_semantics<parallel>], iteration_bounds = array<i64: 2>, scalar_prefetch = 0 : i64, scratch_operands = 0 : i64, tpu.core_type = #tpu.core_type<tc>, window_params = [{pipeline_mode = #tpu.pipeline_mode<synchronous>, transform_indices = @transform_0, window_bounds = array<i64: 16, 800>}, {transform_indices = @transform_1, window_bounds = array<i64: 1, 800, 64>}, {pipeline_mode = #tpu.pipeline_mode<synchronous>, transform_indices = @transform_2, window_bounds = array<i64: 16, 1>}, {transform_indices = @transform_3, window_bounds = array<i64: 1, 16, 256>}, {pipeline_mode = #tpu.pipeline_mode<synchronous>, transform_indices = @transform_4, window_bounds = array<i64: 256, 64>}, {pipeline_mode = #tpu.pipeline_mode<synchronous>, transform_indices = @transform_5, window_bounds = array<i64: 256, 64>}, {pipeline_mode = #tpu.pipeline_mode<synchronous>, transform_indices = @transform_6, window_bounds = array<i64: 256, 64>}, {pipeline_mode = #tpu.pipeline_mode<synchronous>, transform_indices = @transform_7, window_bounds = array<i64: 256, 64>}, {transform_indices = @transform_8, window_bounds = array<i64: 1, 16, 64>}]} {
    %c0 = arith.constant 0 : index
    %c0_0 = arith.constant 0 : index
    %0 = vector.load %arg1[%c0, %c0_0] : memref<16x800xbf16, #tpu.memory_space<vmem>>, vector<16x800xbf16>
    %c0_1 = arith.constant 0 : index
    %c0_2 = arith.constant 0 : index
    %c0_3 = arith.constant 0 : index
    %1 = vector.load %arg2[%c0_1, %c0_2, %c0_3] : memref<1x800x64xbf16, #tpu.memory_space<vmem>>, vector<1x800x64xbf16>
    %2 = vector.shape_cast %1 : vector<1x800x64xbf16> to vector<800x64xbf16>
    %cst = arith.constant dense<0.000000e+00> : vector<16x64xf32>
    %3 = tpu.matmul %0, %2, %cst {dimension_numbers = #tpu.dot_dimension_numbers<[1], [0], [0], [1], [0, 0, 1, 1], [], []>} : vector<16x800xbf16>, vector<800x64xbf16>, vector<16x64xf32> -> vector<16x64xf32>
    %c0_4 = arith.constant 0 : index
    %c0_5 = arith.constant 0 : index
    %4 = vector.load %arg3[%c0_4, %c0_5] : memref<16x1xf32, #tpu.memory_space<vmem>>, vector<16x1xf32>
    %5 = vector.broadcast %4 : vector<16x1xf32> to vector<16x64xf32>
    %6 = arith.addf %3, %5 : vector<16x64xf32>
    %c0_6 = arith.constant 0 : index
    %c0_7 = arith.constant 0 : index
    %c0_8 = arith.constant 0 : index
    %7 = vector.load %arg4[%c0_6, %c0_7, %c0_8] : memref<1x16x256xf32, #tpu.memory_space<vmem>>, vector<1x16x256xf32>
    %8 = vector.shape_cast %7 : vector<1x16x256xf32> to vector<16x256xf32>
    %c0_9 = arith.constant 0 : index
    %c0_10 = arith.constant 0 : index
    %9 = vector.load %arg5[%c0_9, %c0_10] : memref<256x64xf32, #tpu.memory_space<vmem>>, vector<256x64xf32>
    %cst_11 = arith.constant dense<0.000000e+00> : vector<16x64xf32>
    %10 = tpu.matmul %8, %9, %cst_11 {dimension_numbers = #tpu.dot_dimension_numbers<[1], [0], [0], [1], [0, 0, 1, 1], [], []>} : vector<16x256xf32>, vector<256x64xf32>, vector<16x64xf32> -> vector<16x64xf32>
    %c0_12 = arith.constant 0 : index
    %c0_13 = arith.constant 0 : index
    %11 = vector.load %arg6[%c0_12, %c0_13] : memref<256x64xf32, #tpu.memory_space<vmem>>, vector<256x64xf32>
    %cst_14 = arith.constant dense<0.000000e+00> : vector<16x64xf32>
    %12 = tpu.matmul %8, %11, %cst_14 {dimension_numbers = #tpu.dot_dimension_numbers<[1], [0], [0], [1], [0, 0, 1, 1], [], []>} : vector<16x256xf32>, vector<256x64xf32>, vector<16x64xf32> -> vector<16x64xf32>
    %c0_15 = arith.constant 0 : index
    %c0_16 = arith.constant 0 : index
    %13 = vector.load %arg7[%c0_15, %c0_16] : memref<256x64xf32, #tpu.memory_space<vmem>>, vector<256x64xf32>
    %cst_17 = arith.constant dense<0.000000e+00> : vector<16x64xf32>
    %14 = tpu.matmul %8, %13, %cst_17 {dimension_numbers = #tpu.dot_dimension_numbers<[1], [0], [0], [1], [0, 0, 1, 1], [], []>} : vector<16x256xf32>, vector<256x64xf32>, vector<16x64xf32> -> vector<16x64xf32>
    %c0_18 = arith.constant 0 : index
    %c0_19 = arith.constant 0 : index
    %15 = vector.load %arg8[%c0_18, %c0_19] : memref<256x64xf32, #tpu.memory_space<vmem>>, vector<256x64xf32>
    %cst_20 = arith.constant dense<0.000000e+00> : vector<16x64xf32>
    %16 = tpu.matmul %8, %15, %cst_20 {dimension_numbers = #tpu.dot_dimension_numbers<[1], [0], [0], [1], [0, 0, 1, 1], [], []>} : vector<16x256xf32>, vector<256x64xf32>, vector<16x64xf32> -> vector<16x64xf32>
    %17 = arith.maximumf %10, %12 : vector<16x64xf32>
    %18 = arith.maximumf %14, %16 : vector<16x64xf32>
    %19 = arith.maximumf %17, %18 : vector<16x64xf32>
    %20 = arith.addf %6, %19 : vector<16x64xf32>
    %cst_21 = arith.constant 0.000000e+00 : f32
    %21 = vector.broadcast %cst_21 : f32 to vector<16x64xf32>
    %22 = arith.maximumf %20, %21 : vector<16x64xf32>
    %c0_22 = arith.constant 0 : index
    %c0_23 = arith.constant 0 : index
    %c0_24 = arith.constant 0 : index
    %23 = vector.load %arg9[%c0_22, %c0_23, %c0_24] : memref<1x16x64xf32, #tpu.memory_space<vmem>>, vector<1x16x64xf32>
    %24 = vector.shape_cast %23 : vector<1x16x64xf32> to vector<16x64xf32>
    %25 = vector.shape_cast %22 : vector<16x64xf32> to vector<1x16x64xf32>
    tpu.vector_store %arg9[%c0_22, %c0_23, %c0_24], %25 {strides = array<i32>} : memref<1x16x64xf32, #tpu.memory_space<vmem>>, vector<1x16x64xf32>,
    return
  }
  func.func @transform_0(%arg0: i32) -> (i32, i32) {
    %c0_i32 = arith.constant 0 : i32
    %c0_i32_0 = arith.constant 0 : i32
    %c0_i32_1 = arith.constant 0 : i32
    return %c0_i32, %c0_i32_0 : i32, i32
  }
  func.func @transform_1(%arg0: i32) -> (i32, i32, i32) {
    %c0_i32 = arith.constant 0 : i32
    %c0_i32_0 = arith.constant 0 : i32
    %c0_i32_1 = arith.constant 0 : i32
    return %arg0, %c0_i32, %c0_i32_0 : i32, i32, i32
  }
  func.func @transform_2(%arg0: i32) -> (i32, i32) {
    %c0_i32 = arith.constant 0 : i32
    %c0_i32_0 = arith.constant 0 : i32
    %c0_i32_1 = arith.constant 0 : i32
    return %c0_i32, %c0_i32_0 : i32, i32
  }
  func.func @transform_3(%arg0: i32) -> (i32, i32, i32) {
    %c0_i32 = arith.constant 0 : i32
    %c0_i32_0 = arith.constant 0 : i32
    %c0_i32_1 = arith.constant 0 : i32
    return %arg0, %c0_i32, %c0_i32_0 : i32, i32, i32
  }
  func.func @transform_4(%arg0: i32) -> (i32, i32) {
    %c0_i32 = arith.constant 0 : i32
    %c0_i32_0 = arith.constant 0 : i32
    %c0_i32_1 = arith.constant 0 : i32
    return %c0_i32, %c0_i32_0 : i32, i32
  }
  func.func @transform_5(%arg0: i32) -> (i32, i32) {
    %c0_i32 = arith.constant 0 : i32
    %c0_i32_0 = arith.constant 0 : i32
    %c0_i32_1 = arith.constant 0 : i32
    return %c0_i32, %c0_i32_0 : i32, i32
  }
  func.func @transform_6(%arg0: i32) -> (i32, i32) {
    %c0_i32 = arith.constant 0 : i32
    %c0_i32_0 = arith.constant 0 : i32
    %c0_i32_1 = arith.constant 0 : i32
    return %c0_i32, %c0_i32_0 : i32, i32
  }
  func.func @transform_7(%arg0: i32) -> (i32, i32) {
    %c0_i32 = arith.constant 0 : i32
    %c0_i32_0 = arith.constant 0 : i32
    %c0_i32_1 = arith.constant 0 : i32
    return %c0_i32, %c0_i32_0 : i32, i32
  }
  func.func @transform_8(%arg0: i32) -> (i32, i32, i32) {
    %c0_i32 = arith.constant 0 : i32
    %c0_i32_0 = arith.constant 0 : i32
    %c0_i32_1 = arith.constant 0 : i32
    return %arg0, %c0_i32, %c0_i32_0 : i32, i32, i32
  }
}

module attributes {stable_mosaic.version = 11 : i64} {
  func.func @_mlp_kernel(%arg0: i32, %arg1: memref<2x1024xbf16, #tpu.memory_space<vmem>>, %arg2: memref<1024x64xbf16, #tpu.memory_space<vmem>>, %arg3: memref<1x64xf32, #tpu.memory_space<vmem>>, %arg4: memref<64x32xbf16, #tpu.memory_space<vmem>>, %arg5: memref<1x32xf32, #tpu.memory_space<vmem>>, %arg6: memref<32x10xbf16, #tpu.memory_space<vmem>>, %arg7: memref<1x10xf32, #tpu.memory_space<vmem>>, %arg8: memref<2x10xf32, #tpu.memory_space<vmem>>) attributes {dimension_semantics = [#tpu.dimension_semantics<arbitrary>], iteration_bounds = array<i64: 1>, scalar_prefetch = 0 : i64, scratch_operands = 0 : i64, tpu.core_type = #tpu.core_type<tc>, window_params = [{pipeline_mode = #tpu.pipeline_mode<synchronous>, transform_indices = @transform_0, window_bounds = array<i64: 2, 1024>}, {pipeline_mode = #tpu.pipeline_mode<synchronous>, transform_indices = @transform_1, window_bounds = array<i64: 1024, 64>}, {pipeline_mode = #tpu.pipeline_mode<synchronous>, transform_indices = @transform_2, window_bounds = array<i64: 1, 64>}, {pipeline_mode = #tpu.pipeline_mode<synchronous>, transform_indices = @transform_3, window_bounds = array<i64: 64, 32>}, {pipeline_mode = #tpu.pipeline_mode<synchronous>, transform_indices = @transform_4, window_bounds = array<i64: 1, 32>}, {pipeline_mode = #tpu.pipeline_mode<synchronous>, transform_indices = @transform_5, window_bounds = array<i64: 32, 10>}, {pipeline_mode = #tpu.pipeline_mode<synchronous>, transform_indices = @transform_6, window_bounds = array<i64: 1, 10>}, {pipeline_mode = #tpu.pipeline_mode<synchronous>, transform_indices = @transform_7, window_bounds = array<i64: 2, 10>}]} {
    %c0 = arith.constant 0 : index
    %c0_0 = arith.constant 0 : index
    %0 = vector.load %arg1[%c0, %c0_0] : memref<2x1024xbf16, #tpu.memory_space<vmem>>, vector<2x1024xbf16>
    %c0_1 = arith.constant 0 : index
    %c0_2 = arith.constant 0 : index
    %1 = vector.load %arg2[%c0_1, %c0_2] : memref<1024x64xbf16, #tpu.memory_space<vmem>>, vector<1024x64xbf16>
    %cst = arith.constant dense<0.000000e+00> : vector<2x64xf32>
    %2 = tpu.matmul %0, %1, %cst {dimension_numbers = #tpu.dot_dimension_numbers<[1], [0], [0], [1], [0, 0, 1, 1], [], []>} : vector<2x1024xbf16>, vector<1024x64xbf16>, vector<2x64xf32> -> vector<2x64xf32>
    %c0_3 = arith.constant 0 : index
    %c0_4 = arith.constant 0 : index
    %3 = vector.load %arg3[%c0_3, %c0_4] : memref<1x64xf32, #tpu.memory_space<vmem>>, vector<1x64xf32>
    %4 = vector.broadcast %3 : vector<1x64xf32> to vector<2x64xf32>
    %5 = arith.addf %2, %4 : vector<2x64xf32>
    %cst_5 = arith.constant 0.000000e+00 : f32
    %6 = vector.broadcast %cst_5 : f32 to vector<2x64xf32>
    %7 = arith.maximumf %5, %6 : vector<2x64xf32>
    %8 = arith.truncf %7 : vector<2x64xf32> to vector<2x64xbf16>
    %c0_6 = arith.constant 0 : index
    %c0_7 = arith.constant 0 : index
    %9 = vector.load %arg4[%c0_6, %c0_7] : memref<64x32xbf16, #tpu.memory_space<vmem>>, vector<64x32xbf16>
    %cst_8 = arith.constant dense<0.000000e+00> : vector<2x32xf32>
    %10 = tpu.matmul %8, %9, %cst_8 {dimension_numbers = #tpu.dot_dimension_numbers<[1], [0], [0], [1], [0, 0, 1, 1], [], []>} : vector<2x64xbf16>, vector<64x32xbf16>, vector<2x32xf32> -> vector<2x32xf32>
    %c0_9 = arith.constant 0 : index
    %c0_10 = arith.constant 0 : index
    %11 = vector.load %arg5[%c0_9, %c0_10] : memref<1x32xf32, #tpu.memory_space<vmem>>, vector<1x32xf32>
    %12 = vector.broadcast %11 : vector<1x32xf32> to vector<2x32xf32>
    %13 = arith.addf %10, %12 : vector<2x32xf32>
    %cst_11 = arith.constant 0.000000e+00 : f32
    %14 = vector.broadcast %cst_11 : f32 to vector<2x32xf32>
    %15 = arith.maximumf %13, %14 : vector<2x32xf32>
    %16 = arith.truncf %15 : vector<2x32xf32> to vector<2x32xbf16>
    %c0_12 = arith.constant 0 : index
    %c0_13 = arith.constant 0 : index
    %17 = vector.load %arg6[%c0_12, %c0_13] : memref<32x10xbf16, #tpu.memory_space<vmem>>, vector<32x10xbf16>
    %cst_14 = arith.constant dense<0.000000e+00> : vector<2x10xf32>
    %18 = tpu.matmul %16, %17, %cst_14 {dimension_numbers = #tpu.dot_dimension_numbers<[1], [0], [0], [1], [0, 0, 1, 1], [], []>} : vector<2x32xbf16>, vector<32x10xbf16>, vector<2x10xf32> -> vector<2x10xf32>
    %c0_15 = arith.constant 0 : index
    %c0_16 = arith.constant 0 : index
    %19 = vector.load %arg7[%c0_15, %c0_16] : memref<1x10xf32, #tpu.memory_space<vmem>>, vector<1x10xf32>
    %20 = vector.broadcast %19 : vector<1x10xf32> to vector<2x10xf32>
    %21 = arith.addf %18, %20 : vector<2x10xf32>
    %c0_17 = arith.constant 0 : index
    %c0_18 = arith.constant 0 : index
    %22 = vector.load %arg8[%c0_17, %c0_18] : memref<2x10xf32, #tpu.memory_space<vmem>>, vector<2x10xf32>
    tpu.vector_store %arg8[%c0_17, %c0_18], %21 {strides = array<i32>} : memref<2x10xf32, #tpu.memory_space<vmem>>, vector<2x10xf32>,
    return
  }
  func.func @transform_0(%arg0: i32) -> (i32, i32) {
    %c0_i32 = arith.constant 0 : i32
    %c0_i32_0 = arith.constant 0 : i32
    %c0_i32_1 = arith.constant 0 : i32
    return %c0_i32, %c0_i32_0 : i32, i32
  }
  func.func @transform_1(%arg0: i32) -> (i32, i32) {
    %c0_i32 = arith.constant 0 : i32
    %c0_i32_0 = arith.constant 0 : i32
    %c0_i32_1 = arith.constant 0 : i32
    return %c0_i32, %c0_i32_0 : i32, i32
  }
  func.func @transform_2(%arg0: i32) -> (i32, i32) {
    %c0_i32 = arith.constant 0 : i32
    %c0_i32_0 = arith.constant 0 : i32
    %c0_i32_1 = arith.constant 0 : i32
    return %c0_i32, %c0_i32_0 : i32, i32
  }
  func.func @transform_3(%arg0: i32) -> (i32, i32) {
    %c0_i32 = arith.constant 0 : i32
    %c0_i32_0 = arith.constant 0 : i32
    %c0_i32_1 = arith.constant 0 : i32
    return %c0_i32, %c0_i32_0 : i32, i32
  }
  func.func @transform_4(%arg0: i32) -> (i32, i32) {
    %c0_i32 = arith.constant 0 : i32
    %c0_i32_0 = arith.constant 0 : i32
    %c0_i32_1 = arith.constant 0 : i32
    return %c0_i32, %c0_i32_0 : i32, i32
  }
  func.func @transform_5(%arg0: i32) -> (i32, i32) {
    %c0_i32 = arith.constant 0 : i32
    %c0_i32_0 = arith.constant 0 : i32
    %c0_i32_1 = arith.constant 0 : i32
    return %c0_i32, %c0_i32_0 : i32, i32
  }
  func.func @transform_6(%arg0: i32) -> (i32, i32) {
    %c0_i32 = arith.constant 0 : i32
    %c0_i32_0 = arith.constant 0 : i32
    %c0_i32_1 = arith.constant 0 : i32
    return %c0_i32, %c0_i32_0 : i32, i32
  }
  func.func @transform_7(%arg0: i32) -> (i32, i32) {
    %c0_i32 = arith.constant 0 : i32
    %c0_i32_0 = arith.constant 0 : i32
    %c0_i32_1 = arith.constant 0 : i32
    return %c0_i32, %c0_i32_0 : i32, i32
  }
}

</mosaic_0001>

<llo_original>
// kernel: residual_cnn_forward.4
$region0: #{residual_cnn_forward.4}
  #allocation0 [shape = 'u32[]', space=smem, size = 0x4, offset = 0x4, fixed_abs, tag = 'smem constant byte address 0x4 - core index']
  #allocation1 [shape = 'u32[144,128]{1,0:T(1,128)}', space=vmem, size = 0x12000, scoped, tag = 'internal scratch']
  %s0 = inlined_call_operand.vmem [shape: bf16[16,75], index: 0, kind: input, shape index: {}]
  %s1 = inlined_call_operand.vmem [shape: bf16[2,75,1024], index: 1, kind: input, shape index: {}]
  %s2 = inlined_call_operand.vmem [shape: f32[16,1], index: 2, kind: input, shape index: {}]
  %s3 = inlined_call_operand.vmem [shape: f32[1024,256], index: 3, kind: input, shape index: {}]
  %s4 = inlined_call_operand.vmem [shape: f32[1024,256], index: 4, kind: input, shape index: {}]
  %s5 = inlined_call_operand.vmem [shape: f32[1024,256], index: 5, kind: input, shape index: {}]
  %s6 = inlined_call_operand.vmem [shape: f32[1024,256], index: 6, kind: input, shape index: {}]
  %s7 = inlined_call_operand.vmem [shape: f32[2,16,256], index: 7, kind: output, shape index: {}]
  %s8 = sld [smem:[#allocation0]]
  $region61: #{residual_cnn_forward.4} parent=0
    _
  %s10 = ssub.s32 1, %s8
  %s11 = scalar_select 0, %s10, %s8
  loop: start=0, step=1, limit=4
  $region2: #{residual_cnn_forward.4} parent=0 // loop_pre_header
    _
  $region3: #{residual_cnn_forward.4} parent=0 // loop_header
    %s13 = sphi 0, %s17
    %p14 = scmp.ge.s32.totalorder %s13, 4
    %s21 = sphi 0, %s21
    %s23 = sphi 0, %s21
    %s24 = sphi 0, %s23
    %s38 = sphi 0, %s24
    %s44 = sphi 0, %s46
    %s47 = sphi 0, %s44
    %s48 = sphi 0, %s47
    %s64 = sphi 0, %s48
    %s68 = sphi 0, %s68
    %s70 = sphi 0, %s68
    %s71 = sphi 0, %s70
    %s85 = sphi 0, %s71
    %s89 = sphi 0, %s89
    %s91 = sphi 0, %s89
    %s92 = sphi 0, %s91
    %s106 = sphi 0, %s92
    %s110 = sphi 0, %s110
    %s112 = sphi 0, %s110
    %s113 = sphi 0, %s112
    %s127 = sphi 0, %s113
    %s131 = sphi 0, %s131
    %s133 = sphi 0, %s131
    %s134 = sphi 0, %s133
    %s148 = sphi 0, %s134
    %s152 = sphi 0, %s152
    %s154 = sphi 0, %s152
    %s155 = sphi 0, %s154
    %s169 = sphi 0, %s155
    %s175 = sphi 0, %s177
    %s178 = sphi 0, %s175
    %s179 = sphi 0, %s178
    %s195 = sphi 0, %s179
  $region4: #{residual_cnn_forward.4} parent=0 // loop_header_branch
    %16 = sbr.rel (%p14) target = $region8
  $region5: #{residual_cnn_forward.4} parent=0 // loop_body
    %s18 = ssub.s32 %s13, 1
    %s19 = ssub.s32 %s13, 2
    %s20 = sadd.s32 %s13, 1
    %s22 = sadd.s32 %s21, 1
    %p25 = scmp.eq.s32.totalorder %s13, 1
    %p26 = scmp.ne.s32.totalorder %s21, %s23
    %p27 = scmp.eq.s32.totalorder %s13, 0
    %p28 = por %p26, %p27
    %p29 = scmp.ne.s32.totalorder %s21, %s23
    %p30 = scmp.eq.s32.totalorder %s18, 1
    %p31 = por %p29, %p30
    %p32 = scmp.ne.s32.totalorder %s23, %s24
    %p33 = scmp.eq.s32.totalorder %s18, 0
    %p34 = por %p32, %p33
    %p35 = scmp.ne.s32.totalorder %s23, %s24
    %p36 = scmp.eq.s32.totalorder %s19, 1
    %p37 = por %p35, %p36
    %p39 = scmp.ne.s32.totalorder %s24, %s38
    %p40 = scmp.eq.s32.totalorder %s19, 0
    %p41 = por %p39, %p40
    %s42 = ssub.s32 %s13, %s20
    %p43 = scmp.eq.s32.totalorder %s42, 0
    %s45 = sadd.s32 %s44, 1
    %s46 = scalar_select %p43, %s44, %s45
    %p49 = pneg %p43
    %p50 = scmp.eq.s32.totalorder %s13, 1
    %p51 = por %p49, %p50
    %p52 = scmp.ne.s32.totalorder %s44, %s47
    %p53 = scmp.eq.s32.totalorder %s13, 0
    %p54 = por %p52, %p53
    %p55 = scmp.ne.s32.totalorder %s44, %s47
    %p56 = scmp.eq.s32.totalorder %s18, 1
    %p57 = por %p55, %p56
    %p58 = scmp.ne.s32.totalorder %s47, %s48
    %p59 = scmp.eq.s32.totalorder %s18, 0
    %p60 = por %p58, %p59
    %p61 = scmp.ne.s32.totalorder %s47, %s48
    %p62 = scmp.eq.s32.totalorder %s19, 1
    %p63 = por %p61, %p62
    %p65 = scmp.ne.s32.totalorder %s48, %s64
    %p66 = scmp.eq.s32.totalorder %s19, 0
    %p67 = por %p65, %p66
    %s69 = sadd.s32 %s68, 1
    %p72 = scmp.eq.s32.totalorder %s13, 1
    %p73 = scmp.ne.s32.totalorder %s68, %s70
    %p74 = scmp.eq.s32.totalorder %s13, 0
    %p75 = por %p73, %p74
    %p76 = scmp.ne.s32.totalorder %s68, %s70
    %p77 = scmp.eq.s32.totalorder %s18, 1
    %p78 = por %p76, %p77
    %p79 = scmp.ne.s32.totalorder %s70, %s71
    %p80 = scmp.eq.s32.totalorder %s18, 0
    %p81 = por %p79, %p80
    %p82 = scmp.ne.s32.totalorder %s70, %s71
    %p83 = scmp.eq.s32.totalorder %s19, 1
    %p84 = por %p82, %p83
    %p86 = scmp.ne.s32.totalorder %s71, %s85
    %p87 = scmp.eq.s32.totalorder %s19, 0
    %p88 = por %p86, %p87
    %s90 = sadd.s32 %s89, 1
    %p93 = scmp.eq.s32.totalorder %s13, 1
    %p94 = scmp.ne.s32.totalorder %s89, %s91
    %p95 = scmp.eq.s32.totalorder %s13, 0
    %p96 = por %p94, %p95
    %p97 = scmp.ne.s32.totalorder %s89, %s91
    %p98 = scmp.eq.s32.totalorder %s18, 1
    %p99 = por %p97, %p98
    %p100 = scmp.ne.s32.totalorder %s91, %s92
    %p101 = scmp.eq.s32.totalorder %s18, 0
    %p102 = por %p100, %p101
    %p103 = scmp.ne.s32.totalorder %s91, %s92
    %p104 = scmp.eq.s32.totalorder %s19, 1
    %p105 = por %p103, %p104
    %p107 = scmp.ne.s32.totalorder %s92, %s106
    %p108 = scmp.eq.s32.totalorder %s19, 0
    %p109 = por %p107, %p108
    %s111 = sadd.s32 %s110, 1
    %p114 = scmp.eq.s32.totalorder %s13, 1
    %p115 = scmp.ne.s32.totalorder %s110, %s112
    %p116 = scmp.eq.s32.totalorder %s13, 0
    %p117 = por %p115, %p116
    %p118 = scmp.ne.s32.totalorder %s110, %s112
    %p119 = scmp.eq.s32.totalorder %s18, 1
    %p120 = por %p118, %p119
    %p121 = scmp.ne.s32.totalorder %s112, %s113
    %p122 = scmp.eq.s32.totalorder %s18, 0
    %p123 = por %p121, %p122
    %p124 = scmp.ne.s32.totalorder %s112, %s113
    %p125 = scmp.eq.s32.totalorder %s19, 1
    %p126 = por %p124, %p125
    %p128 = scmp.ne.s32.totalorder %s113, %s127
    %p129 = scmp.eq.s32.totalorder %s19, 0
    %p130 = por %p128, %p129
    %s132 = sadd.s32 %s131, 1
    %p135 = scmp.eq.s32.totalorder %s13, 1
    %p136 = scmp.ne.s32.totalorder %s131, %s133
    %p137 = scmp.eq.s32.totalorder %s13, 0
    %p138 = por %p136, %p137
    %p139 = scmp.ne.s32.totalorder %s131, %s133
    %p140 = scmp.eq.s32.totalorder %s18, 1
    %p141 = por %p139, %p140
    %p142 = scmp.ne.s32.totalorder %s133, %s134
    %p143 = scmp.eq.s32.totalorder %s18, 0
    %p144 = por %p142, %p143
    %p145 = scmp.ne.s32.totalorder %s133, %s134
    %p146 = scmp.eq.s32.totalorder %s19, 1
    %p147 = por %p145, %p146
    %p149 = scmp.ne.s32.totalorder %s134, %s148
    %p150 = scmp.eq.s32.totalorder %s19, 0
    %p151 = por %p149, %p150
    %s153 = sadd.s32 %s152, 1
    %p156 = scmp.eq.s32.totalorder %s13, 1
    %p157 = scmp.ne.s32.totalorder %s152, %s154
    %p158 = scmp.eq.s32.totalorder %s13, 0
    %p159 = por %p157, %p158
    %p160 = scmp.ne.s32.totalorder %s152, %s154
    %p161 = scmp.eq.s32.totalorder %s18, 1
    %p162 = por %p160, %p161
    %p163 = scmp.ne.s32.totalorder %s154, %s155
    %p164 = scmp.eq.s32.totalorder %s18, 0
    %p165 = por %p163, %p164
    %p166 = scmp.ne.s32.totalorder %s154, %s155
    %p167 = scmp.eq.s32.totalorder %s19, 1
    %p168 = por %p166, %p167
    %p170 = scmp.ne.s32.totalorder %s155, %s169
    %p171 = scmp.eq.s32.totalorder %s19, 0
    %p172 = por %p170, %p171
    %s173 = ssub.s32 %s13, %s20
    %p174 = scmp.eq.s32.totalorder %s173, 0
    %s176 = sadd.s32 %s175, 1
    %s177 = scalar_select %p174, %s175, %s176
    %p180 = pneg %p174
    %p181 = scmp.eq.s32.totalorder %s13, 1
    %p182 = por %p180, %p181
    %p183 = scmp.ne.s32.totalorder %s175, %s178
    %p184 = scmp.eq.s32.totalorder %s13, 0
    %p185 = por %p183, %p184
    %p186 = scmp.ne.s32.totalorder %s175, %s178
    %p187 = scmp.eq.s32.totalorder %s18, 1
    %p188 = por %p186, %p187
    %p189 = scmp.ne.s32.totalorder %s178, %s179
    %p190 = scmp.eq.s32.totalorder %s18, 0
    %p191 = por %p189, %p190
    %p192 = scmp.ne.s32.totalorder %s178, %s179
    %p193 = scmp.eq.s32.totalorder %s19, 1
    %p194 = por %p192, %p193
    %p196 = scmp.ne.s32.totalorder %s179, %s195
    %p197 = scmp.eq.s32.totalorder %s19, 0
    %p198 = por %p196, %p197
    %p199 = scmp.le.s32.totalorder 1, %s13
    %p200 = scmp.lt.s32.totalorder %s13, 3
    %p201 = pnand %p199, %p200
    %p202 = pneg %p201
    // Predicated region
    $region9: #{residual_cnn_forward.4} parent=5 // pred_check
      _
    $region10: #{residual_cnn_forward.4} parent=5 // pred_check_branch
      %204 = sbr.rel (%p201) target = $region12
    $region11: #{residual_cnn_forward.4} parent=5 // pred_region
      %s205 = ssub.s32 %s13, 1
      // Predicated region
      $region13: #{residual_cnn_forward.4} parent=11 // pred_check
        %p206 = pneg %p34
      $region14: #{residual_cnn_forward.4} parent=11 // pred_check_branch
        %208 = sbr.rel (%p206) target = $region16
      $region15: #{residual_cnn_forward.4} parent=11 // pred_region
        _
      $region16: #{residual_cnn_forward.4} parent=11 // pred_fallthru
        _
      // Predicated region
      $region17: #{residual_cnn_forward.4} parent=11 // pred_check
        %p209 = pneg %p81
      $region18: #{residual_cnn_forward.4} parent=11 // pred_check_branch
        %211 = sbr.rel (%p209) target = $region20
      $region19: #{residual_cnn_forward.4} parent=11 // pred_region
        _
      $region20: #{residual_cnn_forward.4} parent=11 // pred_fallthru
        _
      // Predicated region
      $region21: #{residual_cnn_forward.4} parent=11 // pred_check
        %p212 = pneg %p102
      $region22: #{residual_cnn_forward.4} parent=11 // pred_check_branch
        %214 = sbr.rel (%p212) target = $region24
      $region23: #{residual_cnn_forward.4} parent=11 // pred_region
        _
      $region24: #{residual_cnn_forward.4} parent=11 // pred_fallthru
        _
      // Predicated region
      $region25: #{residual_cnn_forward.4} parent=11 // pred_check
        %p215 = pneg %p123
      $region26: #{residual_cnn_forward.4} parent=11 // pred_check_branch
        %217 = sbr.rel (%p215) target = $region28
      $region27: #{residual_cnn_forward.4} parent=11 // pred_region
        _
      $region28: #{residual_cnn_forward.4} parent=11 // pred_fallthru
        _
      // Predicated region
      $region29: #{residual_cnn_forward.4} parent=11 // pred_check
        %p218 = pneg %p144
      $region30: #{residual_cnn_forward.4} parent=11 // pred_check_branch
        %220 = sbr.rel (%p218) target = $region32
      $region31: #{residual_cnn_forward.4} parent=11 // pred_region
        _
      $region32: #{residual_cnn_forward.4} parent=11 // pred_fallthru
        _
      // Predicated region
      $region33: #{residual_cnn_forward.4} parent=11 // pred_check
        %p221 = pneg %p165
      $region34: #{residual_cnn_forward.4} parent=11 // pred_check_branch
        %223 = sbr.rel (%p221) target = $region36
      $region35: #{residual_cnn_forward.4} parent=11 // pred_region
        _
      $region36: #{residual_cnn_forward.4} parent=11 // pred_fallthru
        _
    $region12: #{residual_cnn_forward.4} parent=5 // pred_fallthru
      _
    %p224 = scmp.lt.s32.totalorder %s13, 2
    // Predicated region
    $region37: #{residual_cnn_forward.4} parent=5 // pred_check
      %p225 = pneg %p224
    $region38: #{residual_cnn_forward.4} parent=5 // pred_check_branch
      %227 = sbr.rel (%p225) target = $region40
    $region39: #{residual_cnn_forward.4} parent=5 // pred_region
      // Predicated region
      $region41: #{residual_cnn_forward.4} parent=39 // pred_check
        %p228 = pneg %p54
      $region42: #{residual_cnn_forward.4} parent=39 // pred_check_branch
        %230 = sbr.rel (%p228) target = $region44
      $region43: #{residual_cnn_forward.4} parent=39 // pred_region
        %p231 = scmp.lt.s32.totalorder %s13, 1
        %s232 = scalar_select %p231, %s13, 1
        %s233 = smul.addr %s232, 80
        %s234 = smul.addr %s233, 4
        %s235 = scalar_lea.vmem %s1, %s234
      $region44: #{residual_cnn_forward.4} parent=39 // pred_fallthru
        _
    $region40: #{residual_cnn_forward.4} parent=5 // pred_fallthru
      _
    %p236 = scmp.le.s32.totalorder 1, %s13
    %p237 = scmp.lt.s32.totalorder %s13, 3
    %p238 = pnand %p236, %p237
    %p239 = pneg %p238
    // Predicated region
    $region45: #{residual_cnn_forward.4} parent=5 // pred_check
      _
    $region46: #{residual_cnn_forward.4} parent=5 // pred_check_branch
      %241 = sbr.rel (%p238) target = $region48
    $region47: #{residual_cnn_forward.4} parent=5 // pred_region
      %s242 = ssub.s32 %s13, 1
      %p243 = pneg %p34
      %p244 = pneg %p31
      %p245 = scmp.lt.s32.totalorder %s18, 1
      %s246 = scalar_select %p245, %s18, 1
      %s247 = smul.addr %s246, 80
      %s248 = smul.addr %s247, 4
      %s249 = scalar_lea.vmem %s1, %s248
      %p250 = pneg %p60
      %p251 = pneg %p57
      %p252 = pneg %p81
      %p253 = pneg %p78
      %p254 = pneg %p102
      %p255 = pneg %p99
      %p256 = pneg %p123
      %p257 = pneg %p120
      %p258 = pneg %p144
      %p259 = pneg %p141
      %p260 = pneg %p165
      %p261 = pneg %p162
      %p262 = pneg %p191
      %p263 = pneg %p188
      %p264 = scmp.lt.s32.totalorder %s18, 1
      %s265 = scalar_select %p264, %s18, 1
      %s266 = smul.addr %s265, 4
      %s267 = smul.addr %s266, 8
      %s268 = scalar_lea.vmem %s7, %s267
      %p269 = scmp.lt.s32.totalorder %s18, 1
      %s270 = scalar_select %p269, %s18, 1
      %s271 = smul.addr %s270, 80
      %s272 = smul.addr %s271, 4
      %s273 = scalar_lea.vmem %s1, %s272
      %p274 = scmp.lt.s32.totalorder %s18, 1
      %s275 = scalar_select %p274, %s18, 1
      %s276 = smul.addr %s275, 4
      %s277 = smul.addr %s276, 8
      %s278 = scalar_lea.vmem %s7, %s277
      %v280 = vld [vmem:[%s273] sm:$0xff]
      %v281 = vld [vmem:[%s273 + $0x8] sm:$0xff]
      %v282 = vld [vmem:[%s273 + $0x10] sm:$0xff]
      %v283 = vld [vmem:[%s273 + $0x18] sm:$0xff]
      %v284 = vld [vmem:[%s273 + $0x20] sm:$0xff]
      %v285 = vld [vmem:[%s273 + $0x28] sm:$0xff]
      %v286 = vld [vmem:[%s273 + $0x30] sm:$0xff]
      %v287 = vld [vmem:[%s273 + $0x38] sm:$0xff]
      %v288 = vld [vmem:[%s273 + $0x40] sm:$0xff]
      %v289 = vld [vmem:[%s273 + $0x48] sm:$0xff]
      %v290 = vld [vmem:[%s273 + $0x50] sm:$0xff]
      %v291 = vld [vmem:[%s273 + $0x58] sm:$0xff]
      %v292 = vld [vmem:[%s273 + $0x60] sm:$0xff]
      %v293 = vld [vmem:[%s273 + $0x68] sm:$0xff]
      %v294 = vld [vmem:[%s273 + $0x70] sm:$0xff]
      %v295 = vld [vmem:[%s273 + $0x78] sm:$0xff]
      %v296 = vld [vmem:[%s273 + $0x80] sm:$0xff]
      %v297 = vld [vmem:[%s273 + $0x88] sm:$0xff]
      %v298 = vld [vmem:[%s273 + $0x90] sm:$0xff]
      %v299 = vld [vmem:[%s273 + $0x98] sm:$0xff]
      %v300 = vld [vmem:[%s273 + $0xa0] sm:$0xff]
      %v301 = vld [vmem:[%s273 + $0xa8] sm:$0xff]
      %v302 = vld [vmem:[%s273 + $0xb0] sm:$0xff]
      %v303 = vld [vmem:[%s273 + $0xb8] sm:$0xff]
      %v304 = vld [vmem:[%s273 + $0xc0] sm:$0xff]
      %v305 = vld [vmem:[%s273 + $0xc8] sm:$0xff]
      %v306 = vld [vmem:[%s273 + $0xd0] sm:$0xff]
      %v307 = vld [vmem:[%s273 + $0xd8] sm:$0xff]
      %v308 = vld [vmem:[%s273 + $0xe0] sm:$0xff]
      %v309 = vld [vmem:[%s273 + $0xe8] sm:$0xff]
      %v310 = vld [vmem:[%s273 + $0xf0] sm:$0xff]
      %v311 = vld [vmem:[%s273 + $0xf8] sm:$0xff]
      %v312 = vld [vmem:[%s273 + $0x100] sm:$0xff]
      %v313 = vld [vmem:[%s273 + $0x108] sm:$0xff]
      %v314 = vld [vmem:[%s273 + $0x110] sm:$0xff]
      %v315 = vld [vmem:[%s273 + $0x118] sm:$0xff]
      %v316 = vld [vmem:[%s273 + $0x120] sm:$0x33]
      %v317 = vld [vmem:[%s273 + $0x128] sm:$0x33]
      %v318 = vld [vmem:[%s273 + $0x130] sm:$0x33]
      %v319 = vld [vmem:[%s273 + $0x138] sm:$0x33]
      %v320 = vld [vmem:[%s0] sm:$0xf]
      %v321 = vld [vmem:[%s0 + $0x4] sm:$0xf]
      %v322 = vld [vmem:[%s2] sm:$0xff]
      %v323 = vld [vmem:[%s2 + $0x8] sm:$0xff]
      %325 = vset.pattern.permute.xlu0 0
      %326 = vperm.xlu0 %325, %v322
      %v327 = vpop.permute.xlu0 %326
      %330 = vset.pattern.permute.xlu0 0
      %331 = vperm.xlu0 %330, %v323
      %v332 = vpop.permute.xlu0 %331
      %v336 = vunpack.c.l.b16 %v320
      %v337 = vunpack.c.l.b16 %v321
      %v338 = vpack.c.b16 %v337, %v336
      %v379 = vunpack.c.l.b16 %v280
      %v380 = vunpack.c.h.b16 %v280
      %v381 = vunpack.c.l.b16 %v281
      %v382 = vunpack.c.h.b16 %v281
      %v383 = vunpack.c.l.b16 %v282
      %v384 = vunpack.c.h.b16 %v282
      %v385 = vunpack.c.l.b16 %v283
      %v386 = vunpack.c.h.b16 %v283
      %v387 = vunpack.c.l.b16 %v284
      %v388 = vunpack.c.h.b16 %v284
      %v389 = vunpack.c.l.b16 %v285
      %v390 = vunpack.c.h.b16 %v285
      %v391 = vunpack.c.l.b16 %v286
      %v392 = vunpack.c.h.b16 %v286
      %v393 = vunpack.c.l.b16 %v287
      %v394 = vunpack.c.h.b16 %v287
      %v395 = vunpack.c.l.b16 %v288
      %v396 = vunpack.c.h.b16 %v288
      %v397 = vunpack.c.l.b16 %v289
      %v398 = vunpack.c.h.b16 %v289
      %v399 = vunpack.c.l.b16 %v290
      %v400 = vunpack.c.h.b16 %v290
      %v401 = vunpack.c.l.b16 %v291
      %v402 = vunpack.c.h.b16 %v291
      %v403 = vunpack.c.l.b16 %v292
      %v404 = vunpack.c.h.b16 %v292
      %v405 = vunpack.c.l.b16 %v293
      %v406 = vunpack.c.h.b16 %v293
      %v407 = vunpack.c.l.b16 %v294
      %v408 = vunpack.c.h.b16 %v294
      %v409 = vunpack.c.l.b16 %v295
      %v410 = vunpack.c.h.b16 %v295
      %v411 = vunpack.c.l.b16 %v296
      %v412 = vunpack.c.h.b16 %v296
      %v413 = vunpack.c.l.b16 %v297
      %v414 = vunpack.c.h.b16 %v297
      %v415 = vunpack.c.l.b16 %v298
      %v416 = vunpack.c.h.b16 %v298
      %v417 = vunpack.c.l.b16 %v299
      %v418 = vunpack.c.h.b16 %v299
      %v419 = vunpack.c.l.b16 %v300
      %v420 = vunpack.c.h.b16 %v300
      %v421 = vunpack.c.l.b16 %v301
      %v422 = vunpack.c.h.b16 %v301
      %v423 = vunpack.c.l.b16 %v302
      %v424 = vunpack.c.h.b16 %v302
      %v425 = vunpack.c.l.b16 %v303
      %v426 = vunpack.c.h.b16 %v303
      %v427 = vunpack.c.l.b16 %v304
      %v428 = vunpack.c.h.b16 %v304
      %v429 = vunpack.c.l.b16 %v305
      %v430 = vunpack.c.h.b16 %v305
      %v431 = vunpack.c.l.b16 %v306
      %v432 = vunpack.c.h.b16 %v306
      %v433 = vunpack.c.l.b16 %v307
      %v434 = vunpack.c.h.b16 %v307
      %v435 = vunpack.c.l.b16 %v308
      %v436 = vunpack.c.h.b16 %v308
      %v437 = vunpack.c.l.b16 %v309
      %v438 = vunpack.c.h.b16 %v309
      %v439 = vunpack.c.l.b16 %v310
      %v440 = vunpack.c.h.b16 %v310
      %v441 = vunpack.c.l.b16 %v311
      %v442 = vunpack.c.h.b16 %v311
      %v443 = vunpack.c.l.b16 %v312
      %v444 = vunpack.c.h.b16 %v312
      %v445 = vunpack.c.l.b16 %v313
      %v446 = vunpack.c.h.b16 %v313
      %v447 = vunpack.c.l.b16 %v314
      %v448 = vunpack.c.h.b16 %v314
      %v449 = vunpack.c.l.b16 %v315
      %v450 = vunpack.c.h.b16 %v315
      %v451 = vunpack.c.l.b16 %v316
      %v452 = vunpack.c.h.b16 %v316
      %v453 = vunpack.c.l.b16 %v317
      %v454 = vunpack.c.h.b16 %v317
      %v455 = vunpack.c.l.b16 %v318
      %v456 = vunpack.c.h.b16 %v318
      %v457 = vunpack.c.l.b16 %v319
      %v458 = vunpack.c.h.b16 %v319
      %v459 = vpack.c.b16 %v387, %v379
      %v460 = vpack.c.b16 %v388, %v380
      %v461 = vpack.c.b16 %v389, %v381
      %v462 = vpack.c.b16 %v390, %v382
      %v463 = vpack.c.b16 %v391, %v383
      %v464 = vpack.c.b16 %v392, %v384
      %v465 = vpack.c.b16 %v393, %v385
      %v466 = vpack.c.b16 %v394, %v386
      %v467 = vpack.c.b16 %v403, %v395
      %v468 = vpack.c.b16 %v404, %v396
      %v469 = vpack.c.b16 %v405, %v397
      %v470 = vpack.c.b16 %v406, %v398
      %v471 = vpack.c.b16 %v407, %v399
      %v472 = vpack.c.b16 %v408, %v400
      %v473 = vpack.c.b16 %v409, %v401
      %v474 = vpack.c.b16 %v410, %v402
      %v475 = vpack.c.b16 %v419, %v411
      %v476 = vpack.c.b16 %v420, %v412
      %v477 = vpack.c.b16 %v421, %v413
      %v478 = vpack.c.b16 %v422, %v414
      %v479 = vpack.c.b16 %v423, %v415
      %v480 = vpack.c.b16 %v424, %v416
      %v481 = vpack.c.b16 %v425, %v417
      %v482 = vpack.c.b16 %v426, %v418
      %v483 = vpack.c.b16 %v435, %v427
      %v484 = vpack.c.b16 %v436, %v428
      %v485 = vpack.c.b16 %v437, %v429
      %v486 = vpack.c.b16 %v438, %v430
      %v487 = vpack.c.b16 %v439, %v431
      %v488 = vpack.c.b16 %v440, %v432
      %v489 = vpack.c.b16 %v441, %v433
      %v490 = vpack.c.b16 %v442, %v434
      %v491 = vpack.c.b16 %v451, %v443
      %v492 = vpack.c.b16 %v452, %v444
      %v493 = vpack.c.b16 %v453, %v445
      %v494 = vpack.c.b16 %v454, %v446
      %v495 = vpack.c.b16 %v455, %v447
      %v496 = vpack.c.b16 %v456, %v448
      %v497 = vpack.c.b16 %v457, %v449
      %v498 = vpack.c.b16 %v458, %v450
      %vm531 = vcmask 613376
      %v533 = vsel %vm531, %v338, 0
      %vm535 = vcmask 1044480
      %vm536 = vcmask 1045504
      %v537 = vsel %vm535, 4294967295, 65535
      %v538 = vsel %vm536, %v537, 0
      %v540 = vand.u32 %v491, %v538
      %v543 = vand.u32 %v492, %v538
      %v546 = vand.u32 %v493, %v538
      %v549 = vand.u32 %v494, %v538
      %v552 = vand.u32 %v495, %v538
      %v555 = vand.u32 %v496, %v538
      %v558 = vand.u32 %v497, %v538
      %v561 = vand.u32 %v498, %v538
      %563 = vmatprep.subr.bf16.mxu0 %v460
      %564 = vmatpush1.bf16.msra.mxu0 %v459
      %565 = vmatprep.subr.bf16.mxu0 %v468
      %566 = vmatpush1.bf16.msra.mxu0 %v467
      %567 = vmatprep.subr.bf16.mxu0 %v476
      %568 = vmatpush1.bf16.msra.mxu0 %v475
      %569 = vmatprep.subr.bf16.mxu0 %v484
      %570 = vmatpush1.bf16.msra.mxu0 %v483
      %571 = vmatprep.subr.bf16.mxu0 %v543
      %572 = vmatpush1.bf16.msra.mxu0 %v540
      %573 = vmatprep.subr.bf16.mxu0 0
      %574 = vmatpush1.bf16.msra.mxu0 0
      %575 = vmatprep.subr.bf16.mxu0 0
      %576 = vmatpush1.bf16.msra.mxu0 0
      %577 = vmatprep.subr.bf16.mxu0 0
      %578 = vmatpush1.bf16.msra.mxu0 0
      %579 = vmatprep.subr.bf16.mxu0 0
      %580 = vmatpush1.bf16.msra.mxu0 0
      %581 = vmatprep.subr.bf16.mxu0 0
      %582 = vmatpush1.bf16.msra.mxu0 0
      %583 = vmatprep.subr.bf16.mxu0 0
      %584 = vmatpush1.bf16.msra.mxu0 0
      %585 = vmatprep.subr.bf16.mxu0 0
      %586 = vmatpush1.bf16.msra.mxu0 0
      %587 = vmatprep.subr.bf16.mxu0 0
      %588 = vmatpush1.bf16.msra.mxu0 0
      %589 = vmatprep.subr.bf16.mxu0 0
      %590 = vmatpush1.bf16.msra.mxu0 0
      %591 = vmatprep.subr.bf16.mxu0 0
      %592 = vmatpush1.bf16.msra.mxu0 0
      %593 = vmatprep.subr.bf16.mxu0 0
      %594 = vmatpush1.bf16.msra.mxu0 0
      %595 = vmatprep.mubr.bf16.mxu0 0
      %596 = vmatmul.mubr.bf16.gmra.mrb[0].mxu0 %v533
      %v597 = vpop.f32.mrb[0].mxu0
      %v598 = vadd.f32 %v327, %v597
      %v599 = vpop.f32.mrb[0].mxu0
      %v600 = vadd.f32 %v327, %v599
      %v601 = vpop.f32.mrb[0].mxu0
      %v602 = vadd.f32 %v332, %v601
      %v603 = vpop.f32.mrb[0].mxu0
      %v604 = vadd.f32 %v332, %v603
      %605 = vdwg.mxu0
      %606 = vmatprep.subr.bf16.mxu0 %v462
      %607 = vmatpush1.bf16.msra.mxu0 %v461
      %608 = vmatprep.subr.bf16.mxu0 %v470
      %609 = vmatpush1.bf16.msra.mxu0 %v469
      %610 = vmatprep.subr.bf16.mxu0 %v478
      %611 = vmatpush1.bf16.msra.mxu0 %v477
      %612 = vmatprep.subr.bf16.mxu0 %v486
      %613 = vmatpush1.bf16.msra.mxu0 %v485
      %614 = vmatprep.subr.bf16.mxu0 %v549
      %615 = vmatpush1.bf16.msra.mxu0 %v546
      %616 = vmatprep.subr.bf16.mxu0 0
      %617 = vmatpush1.bf16.msra.mxu0 0
      %618 = vmatprep.subr.bf16.mxu0 0
      %619 = vmatpush1.bf16.msra.mxu0 0
      %620 = vmatprep.subr.bf16.mxu0 0
      %621 = vmatpush1.bf16.msra.mxu0 0
      %622 = vmatprep.subr.bf16.mxu0 0
      %623 = vmatpush1.bf16.msra.mxu0 0
      %624 = vmatprep.subr.bf16.mxu0 0
      %625 = vmatpush1.bf16.msra.mxu0 0
      %626 = vmatprep.subr.bf16.mxu0 0
      %627 = vmatpush1.bf16.msra.mxu0 0
      %628 = vmatprep.subr.bf16.mxu0 0
      %629 = vmatpush1.bf16.msra.mxu0 0
      %630 = vmatprep.subr.bf16.mxu0 0
      %631 = vmatpush1.bf16.msra.mxu0 0
      %632 = vmatprep.subr.bf16.mxu0 0
      %633 = vmatpush1.bf16.msra.mxu0 0
      %634 = vmatprep.subr.bf16.mxu0 0
      %635 = vmatpush1.bf16.msra.mxu0 0
      %636 = vmatprep.subr.bf16.mxu0 0
      %637 = vmatpush1.bf16.msra.mxu0 0
      %638 = vmatprep.mubr.bf16.mxu0 0
      %639 = vmatmul.mubr.bf16.gmra.mrb[0].mxu0 %v533
      %v640 = vpop.f32.mrb[0].mxu0
      %v641 = vadd.f32 %v327, %v640
      %v642 = vpop.f32.mrb[0].mxu0
      %v643 = vadd.f32 %v327, %v642
      %v644 = vpop.f32.mrb[0].mxu0
      %v645 = vadd.f32 %v332, %v644
      %v646 = vpop.f32.mrb[0].mxu0
      %v647 = vadd.f32 %v332, %v646
      %648 = vdwg.mxu0
      %649 = vmatprep.subr.bf16.mxu0 %v464
      %650 = vmatpush1.bf16.msra.mxu0 %v463
      %651 = vmatprep.subr.bf16.mxu0 %v472
      %652 = vmatpush1.bf16.msra.mxu0 %v471
      %653 = vmatprep.subr.bf16.mxu0 %v480
      %654 = vmatpush1.bf16.msra.mxu0 %v479
      %655 = vmatprep.subr.bf16.mxu0 %v488
      %656 = vmatpush1.bf16.msra.mxu0 %v487
      %657 = vmatprep.subr.bf16.mxu0 %v555
      %658 = vmatpush1.bf16.msra.mxu0 %v552
      %659 = vmatprep.subr.bf16.mxu0 0
      %660 = vmatpush1.bf16.msra.mxu0 0
      %661 = vmatprep.subr.bf16.mxu0 0
      %662 = vmatpush1.bf16.msra.mxu0 0
      %663 = vmatprep.subr.bf16.mxu0 0
      %664 = vmatpush1.bf16.msra.mxu0 0
      %665 = vmatprep.subr.bf16.mxu0 0
      %666 = vmatpush1.bf16.msra.mxu0 0
      %667 = vmatprep.subr.bf16.mxu0 0
      %668 = vmatpush1.bf16.msra.mxu0 0
      %669 = vmatprep.subr.bf16.mxu0 0
      %670 = vmatpush1.bf16.msra.mxu0 0
      %671 = vmatprep.subr.bf16.mxu0 0
      %672 = vmatpush1.bf16.msra.mxu0 0
      %673 = vmatprep.subr.bf16.mxu0 0
      %674 = vmatpush1.bf16.msra.mxu0 0
      %675 = vmatprep.subr.bf16.mxu0 0
      %676 = vmatpush1.bf16.msra.mxu0 0
      %677 = vmatprep.subr.bf16.mxu0 0
      %678 = vmatpush1.bf16.msra.mxu0 0
      %679 = vmatprep.subr.bf16.mxu0 0
      %680 = vmatpush1.bf16.msra.mxu0 0
      %681 = vmatprep.mubr.bf16.mxu0 0
      %682 = vmatmul.mubr.bf16.gmra.mrb[0].mxu0 %v533
      %v683 = vpop.f32.mrb[0].mxu0
      %v684 = vadd.f32 %v327, %v683
      %v685 = vpop.f32.mrb[0].mxu0
      %v686 = vadd.f32 %v327, %v685
      %v687 = vpop.f32.mrb[0].mxu0
      %v688 = vadd.f32 %v332, %v687
      %v689 = vpop.f32.mrb[0].mxu0
      %v690 = vadd.f32 %v332, %v689
      %691 = vdwg.mxu0
      %692 = vmatprep.subr.bf16.mxu0 %v466
      %693 = vmatpush1.bf16.msra.mxu0 %v465
      %694 = vmatprep.subr.bf16.mxu0 %v474
      %695 = vmatpush1.bf16.msra.mxu0 %v473
      %696 = vmatprep.subr.bf16.mxu0 %v482
      %697 = vmatpush1.bf16.msra.mxu0 %v481
      %698 = vmatprep.subr.bf16.mxu0 %v490
      %699 = vmatpush1.bf16.msra.mxu0 %v489
      %700 = vmatprep.subr.bf16.mxu0 %v561
      %701 = vmatpush1.bf16.msra.mxu0 %v558
      %702 = vmatprep.subr.bf16.mxu0 0
      %703 = vmatpush1.bf16.msra.mxu0 0
      %704 = vmatprep.subr.bf16.mxu0 0
      %705 = vmatpush1.bf16.msra.mxu0 0
      %706 = vmatprep.subr.bf16.mxu0 0
      %707 = vmatpush1.bf16.msra.mxu0 0
      %708 = vmatprep.subr.bf16.mxu0 0
      %709 = vmatpush1.bf16.msra.mxu0 0
      %710 = vmatprep.subr.bf16.mxu0 0
      %711 = vmatpush1.bf16.msra.mxu0 0
      %712 = vmatprep.subr.bf16.mxu0 0
      %713 = vmatpush1.bf16.msra.mxu0 0
      %714 = vmatprep.subr.bf16.mxu0 0
      %715 = vmatpush1.bf16.msra.mxu0 0
      %716 = vmatprep.subr.bf16.mxu0 0
      %717 = vmatpush1.bf16.msra.mxu0 0
      %718 = vmatprep.subr.bf16.mxu0 0
      %719 = vmatpush1.bf16.msra.mxu0 0
      %720 = vmatprep.subr.bf16.mxu0 0
      %721 = vmatpush1.bf16.msra.mxu0 0
      %722 = vmatprep.subr.bf16.mxu0 0
      %723 = vmatpush1.bf16.msra.mxu0 0
      %724 = vmatprep.mubr.bf16.mxu0 0
      %725 = vmatmul.mubr.bf16.gmra.mrb[0].mxu0 %v533
      %v726 = vpop.f32.mrb[0].mxu0
      %v727 = vadd.f32 %v327, %v726
      %v728 = vpop.f32.mrb[0].mxu0
      %v729 = vadd.f32 %v327, %v728
      %v730 = vpop.f32.mrb[0].mxu0
      %v731 = vadd.f32 %v332, %v730
      %v732 = vpop.f32.mrb[0].mxu0
      %v733 = vadd.f32 %v332, %v732
      %734 = vdwg.mxu0
      %v735 = vld [vmem:[%s3] sm:$0xff]
      %v736 = vld [vmem:[%s3 + $0x8] sm:$0xff]
      %v737 = vld [vmem:[%s3 + $0x10] sm:$0xff]
      %v738 = vld [vmem:[%s3 + $0x18] sm:$0xff]
      %v739 = vld [vmem:[%s3 + $0x20] sm:$0xff]
      %v740 = vld [vmem:[%s3 + $0x28] sm:$0xff]
      %v741 = vld [vmem:[%s3 + $0x30] sm:$0xff]
      %v742 = vld [vmem:[%s3 + $0x38] sm:$0xff]
      %v743 = vld [vmem:[%s3 + $0x40] sm:$0xff]
      %v744 = vld [vmem:[%s3 + $0x48] sm:$0xff]
      %v745 = vld [vmem:[%s3 + $0x50] sm:$0xff]
      %v746 = vld [vmem:[%s3 + $0x58] sm:$0xff]
      %v747 = vld [vmem:[%s3 + $0x60] sm:$0xff]
      %v748 = vld [vmem:[%s3 + $0x68] sm:$0xff]
      %v749 = vld [vmem:[%s3 + $0x70] sm:$0xff]
      %v750 = vld [vmem:[%s3 + $0x78] sm:$0xff]
      %v751 = vld [vmem:[%s3 + $0x80] sm:$0xff]
      %v752 = vld [vmem:[%s3 + $0x88] sm:$0xff]
      %v753 = vld [vmem:[%s3 + $0x90] sm:$0xff]
      %v754 = vld [vmem:[%s3 + $0x98] sm:$0xff]
      %v755 = vld [vmem:[%s3 + $0xa0] sm:$0xff]
      %v756 = vld [vmem:[%s3 + $0xa8] sm:$0xff]
      %v757 = vld [vmem:[%s3 + $0xb0] sm:$0xff]
      %v758 = vld [vmem:[%s3 + $0xb8] sm:$0xff]
      %v759 = vld [vmem:[%s3 + $0xc0] sm:$0xff]
      %v760 = vld [vmem:[%s3 + $0xc8] sm:$0xff]
      %v761 = vld [vmem:[%s3 + $0xd0] sm:$0xff]
      %v762 = vld [vmem:[%s3 + $0xd8] sm:$0xff]
      %v763 = vld [vmem:[%s3 + $0xe0] sm:$0xff]
      %v764 = vld [vmem:[%s3 + $0xe8] sm:$0xff]
      %v765 = vld [vmem:[%s3 + $0xf0] sm:$0xff]
      %v766 = vld [vmem:[%s3 + $0xf8] sm:$0xff]
      %v767 = vld [vmem:[%s3 + $0x100] sm:$0xff]
      %v768 = vld [vmem:[%s3 + $0x108] sm:$0xff]
      %v769 = vld [vmem:[%s3 + $0x110] sm:$0xff]
      %v770 = vld [vmem:[%s3 + $0x118] sm:$0xff]
      %v771 = vld [vmem:[%s3 + $0x120] sm:$0xff]
      %v772 = vld [vmem:[%s3 + $0x128] sm:$0xff]
      %v773 = vld [vmem:[%s3 + $0x130] sm:$0xff]
      %v774 = vld [vmem:[%s3 + $0x138] sm:$0xff]
      %v775 = vld [vmem:[%s3 + $0x140] sm:$0xff]
      %v776 = vld [vmem:[%s3 + $0x148] sm:$0xff]
      %v777 = vld [vmem:[%s3 + $0x150] sm:$0xff]
      %v778 = vld [vmem:[%s3 + $0x158] sm:$0xff]
      %v779 = vld [vmem:[%s3 + $0x160] sm:$0xff]
      %v780 = vld [vmem:[%s3 + $0x168] sm:$0xff]
      %v781 = vld [vmem:[%s3 + $0x170] sm:$0xff]
      %v782 = vld [vmem:[%s3 + $0x178] sm:$0xff]
      %v783 = vld [vmem:[%s3 + $0x180] sm:$0xff]
      %v784 = vld [vmem:[%s3 + $0x188] sm:$0xff]
      %v785 = vld [vmem:[%s3 + $0x190] sm:$0xff]
      %v786 = vld [vmem:[%s3 + $0x198] sm:$0xff]
      %v787 = vld [vmem:[%s3 + $0x1a0] sm:$0xff]
      %v788 = vld [vmem:[%s3 + $0x1a8] sm:$0xff]
      %v789 = vld [vmem:[%s3 + $0x1b0] sm:$0xff]
      %v790 = vld [vmem:[%s3 + $0x1b8] sm:$0xff]
      %v791 = vld [vmem:[%s3 + $0x1c0] sm:$0xff]
      %v792 = vld [vmem:[%s3 + $0x1c8] sm:$0xff]
      %v793 = vld [vmem:[%s3 + $0x1d0] sm:$0xff]
      %v794 = vld [vmem:[%s3 + $0x1d8] sm:$0xff]
      %v795 = vld [vmem:[%s3 + $0x1e0] sm:$0xff]
      %v796 = vld [vmem:[%s3 + $0x1e8] sm:$0xff]
      %v797 = vld [vmem:[%s3 + $0x1f0] sm:$0xff]
      %v798 = vld [vmem:[%s3 + $0x1f8] sm:$0xff]
      %v799 = vld [vmem:[%s3 + $0x200] sm:$0xff]
      %v800 = vld [vmem:[%s3 + $0x208] sm:$0xff]
      %v801 = vld [vmem:[%s3 + $0x210] sm:$0xff]
      %v802 = vld [vmem:[%s3 + $0x218] sm:$0xff]
      %v803 = vld [vmem:[%s3 + $0x220] sm:$0xff]
      %v804 = vld [vmem:[%s3 + $0x228] sm:$0xff]
      %v805 = vld [vmem:[%s3 + $0x230] sm:$0xff]
      %v806 = vld [vmem:[%s3 + $0x238] sm:$0xff]
      %v807 = vld [vmem:[%s3 + $0x240] sm:$0xff]
      %v808 = vld [vmem:[%s3 + $0x248] sm:$0xff]
      %v809 = vld [vmem:[%s3 + $0x250] sm:$0xff]
      %v810 = vld [vmem:[%s3 + $0x258] sm:$0xff]
      %v811 = vld [vmem:[%s3 + $0x260] sm:$0xff]
      %v812 = vld [vmem:[%s3 + $0x268] sm:$0xff]
      %v813 = vld [vmem:[%s3 + $0x270] sm:$0xff]
      %v814 = vld [vmem:[%s3 + $0x278] sm:$0xff]
      %v815 = vld [vmem:[%s3 + $0x280] sm:$0xff]
      %v816 = vld [vmem:[%s3 + $0x288] sm:$0xff]
      %v817 = vld [vmem:[%s3 + $0x290] sm:$0xff]
      %v818 = vld [vmem:[%s3 + $0x298] sm:$0xff]
      %v819 = vld [vmem:[%s3 + $0x2a0] sm:$0xff]
      %v820 = vld [vmem:[%s3 + $0x2a8] sm:$0xff]
      %v821 = vld [vmem:[%s3 + $0x2b0] sm:$0xff]
      %v822 = vld [vmem:[%s3 + $0x2b8] sm:$0xff]
      %v823 = vld [vmem:[%s3 + $0x2c0] sm:$0xff]
      %v824 = vld [vmem:[%s3 + $0x2c8] sm:$0xff]
      %v825 = vld [vmem:[%s3 + $0x2d0] sm:$0xff]
      %v826 = vld [vmem:[%s3 + $0x2d8] sm:$0xff]
      %v827 = vld [vmem:[%s3 + $0x2e0] sm:$0xff]
      %v828 = vld [vmem:[%s3 + $0x2e8] sm:$0xff]
      %v829 = vld [vmem:[%s3 + $0x2f0] sm:$0xff]
      %v830 = vld [vmem:[%s3 + $0x2f8] sm:$0xff]
      %v831 = vld [vmem:[%s3 + $0x300] sm:$0xff]
      %v832 = vld [vmem:[%s3 + $0x308] sm:$0xff]
      %v833 = vld [vmem:[%s3 + $0x310] sm:$0xff]
      %v834 = vld [vmem:[%s3 + $0x318] sm:$0xff]
      %v835 = vld [vmem:[%s3 + $0x320] sm:$0xff]
      %v836 = vld [vmem:[%s3 + $0x328] sm:$0xff]
      %v837 = vld [vmem:[%s3 + $0x330] sm:$0xff]
      %v838 = vld [vmem:[%s3 + $0x338] sm:$0xff]
      %v839 = vld [vmem:[%s3 + $0x340] sm:$0xff]
      %v840 = vld [vmem:[%s3 + $0x348] sm:$0xff]
      %v841 = vld [vmem:[%s3 + $0x350] sm:$0xff]
      %v842 = vld [vmem:[%s3 + $0x358] sm:$0xff]
      %v843 = vld [vmem:[%s3 + $0x360] sm:$0xff]
      %v844 = vld [vmem:[%s3 + $0x368] sm:$0xff]
      %v845 = vld [vmem:[%s3 + $0x370] sm:$0xff]
      %v846 = vld [vmem:[%s3 + $0x378] sm:$0xff]
      %v847 = vld [vmem:[%s3 + $0x380] sm:$0xff]
      %v848 = vld [vmem:[%s3 + $0x388] sm:$0xff]
      %v849 = vld [vmem:[%s3 + $0x390] sm:$0xff]
      %v850 = vld [vmem:[%s3 + $0x398] sm:$0xff]
      %v851 = vld [vmem:[%s3 + $0x3a0] sm:$0xff]
      %v852 = vld [vmem:[%s3 + $0x3a8] sm:$0xff]
      %v853 = vld [vmem:[%s3 + $0x3b0] sm:$0xff]
      %v854 = vld [vmem:[%s3 + $0x3b8] sm:$0xff]
      %v855 = vld [vmem:[%s3 + $0x3c0] sm:$0xff]
      %v856 = vld [vmem:[%s3 + $0x3c8] sm:$0xff]
      %v857 = vld [vmem:[%s3 + $0x3d0] sm:$0xff]
      %v858 = vld [vmem:[%s3 + $0x3d8] sm:$0xff]
      %v859 = vld [vmem:[%s3 + $0x3e0] sm:$0xff]
      %v860 = vld [vmem:[%s3 + $0x3e8] sm:$0xff]
      %v861 = vld [vmem:[%s3 + $0x3f0] sm:$0xff]
      %v862 = vld [vmem:[%s3 + $0x3f8] sm:$0xff]
      %v863 = vld [vmem:[%s3 + $0x400] sm:$0xff]
      %v864 = vld [vmem:[%s3 + $0x408] sm:$0xff]
      %v865 = vld [vmem:[%s3 + $0x410] sm:$0xff]
      %v866 = vld [vmem:[%s3 + $0x418] sm:$0xff]
      %v867 = vld [vmem:[%s3 + $0x420] sm:$0xff]
      %v868 = vld [vmem:[%s3 + $0x428] sm:$0xff]
      %v869 = vld [vmem:[%s3 + $0x430] sm:$0xff]
      %v870 = vld [vmem:[%s3 + $0x438] sm:$0xff]
      %v871 = vld [vmem:[%s3 + $0x440] sm:$0xff]
      %v872 = vld [vmem:[%s3 + $0x448] sm:$0xff]
      %v873 = vld [vmem:[%s3 + $0x450] sm:$0xff]
      %v874 = vld [vmem:[%s3 + $0x458] sm:$0xff]
      %v875 = vld [vmem:[%s3 + $0x460] sm:$0xff]
      %v876 = vld [vmem:[%s3 + $0x468] sm:$0xff]
      %v877 = vld [vmem:[%s3 + $0x470] sm:$0xff]
      %v878 = vld [vmem:[%s3 + $0x478] sm:$0xff]
      %v879 = vld [vmem:[%s3 + $0x480] sm:$0xff]
      %v880 = vld [vmem:[%s3 + $0x488] sm:$0xff]
      %v881 = vld [vmem:[%s3 + $0x490] sm:$0xff]
      %v882 = vld [vmem:[%s3 + $0x498] sm:$0xff]
      %v883 = vld [vmem:[%s3 + $0x4a0] sm:$0xff]
      %v884 = vld [vmem:[%s3 + $0x4a8] sm:$0xff]
      %v885 = vld [vmem:[%s3 + $0x4b0] sm:$0xff]
      %v886 = vld [vmem:[%s3 + $0x4b8] sm:$0xff]
      %v887 = vld [vmem:[%s3 + $0x4c0] sm:$0xff]
      %v888 = vld [vmem:[%s3 + $0x4c8] sm:$0xff]
      %v889 = vld [vmem:[%s3 + $0x4d0] sm:$0xff]
      %v890 = vld [vmem:[%s3 + $0x4d8] sm:$0xff]
      %v891 = vld [vmem:[%s3 + $0x4e0] sm:$0xff]
      %v892 = vld [vmem:[%s3 + $0x4e8] sm:$0xff]
      %v893 = vld [vmem:[%s3 + $0x4f0] sm:$0xff]
      %v894 = vld [vmem:[%s3 + $0x4f8] sm:$0xff]
      %v895 = vld [vmem:[%s3 + $0x500] sm:$0xff]
      %v896 = vld [vmem:[%s3 + $0x508] sm:$0xff]
      %v897 = vld [vmem:[%s3 + $0x510] sm:$0xff]
      %v898 = vld [vmem:[%s3 + $0x518] sm:$0xff]
      %v899 = vld [vmem:[%s3 + $0x520] sm:$0xff]
      %v900 = vld [vmem:[%s3 + $0x528] sm:$0xff]
      %v901 = vld [vmem:[%s3 + $0x530] sm:$0xff]
      %v902 = vld [vmem:[%s3 + $0x538] sm:$0xff]
      %v903 = vld [vmem:[%s3 + $0x540] sm:$0xff]
      %v904 = vld [vmem:[%s3 + $0x548] sm:$0xff]
      %v905 = vld [vmem:[%s3 + $0x550] sm:$0xff]
      %v906 = vld [vmem:[%s3 + $0x558] sm:$0xff]
      %v907 = vld [vmem:[%s3 + $0x560] sm:$0xff]
      %v908 = vld [vmem:[%s3 + $0x568] sm:$0xff]
      %v909 = vld [vmem:[%s3 + $0x570] sm:$0xff]
      %v910 = vld [vmem:[%s3 + $0x578] sm:$0xff]
      %v911 = vld [vmem:[%s3 + $0x580] sm:$0xff]
      %v912 = vld [vmem:[%s3 + $0x588] sm:$0xff]
      %v913 = vld [vmem:[%s3 + $0x590] sm:$0xff]
      %v914 = vld [vmem:[%s3 + $0x598] sm:$0xff]
      %v915 = vld [vmem:[%s3 + $0x5a0] sm:$0xff]
      %v916 = vld [vmem:[%s3 + $0x5a8] sm:$0xff]
      %v917 = vld [vmem:[%s3 + $0x5b0] sm:$0xff]
      %v918 = vld [vmem:[%s3 + $0x5b8] sm:$0xff]
      %v919 = vld [vmem:[%s3 + $0x5c0] sm:$0xff]
      %v920 = vld [vmem:[%s3 + $0x5c8] sm:$0xff]
      %v921 = vld [vmem:[%s3 + $0x5d0] sm:$0xff]
      %v922 = vld [vmem:[%s3 + $0x5d8] sm:$0xff]
      %v923 = vld [vmem:[%s3 + $0x5e0] sm:$0xff]
      %v924 = vld [vmem:[%s3 + $0x5e8] sm:$0xff]
      %v925 = vld [vmem:[%s3 + $0x5f0] sm:$0xff]
      %v926 = vld [vmem:[%s3 + $0x5f8] sm:$0xff]
      %v927 = vld [vmem:[%s3 + $0x600] sm:$0xff]
      %v928 = vld [vmem:[%s3 + $0x608] sm:$0xff]
      %v929 = vld [vmem:[%s3 + $0x610] sm:$0xff]
      %v930 = vld [vmem:[%s3 + $0x618] sm:$0xff]
      %v931 = vld [vmem:[%s3 + $0x620] sm:$0xff]
      %v932 = vld [vmem:[%s3 + $0x628] sm:$0xff]
      %v933 = vld [vmem:[%s3 + $0x630] sm:$0xff]
      %v934 = vld [vmem:[%s3 + $0x638] sm:$0xff]
      %v935 = vld [vmem:[%s3 + $0x640] sm:$0xff]
      %v936 = vld [vmem:[%s3 + $0x648] sm:$0xff]
      %v937 = vld [vmem:[%s3 + $0x650] sm:$0xff]
      %v938 = vld [vmem:[%s3 + $0x658] sm:$0xff]
      %v939 = vld [vmem:[%s3 + $0x660] sm:$0xff]
      %v940 = vld [vmem:[%s3 + $0x668] sm:$0xff]
      %v941 = vld [vmem:[%s3 + $0x670] sm:$0xff]
      %v942 = vld [vmem:[%s3 + $0x678] sm:$0xff]
      %v943 = vld [vmem:[%s3 + $0x680] sm:$0xff]
      %v944 = vld [vmem:[%s3 + $0x688] sm:$0xff]
      %v945 = vld [vmem:[%s3 + $0x690] sm:$0xff]
      %v946 = vld [vmem:[%s3 + $0x698] sm:$0xff]
      %v947 = vld [vmem:[%s3 + $0x6a0] sm:$0xff]
      %v948 = vld [vmem:[%s3 + $0x6a8] sm:$0xff]
      %v949 = vld [vmem:[%s3 + $0x6b0] sm:$0xff]
      %v950 = vld [vmem:[%s3 + $0x6b8] sm:$0xff]
      %v951 = vld [vmem:[%s3 + $0x6c0] sm:$0xff]
      %v952 = vld [vmem:[%s3 + $0x6c8] sm:$0xff]
      %v953 = vld [vmem:[%s3 + $0x6d0] sm:$0xff]
      %v954 = vld [vmem:[%s3 + $0x6d8] sm:$0xff]
      %v955 = vld [vmem:[%s3 + $0x6e0] sm:$0xff]
      %v956 = vld [vmem:[%s3 + $0x6e8] sm:$0xff]
      %v957 = vld [vmem:[%s3 + $0x6f0] sm:$0xff]
      %v958 = vld [vmem:[%s3 + $0x6f8] sm:$0xff]
      %v959 = vld [vmem:[%s3 + $0x700] sm:$0xff]
      %v960 = vld [vmem:[%s3 + $0x708] sm:$0xff]
      %v961 = vld [vmem:[%s3 + $0x710] sm:$0xff]
      %v962 = vld [vmem:[%s3 + $0x718] sm:$0xff]
      %v963 = vld [vmem:[%s3 + $0x720] sm:$0xff]
      %v964 = vld [vmem:[%s3 + $0x728] sm:$0xff]
      %v965 = vld [vmem:[%s3 + $0x730] sm:$0xff]
      %v966 = vld [vmem:[%s3 + $0x738] sm:$0xff]
      %v967 = vld [vmem:[%s3 + $0x740] sm:$0xff]
      %v968 = vld [vmem:[%s3 + $0x748] sm:$0xff]
      %v969 = vld [vmem:[%s3 + $0x750] sm:$0xff]
      %v970 = vld [vmem:[%s3 + $0x758] sm:$0xff]
      %v971 = vld [vmem:[%s3 + $0x760] sm:$0xff]
      %v972 = vld [vmem:[%s3 + $0x768] sm:$0xff]
      %v973 = vld [vmem:[%s3 + $0x770] sm:$0xff]
      %v974 = vld [vmem:[%s3 + $0x778] sm:$0xff]
      %v975 = vld [vmem:[%s3 + $0x780] sm:$0xff]
      %v976 = vld [vmem:[%s3 + $0x788] sm:$0xff]
      %v977 = vld [vmem:[%s3 + $0x790] sm:$0xff]
      %v978 = vld [vmem:[%s3 + $0x798] sm:$0xff]
      %v979 = vld [vmem:[%s3 + $0x7a0] sm:$0xff]
      %v980 = vld [vmem:[%s3 + $0x7a8] sm:$0xff]
      %v981 = vld [vmem:[%s3 + $0x7b0] sm:$0xff]
      %v982 = vld [vmem:[%s3 + $0x7b8] sm:$0xff]
      %v983 = vld [vmem:[%s3 + $0x7c0] sm:$0xff]
      %v984 = vld [vmem:[%s3 + $0x7c8] sm:$0xff]
      %v985 = vld [vmem:[%s3 + $0x7d0] sm:$0xff]
      %v986 = vld [vmem:[%s3 + $0x7d8] sm:$0xff]
      %v987 = vld [vmem:[%s3 + $0x7e0] sm:$0xff]
      %v988 = vld [vmem:[%s3 + $0x7e8] sm:$0xff]
      %v989 = vld [vmem:[%s3 + $0x7f0] sm:$0xff]
      %v990 = vld [vmem:[%s3 + $0x7f8] sm:$0xff]
      %991 = vmatprep.subr.mxu0 %v736
      %992 = vmatpush1.msra.mxu0 %v735
      %993 = vmatprep.subr.mxu0 %v738
      %994 = vmatpush1.msra.mxu0 %v737
      %995 = vmatprep.subr.mxu0 %v740
      %996 = vmatpush1.msra.mxu0 %v739
      %997 = vmatprep.subr.mxu0 %v742
      %998 = vmatpush1.msra.mxu0 %v741
      %999 = vmatprep.subr.mxu0 %v744
      %1000 = vmatpush1.msra.mxu0 %v743
      %1001 = vmatprep.subr.mxu0 %v746
      %1002 = vmatpush1.msra.mxu0 %v745
      %1003 = vmatprep.subr.mxu0 %v748
      %1004 = vmatpush1.msra.mxu0 %v747
      %1005 = vmatprep.subr.mxu0 %v750
      %1006 = vmatpush1.msra.mxu0 %v749
      %1007 = vmatprep.subr.mxu0 %v752
      %1008 = vmatpush1.msra.mxu0 %v751
      %1009 = vmatprep.subr.mxu0 %v754
      %1010 = vmatpush1.msra.mxu0 %v753
      %1011 = vmatprep.subr.mxu0 %v756
      %1012 = vmatpush1.msra.mxu0 %v755
      %1013 = vmatprep.subr.mxu0 %v758
      %1014 = vmatpush1.msra.mxu0 %v757
      %1015 = vmatprep.subr.mxu0 %v760
      %1016 = vmatpush1.msra.mxu0 %v759
      %1017 = vmatprep.subr.mxu0 %v762
      %1018 = vmatpush1.msra.mxu0 %v761
      %1019 = vmatprep.subr.mxu0 %v764
      %1020 = vmatpush1.msra.mxu0 %v763
      %1021 = vmatprep.subr.mxu0 %v766
      %1022 = vmatpush1.msra.mxu0 %v765
      %1023 = vmatprep.subr.mxu0 %v768
      %1024 = vmatpush1.msra.mxu0 %v767
      %1025 = vmatprep.subr.mxu0 %v770
      %1026 = vmatpush1.msra.mxu0 %v769
      %1027 = vmatprep.subr.mxu0 %v772
      %1028 = vmatpush1.msra.mxu0 %v771
      %1029 = vmatprep.subr.mxu0 %v774
      %1030 = vmatpush1.msra.mxu0 %v773
      %1031 = vmatprep.subr.mxu0 %v776
      %1032 = vmatpush1.msra.mxu0 %v775
      %1033 = vmatprep.subr.mxu0 %v778
      %1034 = vmatpush1.msra.mxu0 %v777
      %1035 = vmatprep.subr.mxu0 %v780
      %1036 = vmatpush1.msra.mxu0 %v779
      %1037 = vmatprep.subr.mxu0 %v782
      %1038 = vmatpush1.msra.mxu0 %v781
      %1039 = vmatprep.subr.mxu0 %v784
      %1040 = vmatpush1.msra.mxu0 %v783
      %1041 = vmatprep.subr.mxu0 %v786
      %1042 = vmatpush1.msra.mxu0 %v785
      %1043 = vmatprep.subr.mxu0 %v788
      %1044 = vmatpush1.msra.mxu0 %v787
      %1045 = vmatprep.subr.mxu0 %v790
      %1046 = vmatpush1.msra.mxu0 %v789
      %1047 = vmatprep.subr.mxu0 %v792
      %1048 = vmatpush1.msra.mxu0 %v791
      %1049 = vmatprep.subr.mxu0 %v794
      %1050 = vmatpush1.msra.mxu0 %v793
      %1051 = vmatprep.subr.mxu0 %v796
      %1052 = vmatpush1.msra.mxu0 %v795
      %1053 = vmatprep.subr.mxu0 %v798
      %1054 = vmatpush1.msra.mxu0 %v797
      %1055 = vmatprep.mubr.f32.mxu0 %v600
      %1056 = vmatmul.mubr.f32.gmra.mrb[0].mxu0 %v598
      %v1057 = vpop.f32.mrb[0].mxu0
      %v1058 = vadd.f32 0.0, %v1057
      %v1059 = vpop.f32.mrb[0].mxu0
      %v1060 = vadd.f32 0.0, %v1059
      %1061 = vmatprep.mubr.f32.mxu0 %v604
      %1062 = vmatmul.mubr.f32.gmra.mrb[0].mxu0 %v602
      %v1063 = vpop.f32.mrb[0].mxu0
      %v1064 = vadd.f32 0.0, %v1063
      %v1065 = vpop.f32.mrb[0].mxu0
      %v1066 = vadd.f32 0.0, %v1065
      %1067 = vdwg.mxu0
      %1068 = vmatprep.subr.mxu0 %v800
      %1069 = vmatpush1.msra.mxu0 %v799
      %1070 = vmatprep.subr.mxu0 %v802
      %1071 = vmatpush1.msra.mxu0 %v801
      %1072 = vmatprep.subr.mxu0 %v804
      %1073 = vmatpush1.msra.mxu0 %v803
      %1074 = vmatprep.subr.mxu0 %v806
      %1075 = vmatpush1.msra.mxu0 %v805
      %1076 = vmatprep.subr.mxu0 %v808
      %1077 = vmatpush1.msra.mxu0 %v807
      %1078 = vmatprep.subr.mxu0 %v810
      %1079 = vmatpush1.msra.mxu0 %v809
      %1080 = vmatprep.subr.mxu0 %v812
      %1081 = vmatpush1.msra.mxu0 %v811
      %1082 = vmatprep.subr.mxu0 %v814
      %1083 = vmatpush1.msra.mxu0 %v813
      %1084 = vmatprep.subr.mxu0 %v816
      %1085 = vmatpush1.msra.mxu0 %v815
      %1086 = vmatprep.subr.mxu0 %v818
      %1087 = vmatpush1.msra.mxu0 %v817
      %1088 = vmatprep.subr.mxu0 %v820
      %1089 = vmatpush1.msra.mxu0 %v819
      %1090 = vmatprep.subr.mxu0 %v822
      %1091 = vmatpush1.msra.mxu0 %v821
      %1092 = vmatprep.subr.mxu0 %v824
      %1093 = vmatpush1.msra.mxu0 %v823
      %1094 = vmatprep.subr.mxu0 %v826
      %1095 = vmatpush1.msra.mxu0 %v825
      %1096 = vmatprep.subr.mxu0 %v828
      %1097 = vmatpush1.msra.mxu0 %v827
      %1098 = vmatprep.subr.mxu0 %v830
      %1099 = vmatpush1.msra.mxu0 %v829
      %1100 = vmatprep.subr.mxu0 %v832
      %1101 = vmatpush1.msra.mxu0 %v831
      %1102 = vmatprep.subr.mxu0 %v834
      %1103 = vmatpush1.msra.mxu0 %v833
      %1104 = vmatprep.subr.mxu0 %v836
      %1105 = vmatpush1.msra.mxu0 %v835
      %1106 = vmatprep.subr.mxu0 %v838
      %1107 = vmatpush1.msra.mxu0 %v837
      %1108 = vmatprep.subr.mxu0 %v840
      %1109 = vmatpush1.msra.mxu0 %v839
      %1110 = vmatprep.subr.mxu0 %v842
      %1111 = vmatpush1.msra.mxu0 %v841
      %1112 = vmatprep.subr.mxu0 %v844
      %1113 = vmatpush1.msra.mxu0 %v843
      %1114 = vmatprep.subr.mxu0 %v846
      %1115 = vmatpush1.msra.mxu0 %v845
      %1116 = vmatprep.subr.mxu0 %v848
      %1117 = vmatpush1.msra.mxu0 %v847
      %1118 = vmatprep.subr.mxu0 %v850
      %1119 = vmatpush1.msra.mxu0 %v849
      %1120 = vmatprep.subr.mxu0 %v852
      %1121 = vmatpush1.msra.mxu0 %v851
      %1122 = vmatprep.subr.mxu0 %v854
      %1123 = vmatpush1.msra.mxu0 %v853
      %1124 = vmatprep.subr.mxu0 %v856
      %1125 = vmatpush1.msra.mxu0 %v855
      %1126 = vmatprep.subr.mxu0 %v858
      %1127 = vmatpush1.msra.mxu0 %v857
      %1128 = vmatprep.subr.mxu0 %v860
      %1129 = vmatpush1.msra.mxu0 %v859
      %1130 = vmatprep.subr.mxu0 %v862
      %1131 = vmatpush1.msra.mxu0 %v861
      %1132 = vmatprep.mubr.f32.mxu0 %v643
      %1133 = vmatmul.mubr.f32.gmra.mrb[0].mxu0 %v641
      %v1134 = vpop.f32.mrb[0].mxu0
      %v1135 = vadd.f32 %v1058, %v1134
      %v1136 = vpop.f32.mrb[0].mxu0
      %v1137 = vadd.f32 %v1060, %v1136
      %1138 = vmatprep.mubr.f32.mxu0 %v647
      %1139 = vmatmul.mubr.f32.gmra.mrb[0].mxu0 %v645
      %v1140 = vpop.f32.mrb[0].mxu0
      %v1141 = vadd.f32 %v1064, %v1140
      %v1142 = vpop.f32.mrb[0].mxu0
      %v1143 = vadd.f32 %v1066, %v1142
      %1144 = vdwg.mxu0
      %1145 = vmatprep.subr.mxu0 %v864
      %1146 = vmatpush1.msra.mxu0 %v863
      %1147 = vmatprep.subr.mxu0 %v866
      %1148 = vmatpush1.msra.mxu0 %v865
      %1149 = vmatprep.subr.mxu0 %v868
      %1150 = vmatpush1.msra.mxu0 %v867
      %1151 = vmatprep.subr.mxu0 %v870
      %1152 = vmatpush1.msra.mxu0 %v869
      %1153 = vmatprep.subr.mxu0 %v872
      %1154 = vmatpush1.msra.mxu0 %v871
      %1155 = vmatprep.subr.mxu0 %v874
      %1156 = vmatpush1.msra.mxu0 %v873
      %1157 = vmatprep.subr.mxu0 %v876
      %1158 = vmatpush1.msra.mxu0 %v875
      %1159 = vmatprep.subr.mxu0 %v878
      %1160 = vmatpush1.msra.mxu0 %v877
      %1161 = vmatprep.subr.mxu0 %v880
      %1162 = vmatpush1.msra.mxu0 %v879
      %1163 = vmatprep.subr.mxu0 %v882
      %1164 = vmatpush1.msra.mxu0 %v881
      %1165 = vmatprep.subr.mxu0 %v884
      %1166 = vmatpush1.msra.mxu0 %v883
      %1167 = vmatprep.subr.mxu0 %v886
      %1168 = vmatpush1.msra.mxu0 %v885
      %1169 = vmatprep.subr.mxu0 %v888
      %1170 = vmatpush1.msra.mxu0 %v887
      %1171 = vmatprep.subr.mxu0 %v890
      %1172 = vmatpush1.msra.mxu0 %v889
      %1173 = vmatprep.subr.mxu0 %v892
      %1174 = vmatpush1.msra.mxu0 %v891
      %1175 = vmatprep.subr.mxu0 %v894
      %1176 = vmatpush1.msra.mxu0 %v893
      %1177 = vmatprep.subr.mxu0 %v896
      %1178 = vmatpush1.msra.mxu0 %v895
      %1179 = vmatprep.subr.mxu0 %v898
      %1180 = vmatpush1.msra.mxu0 %v897
      %1181 = vmatprep.subr.mxu0 %v900
      %1182 = vmatpush1.msra.mxu0 %v899
      %1183 = vmatprep.subr.mxu0 %v902
      %1184 = vmatpush1.msra.mxu0 %v901
      %1185 = vmatprep.subr.mxu0 %v904
      %1186 = vmatpush1.msra.mxu0 %v903
      %1187 = vmatprep.subr.mxu0 %v906
      %1188 = vmatpush1.msra.mxu0 %v905
      %1189 = vmatprep.subr.mxu0 %v908
      %1190 = vmatpush1.msra.mxu0 %v907
      %1191 = vmatprep.subr.mxu0 %v910
      %1192 = vmatpush1.msra.mxu0 %v909
      %1193 = vmatprep.subr.mxu0 %v912
      %1194 = vmatpush1.msra.mxu0 %v911
      %1195 = vmatprep.subr.mxu0 %v914
      %1196 = vmatpush1.msra.mxu0 %v913
      %1197 = vmatprep.subr.mxu0 %v916
      %1198 = vmatpush1.msra.mxu0 %v915
      %1199 = vmatprep.subr.mxu0 %v918
      %1200 = vmatpush1.msra.mxu0 %v917
      %1201 = vmatprep.subr.mxu0 %v920
      %1202 = vmatpush1.msra.mxu0 %v919
      %1203 = vmatprep.subr.mxu0 %v922
      %1204 = vmatpush1.msra.mxu0 %v921
      %1205 = vmatprep.subr.mxu0 %v924
      %1206 = vmatpush1.msra.mxu0 %v923
      %1207 = vmatprep.subr.mxu0 %v926
      %1208 = vmatpush1.msra.mxu0 %v925
      %1209 = vmatprep.mubr.f32.mxu0 %v686
      %1210 = vmatmul.mubr.f32.gmra.mrb[0].mxu0 %v684
      %v1211 = vpop.f32.mrb[0].mxu0
      %v1212 = vadd.f32 %v1135, %v1211
      %v1213 = vpop.f32.mrb[0].mxu0
      %v1214 = vadd.f32 %v1137, %v1213
      %1215 = vmatprep.mubr.f32.mxu0 %v690
      %1216 = vmatmul.mubr.f32.gmra.mrb[0].mxu0 %v688
      %v1217 = vpop.f32.mrb[0].mxu0
      %v1218 = vadd.f32 %v1141, %v1217
      %v1219 = vpop.f32.mrb[0].mxu0
      %v1220 = vadd.f32 %v1143, %v1219
      %1221 = vdwg.mxu0
      %1222 = vmatprep.subr.mxu0 %v928
      %1223 = vmatpush1.msra.mxu0 %v927
      %1224 = vmatprep.subr.mxu0 %v930
      %1225 = vmatpush1.msra.mxu0 %v929
      %1226 = vmatprep.subr.mxu0 %v932
      %1227 = vmatpush1.msra.mxu0 %v931
      %1228 = vmatprep.subr.mxu0 %v934
      %1229 = vmatpush1.msra.mxu0 %v933
      %1230 = vmatprep.subr.mxu0 %v936
      %1231 = vmatpush1.msra.mxu0 %v935
      %1232 = vmatprep.subr.mxu0 %v938
      %1233 = vmatpush1.msra.mxu0 %v937
      %1234 = vmatprep.subr.mxu0 %v940
      %1235 = vmatpush1.msra.mxu0 %v939
      %1236 = vmatprep.subr.mxu0 %v942
      %1237 = vmatpush1.msra.mxu0 %v941
      %1238 = vmatprep.subr.mxu0 %v944
      %1239 = vmatpush1.msra.mxu0 %v943
      %1240 = vmatprep.subr.mxu0 %v946
      %1241 = vmatpush1.msra.mxu0 %v945
      %1242 = vmatprep.subr.mxu0 %v948
      %1243 = vmatpush1.msra.mxu0 %v947
      %1244 = vmatprep.subr.mxu0 %v950
      %1245 = vmatpush1.msra.mxu0 %v949
      %1246 = vmatprep.subr.mxu0 %v952
      %1247 = vmatpush1.msra.mxu0 %v951
      %1248 = vmatprep.subr.mxu0 %v954
      %1249 = vmatpush1.msra.mxu0 %v953
      %1250 = vmatprep.subr.mxu0 %v956
      %1251 = vmatpush1.msra.mxu0 %v955
      %1252 = vmatprep.subr.mxu0 %v958
      %1253 = vmatpush1.msra.mxu0 %v957
      %1254 = vmatprep.subr.mxu0 %v960
      %1255 = vmatpush1.msra.mxu0 %v959
      %1256 = vmatprep.subr.mxu0 %v962
      %1257 = vmatpush1.msra.mxu0 %v961
      %1258 = vmatprep.subr.mxu0 %v964
      %1259 = vmatpush1.msra.mxu0 %v963
      %1260 = vmatprep.subr.mxu0 %v966
      %1261 = vmatpush1.msra.mxu0 %v965
      %1262 = vmatprep.subr.mxu0 %v968
      %1263 = vmatpush1.msra.mxu0 %v967
      %1264 = vmatprep.subr.mxu0 %v970
      %1265 = vmatpush1.msra.mxu0 %v969
      %1266 = vmatprep.subr.mxu0 %v972
      %1267 = vmatpush1.msra.mxu0 %v971
      %1268 = vmatprep.subr.mxu0 %v974
      %1269 = vmatpush1.msra.mxu0 %v973
      %1270 = vmatprep.subr.mxu0 %v976
      %1271 = vmatpush1.msra.mxu0 %v975
      %1272 = vmatprep.subr.mxu0 %v978
      %1273 = vmatpush1.msra.mxu0 %v977
      %1274 = vmatprep.subr.mxu0 %v980
      %1275 = vmatpush1.msra.mxu0 %v979
      %1276 = vmatprep.subr.mxu0 %v982
      %1277 = vmatpush1.msra.mxu0 %v981
      %1278 = vmatprep.subr.mxu0 %v984
      %1279 = vmatpush1.msra.mxu0 %v983
      %1280 = vmatprep.subr.mxu0 %v986
      %1281 = vmatpush1.msra.mxu0 %v985
      %1282 = vmatprep.subr.mxu0 %v988
      %1283 = vmatpush1.msra.mxu0 %v987
      %1284 = vmatprep.subr.mxu0 %v990
      %1285 = vmatpush1.msra.mxu0 %v989
      %1286 = vmatprep.mubr.f32.mxu0 %v729
      %1287 = vmatmul.mubr.f32.gmra.mrb[0].mxu0 %v727
      %v1288 = vpop.f32.mrb[0].mxu0
      %v1289 = vadd.f32 %v1212, %v1288
      %v1290 = vpop.f32.mrb[0].mxu0
      %v1291 = vadd.f32 %v1214, %v1290
      %1292 = vmatprep.mubr.f32.mxu0 %v733
      %1293 = vmatmul.mubr.f32.gmra.mrb[0].mxu0 %v731
      %v1294 = vpop.f32.mrb[0].mxu0
      %v1295 = vadd.f32 %v1218, %v1294
      %v1296 = vpop.f32.mrb[0].mxu0
      %v1297 = vadd.f32 %v1220, %v1296
      %1298 = vdwg.mxu0
      %v1299 = vld [vmem:[%s4] sm:$0xff]
      %v1300 = vld [vmem:[%s4 + $0x8] sm:$0xff]
      %v1301 = vld [vmem:[%s4 + $0x10] sm:$0xff]
      %v1302 = vld [vmem:[%s4 + $0x18] sm:$0xff]
      %v1303 = vld [vmem:[%s4 + $0x20] sm:$0xff]
      %v1304 = vld [vmem:[%s4 + $0x28] sm:$0xff]
      %v1305 = vld [vmem:[%s4 + $0x30] sm:$0xff]
      %v1306 = vld [vmem:[%s4 + $0x38] sm:$0xff]
      %v1307 = vld [vmem:[%s4 + $0x40] sm:$0xff]
      %v1308 = vld [vmem:[%s4 + $0x48] sm:$0xff]
      %v1309 = vld [vmem:[%s4 + $0x50] sm:$0xff]
      %v1310 = vld [vmem:[%s4 + $0x58] sm:$0xff]
      %v1311 = vld [vmem:[%s4 + $0x60] sm:$0xff]
      %v1312 = vld [vmem:[%s4 + $0x68] sm:$0xff]
      %v1313 = vld [vmem:[%s4 + $0x70] sm:$0xff]
      %v1314 = vld [vmem:[%s4 + $0x78] sm:$0xff]
      %v1315 = vld [vmem:[%s4 + $0x80] sm:$0xff]
      %v1316 = vld [vmem:[%s4 + $0x88] sm:$0xff]
      %v1317 = vld [vmem:[%s4 + $0x90] sm:$0xff]
      %v1318 = vld [vmem:[%s4 + $0x98] sm:$0xff]
      %v1319 = vld [vmem:[%s4 + $0xa0] sm:$0xff]
      %v1320 = vld [vmem:[%s4 + $0xa8] sm:$0xff]
      %v1321 = vld [vmem:[%s4 + $0xb0] sm:$0xff]
      %v1322 = vld [vmem:[%s4 + $0xb8] sm:$0xff]
      %v1323 = vld [vmem:[%s4 + $0xc0] sm:$0xff]
      %v1324 = vld [vmem:[%s4 + $0xc8] sm:$0xff]
      %v1325 = vld [vmem:[%s4 + $0xd0] sm:$0xff]
      %v1326 = vld [vmem:[%s4 + $0xd8] sm:$0xff]
      %v1327 = vld [vmem:[%s4 + $0xe0] sm:$0xff]
      %v1328 = vld [vmem:[%s4 + $0xe8] sm:$0xff]
      %v1329 = vld [vmem:[%s4 + $0xf0] sm:$0xff]
      %v1330 = vld [vmem:[%s4 + $0xf8] sm:$0xff]
      %v1331 = vld [vmem:[%s4 + $0x100] sm:$0xff]
      %v1332 = vld [vmem:[%s4 + $0x108] sm:$0xff]
      %v1333 = vld [vmem:[%s4 + $0x110] sm:$0xff]
      %v1334 = vld [vmem:[%s4 + $0x118] sm:$0xff]
      %v1335 = vld [vmem:[%s4 + $0x120] sm:$0xff]
      %v1336 = vld [vmem:[%s4 + $0x128] sm:$0xff]
      %v1337 = vld [vmem:[%s4 + $0x130] sm:$0xff]
      %v1338 = vld [vmem:[%s4 + $0x138] sm:$0xff]
      %v1339 = vld [vmem:[%s4 + $0x140] sm:$0xff]
      %v1340 = vld [vmem:[%s4 + $0x148] sm:$0xff]
      %v1341 = vld [vmem:[%s4 + $0x150] sm:$0xff]
      %v1342 = vld [vmem:[%s4 + $0x158] sm:$0xff]
      %v1343 = vld [vmem:[%s4 + $0x160] sm:$0xff]
      %v1344 = vld [vmem:[%s4 + $0x168] sm:$0xff]
      %v1345 = vld [vmem:[%s4 + $0x170] sm:$0xff]
      %v1346 = vld [vmem:[%s4 + $0x178] sm:$0xff]
      %v1347 = vld [vmem:[%s4 + $0x180] sm:$0xff]
      %v1348 = vld [vmem:[%s4 + $0x188] sm:$0xff]
      %v1349 = vld [vmem:[%s4 + $0x190] sm:$0xff]
      %v1350 = vld [vmem:[%s4 + $0x198] sm:$0xff]
      %v1351 = vld [vmem:[%s4 + $0x1a0] sm:$0xff]
      %v1352 = vld [vmem:[%s4 + $0x1a8] sm:$0xff]
      %v1353 = vld [vmem:[%s4 + $0x1b0] sm:$0xff]
      %v1354 = vld [vmem:[%s4 + $0x1b8] sm:$0xff]
      %v1355 = vld [vmem:[%s4 + $0x1c0] sm:$0xff]
      %v1356 = vld [vmem:[%s4 + $0x1c8] sm:$0xff]
      %v1357 = vld [vmem:[%s4 + $0x1d0] sm:$0xff]
      %v1358 = vld [vmem:[%s4 + $0x1d8] sm:$0xff]
      %v1359 = vld [vmem:[%s4 + $0x1e0] sm:$0xff]
      %v1360 = vld [vmem:[%s4 + $0x1e8] sm:$0xff]
      %v1361 = vld [vmem:[%s4 + $0x1f0] sm:$0xff]
      %v1362 = vld [vmem:[%s4 + $0x1f8] sm:$0xff]
      %v1363 = vld [vmem:[%s4 + $0x200] sm:$0xff]
      %v1364 = vld [vmem:[%s4 + $0x208] sm:$0xff]
      %v1365 = vld [vmem:[%s4 + $0x210] sm:$0xff]
      %v1366 = vld [vmem:[%s4 + $0x218] sm:$0xff]
      %v1367 = vld [vmem:[%s4 + $0x220] sm:$0xff]
      %v1368 = vld [vmem:[%s4 + $0x228] sm:$0xff]
      %v1369 = vld [vmem:[%s4 + $0x230] sm:$0xff]
      %v1370 = vld [vmem:[%s4 + $0x238] sm:$0xff]
      %v1371 = vld [vmem:[%s4 + $0x240] sm:$0xff]
      %v1372 = vld [vmem:[%s4 + $0x248] sm:$0xff]
      %v1373 = vld [vmem:[%s4 + $0x250] sm:$0xff]
      %v1374 = vld [vmem:[%s4 + $0x258] sm:$0xff]
      %v1375 = vld [vmem:[%s4 + $0x260] sm:$0xff]
      %v1376 = vld [vmem:[%s4 + $0x268] sm:$0xff]
      %v1377 = vld [vmem:[%s4 + $0x270] sm:$0xff]
      %v1378 = vld [vmem:[%s4 + $0x278] sm:$0xff]
      %v1379 = vld [vmem:[%s4 + $0x280] sm:$0xff]
      %v1380 = vld [vmem:[%s4 + $0x288] sm:$0xff]
      %v1381 = vld [vmem:[%s4 + $0x290] sm:$0xff]
      %v1382 = vld [vmem:[%s4 + $0x298] sm:$0xff]
      %v1383 = vld [vmem:[%s4 + $0x2a0] sm:$0xff]
      %v1384 = vld [vmem:[%s4 + $0x2a8] sm:$0xff]
      %v1385 = vld [vmem:[%s4 + $0x2b0] sm:$0xff]
      %v1386 = vld [vmem:[%s4 + $0x2b8] sm:$0xff]
      %v1387 = vld [vmem:[%s4 + $0x2c0] sm:$0xff]
      %v1388 = vld [vmem:[%s4 + $0x2c8] sm:$0xff]
      %v1389 = vld [vmem:[%s4 + $0x2d0] sm:$0xff]
      %v1390 = vld [vmem:[%s4 + $0x2d8] sm:$0xff]
      %v1391 = vld [vmem:[%s4 + $0x2e0] sm:$0xff]
      %v1392 = vld [vmem:[%s4 + $0x2e8] sm:$0xff]
      %v1393 = vld [vmem:[%s4 + $0x2f0] sm:$0xff]
      %v1394 = vld [vmem:[%s4 + $0x2f8] sm:$0xff]
      %v1395 = vld [vmem:[%s4 + $0x300] sm:$0xff]
      %v1396 = vld [vmem:[%s4 + $0x308] sm:$0xff]
      %v1397 = vld [vmem:[%s4 + $0x310] sm:$0xff]
      %v1398 = vld [vmem:[%s4 + $0x318] sm:$0xff]
      %v1399 = vld [vmem:[%s4 + $0x320] sm:$0xff]
      %v1400 = vld [vmem:[%s4 + $0x328] sm:$0xff]
      %v1401 = vld [vmem:[%s4 + $0x330] sm:$0xff]
      %v1402 = vld [vmem:[%s4 + $0x338] sm:$0xff]
      %v1403 = vld [vmem:[%s4 + $0x340] sm:$0xff]
      %v1404 = vld [vmem:[%s4 + $0x348] sm:$0xff]
      %v1405 = vld [vmem:[%s4 + $0x350] sm:$0xff]
      %v1406 = vld [vmem:[%s4 + $0x358] sm:$0xff]
      %v1407 = vld [vmem:[%s4 + $0x360] sm:$0xff]
      %v1408 = vld [vmem:[%s4 + $0x368] sm:$0xff]
      %v1409 = vld [vmem:[%s4 + $0x370] sm:$0xff]
      %v1410 = vld [vmem:[%s4 + $0x378] sm:$0xff]
      %v1411 = vld [vmem:[%s4 + $0x380] sm:$0xff]
      %v1412 = vld [vmem:[%s4 + $0x388] sm:$0xff]
      %v1413 = vld [vmem:[%s4 + $0x390] sm:$0xff]
      %v1414 = vld [vmem:[%s4 + $0x398] sm:$0xff]
      %v1415 = vld [vmem:[%s4 + $0x3a0] sm:$0xff]
      %v1416 = vld [vmem:[%s4 + $0x3a8] sm:$0xff]
      %v1417 = vld [vmem:[%s4 + $0x3b0] sm:$0xff]
      %v1418 = vld [vmem:[%s4 + $0x3b8] sm:$0xff]
      %v1419 = vld [vmem:[%s4 + $0x3c0] sm:$0xff]
      %v1420 = vld [vmem:[%s4 + $0x3c8] sm:$0xff]
      %v1421 = vld [vmem:[%s4 + $0x3d0] sm:$0xff]
      %v1422 = vld [vmem:[%s4 + $0x3d8] sm:$0xff]
      %v1423 = vld [vmem:[%s4 + $0x3e0] sm:$0xff]
      %v1424 = vld [vmem:[%s4 + $0x3e8] sm:$0xff]
      %v1425 = vld [vmem:[%s4 + $0x3f0] sm:$0xff]
      %v1426 = vld [vmem:[%s4 + $0x3f8] sm:$0xff]
      %v1427 = vld [vmem:[%s4 + $0x400] sm:$0xff]
      %v1428 = vld [vmem:[%s4 + $0x408] sm:$0xff]
      %v1429 = vld [vmem:[%s4 + $0x410] sm:$0xff]
      %v1430 = vld [vmem:[%s4 + $0x418] sm:$0xff]
      %v1431 = vld [vmem:[%s4 + $0x420] sm:$0xff]
      %v1432 = vld [vmem:[%s4 + $0x428] sm:$0xff]
      %v1433 = vld [vmem:[%s4 + $0x430] sm:$0xff]
      %v1434 = vld [vmem:[%s4 + $0x438] sm:$0xff]
      %v1435 = vld [vmem:[%s4 + $0x440] sm:$0xff]
      %v1436 = vld [vmem:[%s4 + $0x448] sm:$0xff]
      %v1437 = vld [vmem:[%s4 + $0x450] sm:$0xff]
      %v1438 = vld [vmem:[%s4 + $0x458] sm:$0xff]
      %v1439 = vld [vmem:[%s4 + $0x460] sm:$0xff]
      %v1440 = vld [vmem:[%s4 + $0x468] sm:$0xff]
      %v1441 = vld [vmem:[%s4 + $0x470] sm:$0xff]
      %v1442 = vld [vmem:[%s4 + $0x478] sm:$0xff]
      %v1443 = vld [vmem:[%s4 + $0x480] sm:$0xff]
      %v1444 = vld [vmem:[%s4 + $0x488] sm:$0xff]
      %v1445 = vld [vmem:[%s4 + $0x490] sm:$0xff]
      %v1446 = vld [vmem:[%s4 + $0x498] sm:$0xff]
      %v1447 = vld [vmem:[%s4 + $0x4a0] sm:$0xff]
      %v1448 = vld [vmem:[%s4 + $0x4a8] sm:$0xff]
      %v1449 = vld [vmem:[%s4 + $0x4b0] sm:$0xff]
      %v1450 = vld [vmem:[%s4 + $0x4b8] sm:$0xff]
      %v1451 = vld [vmem:[%s4 + $0x4c0] sm:$0xff]
      %v1452 = vld [vmem:[%s4 + $0x4c8] sm:$0xff]
      %v1453 = vld [vmem:[%s4 + $0x4d0] sm:$0xff]
      %v1454 = vld [vmem:[%s4 + $0x4d8] sm:$0xff]
      %v1455 = vld [vmem:[%s4 + $0x4e0] sm:$0xff]
      %v1456 = vld [vmem:[%s4 + $0x4e8] sm:$0xff]
      %v1457 = vld [vmem:[%s4 + $0x4f0] sm:$0xff]
      %v1458 = vld [vmem:[%s4 + $0x4f8] sm:$0xff]
      %v1459 = vld [vmem:[%s4 + $0x500] sm:$0xff]
      %v1460 = vld [vmem:[%s4 + $0x508] sm:$0xff]
      %v1461 = vld [vmem:[%s4 + $0x510] sm:$0xff]
      %v1462 = vld [vmem:[%s4 + $0x518] sm:$0xff]
      %v1463 = vld [vmem:[%s4 + $0x520] sm:$0xff]
      %v1464 = vld [vmem:[%s4 + $0x528] sm:$0xff]
      %v1465 = vld [vmem:[%s4 + $0x530] sm:$0xff]
      %v1466 = vld [vmem:[%s4 + $0x538] sm:$0xff]
      %v1467 = vld [vmem:[%s4 + $0x540] sm:$0xff]
      %v1468 = vld [vmem:[%s4 + $0x548] sm:$0xff]
      %v1469 = vld [vmem:[%s4 + $0x550] sm:$0xff]
      %v1470 = vld [vmem:[%s4 + $0x558] sm:$0xff]
      %v1471 = vld [vmem:[%s4 + $0x560] sm:$0xff]
      %v1472 = vld [vmem:[%s4 + $0x568] sm:$0xff]
      %v1473 = vld [vmem:[%s4 + $0x570] sm:$0xff]
      %v1474 = vld [vmem:[%s4 + $0x578] sm:$0xff]
      %v1475 = vld [vmem:[%s4 + $0x580] sm:$0xff]
      %v1476 = vld [vmem:[%s4 + $0x588] sm:$0xff]
      %v1477 = vld [vmem:[%s4 + $0x590] sm:$0xff]
      %v1478 = vld [vmem:[%s4 + $0x598] sm:$0xff]
      %v1479 = vld [vmem:[%s4 + $0x5a0] sm:$0xff]
      %v1480 = vld [vmem:[%s4 + $0x5a8] sm:$0xff]
      %v1481 = vld [vmem:[%s4 + $0x5b0] sm:$0xff]
      %v1482 = vld [vmem:[%s4 + $0x5b8] sm:$0xff]
      %v1483 = vld [vmem:[%s4 + $0x5c0] sm:$0xff]
      %v1484 = vld [vmem:[%s4 + $0x5c8] sm:$0xff]
      %v1485 = vld [vmem:[%s4 + $0x5d0] sm:$0xff]
      %v1486 = vld [vmem:[%s4 + $0x5d8] sm:$0xff]
      %v1487 = vld [vmem:[%s4 + $0x5e0] sm:$0xff]
      %v1488 = vld [vmem:[%s4 + $0x5e8] sm:$0xff]
      %v1489 = vld [vmem:[%s4 + $0x5f0] sm:$0xff]
      %v1490 = vld [vmem:[%s4 + $0x5f8] sm:$0xff]
      %v1491 = vld [vmem:[%s4 + $0x600] sm:$0xff]
      %v1492 = vld [vmem:[%s4 + $0x608] sm:$0xff]
      %v1493 = vld [vmem:[%s4 + $0x610] sm:$0xff]
      %v1494 = vld [vmem:[%s4 + $0x618] sm:$0xff]
      %v1495 = vld [vmem:[%s4 + $0x620] sm:$0xff]
      %v1496 = vld [vmem:[%s4 + $0x628] sm:$0xff]
      %v1497 = vld [vmem:[%s4 + $0x630] sm:$0xff]
      %v1498 = vld [vmem:[%s4 + $0x638] sm:$0xff]
      %v1499 = vld [vmem:[%s4 + $0x640] sm:$0xff]
      %v1500 = vld [vmem:[%s4 + $0x648] sm:$0xff]
      %v1501 = vld [vmem:[%s4 + $0x650] sm:$0xff]
      %v1502 = vld [vmem:[%s4 + $0x658] sm:$0xff]
      %v1503 = vld [vmem:[%s4 + $0x660] sm:$0xff]
      %v1504 = vld [vmem:[%s4 + $0x668] sm:$0xff]
      %v1505 = vld [vmem:[%s4 + $0x670] sm:$0xff]
      %v1506 = vld [vmem:[%s4 + $0x678] sm:$0xff]
      %v1507 = vld [vmem:[%s4 + $0x680] sm:$0xff]
      %v1508 = vld [vmem:[%s4 + $0x688] sm:$0xff]
      %v1509 = vld [vmem:[%s4 + $0x690] sm:$0xff]
      %v1510 = vld [vmem:[%s4 + $0x698] sm:$0xff]
      %v1511 = vld [vmem:[%s4 + $0x6a0] sm:$0xff]
      %v1512 = vld [vmem:[%s4 + $0x6a8] sm:$0xff]
      %v1513 = vld [vmem:[%s4 + $0x6b0] sm:$0xff]
      %v1514 = vld [vmem:[%s4 + $0x6b8] sm:$0xff]
      %v1515 = vld [vmem:[%s4 + $0x6c0] sm:$0xff]
      %v1516 = vld [vmem:[%s4 + $0x6c8] sm:$0xff]
      %v1517 = vld [vmem:[%s4 + $0x6d0] sm:$0xff]
      %v1518 = vld [vmem:[%s4 + $0x6d8] sm:$0xff]
      %v1519 = vld [vmem:[%s4 + $0x6e0] sm:$0xff]
      %v1520 = vld [vmem:[%s4 + $0x6e8] sm:$0xff]
      %v1521 = vld [vmem:[%s4 + $0x6f0] sm:$0xff]
      %v1522 = vld [vmem:[%s4 + $0x6f8] sm:$0xff]
      %v1523 = vld [vmem:[%s4 + $0x700] sm:$0xff]
      %v1524 = vld [vmem:[%s4 + $0x708] sm:$0xff]
      %v1525 = vld [vmem:[%s4 + $0x710] sm:$0xff]
      %v1526 = vld [vmem:[%s4 + $0x718] sm:$0xff]
      %v1527 = vld [vmem:[%s4 + $0x720] sm:$0xff]
      %v1528 = vld [vmem:[%s4 + $0x728] sm:$0xff]
      %v1529 = vld [vmem:[%s4 + $0x730] sm:$0xff]
      %v1530 = vld [vmem:[%s4 + $0x738] sm:$0xff]
      %v1531 = vld [vmem:[%s4 + $0x740] sm:$0xff]
      %v1532 = vld [vmem:[%s4 + $0x748] sm:$0xff]
      %v1533 = vld [vmem:[%s4 + $0x750] sm:$0xff]
      %v1534 = vld [vmem:[%s4 + $0x758] sm:$0xff]
      %v1535 = vld [vmem:[%s4 + $0x760] sm:$0xff]
      %v1536 = vld [vmem:[%s4 + $0x768] sm:$0xff]
      %v1537 = vld [vmem:[%s4 + $0x770] sm:$0xff]
      %v1538 = vld [vmem:[%s4 + $0x778] sm:$0xff]
      %v1539 = vld [vmem:[%s4 + $0x780] sm:$0xff]
      %v1540 = vld [vmem:[%s4 + $0x788] sm:$0xff]
      %v1541 = vld [vmem:[%s4 + $0x790] sm:$0xff]
      %v1542 = vld [vmem:[%s4 + $0x798] sm:$0xff]
      %v1543 = vld [vmem:[%s4 + $0x7a0] sm:$0xff]
      %v1544 = vld [vmem:[%s4 + $0x7a8] sm:$0xff]
      %v1545 = vld [vmem:[%s4 + $0x7b0] sm:$0xff]
      %v1546 = vld [vmem:[%s4 + $0x7b8] sm:$0xff]
      %v1547 = vld [vmem:[%s4 + $0x7c0] sm:$0xff]
      %v1548 = vld [vmem:[%s4 + $0x7c8] sm:$0xff]
      %v1549 = vld [vmem:[%s4 + $0x7d0] sm:$0xff]
      %v1550 = vld [vmem:[%s4 + $0x7d8] sm:$0xff]
      %v1551 = vld [vmem:[%s4 + $0x7e0] sm:$0xff]
      %v1552 = vld [vmem:[%s4 + $0x7e8] sm:$0xff]
      %v1553 = vld [vmem:[%s4 + $0x7f0] sm:$0xff]
      %v1554 = vld [vmem:[%s4 + $0x7f8] sm:$0xff]
      %1555 = vmatprep.subr.mxu0 %v1300
      %1556 = vmatpush1.msra.mxu0 %v1299
      %1557 = vmatprep.subr.mxu0 %v1302
      %1558 = vmatpush1.msra.mxu0 %v1301
      %1559 = vmatprep.subr.mxu0 %v1304
      %1560 = vmatpush1.msra.mxu0 %v1303
      %1561 = vmatprep.subr.mxu0 %v1306
      %1562 = vmatpush1.msra.mxu0 %v1305
      %1563 = vmatprep.subr.mxu0 %v1308
      %1564 = vmatpush1.msra.mxu0 %v1307
      %1565 = vmatprep.subr.mxu0 %v1310
      %1566 = vmatpush1.msra.mxu0 %v1309
      %1567 = vmatprep.subr.mxu0 %v1312
      %1568 = vmatpush1.msra.mxu0 %v1311
      %1569 = vmatprep.subr.mxu0 %v1314
      %1570 = vmatpush1.msra.mxu0 %v1313
      %1571 = vmatprep.subr.mxu0 %v1316
      %1572 = vmatpush1.msra.mxu0 %v1315
      %1573 = vmatprep.subr.mxu0 %v1318
      %1574 = vmatpush1.msra.mxu0 %v1317
      %1575 = vmatprep.subr.mxu0 %v1320
      %1576 = vmatpush1.msra.mxu0 %v1319
      %1577 = vmatprep.subr.mxu0 %v1322
      %1578 = vmatpush1.msra.mxu0 %v1321
      %1579 = vmatprep.subr.mxu0 %v1324
      %1580 = vmatpush1.msra.mxu0 %v1323
      %1581 = vmatprep.subr.mxu0 %v1326
      %1582 = vmatpush1.msra.mxu0 %v1325
      %1583 = vmatprep.subr.mxu0 %v1328
      %1584 = vmatpush1.msra.mxu0 %v1327
      %1585 = vmatprep.subr.mxu0 %v1330
      %1586 = vmatpush1.msra.mxu0 %v1329
      %1587 = vmatprep.subr.mxu0 %v1332
      %1588 = vmatpush1.msra.mxu0 %v1331
      %1589 = vmatprep.subr.mxu0 %v1334
      %1590 = vmatpush1.msra.mxu0 %v1333
      %1591 = vmatprep.subr.mxu0 %v1336
      %1592 = vmatpush1.msra.mxu0 %v1335
      %1593 = vmatprep.subr.mxu0 %v1338
      %1594 = vmatpush1.msra.mxu0 %v1337
      %1595 = vmatprep.subr.mxu0 %v1340
      %1596 = vmatpush1.msra.mxu0 %v1339
      %1597 = vmatprep.subr.mxu0 %v1342
      %1598 = vmatpush1.msra.mxu0 %v1341
      %1599 = vmatprep.subr.mxu0 %v1344
      %1600 = vmatpush1.msra.mxu0 %v1343
      %1601 = vmatprep.subr.mxu0 %v1346
      %1602 = vmatpush1.msra.mxu0 %v1345
      %1603 = vmatprep.subr.mxu0 %v1348
      %1604 = vmatpush1.msra.mxu0 %v1347
      %1605 = vmatprep.subr.mxu0 %v1350
      %1606 = vmatpush1.msra.mxu0 %v1349
      %1607 = vmatprep.subr.mxu0 %v1352
      %1608 = vmatpush1.msra.mxu0 %v1351
      %1609 = vmatprep.subr.mxu0 %v1354
      %1610 = vmatpush1.msra.mxu0 %v1353
      %1611 = vmatprep.subr.mxu0 %v1356
      %1612 = vmatpush1.msra.mxu0 %v1355
      %1613 = vmatprep.subr.mxu0 %v1358
      %1614 = vmatpush1.msra.mxu0 %v1357
      %1615 = vmatprep.subr.mxu0 %v1360
      %1616 = vmatpush1.msra.mxu0 %v1359
      %1617 = vmatprep.subr.mxu0 %v1362
      %1618 = vmatpush1.msra.mxu0 %v1361
      %1619 = vmatprep.mubr.f32.mxu0 %v600
      %1620 = vmatmul.mubr.f32.gmra.mrb[0].mxu0 %v598
      %v1621 = vpop.f32.mrb[0].mxu0
      %v1622 = vadd.f32 0.0, %v1621
      %v1623 = vpop.f32.mrb[0].mxu0
      %v1624 = vadd.f32 0.0, %v1623
      %1625 = vmatprep.mubr.f32.mxu0 %v604
      %1626 = vmatmul.mubr.f32.gmra.mrb[0].mxu0 %v602
      %v1627 = vpop.f32.mrb[0].mxu0
      %v1628 = vadd.f32 0.0, %v1627
      %v1629 = vpop.f32.mrb[0].mxu0
      %v1630 = vadd.f32 0.0, %v1629
      %1631 = vdwg.mxu0
      %1632 = vmatprep.subr.mxu0 %v1364
      %1633 = vmatpush1.msra.mxu0 %v1363
      %1634 = vmatprep.subr.mxu0 %v1366
      %1635 = vmatpush1.msra.mxu0 %v1365
      %1636 = vmatprep.subr.mxu0 %v1368
      %1637 = vmatpush1.msra.mxu0 %v1367
      %1638 = vmatprep.subr.mxu0 %v1370
      %1639 = vmatpush1.msra.mxu0 %v1369
      %1640 = vmatprep.subr.mxu0 %v1372
      %1641 = vmatpush1.msra.mxu0 %v1371
      %1642 = vmatprep.subr.mxu0 %v1374
      %1643 = vmatpush1.msra.mxu0 %v1373
      %1644 = vmatprep.subr.mxu0 %v1376
      %1645 = vmatpush1.msra.mxu0 %v1375
      %1646 = vmatprep.subr.mxu0 %v1378
      %1647 = vmatpush1.msra.mxu0 %v1377
      %1648 = vmatprep.subr.mxu0 %v1380
      %1649 = vmatpush1.msra.mxu0 %v1379
      %1650 = vmatprep.subr.mxu0 %v1382
      %1651 = vmatpush1.msra.mxu0 %v1381
      %1652 = vmatprep.subr.mxu0 %v1384
      %1653 = vmatpush1.msra.mxu0 %v1383
      %1654 = vmatprep.subr.mxu0 %v1386
      %1655 = vmatpush1.msra.mxu0 %v1385
      %1656 = vmatprep.subr.mxu0 %v1388
      %1657 = vmatpush1.msra.mxu0 %v1387
      %1658 = vmatprep.subr.mxu0 %v1390
      %1659 = vmatpush1.msra.mxu0 %v1389
      %1660 = vmatprep.subr.mxu0 %v1392
      %1661 = vmatpush1.msra.mxu0 %v1391
      %1662 = vmatprep.subr.mxu0 %v1394
      %1663 = vmatpush1.msra.mxu0 %v1393
      %1664 = vmatprep.subr.mxu0 %v1396
      %1665 = vmatpush1.msra.mxu0 %v1395
      %1666 = vmatprep.subr.mxu0 %v1398
      %1667 = vmatpush1.msra.mxu0 %v1397
      %1668 = vmatprep.subr.mxu0 %v1400
      %1669 = vmatpush1.msra.mxu0 %v1399
      %1670 = vmatprep.subr.mxu0 %v1402
      %1671 = vmatpush1.msra.mxu0 %v1401
      %1672 = vmatprep.subr.mxu0 %v1404
      %1673 = vmatpush1.msra.mxu0 %v1403
      %1674 = vmatprep.subr.mxu0 %v1406
      %1675 = vmatpush1.msra.mxu0 %v1405
      %1676 = vmatprep.subr.mxu0 %v1408
      %1677 = vmatpush1.msra.mxu0 %v1407
      %1678 = vmatprep.subr.mxu0 %v1410
      %1679 = vmatpush1.msra.mxu0 %v1409
      %1680 = vmatprep.subr.mxu0 %v1412
      %1681 = vmatpush1.msra.mxu0 %v1411
      %1682 = vmatprep.subr.mxu0 %v1414
      %1683 = vmatpush1.msra.mxu0 %v1413
      %1684 = vmatprep.subr.mxu0 %v1416
      %1685 = vmatpush1.msra.mxu0 %v1415
      %1686 = vmatprep.subr.mxu0 %v1418
      %1687 = vmatpush1.msra.mxu0 %v1417
      %1688 = vmatprep.subr.mxu0 %v1420
      %1689 = vmatpush1.msra.mxu0 %v1419
      %1690 = vmatprep.subr.mxu0 %v1422
      %1691 = vmatpush1.msra.mxu0 %v1421
      %1692 = vmatprep.subr.mxu0 %v1424
      %1693 = vmatpush1.msra.mxu0 %v1423
      %1694 = vmatprep.subr.mxu0 %v1426
      %1695 = vmatpush1.msra.mxu0 %v1425
      %1696 = vmatprep.mubr.f32.mxu0 %v643
      %1697 = vmatmul.mubr.f32.gmra.mrb[0].mxu0 %v641
      %v1698 = vpop.f32.mrb[0].mxu0
      %v1699 = vadd.f32 %v1622, %v1698
      %v1700 = vpop.f32.mrb[0].mxu0
      %v1701 = vadd.f32 %v1624, %v1700
      %1702 = vmatprep.mubr.f32.mxu0 %v647
      %1703 = vmatmul.mubr.f32.gmra.mrb[0].mxu0 %v645
      %v1704 = vpop.f32.mrb[0].mxu0
      %v1705 = vadd.f32 %v1628, %v1704
      %v1706 = vpop.f32.mrb[0].mxu0
      %v1707 = vadd.f32 %v1630, %v1706
      %1708 = vdwg.mxu0
      %1709 = vmatprep.subr.mxu0 %v1428
      %1710 = vmatpush1.msra.mxu0 %v1427
      %1711 = vmatprep.subr.mxu0 %v1430
      %1712 = vmatpush1.msra.mxu0 %v1429
      %1713 = vmatprep.subr.mxu0 %v1432
      %1714 = vmatpush1.msra.mxu0 %v1431
      %1715 = vmatprep.subr.mxu0 %v1434
      %1716 = vmatpush1.msra.mxu0 %v1433
      %1717 = vmatprep.subr.mxu0 %v1436
      %1718 = vmatpush1.msra.mxu0 %v1435
      %1719 = vmatprep.subr.mxu0 %v1438
      %1720 = vmatpush1.msra.mxu0 %v1437
      %1721 = vmatprep.subr.mxu0 %v1440
      %1722 = vmatpush1.msra.mxu0 %v1439
      %1723 = vmatprep.subr.mxu0 %v1442
      %1724 = vmatpush1.msra.mxu0 %v1441
      %1725 = vmatprep.subr.mxu0 %v1444
      %1726 = vmatpush1.msra.mxu0 %v1443
      %1727 = vmatprep.subr.mxu0 %v1446
      %1728 = vmatpush1.msra.mxu0 %v1445
      %1729 = vmatprep.subr.mxu0 %v1448
      %1730 = vmatpush1.msra.mxu0 %v1447
      %1731 = vmatprep.subr.mxu0 %v1450
      %1732 = vmatpush1.msra.mxu0 %v1449
      %1733 = vmatprep.subr.mxu0 %v1452
      %1734 = vmatpush1.msra.mxu0 %v1451
      %1735 = vmatprep.subr.mxu0 %v1454
      %1736 = vmatpush1.msra.mxu0 %v1453
      %1737 = vmatprep.subr.mxu0 %v1456
      %1738 = vmatpush1.msra.mxu0 %v1455
      %1739 = vmatprep.subr.mxu0 %v1458
      %1740 = vmatpush1.msra.mxu0 %v1457
      %1741 = vmatprep.subr.mxu0 %v1460
      %1742 = vmatpush1.msra.mxu0 %v1459
      %1743 = vmatprep.subr.mxu0 %v1462
      %1744 = vmatpush1.msra.mxu0 %v1461
      %1745 = vmatprep.subr.mxu0 %v1464
      %1746 = vmatpush1.msra.mxu0 %v1463
      %1747 = vmatprep.subr.mxu0 %v1466
      %1748 = vmatpush1.msra.mxu0 %v1465
      %1749 = vmatprep.subr.mxu0 %v1468
      %1750 = vmatpush1.msra.mxu0 %v1467
      %1751 = vmatprep.subr.mxu0 %v1470
      %1752 = vmatpush1.msra.mxu0 %v1469
      %1753 = vmatprep.subr.mxu0 %v1472
      %1754 = vmatpush1.msra.mxu0 %v1471
      %1755 = vmatprep.subr.mxu0 %v1474
      %1756 = vmatpush1.msra.mxu0 %v1473
      %1757 = vmatprep.subr.mxu0 %v1476
      %1758 = vmatpush1.msra.mxu0 %v1475
      %1759 = vmatprep.subr.mxu0 %v1478
      %1760 = vmatpush1.msra.mxu0 %v1477
      %1761 = vmatprep.subr.mxu0 %v1480
      %1762 = vmatpush1.msra.mxu0 %v1479
      %1763 = vmatprep.subr.mxu0 %v1482
      %1764 = vmatpush1.msra.mxu0 %v1481
      %1765 = vmatprep.subr.mxu0 %v1484
      %1766 = vmatpush1.msra.mxu0 %v1483
      %1767 = vmatprep.subr.mxu0 %v1486
      %1768 = vmatpush1.msra.mxu0 %v1485
      %1769 = vmatprep.subr.mxu0 %v1488
      %1770 = vmatpush1.msra.mxu0 %v1487
      %1771 = vmatprep.subr.mxu0 %v1490
      %1772 = vmatpush1.msra.mxu0 %v1489
      %1773 = vmatprep.mubr.f32.mxu0 %v686
      %1774 = vmatmul.mubr.f32.gmra.mrb[0].mxu0 %v684
      %v1775 = vpop.f32.mrb[0].mxu0
      %v1776 = vadd.f32 %v1699, %v1775
      %v1777 = vpop.f32.mrb[0].mxu0
      %v1778 = vadd.f32 %v1701, %v1777
      %1779 = vmatprep.mubr.f32.mxu0 %v690
      %1780 = vmatmul.mubr.f32.gmra.mrb[0].mxu0 %v688
      %v1781 = vpop.f32.mrb[0].mxu0
      %v1782 = vadd.f32 %v1705, %v1781
      %v1783 = vpop.f32.mrb[0].mxu0
      %v1784 = vadd.f32 %v1707, %v1783
      %1785 = vdwg.mxu0
      %1786 = vmatprep.subr.mxu0 %v1492
      %1787 = vmatpush1.msra.mxu0 %v1491
      %1788 = vmatprep.subr.mxu0 %v1494
      %1789 = vmatpush1.msra.mxu0 %v1493
      %1790 = vmatprep.subr.mxu0 %v1496
      %1791 = vmatpush1.msra.mxu0 %v1495
      %1792 = vmatprep.subr.mxu0 %v1498
      %1793 = vmatpush1.msra.mxu0 %v1497
      %1794 = vmatprep.subr.mxu0 %v1500
      %1795 = vmatpush1.msra.mxu0 %v1499
      %1796 = vmatprep.subr.mxu0 %v1502
      %1797 = vmatpush1.msra.mxu0 %v1501
      %1798 = vmatprep.subr.mxu0 %v1504
      %1799 = vmatpush1.msra.mxu0 %v1503
      %1800 = vmatprep.subr.mxu0 %v1506
      %1801 = vmatpush1.msra.mxu0 %v1505
      %1802 = vmatprep.subr.mxu0 %v1508
      %1803 = vmatpush1.msra.mxu0 %v1507
      %1804 = vmatprep.subr.mxu0 %v1510
      %1805 = vmatpush1.msra.mxu0 %v1509
      %1806 = vmatprep.subr.mxu0 %v1512
      %1807 = vmatpush1.msra.mxu0 %v1511
      %1808 = vmatprep.subr.mxu0 %v1514
      %1809 = vmatpush1.msra.mxu0 %v1513
      %1810 = vmatprep.subr.mxu0 %v1516
      %1811 = vmatpush1.msra.mxu0 %v1515
      %1812 = vmatprep.subr.mxu0 %v1518
      %1813 = vmatpush1.msra.mxu0 %v1517
      %1814 = vmatprep.subr.mxu0 %v1520
      %1815 = vmatpush1.msra.mxu0 %v1519
      %1816 = vmatprep.subr.mxu0 %v1522
      %1817 = vmatpush1.msra.mxu0 %v1521
      %1818 = vmatprep.subr.mxu0 %v1524
      %1819 = vmatpush1.msra.mxu0 %v1523
      %1820 = vmatprep.subr.mxu0 %v1526
      %1821 = vmatpush1.msra.mxu0 %v1525
      %1822 = vmatprep.subr.mxu0 %v1528
      %1823 = vmatpush1.msra.mxu0 %v1527
      %1824 = vmatprep.subr.mxu0 %v1530
      %1825 = vmatpush1.msra.mxu0 %v1529
      %1826 = vmatprep.subr.mxu0 %v1532
      %1827 = vmatpush1.msra.mxu0 %v1531
      %1828 = vmatprep.subr.mxu0 %v1534
      %1829 = vmatpush1.msra.mxu0 %v1533
      %1830 = vmatprep.subr.mxu0 %v1536
      %1831 = vmatpush1.msra.mxu0 %v1535
      %1832 = vmatprep.subr.mxu0 %v1538
      %1833 = vmatpush1.msra.mxu0 %v1537
      %1834 = vmatprep.subr.mxu0 %v1540
      %1835 = vmatpush1.msra.mxu0 %v1539
      %1836 = vmatprep.subr.mxu0 %v1542
      %1837 = vmatpush1.msra.mxu0 %v1541
      %1838 = vmatprep.subr.mxu0 %v1544
      %1839 = vmatpush1.msra.mxu0 %v1543
      %1840 = vmatprep.subr.mxu0 %v1546
      %1841 = vmatpush1.msra.mxu0 %v1545
      %1842 = vmatprep.subr.mxu0 %v1548
      %1843 = vmatpush1.msra.mxu0 %v1547
      %1844 = vmatprep.subr.mxu0 %v1550
      %1845 = vmatpush1.msra.mxu0 %v1549
      %1846 = vmatprep.subr.mxu0 %v1552
      %1847 = vmatpush1.msra.mxu0 %v1551
      %1848 = vmatprep.subr.mxu0 %v1554
      %1849 = vmatpush1.msra.mxu0 %v1553
      %1850 = vmatprep.mubr.f32.mxu0 %v729
      %1851 = vmatmul.mubr.f32.gmra.mrb[0].mxu0 %v727
      %v1852 = vpop.f32.mrb[0].mxu0
      %v1853 = vadd.f32 %v1776, %v1852
      %v1854 = vpop.f32.mrb[0].mxu0
      %v1855 = vadd.f32 %v1778, %v1854
      %1856 = vmatprep.mubr.f32.mxu0 %v733
      %1857 = vmatmul.mubr.f32.gmra.mrb[0].mxu0 %v731
      %v1858 = vpop.f32.mrb[0].mxu0
      %v1859 = vadd.f32 %v1782, %v1858
      %v1860 = vpop.f32.mrb[0].mxu0
      %v1861 = vadd.f32 %v1784, %v1860
      %1862 = vdwg.mxu0
      %v1863 = vld [vmem:[%s5] sm:$0xff]
      %v1864 = vld [vmem:[%s5 + $0x8] sm:$0xff]
      %v1865 = vld [vmem:[%s5 + $0x10] sm:$0xff]
      %v1866 = vld [vmem:[%s5 + $0x18] sm:$0xff]
      %v1867 = vld [vmem:[%s5 + $0x20] sm:$0xff]
      %v1868 = vld [vmem:[%s5 + $0x28] sm:$0xff]
      %v1869 = vld [vmem:[%s5 + $0x30] sm:$0xff]
      %v1870 = vld [vmem:[%s5 + $0x38] sm:$0xff]
      %v1871 = vld [vmem:[%s5 + $0x40] sm:$0xff]
      %v1872 = vld [vmem:[%s5 + $0x48] sm:$0xff]
      %v1873 = vld [vmem:[%s5 + $0x50] sm:$0xff]
      %v1874 = vld [vmem:[%s5 + $0x58] sm:$0xff]
      %v1875 = vld [vmem:[%s5 + $0x60] sm:$0xff]
      %v1876 = vld [vmem:[%s5 + $0x68] sm:$0xff]
      %v1877 = vld [vmem:[%s5 + $0x70] sm:$0xff]
      %v1878 = vld [vmem:[%s5 + $0x78] sm:$0xff]
      %v1879 = vld [vmem:[%s5 + $0x80] sm:$0xff]
      %v1880 = vld [vmem:[%s5 + $0x88] sm:$0xff]
      %v1881 = vld [vmem:[%s5 + $0x90] sm:$0xff]
      %v1882 = vld [vmem:[%s5 + $0x98] sm:$0xff]
      %v1883 = vld [vmem:[%s5 + $0xa0] sm:$0xff]
      %v1884 = vld [vmem:[%s5 + $0xa8] sm:$0xff]
      %v1885 = vld [vmem:[%s5 + $0xb0] sm:$0xff]
      %v1886 = vld [vmem:[%s5 + $0xb8] sm:$0xff]
      %v1887 = vld [vmem:[%s5 + $0xc0] sm:$0xff]
      %v1888 = vld [vmem:[%s5 + $0xc8] sm:$0xff]
      %v1889 = vld [vmem:[%s5 + $0xd0] sm:$0xff]
      %v1890 = vld [vmem:[%s5 + $0xd8] sm:$0xff]
      %v1891 = vld [vmem:[%s5 + $0xe0] sm:$0xff]
      %v1892 = vld [vmem:[%s5 + $0xe8] sm:$0xff]
      %v1893 = vld [vmem:[%s5 + $0xf0] sm:$0xff]
      %v1894 = vld [vmem:[%s5 + $0xf8] sm:$0xff]
      %v1895 = vld [vmem:[%s5 + $0x100] sm:$0xff]
      %v1896 = vld [vmem:[%s5 + $0x108] sm:$0xff]
      %v1897 = vld [vmem:[%s5 + $0x110] sm:$0xff]
      %v1898 = vld [vmem:[%s5 + $0x118] sm:$0xff]
      %v1899 = vld [vmem:[%s5 + $0x120] sm:$0xff]
      %v1900 = vld [vmem:[%s5 + $0x128] sm:$0xff]
      %v1901 = vld [vmem:[%s5 + $0x130] sm:$0xff]
      %v1902 = vld [vmem:[%s5 + $0x138] sm:$0xff]
      %v1903 = vld [vmem:[%s5 + $0x140] sm:$0xff]
      %v1904 = vld [vmem:[%s5 + $0x148] sm:$0xff]
      %v1905 = vld [vmem:[%s5 + $0x150] sm:$0xff]
      %v1906 = vld [vmem:[%s5 + $0x158] sm:$0xff]
      %v1907 = vld [vmem:[%s5 + $0x160] sm:$0xff]
      %v1908 = vld [vmem:[%s5 + $0x168] sm:$0xff]
      %v1909 = vld [vmem:[%s5 + $0x170] sm:$0xff]
      %v1910 = vld [vmem:[%s5 + $0x178] sm:$0xff]
      %v1911 = vld [vmem:[%s5 + $0x180] sm:$0xff]
      %v1912 = vld [vmem:[%s5 + $0x188] sm:$0xff]
      %v1913 = vld [vmem:[%s5 + $0x190] sm:$0xff]
      %v1914 = vld [vmem:[%s5 + $0x198] sm:$0xff]
      %v1915 = vld [vmem:[%s5 + $0x1a0] sm:$0xff]
      %v1916 = vld [vmem:[%s5 + $0x1a8] sm:$0xff]
      %v1917 = vld [vmem:[%s5 + $0x1b0] sm:$0xff]
      %v1918 = vld [vmem:[%s5 + $0x1b8] sm:$0xff]
      %v1919 = vld [vmem:[%s5 + $0x1c0] sm:$0xff]
      %v1920 = vld [vmem:[%s5 + $0x1c8] sm:$0xff]
      %v1921 = vld [vmem:[%s5 + $0x1d0] sm:$0xff]
      %v1922 = vld [vmem:[%s5 + $0x1d8] sm:$0xff]
      %v1923 = vld [vmem:[%s5 + $0x1e0] sm:$0xff]
      %v1924 = vld [vmem:[%s5 + $0x1e8] sm:$0xff]
      %v1925 = vld [vmem:[%s5 + $0x1f0] sm:$0xff]
      %v1926 = vld [vmem:[%s5 + $0x1f8] sm:$0xff]
      %v1927 = vld [vmem:[%s5 + $0x200] sm:$0xff]
      %v1928 = vld [vmem:[%s5 + $0x208] sm:$0xff]
      %v1929 = vld [vmem:[%s5 + $0x210] sm:$0xff]
      %v1930 = vld [vmem:[%s5 + $0x218] sm:$0xff]
      %v1931 = vld [vmem:[%s5 + $0x220] sm:$0xff]
      %v1932 = vld [vmem:[%s5 + $0x228] sm:$0xff]
      %v1933 = vld [vmem:[%s5 + $0x230] sm:$0xff]
      %v1934 = vld [vmem:[%s5 + $0x238] sm:$0xff]
      %v1935 = vld [vmem:[%s5 + $0x240] sm:$0xff]
      %v1936 = vld [vmem:[%s5 + $0x248] sm:$0xff]
      %v1937 = vld [vmem:[%s5 + $0x250] sm:$0xff]
      %v1938 = vld [vmem:[%s5 + $0x258] sm:$0xff]
      %v1939 = vld [vmem:[%s5 + $0x260] sm:$0xff]
      %v1940 = vld [vmem:[%s5 + $0x268] sm:$0xff]
      %v1941 = vld [vmem:[%s5 + $0x270] sm:$0xff]
      %v1942 = vld [vmem:[%s5 + $0x278] sm:$0xff]
      %v1943 = vld [vmem:[%s5 + $0x280] sm:$0xff]
      %v1944 = vld [vmem:[%s5 + $0x288] sm:$0xff]
      %v1945 = vld [vmem:[%s5 + $0x290] sm:$0xff]
      %v1946 = vld [vmem:[%s5 + $0x298] sm:$0xff]
      %v1947 = vld [vmem:[%s5 + $0x2a0] sm:$0xff]
      %v1948 = vld [vmem:[%s5 + $0x2a8] sm:$0xff]
      %v1949 = vld [vmem:[%s5 + $0x2b0] sm:$0xff]
      %v1950 = vld [vmem:[%s5 + $0x2b8] sm:$0xff]
      %v1951 = vld [vmem:[%s5 + $0x2c0] sm:$0xff]
      %v1952 = vld [vmem:[%s5 + $0x2c8] sm:$0xff]
      %v1953 = vld [vmem:[%s5 + $0x2d0] sm:$0xff]
      %v1954 = vld [vmem:[%s5 + $0x2d8] sm:$0xff]
      %v1955 = vld [vmem:[%s5 + $0x2e0] sm:$0xff]
      %v1956 = vld [vmem:[%s5 + $0x2e8] sm:$0xff]
      %v1957 = vld [vmem:[%s5 + $0x2f0] sm:$0xff]
      %v1958 = vld [vmem:[%s5 + $0x2f8] sm:$0xff]
      %v1959 = vld [vmem:[%s5 + $0x300] sm:$0xff]
      %v1960 = vld [vmem:[%s5 + $0x308] sm:$0xff]
      %v1961 = vld [vmem:[%s5 + $0x310] sm:$0xff]
      %v1962 = vld [vmem:[%s5 + $0x318] sm:$0xff]
      %v1963 = vld [vmem:[%s5 + $0x320] sm:$0xff]
      %v1964 = vld [vmem:[%s5 + $0x328] sm:$0xff]
      %v1965 = vld [vmem:[%s5 + $0x330] sm:$0xff]
      %v1966 = vld [vmem:[%s5 + $0x338] sm:$0xff]
      %v1967 = vld [vmem:[%s5 + $0x340] sm:$0xff]
      %v1968 = vld [vmem:[%s5 + $0x348] sm:$0xff]
      %v1969 = vld [vmem:[%s5 + $0x350] sm:$0xff]
      %v1970 = vld [vmem:[%s5 + $0x358] sm:$0xff]
      %v1971 = vld [vmem:[%s5 + $0x360] sm:$0xff]
      %v1972 = vld [vmem:[%s5 + $0x368] sm:$0xff]
      %v1973 = vld [vmem:[%s5 + $0x370] sm:$0xff]
      %v1974 = vld [vmem:[%s5 + $0x378] sm:$0xff]
      %v1975 = vld [vmem:[%s5 + $0x380] sm:$0xff]
      %v1976 = vld [vmem:[%s5 + $0x388] sm:$0xff]
      %v1977 = vld [vmem:[%s5 + $0x390] sm:$0xff]
      %v1978 = vld [vmem:[%s5 + $0x398] sm:$0xff]
      %v1979 = vld [vmem:[%s5 + $0x3a0] sm:$0xff]
      %v1980 = vld [vmem:[%s5 + $0x3a8] sm:$0xff]
      %v1981 = vld [vmem:[%s5 + $0x3b0] sm:$0xff]
      %v1982 = vld [vmem:[%s5 + $0x3b8] sm:$0xff]
      %v1983 = vld [vmem:[%s5 + $0x3c0] sm:$0xff]
      %v1984 = vld [vmem:[%s5 + $0x3c8] sm:$0xff]
      %v1985 = vld [vmem:[%s5 + $0x3d0] sm:$0xff]
      %v1986 = vld [vmem:[%s5 + $0x3d8] sm:$0xff]
      %v1987 = vld [vmem:[%s5 + $0x3e0] sm:$0xff]
      %v1988 = vld [vmem:[%s5 + $0x3e8] sm:$0xff]
      %v1989 = vld [vmem:[%s5 + $0x3f0] sm:$0xff]
      %v1990 = vld [vmem:[%s5 + $0x3f8] sm:$0xff]
      %v1991 = vld [vmem:[%s5 + $0x400] sm:$0xff]
      %v1992 = vld [vmem:[%s5 + $0x408] sm:$0xff]
      %v1993 = vld [vmem:[%s5 + $0x410] sm:$0xff]
      %v1994 = vld [vmem:[%s5 + $0x418] sm:$0xff]
      %v1995 = vld [vmem:[%s5 + $0x420] sm:$0xff]
      %v1996 = vld [vmem:[%s5 + $0x428] sm:$0xff]
      %v1997 = vld [vmem:[%s5 + $0x430] sm:$0xff]
      %v1998 = vld [vmem:[%s5 + $0x438] sm:$0xff]
      %v1999 = vld [vmem:[%s5 + $0x440] sm:$0xff]
      %v2000 = vld [vmem:[%s5 + $0x448] sm:$0xff]
      %v2001 = vld [vmem:[%s5 + $0x450] sm:$0xff]
      %v2002 = vld [vmem:[%s5 + $0x458] sm:$0xff]
      %v2003 = vld [vmem:[%s5 + $0x460] sm:$0xff]
      %v2004 = vld [vmem:[%s5 + $0x468] sm:$0xff]
      %v2005 = vld [vmem:[%s5 + $0x470] sm:$0xff]
      %v2006 = vld [vmem:[%s5 + $0x478] sm:$0xff]
      %v2007 = vld [vmem:[%s5 + $0x480] sm:$0xff]
      %v2008 = vld [vmem:[%s5 + $0x488] sm:$0xff]
      %v2009 = vld [vmem:[%s5 + $0x490] sm:$0xff]
      %v2010 = vld [vmem:[%s5 + $0x498] sm:$0xff]
      %v2011 = vld [vmem:[%s5 + $0x4a0] sm:$0xff]
      %v2012 = vld [vmem:[%s5 + $0x4a8] sm:$0xff]
      %v2013 = vld [vmem:[%s5 + $0x4b0] sm:$0xff]
      %v2014 = vld [vmem:[%s5 + $0x4b8] sm:$0xff]
      %v2015 = vld [vmem:[%s5 + $0x4c0] sm:$0xff]
      %v2016 = vld [vmem:[%s5 + $0x4c8] sm:$0xff]
      %v2017 = vld [vmem:[%s5 + $0x4d0] sm:$0xff]
      %v2018 = vld [vmem:[%s5 + $0x4d8] sm:$0xff]
      %v2019 = vld [vmem:[%s5 + $0x4e0] sm:$0xff]
      %v2020 = vld [vmem:[%s5 + $0x4e8] sm:$0xff]
      %v2021 = vld [vmem:[%s5 + $0x4f0] sm:$0xff]
      %v2022 = vld [vmem:[%s5 + $0x4f8] sm:$0xff]
      %v2023 = vld [vmem:[%s5 + $0x500] sm:$0xff]
      %v2024 = vld [vmem:[%s5 + $0x508] sm:$0xff]
      %v2025 = vld [vmem:[%s5 + $0x510] sm:$0xff]
      %v2026 = vld [vmem:[%s5 + $0x518] sm:$0xff]
      %v2027 = vld [vmem:[%s5 + $0x520] sm:$0xff]
      %v2028 = vld [vmem:[%s5 + $0x528] sm:$0xff]
      %v2029 = vld [vmem:[%s5 + $0x530] sm:$0xff]
      %v2030 = vld [vmem:[%s5 + $0x538] sm:$0xff]
      %v2031 = vld [vmem:[%s5 + $0x540] sm:$0xff]
      %v2032 = vld [vmem:[%s5 + $0x548] sm:$0xff]
      %v2033 = vld [vmem:[%s5 + $0x550] sm:$0xff]
      %v2034 = vld [vmem:[%s5 + $0x558] sm:$0xff]
      %v2035 = vld [vmem:[%s5 + $0x560] sm:$0xff]
      %v2036 = vld [vmem:[%s5 + $0x568] sm:$0xff]
      %v2037 = vld [vmem:[%s5 + $0x570] sm:$0xff]
      %v2038 = vld [vmem:[%s5 + $0x578] sm:$0xff]
      %v2039 = vld [vmem:[%s5 + $0x580] sm:$0xff]
      %v2040 = vld [vmem:[%s5 + $0x588] sm:$0xff]
      %v2041 = vld [vmem:[%s5 + $0x590] sm:$0xff]
      %v2042 = vld [vmem:[%s5 + $0x598] sm:$0xff]
      %v2043 = vld [vmem:[%s5 + $0x5a0] sm:$0xff]
      %v2044 = vld [vmem:[%s5 + $0x5a8] sm:$0xff]
      %v2045 = vld [vmem:[%s5 + $0x5b0] sm:$0xff]
      %v2046 = vld [vmem:[%s5 + $0x5b8] sm:$0xff]
      %v2047 = vld [vmem:[%s5 + $0x5c0] sm:$0xff]
      %v2048 = vld [vmem:[%s5 + $0x5c8] sm:$0xff]
      %v2049 = vld [vmem:[%s5 + $0x5d0] sm:$0xff]
      %v2050 = vld [vmem:[%s5 + $0x5d8] sm:$0xff]
      %v2051 = vld [vmem:[%s5 + $0x5e0] sm:$0xff]
      %v2052 = vld [vmem:[%s5 + $0x5e8] sm:$0xff]
      %v2053 = vld [vmem:[%s5 + $0x5f0] sm:$0xff]
      %v2054 = vld [vmem:[%s5 + $0x5f8] sm:$0xff]
      %v2055 = vld [vmem:[%s5 + $0x600] sm:$0xff]
      %v2056 = vld [vmem:[%s5 + $0x608] sm:$0xff]
      %v2057 = vld [vmem:[%s5 + $0x610] sm:$0xff]
      %v2058 = vld [vmem:[%s5 + $0x618] sm:$0xff]
      %v2059 = vld [vmem:[%s5 + $0x620] sm:$0xff]
      %v2060 = vld [vmem:[%s5 + $0x628] sm:$0xff]
      %v2061 = vld [vmem:[%s5 + $0x630] sm:$0xff]
      %v2062 = vld [vmem:[%s5 + $0x638] sm:$0xff]
      %v2063 = vld [vmem:[%s5 + $0x640] sm:$0xff]
      %v2064 = vld [vmem:[%s5 + $0x648] sm:$0xff]
      %v2065 = vld [vmem:[%s5 + $0x650] sm:$0xff]
      %v2066 = vld [vmem:[%s5 + $0x658] sm:$0xff]
      %v2067 = vld [vmem:[%s5 + $0x660] sm:$0xff]
      %v2068 = vld [vmem:[%s5 + $0x668] sm:$0xff]
      %v2069 = vld [vmem:[%s5 + $0x670] sm:$0xff]
      %v2070 = vld [vmem:[%s5 + $0x678] sm:$0xff]
      %v2071 = vld [vmem:[%s5 + $0x680] sm:$0xff]
      %v2072 = vld [vmem:[%s5 + $0x688] sm:$0xff]
      %v2073 = vld [vmem:[%s5 + $0x690] sm:$0xff]
      %v2074 = vld [vmem:[%s5 + $0x698] sm:$0xff]
      %v2075 = vld [vmem:[%s5 + $0x6a0] sm:$0xff]
      %v2076 = vld [vmem:[%s5 + $0x6a8] sm:$0xff]
      %v2077 = vld [vmem:[%s5 + $0x6b0] sm:$0xff]
      %v2078 = vld [vmem:[%s5 + $0x6b8] sm:$0xff]
      %v2079 = vld [vmem:[%s5 + $0x6c0] sm:$0xff]
      %v2080 = vld [vmem:[%s5 + $0x6c8] sm:$0xff]
      %v2081 = vld [vmem:[%s5 + $0x6d0] sm:$0xff]
      %v2082 = vld [vmem:[%s5 + $0x6d8] sm:$0xff]
      %v2083 = vld [vmem:[%s5 + $0x6e0] sm:$0xff]
      %v2084 = vld [vmem:[%s5 + $0x6e8] sm:$0xff]
      %v2085 = vld [vmem:[%s5 + $0x6f0] sm:$0xff]
      %v2086 = vld [vmem:[%s5 + $0x6f8] sm:$0xff]
      %v2087 = vld [vmem:[%s5 + $0x700] sm:$0xff]
      %v2088 = vld [vmem:[%s5 + $0x708] sm:$0xff]
      %v2089 = vld [vmem:[%s5 + $0x710] sm:$0xff]
      %v2090 = vld [vmem:[%s5 + $0x718] sm:$0xff]
      %v2091 = vld [vmem:[%s5 + $0x720] sm:$0xff]
      %v2092 = vld [vmem:[%s5 + $0x728] sm:$0xff]
      %v2093 = vld [vmem:[%s5 + $0x730] sm:$0xff]
      %v2094 = vld [vmem:[%s5 + $0x738] sm:$0xff]
      %v2095 = vld [vmem:[%s5 + $0x740] sm:$0xff]
      %v2096 = vld [vmem:[%s5 + $0x748] sm:$0xff]
      %v2097 = vld [vmem:[%s5 + $0x750] sm:$0xff]
      %v2098 = vld [vmem:[%s5 + $0x758] sm:$0xff]
      %v2099 = vld [vmem:[%s5 + $0x760] sm:$0xff]
      %v2100 = vld [vmem:[%s5 + $0x768] sm:$0xff]
      %v2101 = vld [vmem:[%s5 + $0x770] sm:$0xff]
      %v2102 = vld [vmem:[%s5 + $0x778] sm:$0xff]
      %v2103 = vld [vmem:[%s5 + $0x780] sm:$0xff]
      %v2104 = vld [vmem:[%s5 + $0x788] sm:$0xff]
      %v2105 = vld [vmem:[%s5 + $0x790] sm:$0xff]
      %v2106 = vld [vmem:[%s5 + $0x798] sm:$0xff]
      %v2107 = vld [vmem:[%s5 + $0x7a0] sm:$0xff]
      %v2108 = vld [vmem:[%s5 + $0x7a8] sm:$0xff]
      %v2109 = vld [vmem:[%s5 + $0x7b0] sm:$0xff]
      %v2110 = vld [vmem:[%s5 + $0x7b8] sm:$0xff]
      %v2111 = vld [vmem:[%s5 + $0x7c0] sm:$0xff]
      %v2112 = vld [vmem:[%s5 + $0x7c8] sm:$0xff]
      %v2113 = vld [vmem:[%s5 + $0x7d0] sm:$0xff]
      %v2114 = vld [vmem:[%s5 + $0x7d8] sm:$0xff]
      %v2115 = vld [vmem:[%s5 + $0x7e0] sm:$0xff]
      %v2116 = vld [vmem:[%s5 + $0x7e8] sm:$0xff]
      %v2117 = vld [vmem:[%s5 + $0x7f0] sm:$0xff]
      %v2118 = vld [vmem:[%s5 + $0x7f8] sm:$0xff]
      %2119 = vmatprep.subr.mxu0 %v1864
      %2120 = vmatpush1.msra.mxu0 %v1863
      %2121 = vmatprep.subr.mxu0 %v1866
      %2122 = vmatpush1.msra.mxu0 %v1865
      %2123 = vmatprep.subr.mxu0 %v1868
      %2124 = vmatpush1.msra.mxu0 %v1867
      %2125 = vmatprep.subr.mxu0 %v1870
      %2126 = vmatpush1.msra.mxu0 %v1869
      %2127 = vmatprep.subr.mxu0 %v1872
      %2128 = vmatpush1.msra.mxu0 %v1871
      %2129 = vmatprep.subr.mxu0 %v1874
      %2130 = vmatpush1.msra.mxu0 %v1873
      %2131 = vmatprep.subr.mxu0 %v1876
      %2132 = vmatpush1.msra.mxu0 %v1875
      %2133 = vmatprep.subr.mxu0 %v1878
      %2134 = vmatpush1.msra.mxu0 %v1877
      %2135 = vmatprep.subr.mxu0 %v1880
      %2136 = vmatpush1.msra.mxu0 %v1879
      %2137 = vmatprep.subr.mxu0 %v1882
      %2138 = vmatpush1.msra.mxu0 %v1881
      %2139 = vmatprep.subr.mxu0 %v1884
      %2140 = vmatpush1.msra.mxu0 %v1883
      %2141 = vmatprep.subr.mxu0 %v1886
      %2142 = vmatpush1.msra.mxu0 %v1885
      %2143 = vmatprep.subr.mxu0 %v1888
      %2144 = vmatpush1.msra.mxu0 %v1887
      %2145 = vmatprep.subr.mxu0 %v1890
      %2146 = vmatpush1.msra.mxu0 %v1889
      %2147 = vmatprep.subr.mxu0 %v1892
      %2148 = vmatpush1.msra.mxu0 %v1891
      %2149 = vmatprep.subr.mxu0 %v1894
      %2150 = vmatpush1.msra.mxu0 %v1893
      %2151 = vmatprep.subr.mxu0 %v1896
      %2152 = vmatpush1.msra.mxu0 %v1895
      %2153 = vmatprep.subr.mxu0 %v1898
      %2154 = vmatpush1.msra.mxu0 %v1897
      %2155 = vmatprep.subr.mxu0 %v1900
      %2156 = vmatpush1.msra.mxu0 %v1899
      %2157 = vmatprep.subr.mxu0 %v1902
      %2158 = vmatpush1.msra.mxu0 %v1901
      %2159 = vmatprep.subr.mxu0 %v1904
      %2160 = vmatpush1.msra.mxu0 %v1903
      %2161 = vmatprep.subr.mxu0 %v1906
      %2162 = vmatpush1.msra.mxu0 %v1905
      %2163 = vmatprep.subr.mxu0 %v1908
      %2164 = vmatpush1.msra.mxu0 %v1907
      %2165 = vmatprep.subr.mxu0 %v1910
      %2166 = vmatpush1.msra.mxu0 %v1909
      %2167 = vmatprep.subr.mxu0 %v1912
      %2168 = vmatpush1.msra.mxu0 %v1911
      %2169 = vmatprep.subr.mxu0 %v1914
      %2170 = vmatpush1.msra.mxu0 %v1913
      %2171 = vmatprep.subr.mxu0 %v1916
      %2172 = vmatpush1.msra.mxu0 %v1915
      %2173 = vmatprep.subr.mxu0 %v1918
      %2174 = vmatpush1.msra.mxu0 %v1917
      %2175 = vmatprep.subr.mxu0 %v1920
      %2176 = vmatpush1.msra.mxu0 %v1919
      %2177 = vmatprep.subr.mxu0 %v1922
      %2178 = vmatpush1.msra.mxu0 %v1921
      %2179 = vmatprep.subr.mxu0 %v1924
      %2180 = vmatpush1.msra.mxu0 %v1923
      %2181 = vmatprep.subr.mxu0 %v1926
      %2182 = vmatpush1.msra.mxu0 %v1925
      %2183 = vmatprep.mubr.f32.mxu0 %v600
      %2184 = vmatmul.mubr.f32.gmra.mrb[0].mxu0 %v598
      %v2185 = vpop.f32.mrb[0].mxu0
      %v2186 = vadd.f32 0.0, %v2185
      %v2187 = vpop.f32.mrb[0].mxu0
      %v2188 = vadd.f32 0.0, %v2187
      %2189 = vmatprep.mubr.f32.mxu0 %v604
      %2190 = vmatmul.mubr.f32.gmra.mrb[0].mxu0 %v602
      %v2191 = vpop.f32.mrb[0].mxu0
      %v2192 = vadd.f32 0.0, %v2191
      %v2193 = vpop.f32.mrb[0].mxu0
      %v2194 = vadd.f32 0.0, %v2193
      %2195 = vdwg.mxu0
      %2196 = vmatprep.subr.mxu0 %v1928
      %2197 = vmatpush1.msra.mxu0 %v1927
      %2198 = vmatprep.subr.mxu0 %v1930
      %2199 = vmatpush1.msra.mxu0 %v1929
      %2200 = vmatprep.subr.mxu0 %v1932
      %2201 = vmatpush1.msra.mxu0 %v1931
      %2202 = vmatprep.subr.mxu0 %v1934
      %2203 = vmatpush1.msra.mxu0 %v1933
      %2204 = vmatprep.subr.mxu0 %v1936
      %2205 = vmatpush1.msra.mxu0 %v1935
      %2206 = vmatprep.subr.mxu0 %v1938
      %2207 = vmatpush1.msra.mxu0 %v1937
      %2208 = vmatprep.subr.mxu0 %v1940
      %2209 = vmatpush1.msra.mxu0 %v1939
      %2210 = vmatprep.subr.mxu0 %v1942
      %2211 = vmatpush1.msra.mxu0 %v1941
      %2212 = vmatprep.subr.mxu0 %v1944
      %2213 = vmatpush1.msra.mxu0 %v1943
      %2214 = vmatprep.subr.mxu0 %v1946
      %2215 = vmatpush1.msra.mxu0 %v1945
      %2216 = vmatprep.subr.mxu0 %v1948
      %2217 = vmatpush1.msra.mxu0 %v1947
      %2218 = vmatprep.subr.mxu0 %v1950
      %2219 = vmatpush1.msra.mxu0 %v1949
      %2220 = vmatprep.subr.mxu0 %v1952
      %2221 = vmatpush1.msra.mxu0 %v1951
      %2222 = vmatprep.subr.mxu0 %v1954
      %2223 = vmatpush1.msra.mxu0 %v1953
      %2224 = vmatprep.subr.mxu0 %v1956
      %2225 = vmatpush1.msra.mxu0 %v1955
      %2226 = vmatprep.subr.mxu0 %v1958
      %2227 = vmatpush1.msra.mxu0 %v1957
      %2228 = vmatprep.subr.mxu0 %v1960
      %2229 = vmatpush1.msra.mxu0 %v1959
      %2230 = vmatprep.subr.mxu0 %v1962
      %2231 = vmatpush1.msra.mxu0 %v1961
      %2232 = vmatprep.subr.mxu0 %v1964
      %2233 = vmatpush1.msra.mxu0 %v1963
      %2234 = vmatprep.subr.mxu0 %v1966
      %2235 = vmatpush1.msra.mxu0 %v1965
      %2236 = vmatprep.subr.mxu0 %v1968
      %2237 = vmatpush1.msra.mxu0 %v1967
      %2238 = vmatprep.subr.mxu0 %v1970
      %2239 = vmatpush1.msra.mxu0 %v1969
      %2240 = vmatprep.subr.mxu0 %v1972
      %2241 = vmatpush1.msra.mxu0 %v1971
      %2242 = vmatprep.subr.mxu0 %v1974
      %2243 = vmatpush1.msra.mxu0 %v1973
      %2244 = vmatprep.subr.mxu0 %v1976
      %2245 = vmatpush1.msra.mxu0 %v1975
      %2246 = vmatprep.subr.mxu0 %v1978
      %2247 = vmatpush1.msra.mxu0 %v1977
      %2248 = vmatprep.subr.mxu0 %v1980
      %2249 = vmatpush1.msra.mxu0 %v1979
      %2250 = vmatprep.subr.mxu0 %v1982
      %2251 = vmatpush1.msra.mxu0 %v1981
      %2252 = vmatprep.subr.mxu0 %v1984
      %2253 = vmatpush1.msra.mxu0 %v1983
      %2254 = vmatprep.subr.mxu0 %v1986
      %2255 = vmatpush1.msra.mxu0 %v1985
      %2256 = vmatprep.subr.mxu0 %v1988
      %2257 = vmatpush1.msra.mxu0 %v1987
      %2258 = vmatprep.subr.mxu0 %v1990
      %2259 = vmatpush1.msra.mxu0 %v1989
      %2260 = vmatprep.mubr.f32.mxu0 %v643
      %2261 = vmatmul.mubr.f32.gmra.mrb[0].mxu0 %v641
      %v2262 = vpop.f32.mrb[0].mxu0
      %v2263 = vadd.f32 %v2186, %v2262
      %v2264 = vpop.f32.mrb[0].mxu0
      %v2265 = vadd.f32 %v2188, %v2264
      %2266 = vmatprep.mubr.f32.mxu0 %v647
      %2267 = vmatmul.mubr.f32.gmra.mrb[0].mxu0 %v645
      %v2268 = vpop.f32.mrb[0].mxu0
      %v2269 = vadd.f32 %v2192, %v2268
      %v2270 = vpop.f32.mrb[0].mxu0
      %v2271 = vadd.f32 %v2194, %v2270
      %2272 = vdwg.mxu0
      %2273 = vmatprep.subr.mxu0 %v1992
      %2274 = vmatpush1.msra.mxu0 %v1991
      %2275 = vmatprep.subr.mxu0 %v1994
      %2276 = vmatpush1.msra.mxu0 %v1993
      %2277 = vmatprep.subr.mxu0 %v1996
      %2278 = vmatpush1.msra.mxu0 %v1995
      %2279 = vmatprep.subr.mxu0 %v1998
      %2280 = vmatpush1.msra.mxu0 %v1997
      %2281 = vmatprep.subr.mxu0 %v2000
      %2282 = vmatpush1.msra.mxu0 %v1999
      %2283 = vmatprep.subr.mxu0 %v2002
      %2284 = vmatpush1.msra.mxu0 %v2001
      %2285 = vmatprep.subr.mxu0 %v2004
      %2286 = vmatpush1.msra.mxu0 %v2003
      %2287 = vmatprep.subr.mxu0 %v2006
      %2288 = vmatpush1.msra.mxu0 %v2005
      %2289 = vmatprep.subr.mxu0 %v2008
      %2290 = vmatpush1.msra.mxu0 %v2007
      %2291 = vmatprep.subr.mxu0 %v2010
      %2292 = vmatpush1.msra.mxu0 %v2009
      %2293 = vmatprep.subr.mxu0 %v2012
      %2294 = vmatpush1.msra.mxu0 %v2011
      %2295 = vmatprep.subr.mxu0 %v2014
      %2296 = vmatpush1.msra.mxu0 %v2013
      %2297 = vmatprep.subr.mxu0 %v2016
      %2298 = vmatpush1.msra.mxu0 %v2015
      %2299 = vmatprep.subr.mxu0 %v2018
      %2300 = vmatpush1.msra.mxu0 %v2017
      %2301 = vmatprep.subr.mxu0 %v2020
      %2302 = vmatpush1.msra.mxu0 %v2019
      %2303 = vmatprep.subr.mxu0 %v2022
      %2304 = vmatpush1.msra.mxu0 %v2021
      %2305 = vmatprep.subr.mxu0 %v2024
      %2306 = vmatpush1.msra.mxu0 %v2023
      %2307 = vmatprep.subr.mxu0 %v2026
      %2308 = vmatpush1.msra.mxu0 %v2025
      %2309 = vmatprep.subr.mxu0 %v2028
      %2310 = vmatpush1.msra.mxu0 %v2027
      %2311 = vmatprep.subr.mxu0 %v2030
      %2312 = vmatpush1.msra.mxu0 %v2029
      %2313 = vmatprep.subr.mxu0 %v2032
      %2314 = vmatpush1.msra.mxu0 %v2031
      %2315 = vmatprep.subr.mxu0 %v2034
      %2316 = vmatpush1.msra.mxu0 %v2033
      %2317 = vmatprep.subr.mxu0 %v2036
      %2318 = vmatpush1.msra.mxu0 %v2035
      %2319 = vmatprep.subr.mxu0 %v2038
      %2320 = vmatpush1.msra.mxu0 %v2037
      %2321 = vmatprep.subr.mxu0 %v2040
      %2322 = vmatpush1.msra.mxu0 %v2039
      %2323 = vmatprep.subr.mxu0 %v2042
      %2324 = vmatpush1.msra.mxu0 %v2041
      %2325 = vmatprep.subr.mxu0 %v2044
      %2326 = vmatpush1.msra.mxu0 %v2043
      %2327 = vmatprep.subr.mxu0 %v2046
      %2328 = vmatpush1.msra.mxu0 %v2045
      %2329 = vmatprep.subr.mxu0 %v2048
      %2330 = vmatpush1.msra.mxu0 %v2047
      %2331 = vmatprep.subr.mxu0 %v2050
      %2332 = vmatpush1.msra.mxu0 %v2049
      %2333 = vmatprep.subr.mxu0 %v2052
      %2334 = vmatpush1.msra.mxu0 %v2051
      %2335 = vmatprep.subr.mxu0 %v2054
      %2336 = vmatpush1.msra.mxu0 %v2053
      %2337 = vmatprep.mubr.f32.mxu0 %v686
      %2338 = vmatmul.mubr.f32.gmra.mrb[0].mxu0 %v684
      %v2339 = vpop.f32.mrb[0].mxu0
      %v2340 = vadd.f32 %v2263, %v2339
      %v2341 = vpop.f32.mrb[0].mxu0
      %v2342 = vadd.f32 %v2265, %v2341
      %2343 = vmatprep.mubr.f32.mxu0 %v690
      %2344 = vmatmul.mubr.f32.gmra.mrb[0].mxu0 %v688
      %v2345 = vpop.f32.mrb[0].mxu0
      %v2346 = vadd.f32 %v2269, %v2345
      %v2347 = vpop.f32.mrb[0].mxu0
      %v2348 = vadd.f32 %v2271, %v2347
      %2349 = vdwg.mxu0
      %2350 = vmatprep.subr.mxu0 %v2056
      %2351 = vmatpush1.msra.mxu0 %v2055
      %2352 = vmatprep.subr.mxu0 %v2058
      %2353 = vmatpush1.msra.mxu0 %v2057
      %2354 = vmatprep.subr.mxu0 %v2060
      %2355 = vmatpush1.msra.mxu0 %v2059
      %2356 = vmatprep.subr.mxu0 %v2062
      %2357 = vmatpush1.msra.mxu0 %v2061
      %2358 = vmatprep.subr.mxu0 %v2064
      %2359 = vmatpush1.msra.mxu0 %v2063
      %2360 = vmatprep.subr.mxu0 %v2066
      %2361 = vmatpush1.msra.mxu0 %v2065
      %2362 = vmatprep.subr.mxu0 %v2068
      %2363 = vmatpush1.msra.mxu0 %v2067
      %2364 = vmatprep.subr.mxu0 %v2070
      %2365 = vmatpush1.msra.mxu0 %v2069
      %2366 = vmatprep.subr.mxu0 %v2072
      %2367 = vmatpush1.msra.mxu0 %v2071
      %2368 = vmatprep.subr.mxu0 %v2074
      %2369 = vmatpush1.msra.mxu0 %v2073
      %2370 = vmatprep.subr.mxu0 %v2076
      %2371 = vmatpush1.msra.mxu0 %v2075
      %2372 = vmatprep.subr.mxu0 %v2078
      %2373 = vmatpush1.msra.mxu0 %v2077
      %2374 = vmatprep.subr.mxu0 %v2080
      %2375 = vmatpush1.msra.mxu0 %v2079
      %2376 = vmatprep.subr.mxu0 %v2082
      %2377 = vmatpush1.msra.mxu0 %v2081
      %2378 = vmatprep.subr.mxu0 %v2084
      %2379 = vmatpush1.msra.mxu0 %v2083
      %2380 = vmatprep.subr.mxu0 %v2086
      %2381 = vmatpush1.msra.mxu0 %v2085
      %2382 = vmatprep.subr.mxu0 %v2088
      %2383 = vmatpush1.msra.mxu0 %v2087
      %2384 = vmatprep.subr.mxu0 %v2090
      %2385 = vmatpush1.msra.mxu0 %v2089
      %2386 = vmatprep.subr.mxu0 %v2092
      %2387 = vmatpush1.msra.mxu0 %v2091
      %2388 = vmatprep.subr.mxu0 %v2094
      %2389 = vmatpush1.msra.mxu0 %v2093
      %2390 = vmatprep.subr.mxu0 %v2096
      %2391 = vmatpush1.msra.mxu0 %v2095
      %2392 = vmatprep.subr.mxu0 %v2098
      %2393 = vmatpush1.msra.mxu0 %v2097
      %2394 = vmatprep.subr.mxu0 %v2100
      %2395 = vmatpush1.msra.mxu0 %v2099
      %2396 = vmatprep.subr.mxu0 %v2102
      %2397 = vmatpush1.msra.mxu0 %v2101
      %2398 = vmatprep.subr.mxu0 %v2104
      %2399 = vmatpush1.msra.mxu0 %v2103
      %2400 = vmatprep.subr.mxu0 %v2106
      %2401 = vmatpush1.msra.mxu0 %v2105
      %2402 = vmatprep.subr.mxu0 %v2108
      %2403 = vmatpush1.msra.mxu0 %v2107
      %2404 = vmatprep.subr.mxu0 %v2110
      %2405 = vmatpush1.msra.mxu0 %v2109
      %2406 = vmatprep.subr.mxu0 %v2112
      %2407 = vmatpush1.msra.mxu0 %v2111
      %2408 = vmatprep.subr.mxu0 %v2114
      %2409 = vmatpush1.msra.mxu0 %v2113
      %2410 = vmatprep.subr.mxu0 %v2116
      %2411 = vmatpush1.msra.mxu0 %v2115
      %2412 = vmatprep.subr.mxu0 %v2118
      %2413 = vmatpush1.msra.mxu0 %v2117
      %2414 = vmatprep.mubr.f32.mxu0 %v729
      %2415 = vmatmul.mubr.f32.gmra.mrb[0].mxu0 %v727
      %v2416 = vpop.f32.mrb[0].mxu0
      %v2417 = vadd.f32 %v2340, %v2416
      %v2418 = vpop.f32.mrb[0].mxu0
      %v2419 = vadd.f32 %v2342, %v2418
      %2420 = vmatprep.mubr.f32.mxu0 %v733
      %2421 = vmatmul.mubr.f32.gmra.mrb[0].mxu0 %v731
      %v2422 = vpop.f32.mrb[0].mxu0
      %v2423 = vadd.f32 %v2346, %v2422
      %v2424 = vpop.f32.mrb[0].mxu0
      %v2425 = vadd.f32 %v2348, %v2424
      %2426 = vdwg.mxu0
      %v2427 = vld [vmem:[%s6] sm:$0xff]
      %v2428 = vld [vmem:[%s6 + $0x8] sm:$0xff]
      %v2429 = vld [vmem:[%s6 + $0x10] sm:$0xff]
      %v2430 = vld [vmem:[%s6 + $0x18] sm:$0xff]
      %v2431 = vld [vmem:[%s6 + $0x20] sm:$0xff]
      %v2432 = vld [vmem:[%s6 + $0x28] sm:$0xff]
      %v2433 = vld [vmem:[%s6 + $0x30] sm:$0xff]
      %v2434 = vld [vmem:[%s6 + $0x38] sm:$0xff]
      %v2435 = vld [vmem:[%s6 + $0x40] sm:$0xff]
      %v2436 = vld [vmem:[%s6 + $0x48] sm:$0xff]
      %v2437 = vld [vmem:[%s6 + $0x50] sm:$0xff]
      %v2438 = vld [vmem:[%s6 + $0x58] sm:$0xff]
      %v2439 = vld [vmem:[%s6 + $0x60] sm:$0xff]
      %v2440 = vld [vmem:[%s6 + $0x68] sm:$0xff]
      %v2441 = vld [vmem:[%s6 + $0x70] sm:$0xff]
      %v2442 = vld [vmem:[%s6 + $0x78] sm:$0xff]
      %v2443 = vld [vmem:[%s6 + $0x80] sm:$0xff]
      %v2444 = vld [vmem:[%s6 + $0x88] sm:$0xff]
      %v2445 = vld [vmem:[%s6 + $0x90] sm:$0xff]
      %v2446 = vld [vmem:[%s6 + $0x98] sm:$0xff]
      %v2447 = vld [vmem:[%s6 + $0xa0] sm:$0xff]
      %v2448 = vld [vmem:[%s6 + $0xa8] sm:$0xff]
      %v2449 = vld [vmem:[%s6 + $0xb0] sm:$0xff]
      %v2450 = vld [vmem:[%s6 + $0xb8] sm:$0xff]
      %v2451 = vld [vmem:[%s6 + $0xc0] sm:$0xff]
      %v2452 = vld [vmem:[%s6 + $0xc8] sm:$0xff]
      %v2453 = vld [vmem:[%s6 + $0xd0] sm:$0xff]
      %v2454 = vld [vmem:[%s6 + $0xd8] sm:$0xff]
      %v2455 = vld [vmem:[%s6 + $0xe0] sm:$0xff]
      %v2456 = vld [vmem:[%s6 + $0xe8] sm:$0xff]
      %v2457 = vld [vmem:[%s6 + $0xf0] sm:$0xff]
      %v2458 = vld [vmem:[%s6 + $0xf8] sm:$0xff]
      %v2459 = vld [vmem:[%s6 + $0x100] sm:$0xff]
      %v2460 = vld [vmem:[%s6 + $0x108] sm:$0xff]
      %v2461 = vld [vmem:[%s6 + $0x110] sm:$0xff]
      %v2462 = vld [vmem:[%s6 + $0x118] sm:$0xff]
      %v2463 = vld [vmem:[%s6 + $0x120] sm:$0xff]
      %v2464 = vld [vmem:[%s6 + $0x128] sm:$0xff]
      %v2465 = vld [vmem:[%s6 + $0x130] sm:$0xff]
      %v2466 = vld [vmem:[%s6 + $0x138] sm:$0xff]
      %v2467 = vld [vmem:[%s6 + $0x140] sm:$0xff]
      %v2468 = vld [vmem:[%s6 + $0x148] sm:$0xff]
      %v2469 = vld [vmem:[%s6 + $0x150] sm:$0xff]
      %v2470 = vld [vmem:[%s6 + $0x158] sm:$0xff]
      %v2471 = vld [vmem:[%s6 + $0x160] sm:$0xff]
      %v2472 = vld [vmem:[%s6 + $0x168] sm:$0xff]
      %v2473 = vld [vmem:[%s6 + $0x170] sm:$0xff]
      %v2474 = vld [vmem:[%s6 + $0x178] sm:$0xff]
      %v2475 = vld [vmem:[%s6 + $0x180] sm:$0xff]
      %v2476 = vld [vmem:[%s6 + $0x188] sm:$0xff]
      %v2477 = vld [vmem:[%s6 + $0x190] sm:$0xff]
      %v2478 = vld [vmem:[%s6 + $0x198] sm:$0xff]
      %v2479 = vld [vmem:[%s6 + $0x1a0] sm:$0xff]
      %v2480 = vld [vmem:[%s6 + $0x1a8] sm:$0xff]
      %v2481 = vld [vmem:[%s6 + $0x1b0] sm:$0xff]
      %v2482 = vld [vmem:[%s6 + $0x1b8] sm:$0xff]
      %v2483 = vld [vmem:[%s6 + $0x1c0] sm:$0xff]
      %v2484 = vld [vmem:[%s6 + $0x1c8] sm:$0xff]
      %v2485 = vld [vmem:[%s6 + $0x1d0] sm:$0xff]
      %v2486 = vld [vmem:[%s6 + $0x1d8] sm:$0xff]
      %v2487 = vld [vmem:[%s6 + $0x1e0] sm:$0xff]
      %v2488 = vld [vmem:[%s6 + $0x1e8] sm:$0xff]
      %v2489 = vld [vmem:[%s6 + $0x1f0] sm:$0xff]
      %v2490 = vld [vmem:[%s6 + $0x1f8] sm:$0xff]
      %v2491 = vld [vmem:[%s6 + $0x200] sm:$0xff]
      %v2492 = vld [vmem:[%s6 + $0x208] sm:$0xff]
      %v2493 = vld [vmem:[%s6 + $0x210] sm:$0xff]
      %v2494 = vld [vmem:[%s6 + $0x218] sm:$0xff]
      %v2495 = vld [vmem:[%s6 + $0x220] sm:$0xff]
      %v2496 = vld [vmem:[%s6 + $0x228] sm:$0xff]
      %v2497 = vld [vmem:[%s6 + $0x230] sm:$0xff]
      %v2498 = vld [vmem:[%s6 + $0x238] sm:$0xff]
      %v2499 = vld [vmem:[%s6 + $0x240] sm:$0xff]
      %v2500 = vld [vmem:[%s6 + $0x248] sm:$0xff]
      %v2501 = vld [vmem:[%s6 + $0x250] sm:$0xff]
      %v2502 = vld [vmem:[%s6 + $0x258] sm:$0xff]
      %v2503 = vld [vmem:[%s6 + $0x260] sm:$0xff]
      %v2504 = vld [vmem:[%s6 + $0x268] sm:$0xff]
      %v2505 = vld [vmem:[%s6 + $0x270] sm:$0xff]
      %v2506 = vld [vmem:[%s6 + $0x278] sm:$0xff]
      %v2507 = vld [vmem:[%s6 + $0x280] sm:$0xff]
      %v2508 = vld [vmem:[%s6 + $0x288] sm:$0xff]
      %v2509 = vld [vmem:[%s6 + $0x290] sm:$0xff]
      %v2510 = vld [vmem:[%s6 + $0x298] sm:$0xff]
      %v2511 = vld [vmem:[%s6 + $0x2a0] sm:$0xff]
      %v2512 = vld [vmem:[%s6 + $0x2a8] sm:$0xff]
      %v2513 = vld [vmem:[%s6 + $0x2b0] sm:$0xff]
      %v2514 = vld [vmem:[%s6 + $0x2b8] sm:$0xff]
      %v2515 = vld [vmem:[%s6 + $0x2c0] sm:$0xff]
      %v2516 = vld [vmem:[%s6 + $0x2c8] sm:$0xff]
      %v2517 = vld [vmem:[%s6 + $0x2d0] sm:$0xff]
      %v2518 = vld [vmem:[%s6 + $0x2d8] sm:$0xff]
      %v2519 = vld [vmem:[%s6 + $0x2e0] sm:$0xff]
      %v2520 = vld [vmem:[%s6 + $0x2e8] sm:$0xff]
      %v2521 = vld [vmem:[%s6 + $0x2f0] sm:$0xff]
      %v2522 = vld [vmem:[%s6 + $0x2f8] sm:$0xff]
      %v2523 = vld [vmem:[%s6 + $0x300] sm:$0xff]
      %v2524 = vld [vmem:[%s6 + $0x308] sm:$0xff]
      %v2525 = vld [vmem:[%s6 + $0x310] sm:$0xff]
      %v2526 = vld [vmem:[%s6 + $0x318] sm:$0xff]
      %v2527 = vld [vmem:[%s6 + $0x320] sm:$0xff]
      %v2528 = vld [vmem:[%s6 + $0x328] sm:$0xff]
      %v2529 = vld [vmem:[%s6 + $0x330] sm:$0xff]
      %v2530 = vld [vmem:[%s6 + $0x338] sm:$0xff]
      %v2531 = vld [vmem:[%s6 + $0x340] sm:$0xff]
      %v2532 = vld [vmem:[%s6 + $0x348] sm:$0xff]
      %v2533 = vld [vmem:[%s6 + $0x350] sm:$0xff]
      %v2534 = vld [vmem:[%s6 + $0x358] sm:$0xff]
      %v2535 = vld [vmem:[%s6 + $0x360] sm:$0xff]
      %v2536 = vld [vmem:[%s6 + $0x368] sm:$0xff]
      %v2537 = vld [vmem:[%s6 + $0x370] sm:$0xff]
      %v2538 = vld [vmem:[%s6 + $0x378] sm:$0xff]
      %v2539 = vld [vmem:[%s6 + $0x380] sm:$0xff]
      %v2540 = vld [vmem:[%s6 + $0x388] sm:$0xff]
      %v2541 = vld [vmem:[%s6 + $0x390] sm:$0xff]
      %v2542 = vld [vmem:[%s6 + $0x398] sm:$0xff]
      %v2543 = vld [vmem:[%s6 + $0x3a0] sm:$0xff]
      %v2544 = vld [vmem:[%s6 + $0x3a8] sm:$0xff]
      %v2545 = vld [vmem:[%s6 + $0x3b0] sm:$0xff]
      %v2546 = vld [vmem:[%s6 + $0x3b8] sm:$0xff]
      %v2547 = vld [vmem:[%s6 + $0x3c0] sm:$0xff]
      %v2548 = vld [vmem:[%s6 + $0x3c8] sm:$0xff]
      %v2549 = vld [vmem:[%s6 + $0x3d0] sm:$0xff]
      %v2550 = vld [vmem:[%s6 + $0x3d8] sm:$0xff]
      %v2551 = vld [vmem:[%s6 + $0x3e0] sm:$0xff]
      %v2552 = vld [vmem:[%s6 + $0x3e8] sm:$0xff]
      %v2553 = vld [vmem:[%s6 + $0x3f0] sm:$0xff]
      %v2554 = vld [vmem:[%s6 + $0x3f8] sm:$0xff]
      %v2555 = vld [vmem:[%s6 + $0x400] sm:$0xff]
      %v2556 = vld [vmem:[%s6 + $0x408] sm:$0xff]
      %v2557 = vld [vmem:[%s6 + $0x410] sm:$0xff]
      %v2558 = vld [vmem:[%s6 + $0x418] sm:$0xff]
      %v2559 = vld [vmem:[%s6 + $0x420] sm:$0xff]
      %v2560 = vld [vmem:[%s6 + $0x428] sm:$0xff]
      %v2561 = vld [vmem:[%s6 + $0x430] sm:$0xff]
      %v2562 = vld [vmem:[%s6 + $0x438] sm:$0xff]
      %v2563 = vld [vmem:[%s6 + $0x440] sm:$0xff]
      %v2564 = vld [vmem:[%s6 + $0x448] sm:$0xff]
      %v2565 = vld [vmem:[%s6 + $0x450] sm:$0xff]
      %v2566 = vld [vmem:[%s6 + $0x458] sm:$0xff]
      %v2567 = vld [vmem:[%s6 + $0x460] sm:$0xff]
      %v2568 = vld [vmem:[%s6 + $0x468] sm:$0xff]
      %v2569 = vld [vmem:[%s6 + $0x470] sm:$0xff]
      %v2570 = vld [vmem:[%s6 + $0x478] sm:$0xff]
      %v2571 = vld [vmem:[%s6 + $0x480] sm:$0xff]
      %v2572 = vld [vmem:[%s6 + $0x488] sm:$0xff]
      %v2573 = vld [vmem:[%s6 + $0x490] sm:$0xff]
      %v2574 = vld [vmem:[%s6 + $0x498] sm:$0xff]
      %v2575 = vld [vmem:[%s6 + $0x4a0] sm:$0xff]
      %v2576 = vld [vmem:[%s6 + $0x4a8] sm:$0xff]
      %v2577 = vld [vmem:[%s6 + $0x4b0] sm:$0xff]
      %v2578 = vld [vmem:[%s6 + $0x4b8] sm:$0xff]
      %v2579 = vld [vmem:[%s6 + $0x4c0] sm:$0xff]
      %v2580 = vld [vmem:[%s6 + $0x4c8] sm:$0xff]
      %v2581 = vld [vmem:[%s6 + $0x4d0] sm:$0xff]
      %v2582 = vld [vmem:[%s6 + $0x4d8] sm:$0xff]
      %v2583 = vld [vmem:[%s6 + $0x4e0] sm:$0xff]
      %v2584 = vld [vmem:[%s6 + $0x4e8] sm:$0xff]
      %v2585 = vld [vmem:[%s6 + $0x4f0] sm:$0xff]
      %v2586 = vld [vmem:[%s6 + $0x4f8] sm:$0xff]
      %v2587 = vld [vmem:[%s6 + $0x500] sm:$0xff]
      %v2588 = vld [vmem:[%s6 + $0x508] sm:$0xff]
      %v2589 = vld [vmem:[%s6 + $0x510] sm:$0xff]
      %v2590 = vld [vmem:[%s6 + $0x518] sm:$0xff]
      %v2591 = vld [vmem:[%s6 + $0x520] sm:$0xff]
      %v2592 = vld [vmem:[%s6 + $0x528] sm:$0xff]
      %v2593 = vld [vmem:[%s6 + $0x530] sm:$0xff]
      %v2594 = vld [vmem:[%s6 + $0x538] sm:$0xff]
      %v2595 = vld [vmem:[%s6 + $0x540] sm:$0xff]
      %v2596 = vld [vmem:[%s6 + $0x548] sm:$0xff]
      %v2597 = vld [vmem:[%s6 + $0x550] sm:$0xff]
      %v2598 = vld [vmem:[%s6 + $0x558] sm:$0xff]
      %v2599 = vld [vmem:[%s6 + $0x560] sm:$0xff]
      %v2600 = vld [vmem:[%s6 + $0x568] sm:$0xff]
      %v2601 = vld [vmem:[%s6 + $0x570] sm:$0xff]
      %v2602 = vld [vmem:[%s6 + $0x578] sm:$0xff]
      %v2603 = vld [vmem:[%s6 + $0x580] sm:$0xff]
      %v2604 = vld [vmem:[%s6 + $0x588] sm:$0xff]
      %v2605 = vld [vmem:[%s6 + $0x590] sm:$0xff]
      %v2606 = vld [vmem:[%s6 + $0x598] sm:$0xff]
      %v2607 = vld [vmem:[%s6 + $0x5a0] sm:$0xff]
      %v2608 = vld [vmem:[%s6 + $0x5a8] sm:$0xff]
      %v2609 = vld [vmem:[%s6 + $0x5b0] sm:$0xff]
      %v2610 = vld [vmem:[%s6 + $0x5b8] sm:$0xff]
      %v2611 = vld [vmem:[%s6 + $0x5c0] sm:$0xff]
      %v2612 = vld [vmem:[%s6 + $0x5c8] sm:$0xff]
      %v2613 = vld [vmem:[%s6 + $0x5d0] sm:$0xff]
      %v2614 = vld [vmem:[%s6 + $0x5d8] sm:$0xff]
      %v2615 = vld [vmem:[%s6 + $0x5e0] sm:$0xff]
      %v2616 = vld [vmem:[%s6 + $0x5e8] sm:$0xff]
      %v2617 = vld [vmem:[%s6 + $0x5f0] sm:$0xff]
      %v2618 = vld [vmem:[%s6 + $0x5f8] sm:$0xff]
      %v2619 = vld [vmem:[%s6 + $0x600] sm:$0xff]
      %v2620 = vld [vmem:[%s6 + $0x608] sm:$0xff]
      %v2621 = vld [vmem:[%s6 + $0x610] sm:$0xff]
      %v2622 = vld [vmem:[%s6 + $0x618] sm:$0xff]
      %v2623 = vld [vmem:[%s6 + $0x620] sm:$0xff]
      %v2624 = vld [vmem:[%s6 + $0x628] sm:$0xff]
      %v2625 = vld [vmem:[%s6 + $0x630] sm:$0xff]
      %v2626 = vld [vmem:[%s6 + $0x638] sm:$0xff]
      %v2627 = vld [vmem:[%s6 + $0x640] sm:$0xff]
      %v2628 = vld [vmem:[%s6 + $0x648] sm:$0xff]
      %v2629 = vld [vmem:[%s6 + $0x650] sm:$0xff]
      %v2630 = vld [vmem:[%s6 + $0x658] sm:$0xff]
      %v2631 = vld [vmem:[%s6 + $0x660] sm:$0xff]
      %v2632 = vld [vmem:[%s6 + $0x668] sm:$0xff]
      %v2633 = vld [vmem:[%s6 + $0x670] sm:$0xff]
      %v2634 = vld [vmem:[%s6 + $0x678] sm:$0xff]
      %v2635 = vld [vmem:[%s6 + $0x680] sm:$0xff]
      %v2636 = vld [vmem:[%s6 + $0x688] sm:$0xff]
      %v2637 = vld [vmem:[%s6 + $0x690] sm:$0xff]
      %v2638 = vld [vmem:[%s6 + $0x698] sm:$0xff]
      %v2639 = vld [vmem:[%s6 + $0x6a0] sm:$0xff]
      %v2640 = vld [vmem:[%s6 + $0x6a8] sm:$0xff]
      %v2641 = vld [vmem:[%s6 + $0x6b0] sm:$0xff]
      %v2642 = vld [vmem:[%s6 + $0x6b8] sm:$0xff]
      %v2643 = vld [vmem:[%s6 + $0x6c0] sm:$0xff]
      %v2644 = vld [vmem:[%s6 + $0x6c8] sm:$0xff]
      %v2645 = vld [vmem:[%s6 + $0x6d0] sm:$0xff]
      %v2646 = vld [vmem:[%s6 + $0x6d8] sm:$0xff]
      %v2647 = vld [vmem:[%s6 + $0x6e0] sm:$0xff]
      %v2648 = vld [vmem:[%s6 + $0x6e8] sm:$0xff]
      %v2649 = vld [vmem:[%s6 + $0x6f0] sm:$0xff]
      %v2650 = vld [vmem:[%s6 + $0x6f8] sm:$0xff]
      %v2651 = vld [vmem:[%s6 + $0x700] sm:$0xff]
      %v2652 = vld [vmem:[%s6 + $0x708] sm:$0xff]
      %v2653 = vld [vmem:[%s6 + $0x710] sm:$0xff]
      %v2654 = vld [vmem:[%s6 + $0x718] sm:$0xff]
      %v2655 = vld [vmem:[%s6 + $0x720] sm:$0xff]
      %v2656 = vld [vmem:[%s6 + $0x728] sm:$0xff]
      %v2657 = vld [vmem:[%s6 + $0x730] sm:$0xff]
      %v2658 = vld [vmem:[%s6 + $0x738] sm:$0xff]
      %v2659 = vld [vmem:[%s6 + $0x740] sm:$0xff]
      %v2660 = vld [vmem:[%s6 + $0x748] sm:$0xff]
      %v2661 = vld [vmem:[%s6 + $0x750] sm:$0xff]
      %v2662 = vld [vmem:[%s6 + $0x758] sm:$0xff]
      %v2663 = vld [vmem:[%s6 + $0x760] sm:$0xff]
      %v2664 = vld [vmem:[%s6 + $0x768] sm:$0xff]
      %v2665 = vld [vmem:[%s6 + $0x770] sm:$0xff]
      %v2666 = vld [vmem:[%s6 + $0x778] sm:$0xff]
      %v2667 = vld [vmem:[%s6 + $0x780] sm:$0xff]
      %v2668 = vld [vmem:[%s6 + $0x788] sm:$0xff]
      %v2669 = vld [vmem:[%s6 + $0x790] sm:$0xff]
      %v2670 = vld [vmem:[%s6 + $0x798] sm:$0xff]
      %v2671 = vld [vmem:[%s6 + $0x7a0] sm:$0xff]
      %v2672 = vld [vmem:[%s6 + $0x7a8] sm:$0xff]
      %v2673 = vld [vmem:[%s6 + $0x7b0] sm:$0xff]
      %v2674 = vld [vmem:[%s6 + $0x7b8] sm:$0xff]
      %v2675 = vld [vmem:[%s6 + $0x7c0] sm:$0xff]
      %v2676 = vld [vmem:[%s6 + $0x7c8] sm:$0xff]
      %v2677 = vld [vmem:[%s6 + $0x7d0] sm:$0xff]
      %v2678 = vld [vmem:[%s6 + $0x7d8] sm:$0xff]
      %v2679 = vld [vmem:[%s6 + $0x7e0] sm:$0xff]
      %v2680 = vld [vmem:[%s6 + $0x7e8] sm:$0xff]
      %v2681 = vld [vmem:[%s6 + $0x7f0] sm:$0xff]
      %v2682 = vld [vmem:[%s6 + $0x7f8] sm:$0xff]
      %2683 = vmatprep.subr.mxu0 %v2428
      %2684 = vmatpush1.msra.mxu0 %v2427
      %2685 = vmatprep.subr.mxu0 %v2430
      %2686 = vmatpush1.msra.mxu0 %v2429
      %2687 = vmatprep.subr.mxu0 %v2432
      %2688 = vmatpush1.msra.mxu0 %v2431
      %2689 = vmatprep.subr.mxu0 %v2434
      %2690 = vmatpush1.msra.mxu0 %v2433
      %2691 = vmatprep.subr.mxu0 %v2436
      %2692 = vmatpush1.msra.mxu0 %v2435
      %2693 = vmatprep.subr.mxu0 %v2438
      %2694 = vmatpush1.msra.mxu0 %v2437
      %2695 = vmatprep.subr.mxu0 %v2440
      %2696 = vmatpush1.msra.mxu0 %v2439
      %2697 = vmatprep.subr.mxu0 %v2442
      %2698 = vmatpush1.msra.mxu0 %v2441
      %2699 = vmatprep.subr.mxu0 %v2444
      %2700 = vmatpush1.msra.mxu0 %v2443
      %2701 = vmatprep.subr.mxu0 %v2446
      %2702 = vmatpush1.msra.mxu0 %v2445
      %2703 = vmatprep.subr.mxu0 %v2448
      %2704 = vmatpush1.msra.mxu0 %v2447
      %2705 = vmatprep.subr.mxu0 %v2450
      %2706 = vmatpush1.msra.mxu0 %v2449
      %2707 = vmatprep.subr.mxu0 %v2452
      %2708 = vmatpush1.msra.mxu0 %v2451
      %2709 = vmatprep.subr.mxu0 %v2454
      %2710 = vmatpush1.msra.mxu0 %v2453
      %2711 = vmatprep.subr.mxu0 %v2456
      %2712 = vmatpush1.msra.mxu0 %v2455
      %2713 = vmatprep.subr.mxu0 %v2458
      %2714 = vmatpush1.msra.mxu0 %v2457
      %2715 = vmatprep.subr.mxu0 %v2460
      %2716 = vmatpush1.msra.mxu0 %v2459
      %2717 = vmatprep.subr.mxu0 %v2462
      %2718 = vmatpush1.msra.mxu0 %v2461
      %2719 = vmatprep.subr.mxu0 %v2464
      %2720 = vmatpush1.msra.mxu0 %v2463
      %2721 = vmatprep.subr.mxu0 %v2466
      %2722 = vmatpush1.msra.mxu0 %v2465
      %2723 = vmatprep.subr.mxu0 %v2468
      %2724 = vmatpush1.msra.mxu0 %v2467
      %2725 = vmatprep.subr.mxu0 %v2470
      %2726 = vmatpush1.msra.mxu0 %v2469
      %2727 = vmatprep.subr.mxu0 %v2472
      %2728 = vmatpush1.msra.mxu0 %v2471
      %2729 = vmatprep.subr.mxu0 %v2474
      %2730 = vmatpush1.msra.mxu0 %v2473
      %2731 = vmatprep.subr.mxu0 %v2476
      %2732 = vmatpush1.msra.mxu0 %v2475
      %2733 = vmatprep.subr.mxu0 %v2478
      %2734 = vmatpush1.msra.mxu0 %v2477
      %2735 = vmatprep.subr.mxu0 %v2480
      %2736 = vmatpush1.msra.mxu0 %v2479
      %2737 = vmatprep.subr.mxu0 %v2482
      %2738 = vmatpush1.msra.mxu0 %v2481
      %2739 = vmatprep.subr.mxu0 %v2484
      %2740 = vmatpush1.msra.mxu0 %v2483
      %2741 = vmatprep.subr.mxu0 %v2486
      %2742 = vmatpush1.msra.mxu0 %v2485
      %2743 = vmatprep.subr.mxu0 %v2488
      %2744 = vmatpush1.msra.mxu0 %v2487
      %2745 = vmatprep.subr.mxu0 %v2490
      %2746 = vmatpush1.msra.mxu0 %v2489
      %2747 = vmatprep.mubr.f32.mxu0 %v600
      %2748 = vmatmul.mubr.f32.gmra.mrb[0].mxu0 %v598
      %v2749 = vpop.f32.mrb[0].mxu0
      %v2750 = vadd.f32 0.0, %v2749
      %v2751 = vpop.f32.mrb[0].mxu0
      %v2752 = vadd.f32 0.0, %v2751
      %2753 = vmatprep.mubr.f32.mxu0 %v604
      %2754 = vmatmul.mubr.f32.gmra.mrb[0].mxu0 %v602
      %v2755 = vpop.f32.mrb[0].mxu0
      %v2756 = vadd.f32 0.0, %v2755
      %v2757 = vpop.f32.mrb[0].mxu0
      %v2758 = vadd.f32 0.0, %v2757
      %2759 = vdwg.mxu0
      %2760 = vmatprep.subr.mxu0 %v2492
      %2761 = vmatpush1.msra.mxu0 %v2491
      %2762 = vmatprep.subr.mxu0 %v2494
      %2763 = vmatpush1.msra.mxu0 %v2493
      %2764 = vmatprep.subr.mxu0 %v2496
      %2765 = vmatpush1.msra.mxu0 %v2495
      %2766 = vmatprep.subr.mxu0 %v2498
      %2767 = vmatpush1.msra.mxu0 %v2497
      %2768 = vmatprep.subr.mxu0 %v2500
      %2769 = vmatpush1.msra.mxu0 %v2499
      %2770 = vmatprep.subr.mxu0 %v2502
      %2771 = vmatpush1.msra.mxu0 %v2501
      %2772 = vmatprep.subr.mxu0 %v2504
      %2773 = vmatpush1.msra.mxu0 %v2503
      %2774 = vmatprep.subr.mxu0 %v2506
      %2775 = vmatpush1.msra.mxu0 %v2505
      %2776 = vmatprep.subr.mxu0 %v2508
      %2777 = vmatpush1.msra.mxu0 %v2507
      %2778 = vmatprep.subr.mxu0 %v2510
      %2779 = vmatpush1.msra.mxu0 %v2509
      %2780 = vmatprep.subr.mxu0 %v2512
      %2781 = vmatpush1.msra.mxu0 %v2511
      %2782 = vmatprep.subr.mxu0 %v2514
      %2783 = vmatpush1.msra.mxu0 %v2513
      %2784 = vmatprep.subr.mxu0 %v2516
      %2785 = vmatpush1.msra.mxu0 %v2515
      %2786 = vmatprep.subr.mxu0 %v2518
      %2787 = vmatpush1.msra.mxu0 %v2517
      %2788 = vmatprep.subr.mxu0 %v2520
      %2789 = vmatpush1.msra.mxu0 %v2519
      %2790 = vmatprep.subr.mxu0 %v2522
      %2791 = vmatpush1.msra.mxu0 %v2521
      %2792 = vmatprep.subr.mxu0 %v2524
      %2793 = vmatpush1.msra.mxu0 %v2523
      %2794 = vmatprep.subr.mxu0 %v2526
      %2795 = vmatpush1.msra.mxu0 %v2525
      %2796 = vmatprep.subr.mxu0 %v2528
      %2797 = vmatpush1.msra.mxu0 %v2527
      %2798 = vmatprep.subr.mxu0 %v2530
      %2799 = vmatpush1.msra.mxu0 %v2529
      %2800 = vmatprep.subr.mxu0 %v2532
      %2801 = vmatpush1.msra.mxu0 %v2531
      %2802 = vmatprep.subr.mxu0 %v2534
      %2803 = vmatpush1.msra.mxu0 %v2533
      %2804 = vmatprep.subr.mxu0 %v2536
      %2805 = vmatpush1.msra.mxu0 %v2535
      %2806 = vmatprep.subr.mxu0 %v2538
      %2807 = vmatpush1.msra.mxu0 %v2537
      %2808 = vmatprep.subr.mxu0 %v2540
      %2809 = vmatpush1.msra.mxu0 %v2539
      %2810 = vmatprep.subr.mxu0 %v2542
      %2811 = vmatpush1.msra.mxu0 %v2541
      %2812 = vmatprep.subr.mxu0 %v2544
      %2813 = vmatpush1.msra.mxu0 %v2543
      %2814 = vmatprep.subr.mxu0 %v2546
      %2815 = vmatpush1.msra.mxu0 %v2545
      %2816 = vmatprep.subr.mxu0 %v2548
      %2817 = vmatpush1.msra.mxu0 %v2547
      %2818 = vmatprep.subr.mxu0 %v2550
      %2819 = vmatpush1.msra.mxu0 %v2549
      %2820 = vmatprep.subr.mxu0 %v2552
      %2821 = vmatpush1.msra.mxu0 %v2551
      %2822 = vmatprep.subr.mxu0 %v2554
      %2823 = vmatpush1.msra.mxu0 %v2553
      %2824 = vmatprep.mubr.f32.mxu0 %v643
      %2825 = vmatmul.mubr.f32.gmra.mrb[0].mxu0 %v641
      %v2826 = vpop.f32.mrb[0].mxu0
      %v2827 = vadd.f32 %v2750, %v2826
      %v2828 = vpop.f32.mrb[0].mxu0
      %v2829 = vadd.f32 %v2752, %v2828
      %2830 = vmatprep.mubr.f32.mxu0 %v647
      %2831 = vmatmul.mubr.f32.gmra.mrb[0].mxu0 %v645
      %v2832 = vpop.f32.mrb[0].mxu0
      %v2833 = vadd.f32 %v2756, %v2832
      %v2834 = vpop.f32.mrb[0].mxu0
      %v2835 = vadd.f32 %v2758, %v2834
      %2836 = vdwg.mxu0
      %2837 = vmatprep.subr.mxu0 %v2556
      %2838 = vmatpush1.msra.mxu0 %v2555
      %2839 = vmatprep.subr.mxu0 %v2558
      %2840 = vmatpush1.msra.mxu0 %v2557
      %2841 = vmatprep.subr.mxu0 %v2560
      %2842 = vmatpush1.msra.mxu0 %v2559
      %2843 = vmatprep.subr.mxu0 %v2562
      %2844 = vmatpush1.msra.mxu0 %v2561
      %2845 = vmatprep.subr.mxu0 %v2564
      %2846 = vmatpush1.msra.mxu0 %v2563
      %2847 = vmatprep.subr.mxu0 %v2566
      %2848 = vmatpush1.msra.mxu0 %v2565
      %2849 = vmatprep.subr.mxu0 %v2568
      %2850 = vmatpush1.msra.mxu0 %v2567
      %2851 = vmatprep.subr.mxu0 %v2570
      %2852 = vmatpush1.msra.mxu0 %v2569
      %2853 = vmatprep.subr.mxu0 %v2572
      %2854 = vmatpush1.msra.mxu0 %v2571
      %2855 = vmatprep.subr.mxu0 %v2574
      %2856 = vmatpush1.msra.mxu0 %v2573
      %2857 = vmatprep.subr.mxu0 %v2576
      %2858 = vmatpush1.msra.mxu0 %v2575
      %2859 = vmatprep.subr.mxu0 %v2578
      %2860 = vmatpush1.msra.mxu0 %v2577
      %2861 = vmatprep.subr.mxu0 %v2580
      %2862 = vmatpush1.msra.mxu0 %v2579
      %2863 = vmatprep.subr.mxu0 %v2582
      %2864 = vmatpush1.msra.mxu0 %v2581
      %2865 = vmatprep.subr.mxu0 %v2584
      %2866 = vmatpush1.msra.mxu0 %v2583
      %2867 = vmatprep.subr.mxu0 %v2586
      %2868 = vmatpush1.msra.mxu0 %v2585
      %2869 = vmatprep.subr.mxu0 %v2588
      %2870 = vmatpush1.msra.mxu0 %v2587
      %2871 = vmatprep.subr.mxu0 %v2590
      %2872 = vmatpush1.msra.mxu0 %v2589
      %2873 = vmatprep.subr.mxu0 %v2592
      %2874 = vmatpush1.msra.mxu0 %v2591
      %2875 = vmatprep.subr.mxu0 %v2594
      %2876 = vmatpush1.msra.mxu0 %v2593
      %2877 = vmatprep.subr.mxu0 %v2596
      %2878 = vmatpush1.msra.mxu0 %v2595
      %2879 = vmatprep.subr.mxu0 %v2598
      %2880 = vmatpush1.msra.mxu0 %v2597
      %2881 = vmatprep.subr.mxu0 %v2600
      %2882 = vmatpush1.msra.mxu0 %v2599
      %2883 = vmatprep.subr.mxu0 %v2602
      %2884 = vmatpush1.msra.mxu0 %v2601
      %2885 = vmatprep.subr.mxu0 %v2604
      %2886 = vmatpush1.msra.mxu0 %v2603
      %2887 = vmatprep.subr.mxu0 %v2606
      %2888 = vmatpush1.msra.mxu0 %v2605
      %2889 = vmatprep.subr.mxu0 %v2608
      %2890 = vmatpush1.msra.mxu0 %v2607
      %2891 = vmatprep.subr.mxu0 %v2610
      %2892 = vmatpush1.msra.mxu0 %v2609
      %2893 = vmatprep.subr.mxu0 %v2612
      %2894 = vmatpush1.msra.mxu0 %v2611
      %2895 = vmatprep.subr.mxu0 %v2614
      %2896 = vmatpush1.msra.mxu0 %v2613
      %2897 = vmatprep.subr.mxu0 %v2616
      %2898 = vmatpush1.msra.mxu0 %v2615
      %2899 = vmatprep.subr.mxu0 %v2618
      %2900 = vmatpush1.msra.mxu0 %v2617
      %2901 = vmatprep.mubr.f32.mxu0 %v686
      %2902 = vmatmul.mubr.f32.gmra.mrb[0].mxu0 %v684
      %v2903 = vpop.f32.mrb[0].mxu0
      %v2904 = vadd.f32 %v2827, %v2903
      %v2905 = vpop.f32.mrb[0].mxu0
      %v2906 = vadd.f32 %v2829, %v2905
      %2907 = vmatprep.mubr.f32.mxu0 %v690
      %2908 = vmatmul.mubr.f32.gmra.mrb[0].mxu0 %v688
      %v2909 = vpop.f32.mrb[0].mxu0
      %v2910 = vadd.f32 %v2833, %v2909
      %v2911 = vpop.f32.mrb[0].mxu0
      %v2912 = vadd.f32 %v2835, %v2911
      %2913 = vdwg.mxu0
      %2914 = vmatprep.subr.mxu0 %v2620
      %2915 = vmatpush1.msra.mxu0 %v2619
      %2916 = vmatprep.subr.mxu0 %v2622
      %2917 = vmatpush1.msra.mxu0 %v2621
      %2918 = vmatprep.subr.mxu0 %v2624
      %2919 = vmatpush1.msra.mxu0 %v2623
      %2920 = vmatprep.subr.mxu0 %v2626
      %2921 = vmatpush1.msra.mxu0 %v2625
      %2922 = vmatprep.subr.mxu0 %v2628
      %2923 = vmatpush1.msra.mxu0 %v2627
      %2924 = vmatprep.subr.mxu0 %v2630
      %2925 = vmatpush1.msra.mxu0 %v2629
      %2926 = vmatprep.subr.mxu0 %v2632
      %2927 = vmatpush1.msra.mxu0 %v2631
      %2928 = vmatprep.subr.mxu0 %v2634
      %2929 = vmatpush1.msra.mxu0 %v2633
      %2930 = vmatprep.subr.mxu0 %v2636
      %2931 = vmatpush1.msra.mxu0 %v2635
      %2932 = vmatprep.subr.mxu0 %v2638
      %2933 = vmatpush1.msra.mxu0 %v2637
      %2934 = vmatprep.subr.mxu0 %v2640
      %2935 = vmatpush1.msra.mxu0 %v2639
      %2936 = vmatprep.subr.mxu0 %v2642
      %2937 = vmatpush1.msra.mxu0 %v2641
      %2938 = vmatprep.subr.mxu0 %v2644
      %2939 = vmatpush1.msra.mxu0 %v2643
      %2940 = vmatprep.subr.mxu0 %v2646
      %2941 = vmatpush1.msra.mxu0 %v2645
      %2942 = vmatprep.subr.mxu0 %v2648
      %2943 = vmatpush1.msra.mxu0 %v2647
      %2944 = vmatprep.subr.mxu0 %v2650
      %2945 = vmatpush1.msra.mxu0 %v2649
      %2946 = vmatprep.subr.mxu0 %v2652
      %2947 = vmatpush1.msra.mxu0 %v2651
      %2948 = vmatprep.subr.mxu0 %v2654
      %2949 = vmatpush1.msra.mxu0 %v2653
      %2950 = vmatprep.subr.mxu0 %v2656
      %2951 = vmatpush1.msra.mxu0 %v2655
      %2952 = vmatprep.subr.mxu0 %v2658
      %2953 = vmatpush1.msra.mxu0 %v2657
      %2954 = vmatprep.subr.mxu0 %v2660
      %2955 = vmatpush1.msra.mxu0 %v2659
      %2956 = vmatprep.subr.mxu0 %v2662
      %2957 = vmatpush1.msra.mxu0 %v2661
      %2958 = vmatprep.subr.mxu0 %v2664
      %2959 = vmatpush1.msra.mxu0 %v2663
      %2960 = vmatprep.subr.mxu0 %v2666
      %2961 = vmatpush1.msra.mxu0 %v2665
      %2962 = vmatprep.subr.mxu0 %v2668
      %2963 = vmatpush1.msra.mxu0 %v2667
      %2964 = vmatprep.subr.mxu0 %v2670
      %2965 = vmatpush1.msra.mxu0 %v2669
      %2966 = vmatprep.subr.mxu0 %v2672
      %2967 = vmatpush1.msra.mxu0 %v2671
      %2968 = vmatprep.subr.mxu0 %v2674
      %2969 = vmatpush1.msra.mxu0 %v2673
      %2970 = vmatprep.subr.mxu0 %v2676
      %2971 = vmatpush1.msra.mxu0 %v2675
      %2972 = vmatprep.subr.mxu0 %v2678
      %2973 = vmatpush1.msra.mxu0 %v2677
      %2974 = vmatprep.subr.mxu0 %v2680
      %2975 = vmatpush1.msra.mxu0 %v2679
      %2976 = vmatprep.subr.mxu0 %v2682
      %2977 = vmatpush1.msra.mxu0 %v2681
      %2978 = vmatprep.mubr.f32.mxu0 %v729
      %2979 = vmatmul.mubr.f32.gmra.mrb[0].mxu0 %v727
      %v2980 = vpop.f32.mrb[0].mxu0
      %v2981 = vadd.f32 %v2904, %v2980
      %v2982 = vpop.f32.mrb[0].mxu0
      %v2983 = vadd.f32 %v2906, %v2982
      %2984 = vmatprep.mubr.f32.mxu0 %v733
      %2985 = vmatmul.mubr.f32.gmra.mrb[0].mxu0 %v731
      %v2986 = vpop.f32.mrb[0].mxu0
      %v2987 = vadd.f32 %v2910, %v2986
      %v2988 = vpop.f32.mrb[0].mxu0
      %v2989 = vadd.f32 %v2912, %v2988
      %2990 = vdwg.mxu0
      %v2991 = vmax.f32 %v1289, %v1853
      %v2992 = vmax.f32 %v1291, %v1855
      %v2993 = vmax.f32 %v1295, %v1859
      %v2994 = vmax.f32 %v1297, %v1861
      %v2995 = vmax.f32 %v2417, %v2981
      %v2996 = vmax.f32 %v2419, %v2983
      %v2997 = vmax.f32 %v2423, %v2987
      %v2998 = vmax.f32 %v2425, %v2989
      %v2999 = vmax.f32 %v2991, %v2995
      %v3000 = vmax.f32 %v2992, %v2996
      %v3001 = vmax.f32 %v2993, %v2997
      %v3002 = vmax.f32 %v2994, %v2998
      %3003 = vst [vmem:[%s278] sm:$0xff] %v2999
      %3004 = vst [vmem:[%s278 + $0x8] sm:$0xff] %v3000
      %3005 = vst [vmem:[%s278 + $0x10] sm:$0xff] %v3001
      %3006 = vst [vmem:[%s278 + $0x18] sm:$0xff] %v3002
      %p3007 = scmp.lt.s32.totalorder %s18, 1
      %s3008 = scalar_select %p3007, %s18, 1
      %s3009 = smul.addr %s3008, 4
      %s3010 = smul.addr %s3009, 8
      %s3011 = scalar_lea.vmem %s7, %s3010
      // Predicated region
      $region49: #{residual_cnn_forward.4} parent=47 // pred_check
        %p3012 = pneg %p188
      $region50: #{residual_cnn_forward.4} parent=47 // pred_check_branch
        %3014 = sbr.rel (%p3012) target = $region52
      $region51: #{residual_cnn_forward.4} parent=47 // pred_region
        _
      $region52: #{residual_cnn_forward.4} parent=47 // pred_fallthru
        _
    $region48: #{residual_cnn_forward.4} parent=5 // pred_fallthru
      _
    %p3015 = scmp.le.s32.totalorder 2, %s13
    // Predicated region
    $region53: #{residual_cnn_forward.4} parent=5 // pred_check
      %p3016 = pneg %p3015
    $region54: #{residual_cnn_forward.4} parent=5 // pred_check_branch
      %3018 = sbr.rel (%p3016) target = $region56
    $region55: #{residual_cnn_forward.4} parent=5 // pred_region
      %s3019 = ssub.s32 %s13, 2
      // Predicated region
      $region57: #{residual_cnn_forward.4} parent=55 // pred_check
        %p3020 = pneg %p194
      $region58: #{residual_cnn_forward.4} parent=55 // pred_check_branch
        %3022 = sbr.rel (%p3020) target = $region60
      $region59: #{residual_cnn_forward.4} parent=55 // pred_region
        %p3023 = scmp.lt.s32.totalorder %s19, 1
        %s3024 = scalar_select %p3023, %s19, 1
        %s3025 = smul.addr %s3024, 4
        %s3026 = smul.addr %s3025, 8
        %s3027 = scalar_lea.vmem %s7, %s3026
      $region60: #{residual_cnn_forward.4} parent=55 // pred_fallthru
        _
    $region56: #{residual_cnn_forward.4} parent=5 // pred_fallthru
      _
  $region6: #{residual_cnn_forward.4} parent=0 // loop_footer
    %s17 = sadd.s32 1, %s13
  $region7: #{residual_cnn_forward.4} parent=0 // loop_footer_branch
    %12 = sbr.rel target = $region3
  $region8: #{residual_cnn_forward.4} parent=0 // loop_exit
    _

// kernel: residual_cnn_forward.5
$region0: #{residual_cnn_forward.5}
  #allocation0 [shape = 'u32[]', space=smem, size = 0x4, offset = 0x4, fixed_abs, tag = 'smem constant byte address 0x4 - core index']
  #allocation1 [shape = 'u32[144,128]{1,0:T(1,128)}', space=vmem, size = 0x12000, scoped, tag = 'internal scratch']
  %s0 = inlined_call_operand.vmem [shape: bf16[32,400], index: 0, kind: input, shape index: {}]
  %s1 = inlined_call_operand.vmem [shape: bf16[2,400,256], index: 1, kind: input, shape index: {}]
  %s2 = inlined_call_operand.vmem [shape: f32[32,1], index: 2, kind: input, shape index: {}]
  %s3 = inlined_call_operand.vmem [shape: f32[256,64], index: 3, kind: input, shape index: {}]
  %s4 = inlined_call_operand.vmem [shape: f32[256,64], index: 4, kind: input, shape index: {}]
  %s5 = inlined_call_operand.vmem [shape: f32[256,64], index: 5, kind: input, shape index: {}]
  %s6 = inlined_call_operand.vmem [shape: f32[256,64], index: 6, kind: input, shape index: {}]
  %s7 = inlined_call_operand.vmem [shape: f32[2,32,64], index: 7, kind: output, shape index: {}]
  %s8 = sld [smem:[#allocation0]]
  $region61: #{residual_cnn_forward.5} parent=0
    _
  %s10 = ssub.s32 1, %s8
  %s11 = scalar_select 0, %s10, %s8
  loop: start=0, step=1, limit=4
  $region2: #{residual_cnn_forward.5} parent=0 // loop_pre_header
    _
  $region3: #{residual_cnn_forward.5} parent=0 // loop_header
    %s13 = sphi 0, %s17
    %p14 = scmp.ge.s32.totalorder %s13, 4
    %s21 = sphi 0, %s21
    %s23 = sphi 0, %s21
    %s24 = sphi 0, %s23
    %s38 = sphi 0, %s24
    %s44 = sphi 0, %s46
    %s47 = sphi 0, %s44
    %s48 = sphi 0, %s47
    %s64 = sphi 0, %s48
    %s68 = sphi 0, %s68
    %s70 = sphi 0, %s68
    %s71 = sphi 0, %s70
    %s85 = sphi 0, %s71
    %s89 = sphi 0, %s89
    %s91 = sphi 0, %s89
    %s92 = sphi 0, %s91
    %s106 = sphi 0, %s92
    %s110 = sphi 0, %s110
    %s112 = sphi 0, %s110
    %s113 = sphi 0, %s112
    %s127 = sphi 0, %s113
    %s131 = sphi 0, %s131
    %s133 = sphi 0, %s131
    %s134 = sphi 0, %s133
    %s148 = sphi 0, %s134
    %s152 = sphi 0, %s152
    %s154 = sphi 0, %s152
    %s155 = sphi 0, %s154
    %s169 = sphi 0, %s155
    %s175 = sphi 0, %s177
    %s178 = sphi 0, %s175
    %s179 = sphi 0, %s178
    %s195 = sphi 0, %s179
  $region4: #{residual_cnn_forward.5} parent=0 // loop_header_branch
    %16 = sbr.rel (%p14) target = $region8
  $region5: #{residual_cnn_forward.5} parent=0 // loop_body
    %s18 = ssub.s32 %s13, 1
    %s19 = ssub.s32 %s13, 2
    %s20 = sadd.s32 %s13, 1
    %s22 = sadd.s32 %s21, 1
    %p25 = scmp.eq.s32.totalorder %s13, 1
    %p26 = scmp.ne.s32.totalorder %s21, %s23
    %p27 = scmp.eq.s32.totalorder %s13, 0
    %p28 = por %p26, %p27
    %p29 = scmp.ne.s32.totalorder %s21, %s23
    %p30 = scmp.eq.s32.totalorder %s18, 1
    %p31 = por %p29, %p30
    %p32 = scmp.ne.s32.totalorder %s23, %s24
    %p33 = scmp.eq.s32.totalorder %s18, 0
    %p34 = por %p32, %p33
    %p35 = scmp.ne.s32.totalorder %s23, %s24
    %p36 = scmp.eq.s32.totalorder %s19, 1
    %p37 = por %p35, %p36
    %p39 = scmp.ne.s32.totalorder %s24, %s38
    %p40 = scmp.eq.s32.totalorder %s19, 0
    %p41 = por %p39, %p40
    %s42 = ssub.s32 %s13, %s20
    %p43 = scmp.eq.s32.totalorder %s42, 0
    %s45 = sadd.s32 %s44, 1
    %s46 = scalar_select %p43, %s44, %s45
    %p49 = pneg %p43
    %p50 = scmp.eq.s32.totalorder %s13, 1
    %p51 = por %p49, %p50
    %p52 = scmp.ne.s32.totalorder %s44, %s47
    %p53 = scmp.eq.s32.totalorder %s13, 0
    %p54 = por %p52, %p53
    %p55 = scmp.ne.s32.totalorder %s44, %s47
    %p56 = scmp.eq.s32.totalorder %s18, 1
    %p57 = por %p55, %p56
    %p58 = scmp.ne.s32.totalorder %s47, %s48
    %p59 = scmp.eq.s32.totalorder %s18, 0
    %p60 = por %p58, %p59
    %p61 = scmp.ne.s32.totalorder %s47, %s48
    %p62 = scmp.eq.s32.totalorder %s19, 1
    %p63 = por %p61, %p62
    %p65 = scmp.ne.s32.totalorder %s48, %s64
    %p66 = scmp.eq.s32.totalorder %s19, 0
    %p67 = por %p65, %p66
    %s69 = sadd.s32 %s68, 1
    %p72 = scmp.eq.s32.totalorder %s13, 1
    %p73 = scmp.ne.s32.totalorder %s68, %s70
    %p74 = scmp.eq.s32.totalorder %s13, 0
    %p75 = por %p73, %p74
    %p76 = scmp.ne.s32.totalorder %s68, %s70
    %p77 = scmp.eq.s32.totalorder %s18, 1
    %p78 = por %p76, %p77
    %p79 = scmp.ne.s32.totalorder %s70, %s71
    %p80 = scmp.eq.s32.totalorder %s18, 0
    %p81 = por %p79, %p80
    %p82 = scmp.ne.s32.totalorder %s70, %s71
    %p83 = scmp.eq.s32.totalorder %s19, 1
    %p84 = por %p82, %p83
    %p86 = scmp.ne.s32.totalorder %s71, %s85
    %p87 = scmp.eq.s32.totalorder %s19, 0
    %p88 = por %p86, %p87
    %s90 = sadd.s32 %s89, 1
    %p93 = scmp.eq.s32.totalorder %s13, 1
    %p94 = scmp.ne.s32.totalorder %s89, %s91
    %p95 = scmp.eq.s32.totalorder %s13, 0
    %p96 = por %p94, %p95
    %p97 = scmp.ne.s32.totalorder %s89, %s91
    %p98 = scmp.eq.s32.totalorder %s18, 1
    %p99 = por %p97, %p98
    %p100 = scmp.ne.s32.totalorder %s91, %s92
    %p101 = scmp.eq.s32.totalorder %s18, 0
    %p102 = por %p100, %p101
    %p103 = scmp.ne.s32.totalorder %s91, %s92
    %p104 = scmp.eq.s32.totalorder %s19, 1
    %p105 = por %p103, %p104
    %p107 = scmp.ne.s32.totalorder %s92, %s106
    %p108 = scmp.eq.s32.totalorder %s19, 0
    %p109 = por %p107, %p108
    %s111 = sadd.s32 %s110, 1
    %p114 = scmp.eq.s32.totalorder %s13, 1
    %p115 = scmp.ne.s32.totalorder %s110, %s112
    %p116 = scmp.eq.s32.totalorder %s13, 0
    %p117 = por %p115, %p116
    %p118 = scmp.ne.s32.totalorder %s110, %s112
    %p119 = scmp.eq.s32.totalorder %s18, 1
    %p120 = por %p118, %p119
    %p121 = scmp.ne.s32.totalorder %s112, %s113
    %p122 = scmp.eq.s32.totalorder %s18, 0
    %p123 = por %p121, %p122
    %p124 = scmp.ne.s32.totalorder %s112, %s113
    %p125 = scmp.eq.s32.totalorder %s19, 1
    %p126 = por %p124, %p125
    %p128 = scmp.ne.s32.totalorder %s113, %s127
    %p129 = scmp.eq.s32.totalorder %s19, 0
    %p130 = por %p128, %p129
    %s132 = sadd.s32 %s131, 1
    %p135 = scmp.eq.s32.totalorder %s13, 1
    %p136 = scmp.ne.s32.totalorder %s131, %s133
    %p137 = scmp.eq.s32.totalorder %s13, 0
    %p138 = por %p136, %p137
    %p139 = scmp.ne.s32.totalorder %s131, %s133
    %p140 = scmp.eq.s32.totalorder %s18, 1
    %p141 = por %p139, %p140
    %p142 = scmp.ne.s32.totalorder %s133, %s134
    %p143 = scmp.eq.s32.totalorder %s18, 0
    %p144 = por %p142, %p143
    %p145 = scmp.ne.s32.totalorder %s133, %s134
    %p146 = scmp.eq.s32.totalorder %s19, 1
    %p147 = por %p145, %p146
    %p149 = scmp.ne.s32.totalorder %s134, %s148
    %p150 = scmp.eq.s32.totalorder %s19, 0
    %p151 = por %p149, %p150
    %s153 = sadd.s32 %s152, 1
    %p156 = scmp.eq.s32.totalorder %s13, 1
    %p157 = scmp.ne.s32.totalorder %s152, %s154
    %p158 = scmp.eq.s32.totalorder %s13, 0
    %p159 = por %p157, %p158
    %p160 = scmp.ne.s32.totalorder %s152, %s154
    %p161 = scmp.eq.s32.totalorder %s18, 1
    %p162 = por %p160, %p161
    %p163 = scmp.ne.s32.totalorder %s154, %s155
    %p164 = scmp.eq.s32.totalorder %s18, 0
    %p165 = por %p163, %p164
    %p166 = scmp.ne.s32.totalorder %s154, %s155
    %p167 = scmp.eq.s32.totalorder %s19, 1
    %p168 = por %p166, %p167
    %p170 = scmp.ne.s32.totalorder %s155, %s169
    %p171 = scmp.eq.s32.totalorder %s19, 0
    %p172 = por %p170, %p171
    %s173 = ssub.s32 %s13, %s20
    %p174 = scmp.eq.s32.totalorder %s173, 0
    %s176 = sadd.s32 %s175, 1
    %s177 = scalar_select %p174, %s175, %s176
    %p180 = pneg %p174
    %p181 = scmp.eq.s32.totalorder %s13, 1
    %p182 = por %p180, %p181
    %p183 = scmp.ne.s32.totalorder %s175, %s178
    %p184 = scmp.eq.s32.totalorder %s13, 0
    %p185 = por %p183, %p184
    %p186 = scmp.ne.s32.totalorder %s175, %s178
    %p187 = scmp.eq.s32.totalorder %s18, 1
    %p188 = por %p186, %p187
    %p189 = scmp.ne.s32.totalorder %s178, %s179
    %p190 = scmp.eq.s32.totalorder %s18, 0
    %p191 = por %p189, %p190
    %p192 = scmp.ne.s32.totalorder %s178, %s179
    %p193 = scmp.eq.s32.totalorder %s19, 1
    %p194 = por %p192, %p193
    %p196 = scmp.ne.s32.totalorder %s179, %s195
    %p197 = scmp.eq.s32.totalorder %s19, 0
    %p198 = por %p196, %p197
    %p199 = scmp.le.s32.totalorder 1, %s13
    %p200 = scmp.lt.s32.totalorder %s13, 3
    %p201 = pnand %p199, %p200
    %p202 = pneg %p201
    // Predicated region
    $region9: #{residual_cnn_forward.5} parent=5 // pred_check
      _
    $region10: #{residual_cnn_forward.5} parent=5 // pred_check_branch
      %204 = sbr.rel (%p201) target = $region12
    $region11: #{residual_cnn_forward.5} parent=5 // pred_region
      %s205 = ssub.s32 %s13, 1
      // Predicated region
      $region13: #{residual_cnn_forward.5} parent=11 // pred_check
        %p206 = pneg %p34
      $region14: #{residual_cnn_forward.5} parent=11 // pred_check_branch
        %208 = sbr.rel (%p206) target = $region16
      $region15: #{residual_cnn_forward.5} parent=11 // pred_region
        _
      $region16: #{residual_cnn_forward.5} parent=11 // pred_fallthru
        _
      // Predicated region
      $region17: #{residual_cnn_forward.5} parent=11 // pred_check
        %p209 = pneg %p81
      $region18: #{residual_cnn_forward.5} parent=11 // pred_check_branch
        %211 = sbr.rel (%p209) target = $region20
      $region19: #{residual_cnn_forward.5} parent=11 // pred_region
        _
      $region20: #{residual_cnn_forward.5} parent=11 // pred_fallthru
        _
      // Predicated region
      $region21: #{residual_cnn_forward.5} parent=11 // pred_check
        %p212 = pneg %p102
      $region22: #{residual_cnn_forward.5} parent=11 // pred_check_branch
        %214 = sbr.rel (%p212) target = $region24
      $region23: #{residual_cnn_forward.5} parent=11 // pred_region
        _
      $region24: #{residual_cnn_forward.5} parent=11 // pred_fallthru
        _
      // Predicated region
      $region25: #{residual_cnn_forward.5} parent=11 // pred_check
        %p215 = pneg %p123
      $region26: #{residual_cnn_forward.5} parent=11 // pred_check_branch
        %217 = sbr.rel (%p215) target = $region28
      $region27: #{residual_cnn_forward.5} parent=11 // pred_region
        _
      $region28: #{residual_cnn_forward.5} parent=11 // pred_fallthru
        _
      // Predicated region
      $region29: #{residual_cnn_forward.5} parent=11 // pred_check
        %p218 = pneg %p144
      $region30: #{residual_cnn_forward.5} parent=11 // pred_check_branch
        %220 = sbr.rel (%p218) target = $region32
      $region31: #{residual_cnn_forward.5} parent=11 // pred_region
        _
      $region32: #{residual_cnn_forward.5} parent=11 // pred_fallthru
        _
      // Predicated region
      $region33: #{residual_cnn_forward.5} parent=11 // pred_check
        %p221 = pneg %p165
      $region34: #{residual_cnn_forward.5} parent=11 // pred_check_branch
        %223 = sbr.rel (%p221) target = $region36
      $region35: #{residual_cnn_forward.5} parent=11 // pred_region
        _
      $region36: #{residual_cnn_forward.5} parent=11 // pred_fallthru
        _
    $region12: #{residual_cnn_forward.5} parent=5 // pred_fallthru
      _
    %p224 = scmp.lt.s32.totalorder %s13, 2
    // Predicated region
    $region37: #{residual_cnn_forward.5} parent=5 // pred_check
      %p225 = pneg %p224
    $region38: #{residual_cnn_forward.5} parent=5 // pred_check_branch
      %227 = sbr.rel (%p225) target = $region40
    $region39: #{residual_cnn_forward.5} parent=5 // pred_region
      // Predicated region
      $region41: #{residual_cnn_forward.5} parent=39 // pred_check
        %p228 = pneg %p54
      $region42: #{residual_cnn_forward.5} parent=39 // pred_check_branch
        %230 = sbr.rel (%p228) target = $region44
      $region43: #{residual_cnn_forward.5} parent=39 // pred_region
        %p231 = scmp.lt.s32.totalorder %s13, 1
        %s232 = scalar_select %p231, %s13, 1
        %s233 = smul.addr %s232, 100
        %s234 = smul.addr %s233, 4
        %s235 = scalar_lea.vmem %s1, %s234
      $region44: #{residual_cnn_forward.5} parent=39 // pred_fallthru
        _
    $region40: #{residual_cnn_forward.5} parent=5 // pred_fallthru
      _
    %p236 = scmp.le.s32.totalorder 1, %s13
    %p237 = scmp.lt.s32.totalorder %s13, 3
    %p238 = pnand %p236, %p237
    %p239 = pneg %p238
    // Predicated region
    $region45: #{residual_cnn_forward.5} parent=5 // pred_check
      _
    $region46: #{residual_cnn_forward.5} parent=5 // pred_check_branch
      %241 = sbr.rel (%p238) target = $region48
    $region47: #{residual_cnn_forward.5} parent=5 // pred_region
      %s242 = ssub.s32 %s13, 1
      %p243 = pneg %p34
      %p244 = pneg %p31
      %p245 = scmp.lt.s32.totalorder %s18, 1
      %s246 = scalar_select %p245, %s18, 1
      %s247 = smul.addr %s246, 100
      %s248 = smul.addr %s247, 4
      %s249 = scalar_lea.vmem %s1, %s248
      %p250 = pneg %p60
      %p251 = pneg %p57
      %p252 = pneg %p81
      %p253 = pneg %p78
      %p254 = pneg %p102
      %p255 = pneg %p99
      %p256 = pneg %p123
      %p257 = pneg %p120
      %p258 = pneg %p144
      %p259 = pneg %p141
      %p260 = pneg %p165
      %p261 = pneg %p162
      %p262 = pneg %p191
      %p263 = pneg %p188
      %p264 = scmp.lt.s32.totalorder %s18, 1
      %s265 = scalar_select %p264, %s18, 1
      %s266 = smul.addr %s265, 4
      %s267 = smul.addr %s266, 8
      %s268 = scalar_lea.vmem %s7, %s267
      %p269 = scmp.lt.s32.totalorder %s18, 1
      %s270 = scalar_select %p269, %s18, 1
      %s271 = smul.addr %s270, 100
      %s272 = smul.addr %s271, 4
      %s273 = scalar_lea.vmem %s1, %s272
      %p274 = scmp.lt.s32.totalorder %s18, 1
      %s275 = scalar_select %p274, %s18, 1
      %s276 = smul.addr %s275, 4
      %s277 = smul.addr %s276, 8
      %s278 = scalar_lea.vmem %s7, %s277
      %v280 = vld [vmem:[%s273] sm:$0xff]
      %v281 = vld [vmem:[%s273 + $0x8] sm:$0xff]
      %v282 = vld [vmem:[%s273 + $0x10] sm:$0xff]
      %v283 = vld [vmem:[%s273 + $0x18] sm:$0xff]
      %v284 = vld [vmem:[%s273 + $0x20] sm:$0xff]
      %v285 = vld [vmem:[%s273 + $0x28] sm:$0xff]
      %v286 = vld [vmem:[%s273 + $0x30] sm:$0xff]
      %v287 = vld [vmem:[%s273 + $0x38] sm:$0xff]
      %v288 = vld [vmem:[%s273 + $0x40] sm:$0xff]
      %v289 = vld [vmem:[%s273 + $0x48] sm:$0xff]
      %v290 = vld [vmem:[%s273 + $0x50] sm:$0xff]
      %v291 = vld [vmem:[%s273 + $0x58] sm:$0xff]
      %v292 = vld [vmem:[%s273 + $0x60] sm:$0xff]
      %v293 = vld [vmem:[%s273 + $0x68] sm:$0xff]
      %v294 = vld [vmem:[%s273 + $0x70] sm:$0xff]
      %v295 = vld [vmem:[%s273 + $0x78] sm:$0xff]
      %v296 = vld [vmem:[%s273 + $0x80] sm:$0xff]
      %v297 = vld [vmem:[%s273 + $0x88] sm:$0xff]
      %v298 = vld [vmem:[%s273 + $0x90] sm:$0xff]
      %v299 = vld [vmem:[%s273 + $0x98] sm:$0xff]
      %v300 = vld [vmem:[%s273 + $0xa0] sm:$0xff]
      %v301 = vld [vmem:[%s273 + $0xa8] sm:$0xff]
      %v302 = vld [vmem:[%s273 + $0xb0] sm:$0xff]
      %v303 = vld [vmem:[%s273 + $0xb8] sm:$0xff]
      %v304 = vld [vmem:[%s273 + $0xc0] sm:$0xff]
      %v305 = vld [vmem:[%s273 + $0xc8] sm:$0xff]
      %v306 = vld [vmem:[%s273 + $0xd0] sm:$0xff]
      %v307 = vld [vmem:[%s273 + $0xd8] sm:$0xff]
      %v308 = vld [vmem:[%s273 + $0xe0] sm:$0xff]
      %v309 = vld [vmem:[%s273 + $0xe8] sm:$0xff]
      %v310 = vld [vmem:[%s273 + $0xf0] sm:$0xff]
      %v311 = vld [vmem:[%s273 + $0xf8] sm:$0xff]
      %v312 = vld [vmem:[%s273 + $0x100] sm:$0xff]
      %v313 = vld [vmem:[%s273 + $0x108] sm:$0xff]
      %v314 = vld [vmem:[%s273 + $0x110] sm:$0xff]
      %v315 = vld [vmem:[%s273 + $0x118] sm:$0xff]
      %v316 = vld [vmem:[%s273 + $0x120] sm:$0xff]
      %v317 = vld [vmem:[%s273 + $0x128] sm:$0xff]
      %v318 = vld [vmem:[%s273 + $0x130] sm:$0xff]
      %v319 = vld [vmem:[%s273 + $0x138] sm:$0xff]
      %v320 = vld [vmem:[%s273 + $0x140] sm:$0xff]
      %v321 = vld [vmem:[%s273 + $0x148] sm:$0xff]
      %v322 = vld [vmem:[%s273 + $0x150] sm:$0xff]
      %v323 = vld [vmem:[%s273 + $0x158] sm:$0xff]
      %v324 = vld [vmem:[%s273 + $0x160] sm:$0xff]
      %v325 = vld [vmem:[%s273 + $0x168] sm:$0xff]
      %v326 = vld [vmem:[%s273 + $0x170] sm:$0xff]
      %v327 = vld [vmem:[%s273 + $0x178] sm:$0xff]
      %v328 = vld [vmem:[%s273 + $0x180] sm:$0xff]
      %v329 = vld [vmem:[%s273 + $0x188] sm:$0xff]
      %v330 = vmax.bf16 %v280, 0
      %v331 = vmax.bf16 %v281, 0
      %v332 = vmax.bf16 %v282, 0
      %v333 = vmax.bf16 %v283, 0
      %v334 = vmax.bf16 %v284, 0
      %v335 = vmax.bf16 %v285, 0
      %v336 = vmax.bf16 %v286, 0
      %v337 = vmax.bf16 %v287, 0
      %v338 = vmax.bf16 %v288, 0
      %v339 = vmax.bf16 %v289, 0
      %v340 = vmax.bf16 %v290, 0
      %v341 = vmax.bf16 %v291, 0
      %v342 = vmax.bf16 %v292, 0
      %v343 = vmax.bf16 %v293, 0
      %v344 = vmax.bf16 %v294, 0
      %v345 = vmax.bf16 %v295, 0
      %v346 = vmax.bf16 %v296, 0
      %v347 = vmax.bf16 %v297, 0
      %v348 = vmax.bf16 %v298, 0
      %v349 = vmax.bf16 %v299, 0
      %v350 = vmax.bf16 %v300, 0
      %v351 = vmax.bf16 %v301, 0
      %v352 = vmax.bf16 %v302, 0
      %v353 = vmax.bf16 %v303, 0
      %v354 = vmax.bf16 %v304, 0
      %v355 = vmax.bf16 %v305, 0
      %v356 = vmax.bf16 %v306, 0
      %v357 = vmax.bf16 %v307, 0
      %v358 = vmax.bf16 %v308, 0
      %v359 = vmax.bf16 %v309, 0
      %v360 = vmax.bf16 %v310, 0
      %v361 = vmax.bf16 %v311, 0
      %v362 = vmax.bf16 %v312, 0
      %v363 = vmax.bf16 %v313, 0
      %v364 = vmax.bf16 %v314, 0
      %v365 = vmax.bf16 %v315, 0
      %v366 = vmax.bf16 %v316, 0
      %v367 = vmax.bf16 %v317, 0
      %v368 = vmax.bf16 %v318, 0
      %v369 = vmax.bf16 %v319, 0
      %v370 = vmax.bf16 %v320, 0
      %v371 = vmax.bf16 %v321, 0
      %v372 = vmax.bf16 %v322, 0
      %v373 = vmax.bf16 %v323, 0
      %v374 = vmax.bf16 %v324, 0
      %v375 = vmax.bf16 %v325, 0
      %v376 = vmax.bf16 %v326, 0
      %v377 = vmax.bf16 %v327, 0
      %v378 = vmax.bf16 %v328, 0
      %v379 = vmax.bf16 %v329, 0
      %v380 = vld [vmem:[%s0] sm:$0xff]
      %v381 = vld [vmem:[%s0 + $0x8] sm:$0xff]
      %v382 = vld [vmem:[%s0 + $0x10] sm:$0xff]
      %v383 = vld [vmem:[%s0 + $0x18] sm:$0xff]
      %v384 = vld [vmem:[%s0 + $0x20] sm:$0xff]
      %v385 = vld [vmem:[%s0 + $0x28] sm:$0xff]
      %v386 = vld [vmem:[%s0 + $0x30] sm:$0xff]
      %v387 = vld [vmem:[%s0 + $0x38] sm:$0xff]
      %v388 = vld [vmem:[%s2] sm:$0xff]
      %v389 = vld [vmem:[%s2 + $0x8] sm:$0xff]
      %v390 = vld [vmem:[%s2 + $0x10] sm:$0xff]
      %v391 = vld [vmem:[%s2 + $0x18] sm:$0xff]
      %393 = vset.pattern.permute.xlu0 0
      %394 = vperm.xlu0 %393, %v388
      %v395 = vpop.permute.xlu0 %394
      %398 = vset.pattern.permute.xlu0 0
      %399 = vperm.xlu0 %398, %v389
      %v400 = vpop.permute.xlu0 %399
      %403 = vset.pattern.permute.xlu0 0
      %404 = vperm.xlu0 %403, %v390
      %v405 = vpop.permute.xlu0 %404
      %408 = vset.pattern.permute.xlu0 0
      %409 = vperm.xlu0 %408, %v391
      %v410 = vpop.permute.xlu0 %409
      %v420 = vunpack.c.l.b16 %v380
      %v421 = vunpack.c.h.b16 %v380
      %v422 = vunpack.c.l.b16 %v381
      %v423 = vunpack.c.h.b16 %v381
      %v424 = vunpack.c.l.b16 %v382
      %v425 = vunpack.c.h.b16 %v382
      %v426 = vunpack.c.l.b16 %v383
      %v427 = vunpack.c.h.b16 %v383
      %v428 = vunpack.c.l.b16 %v384
      %v429 = vunpack.c.h.b16 %v384
      %v430 = vunpack.c.l.b16 %v385
      %v431 = vunpack.c.h.b16 %v385
      %v432 = vunpack.c.l.b16 %v386
      %v433 = vunpack.c.h.b16 %v386
      %v434 = vunpack.c.l.b16 %v387
      %v435 = vunpack.c.h.b16 %v387
      %v436 = vpack.c.b16 %v424, %v420
      %v437 = vpack.c.b16 %v425, %v421
      %v438 = vpack.c.b16 %v426, %v422
      %v439 = vpack.c.b16 %v427, %v423
      %v440 = vpack.c.b16 %v432, %v428
      %v441 = vpack.c.b16 %v433, %v429
      %v442 = vpack.c.b16 %v434, %v430
      %v443 = vpack.c.b16 %v435, %v431
      %v500 = vunpack.c.l.b16 %v330
      %v501 = vunpack.c.h.b16 %v330
      %v502 = vunpack.c.l.b16 %v331
      %v503 = vunpack.c.h.b16 %v331
      %v504 = vunpack.c.l.b16 %v332
      %v505 = vunpack.c.h.b16 %v332
      %v506 = vunpack.c.l.b16 %v333
      %v507 = vunpack.c.h.b16 %v333
      %v508 = vunpack.c.l.b16 %v334
      %v509 = vunpack.c.h.b16 %v334
      %v510 = vunpack.c.l.b16 %v335
      %v511 = vunpack.c.h.b16 %v335
      %v512 = vunpack.c.l.b16 %v336
      %v513 = vunpack.c.h.b16 %v336
      %v514 = vunpack.c.l.b16 %v337
      %v515 = vunpack.c.h.b16 %v337
      %v516 = vunpack.c.l.b16 %v338
      %v517 = vunpack.c.h.b16 %v338
      %v518 = vunpack.c.l.b16 %v339
      %v519 = vunpack.c.h.b16 %v339
      %v520 = vunpack.c.l.b16 %v340
      %v521 = vunpack.c.h.b16 %v340
      %v522 = vunpack.c.l.b16 %v341
      %v523 = vunpack.c.h.b16 %v341
      %v524 = vunpack.c.l.b16 %v342
      %v525 = vunpack.c.h.b16 %v342
      %v526 = vunpack.c.l.b16 %v343
      %v527 = vunpack.c.h.b16 %v343
      %v528 = vunpack.c.l.b16 %v344
      %v529 = vunpack.c.h.b16 %v344
      %v530 = vunpack.c.l.b16 %v345
      %v531 = vunpack.c.h.b16 %v345
      %v532 = vunpack.c.l.b16 %v346
      %v533 = vunpack.c.h.b16 %v346
      %v534 = vunpack.c.l.b16 %v347
      %v535 = vunpack.c.h.b16 %v347
      %v536 = vunpack.c.l.b16 %v348
      %v537 = vunpack.c.h.b16 %v348
      %v538 = vunpack.c.l.b16 %v349
      %v539 = vunpack.c.h.b16 %v349
      %v540 = vunpack.c.l.b16 %v350
      %v541 = vunpack.c.h.b16 %v350
      %v542 = vunpack.c.l.b16 %v351
      %v543 = vunpack.c.h.b16 %v351
      %v544 = vunpack.c.l.b16 %v352
      %v545 = vunpack.c.h.b16 %v352
      %v546 = vunpack.c.l.b16 %v353
      %v547 = vunpack.c.h.b16 %v353
      %v548 = vunpack.c.l.b16 %v354
      %v549 = vunpack.c.h.b16 %v354
      %v550 = vunpack.c.l.b16 %v355
      %v551 = vunpack.c.h.b16 %v355
      %v552 = vunpack.c.l.b16 %v356
      %v553 = vunpack.c.h.b16 %v356
      %v554 = vunpack.c.l.b16 %v357
      %v555 = vunpack.c.h.b16 %v357
      %v556 = vunpack.c.l.b16 %v358
      %v557 = vunpack.c.h.b16 %v358
      %v558 = vunpack.c.l.b16 %v359
      %v559 = vunpack.c.h.b16 %v359
      %v560 = vunpack.c.l.b16 %v360
      %v561 = vunpack.c.h.b16 %v360
      %v562 = vunpack.c.l.b16 %v361
      %v563 = vunpack.c.h.b16 %v361
      %v564 = vunpack.c.l.b16 %v362
      %v565 = vunpack.c.h.b16 %v362
      %v566 = vunpack.c.l.b16 %v363
      %v567 = vunpack.c.h.b16 %v363
      %v568 = vunpack.c.l.b16 %v364
      %v569 = vunpack.c.h.b16 %v364
      %v570 = vunpack.c.l.b16 %v365
      %v571 = vunpack.c.h.b16 %v365
      %v572 = vunpack.c.l.b16 %v366
      %v573 = vunpack.c.h.b16 %v366
      %v574 = vunpack.c.l.b16 %v367
      %v575 = vunpack.c.h.b16 %v367
      %v576 = vunpack.c.l.b16 %v368
      %v577 = vunpack.c.h.b16 %v368
      %v578 = vunpack.c.l.b16 %v369
      %v579 = vunpack.c.h.b16 %v369
      %v580 = vunpack.c.l.b16 %v370
      %v581 = vunpack.c.h.b16 %v370
      %v582 = vunpack.c.l.b16 %v371
      %v583 = vunpack.c.h.b16 %v371
      %v584 = vunpack.c.l.b16 %v372
      %v585 = vunpack.c.h.b16 %v372
      %v586 = vunpack.c.l.b16 %v373
      %v587 = vunpack.c.h.b16 %v373
      %v588 = vunpack.c.l.b16 %v374
      %v589 = vunpack.c.h.b16 %v374
      %v590 = vunpack.c.l.b16 %v375
      %v591 = vunpack.c.h.b16 %v375
      %v592 = vunpack.c.l.b16 %v376
      %v593 = vunpack.c.h.b16 %v376
      %v594 = vunpack.c.l.b16 %v377
      %v595 = vunpack.c.h.b16 %v377
      %v596 = vunpack.c.l.b16 %v378
      %v597 = vunpack.c.h.b16 %v378
      %v598 = vunpack.c.l.b16 %v379
      %v599 = vunpack.c.h.b16 %v379
      %v600 = vpack.c.b16 %v502, %v500
      %v601 = vpack.c.b16 %v503, %v501
      %v602 = vpack.c.b16 %v506, %v504
      %v603 = vpack.c.b16 %v507, %v505
      %v604 = vpack.c.b16 %v510, %v508
      %v605 = vpack.c.b16 %v511, %v509
      %v606 = vpack.c.b16 %v514, %v512
      %v607 = vpack.c.b16 %v515, %v513
      %v608 = vpack.c.b16 %v518, %v516
      %v609 = vpack.c.b16 %v519, %v517
      %v610 = vpack.c.b16 %v522, %v520
      %v611 = vpack.c.b16 %v523, %v521
      %v612 = vpack.c.b16 %v526, %v524
      %v613 = vpack.c.b16 %v527, %v525
      %v614 = vpack.c.b16 %v530, %v528
      %v615 = vpack.c.b16 %v531, %v529
      %v616 = vpack.c.b16 %v534, %v532
      %v617 = vpack.c.b16 %v535, %v533
      %v618 = vpack.c.b16 %v538, %v536
      %v619 = vpack.c.b16 %v539, %v537
      %v620 = vpack.c.b16 %v542, %v540
      %v621 = vpack.c.b16 %v543, %v541
      %v622 = vpack.c.b16 %v546, %v544
      %v623 = vpack.c.b16 %v547, %v545
      %v624 = vpack.c.b16 %v550, %v548
      %v625 = vpack.c.b16 %v551, %v549
      %v626 = vpack.c.b16 %v554, %v552
      %v627 = vpack.c.b16 %v555, %v553
      %v628 = vpack.c.b16 %v558, %v556
      %v629 = vpack.c.b16 %v559, %v557
      %v630 = vpack.c.b16 %v562, %v560
      %v631 = vpack.c.b16 %v563, %v561
      %v632 = vpack.c.b16 %v566, %v564
      %v633 = vpack.c.b16 %v567, %v565
      %v634 = vpack.c.b16 %v570, %v568
      %v635 = vpack.c.b16 %v571, %v569
      %v636 = vpack.c.b16 %v574, %v572
      %v637 = vpack.c.b16 %v575, %v573
      %v638 = vpack.c.b16 %v578, %v576
      %v639 = vpack.c.b16 %v579, %v577
      %v640 = vpack.c.b16 %v582, %v580
      %v641 = vpack.c.b16 %v583, %v581
      %v642 = vpack.c.b16 %v586, %v584
      %v643 = vpack.c.b16 %v587, %v585
      %v644 = vpack.c.b16 %v590, %v588
      %v645 = vpack.c.b16 %v591, %v589
      %v646 = vpack.c.b16 %v594, %v592
      %v647 = vpack.c.b16 %v595, %v593
      %v648 = vpack.c.b16 %v598, %v596
      %v649 = vpack.c.b16 %v599, %v597
      %vm700 = vcmask 130048
      %v702 = vsel %vm700, %v439, 0
      %v705 = vsel %vm700, %v443, 0
      %707 = vmatprep.subr.bf16.mxu0 %v601
      %708 = vmatpush1.bf16.msra.mxu0 %v600
      %709 = vmatprep.subr.bf16.mxu0 %v603
      %710 = vmatpush1.bf16.msra.mxu0 %v602
      %711 = vmatprep.subr.bf16.mxu0 %v605
      %712 = vmatpush1.bf16.msra.mxu0 %v604
      %713 = vmatprep.subr.bf16.mxu0 %v607
      %714 = vmatpush1.bf16.msra.mxu0 %v606
      %715 = vmatprep.subr.bf16.mxu0 %v609
      %716 = vmatpush1.bf16.msra.mxu0 %v608
      %717 = vmatprep.subr.bf16.mxu0 %v611
      %718 = vmatpush1.bf16.msra.mxu0 %v610
      %719 = vmatprep.subr.bf16.mxu0 %v613
      %720 = vmatpush1.bf16.msra.mxu0 %v612
      %721 = vmatprep.subr.bf16.mxu0 %v615
      %722 = vmatpush1.bf16.msra.mxu0 %v614
      %723 = vmatprep.subr.bf16.mxu0 %v617
      %724 = vmatpush1.bf16.msra.mxu0 %v616
      %725 = vmatprep.subr.bf16.mxu0 %v619
      %726 = vmatpush1.bf16.msra.mxu0 %v618
      %727 = vmatprep.subr.bf16.mxu0 %v621
      %728 = vmatpush1.bf16.msra.mxu0 %v620
      %729 = vmatprep.subr.bf16.mxu0 %v623
      %730 = vmatpush1.bf16.msra.mxu0 %v622
      %731 = vmatprep.subr.bf16.mxu0 %v625
      %732 = vmatpush1.bf16.msra.mxu0 %v624
      %733 = vmatprep.subr.bf16.mxu0 %v627
      %734 = vmatpush1.bf16.msra.mxu0 %v626
      %735 = vmatprep.subr.bf16.mxu0 %v629
      %736 = vmatpush1.bf16.msra.mxu0 %v628
      %737 = vmatprep.subr.bf16.mxu0 %v631
      %738 = vmatpush1.bf16.msra.mxu0 %v630
      %739 = vmatprep.mubr.bf16.mxu0 %v437
      %740 = vmatmul.mubr.bf16.gmra.mrb[0].mxu0 %v436
      %v741 = vpop.f32.mrb[0].mxu0
      %v742 = vadd.f32 %v395, %v741
      %v743 = vpop.f32.mrb[0].mxu0
      %v744 = vadd.f32 %v395, %v743
      %v745 = vpop.f32.mrb[0].mxu0
      %v746 = vadd.f32 %v400, %v745
      %v747 = vpop.f32.mrb[0].mxu0
      %v748 = vadd.f32 %v400, %v747
      %749 = vmatprep.mubr.bf16.mxu0 %v441
      %750 = vmatmul.mubr.bf16.gmra.mrb[0].mxu0 %v440
      %v751 = vpop.f32.mrb[0].mxu0
      %v752 = vadd.f32 %v405, %v751
      %v753 = vpop.f32.mrb[0].mxu0
      %v754 = vadd.f32 %v405, %v753
      %v755 = vpop.f32.mrb[0].mxu0
      %v756 = vadd.f32 %v410, %v755
      %v757 = vpop.f32.mrb[0].mxu0
      %v758 = vadd.f32 %v410, %v757
      %759 = vdwg.mxu0
      %760 = vmatprep.subr.bf16.mxu0 %v633
      %761 = vmatpush1.bf16.msra.mxu0 %v632
      %762 = vmatprep.subr.bf16.mxu0 %v635
      %763 = vmatpush1.bf16.msra.mxu0 %v634
      %764 = vmatprep.subr.bf16.mxu0 %v637
      %765 = vmatpush1.bf16.msra.mxu0 %v636
      %766 = vmatprep.subr.bf16.mxu0 %v639
      %767 = vmatpush1.bf16.msra.mxu0 %v638
      %768 = vmatprep.subr.bf16.mxu0 %v641
      %769 = vmatpush1.bf16.msra.mxu0 %v640
      %770 = vmatprep.subr.bf16.mxu0 %v643
      %771 = vmatpush1.bf16.msra.mxu0 %v642
      %772 = vmatprep.subr.bf16.mxu0 %v645
      %773 = vmatpush1.bf16.msra.mxu0 %v644
      %774 = vmatprep.subr.bf16.mxu0 %v647
      %775 = vmatpush1.bf16.msra.mxu0 %v646
      %776 = vmatprep.subr.bf16.mxu0 %v649
      %777 = vmatpush1.bf16.msra.mxu0 %v648
      %778 = vmatprep.subr.bf16.mxu0 0
      %779 = vmatpush1.bf16.msra.mxu0 0
      %780 = vmatprep.subr.bf16.mxu0 0
      %781 = vmatpush1.bf16.msra.mxu0 0
      %782 = vmatprep.subr.bf16.mxu0 0
      %783 = vmatpush1.bf16.msra.mxu0 0
      %784 = vmatprep.subr.bf16.mxu0 0
      %785 = vmatpush1.bf16.msra.mxu0 0
      %786 = vmatprep.subr.bf16.mxu0 0
      %787 = vmatpush1.bf16.msra.mxu0 0
      %788 = vmatprep.subr.bf16.mxu0 0
      %789 = vmatpush1.bf16.msra.mxu0 0
      %790 = vmatprep.subr.bf16.mxu0 0
      %791 = vmatpush1.bf16.msra.mxu0 0
      %792 = vmatprep.mubr.bf16.mxu0 %v702
      %793 = vmatmul.mubr.bf16.gmra.mrb[0].mxu0 %v438
      %v794 = vpop.f32.mrb[0].mxu0
      %v795 = vadd.f32 %v742, %v794
      %v796 = vpop.f32.mrb[0].mxu0
      %v797 = vadd.f32 %v744, %v796
      %v798 = vpop.f32.mrb[0].mxu0
      %v799 = vadd.f32 %v746, %v798
      %v800 = vpop.f32.mrb[0].mxu0
      %v801 = vadd.f32 %v748, %v800
      %802 = vmatprep.mubr.bf16.mxu0 %v705
      %803 = vmatmul.mubr.bf16.gmra.mrb[0].mxu0 %v442
      %v804 = vpop.f32.mrb[0].mxu0
      %v805 = vadd.f32 %v752, %v804
      %v806 = vpop.f32.mrb[0].mxu0
      %v807 = vadd.f32 %v754, %v806
      %v808 = vpop.f32.mrb[0].mxu0
      %v809 = vadd.f32 %v756, %v808
      %v810 = vpop.f32.mrb[0].mxu0
      %v811 = vadd.f32 %v758, %v810
      %812 = vdwg.mxu0
      %v813 = vmax.f32 %v795, 0.0
      %v814 = vmax.f32 %v797, 0.0
      %v815 = vmax.f32 %v799, 0.0
      %v816 = vmax.f32 %v801, 0.0
      %v817 = vmax.f32 %v805, 0.0
      %v818 = vmax.f32 %v807, 0.0
      %v819 = vmax.f32 %v809, 0.0
      %v820 = vmax.f32 %v811, 0.0
      %v821 = vld [vmem:[%s3] sm:$0xff]
      %v822 = vld [vmem:[%s3 + $0x8] sm:$0xff]
      %v823 = vld [vmem:[%s3 + $0x10] sm:$0xff]
      %v824 = vld [vmem:[%s3 + $0x18] sm:$0xff]
      %v825 = vld [vmem:[%s3 + $0x20] sm:$0xff]
      %v826 = vld [vmem:[%s3 + $0x28] sm:$0xff]
      %v827 = vld [vmem:[%s3 + $0x30] sm:$0xff]
      %v828 = vld [vmem:[%s3 + $0x38] sm:$0xff]
      %v829 = vld [vmem:[%s3 + $0x40] sm:$0xff]
      %v830 = vld [vmem:[%s3 + $0x48] sm:$0xff]
      %v831 = vld [vmem:[%s3 + $0x50] sm:$0xff]
      %v832 = vld [vmem:[%s3 + $0x58] sm:$0xff]
      %v833 = vld [vmem:[%s3 + $0x60] sm:$0xff]
      %v834 = vld [vmem:[%s3 + $0x68] sm:$0xff]
      %v835 = vld [vmem:[%s3 + $0x70] sm:$0xff]
      %v836 = vld [vmem:[%s3 + $0x78] sm:$0xff]
      %v837 = vld [vmem:[%s3 + $0x80] sm:$0xff]
      %v838 = vld [vmem:[%s3 + $0x88] sm:$0xff]
      %v839 = vld [vmem:[%s3 + $0x90] sm:$0xff]
      %v840 = vld [vmem:[%s3 + $0x98] sm:$0xff]
      %v841 = vld [vmem:[%s3 + $0xa0] sm:$0xff]
      %v842 = vld [vmem:[%s3 + $0xa8] sm:$0xff]
      %v843 = vld [vmem:[%s3 + $0xb0] sm:$0xff]
      %v844 = vld [vmem:[%s3 + $0xb8] sm:$0xff]
      %v845 = vld [vmem:[%s3 + $0xc0] sm:$0xff]
      %v846 = vld [vmem:[%s3 + $0xc8] sm:$0xff]
      %v847 = vld [vmem:[%s3 + $0xd0] sm:$0xff]
      %v848 = vld [vmem:[%s3 + $0xd8] sm:$0xff]
      %v849 = vld [vmem:[%s3 + $0xe0] sm:$0xff]
      %v850 = vld [vmem:[%s3 + $0xe8] sm:$0xff]
      %v851 = vld [vmem:[%s3 + $0xf0] sm:$0xff]
      %v852 = vld [vmem:[%s3 + $0xf8] sm:$0xff]
      %853 = vmatprep.subr.mxu0 0.0
      %854 = vmatpush1.msra.mxu0 %v821
      %855 = vmatprep.subr.mxu0 0.0
      %856 = vmatpush1.msra.mxu0 %v822
      %857 = vmatprep.subr.mxu0 0.0
      %858 = vmatpush1.msra.mxu0 %v823
      %859 = vmatprep.subr.mxu0 0.0
      %860 = vmatpush1.msra.mxu0 %v824
      %861 = vmatprep.subr.mxu0 0.0
      %862 = vmatpush1.msra.mxu0 %v825
      %863 = vmatprep.subr.mxu0 0.0
      %864 = vmatpush1.msra.mxu0 %v826
      %865 = vmatprep.subr.mxu0 0.0
      %866 = vmatpush1.msra.mxu0 %v827
      %867 = vmatprep.subr.mxu0 0.0
      %868 = vmatpush1.msra.mxu0 %v828
      %869 = vmatprep.subr.mxu0 0.0
      %870 = vmatpush1.msra.mxu0 %v829
      %871 = vmatprep.subr.mxu0 0.0
      %872 = vmatpush1.msra.mxu0 %v830
      %873 = vmatprep.subr.mxu0 0.0
      %874 = vmatpush1.msra.mxu0 %v831
      %875 = vmatprep.subr.mxu0 0.0
      %876 = vmatpush1.msra.mxu0 %v832
      %877 = vmatprep.subr.mxu0 0.0
      %878 = vmatpush1.msra.mxu0 %v833
      %879 = vmatprep.subr.mxu0 0.0
      %880 = vmatpush1.msra.mxu0 %v834
      %881 = vmatprep.subr.mxu0 0.0
      %882 = vmatpush1.msra.mxu0 %v835
      %883 = vmatprep.subr.mxu0 0.0
      %884 = vmatpush1.msra.mxu0 %v836
      %885 = vmatprep.subr.mxu0 0.0
      %886 = vmatpush1.msra.mxu0 %v837
      %887 = vmatprep.subr.mxu0 0.0
      %888 = vmatpush1.msra.mxu0 %v838
      %889 = vmatprep.subr.mxu0 0.0
      %890 = vmatpush1.msra.mxu0 %v839
      %891 = vmatprep.subr.mxu0 0.0
      %892 = vmatpush1.msra.mxu0 %v840
      %893 = vmatprep.subr.mxu0 0.0
      %894 = vmatpush1.msra.mxu0 %v841
      %895 = vmatprep.subr.mxu0 0.0
      %896 = vmatpush1.msra.mxu0 %v842
      %897 = vmatprep.subr.mxu0 0.0
      %898 = vmatpush1.msra.mxu0 %v843
      %899 = vmatprep.subr.mxu0 0.0
      %900 = vmatpush1.msra.mxu0 %v844
      %901 = vmatprep.subr.mxu0 0.0
      %902 = vmatpush1.msra.mxu0 %v845
      %903 = vmatprep.subr.mxu0 0.0
      %904 = vmatpush1.msra.mxu0 %v846
      %905 = vmatprep.subr.mxu0 0.0
      %906 = vmatpush1.msra.mxu0 %v847
      %907 = vmatprep.subr.mxu0 0.0
      %908 = vmatpush1.msra.mxu0 %v848
      %909 = vmatprep.subr.mxu0 0.0
      %910 = vmatpush1.msra.mxu0 %v849
      %911 = vmatprep.subr.mxu0 0.0
      %912 = vmatpush1.msra.mxu0 %v850
      %913 = vmatprep.subr.mxu0 0.0
      %914 = vmatpush1.msra.mxu0 %v851
      %915 = vmatprep.subr.mxu0 0.0
      %916 = vmatpush1.msra.mxu0 %v852
      %917 = vmatprep.mubr.f32.mxu0 %v814
      %918 = vmatmul.mubr.f32.gmra.mrb[0].mxu0 %v813
      %v919 = vpop.f32.mrb[0].mxu0
      %v920 = vadd.f32 0.0, %v919
      %v921 = vpop.f32.mrb[0].mxu0
      %922 = vmatprep.mubr.f32.mxu0 %v816
      %923 = vmatmul.mubr.f32.gmra.mrb[0].mxu0 %v815
      %v924 = vpop.f32.mrb[0].mxu0
      %v925 = vadd.f32 0.0, %v924
      %v926 = vpop.f32.mrb[0].mxu0
      %927 = vmatprep.mubr.f32.mxu0 %v818
      %928 = vmatmul.mubr.f32.gmra.mrb[0].mxu0 %v817
      %v929 = vpop.f32.mrb[0].mxu0
      %v930 = vadd.f32 0.0, %v929
      %v931 = vpop.f32.mrb[0].mxu0
      %932 = vmatprep.mubr.f32.mxu0 %v820
      %933 = vmatmul.mubr.f32.gmra.mrb[0].mxu0 %v819
      %v934 = vpop.f32.mrb[0].mxu0
      %v935 = vadd.f32 0.0, %v934
      %v936 = vpop.f32.mrb[0].mxu0
      %937 = vdwg.mxu0
      %v938 = vld [vmem:[%s4] sm:$0xff]
      %v939 = vld [vmem:[%s4 + $0x8] sm:$0xff]
      %v940 = vld [vmem:[%s4 + $0x10] sm:$0xff]
      %v941 = vld [vmem:[%s4 + $0x18] sm:$0xff]
      %v942 = vld [vmem:[%s4 + $0x20] sm:$0xff]
      %v943 = vld [vmem:[%s4 + $0x28] sm:$0xff]
      %v944 = vld [vmem:[%s4 + $0x30] sm:$0xff]
      %v945 = vld [vmem:[%s4 + $0x38] sm:$0xff]
      %v946 = vld [vmem:[%s4 + $0x40] sm:$0xff]
      %v947 = vld [vmem:[%s4 + $0x48] sm:$0xff]
      %v948 = vld [vmem:[%s4 + $0x50] sm:$0xff]
      %v949 = vld [vmem:[%s4 + $0x58] sm:$0xff]
      %v950 = vld [vmem:[%s4 + $0x60] sm:$0xff]
      %v951 = vld [vmem:[%s4 + $0x68] sm:$0xff]
      %v952 = vld [vmem:[%s4 + $0x70] sm:$0xff]
      %v953 = vld [vmem:[%s4 + $0x78] sm:$0xff]
      %v954 = vld [vmem:[%s4 + $0x80] sm:$0xff]
      %v955 = vld [vmem:[%s4 + $0x88] sm:$0xff]
      %v956 = vld [vmem:[%s4 + $0x90] sm:$0xff]
      %v957 = vld [vmem:[%s4 + $0x98] sm:$0xff]
      %v958 = vld [vmem:[%s4 + $0xa0] sm:$0xff]
      %v959 = vld [vmem:[%s4 + $0xa8] sm:$0xff]
      %v960 = vld [vmem:[%s4 + $0xb0] sm:$0xff]
      %v961 = vld [vmem:[%s4 + $0xb8] sm:$0xff]
      %v962 = vld [vmem:[%s4 + $0xc0] sm:$0xff]
      %v963 = vld [vmem:[%s4 + $0xc8] sm:$0xff]
      %v964 = vld [vmem:[%s4 + $0xd0] sm:$0xff]
      %v965 = vld [vmem:[%s4 + $0xd8] sm:$0xff]
      %v966 = vld [vmem:[%s4 + $0xe0] sm:$0xff]
      %v967 = vld [vmem:[%s4 + $0xe8] sm:$0xff]
      %v968 = vld [vmem:[%s4 + $0xf0] sm:$0xff]
      %v969 = vld [vmem:[%s4 + $0xf8] sm:$0xff]
      %970 = vmatprep.subr.mxu0 0.0
      %971 = vmatpush1.msra.mxu0 %v938
      %972 = vmatprep.subr.mxu0 0.0
      %973 = vmatpush1.msra.mxu0 %v939
      %974 = vmatprep.subr.mxu0 0.0
      %975 = vmatpush1.msra.mxu0 %v940
      %976 = vmatprep.subr.mxu0 0.0
      %977 = vmatpush1.msra.mxu0 %v941
      %978 = vmatprep.subr.mxu0 0.0
      %979 = vmatpush1.msra.mxu0 %v942
      %980 = vmatprep.subr.mxu0 0.0
      %981 = vmatpush1.msra.mxu0 %v943
      %982 = vmatprep.subr.mxu0 0.0
      %983 = vmatpush1.msra.mxu0 %v944
      %984 = vmatprep.subr.mxu0 0.0
      %985 = vmatpush1.msra.mxu0 %v945
      %986 = vmatprep.subr.mxu0 0.0
      %987 = vmatpush1.msra.mxu0 %v946
      %988 = vmatprep.subr.mxu0 0.0
      %989 = vmatpush1.msra.mxu0 %v947
      %990 = vmatprep.subr.mxu0 0.0
      %991 = vmatpush1.msra.mxu0 %v948
      %992 = vmatprep.subr.mxu0 0.0
      %993 = vmatpush1.msra.mxu0 %v949
      %994 = vmatprep.subr.mxu0 0.0
      %995 = vmatpush1.msra.mxu0 %v950
      %996 = vmatprep.subr.mxu0 0.0
      %997 = vmatpush1.msra.mxu0 %v951
      %998 = vmatprep.subr.mxu0 0.0
      %999 = vmatpush1.msra.mxu0 %v952
      %1000 = vmatprep.subr.mxu0 0.0
      %1001 = vmatpush1.msra.mxu0 %v953
      %1002 = vmatprep.subr.mxu0 0.0
      %1003 = vmatpush1.msra.mxu0 %v954
      %1004 = vmatprep.subr.mxu0 0.0
      %1005 = vmatpush1.msra.mxu0 %v955
      %1006 = vmatprep.subr.mxu0 0.0
      %1007 = vmatpush1.msra.mxu0 %v956
      %1008 = vmatprep.subr.mxu0 0.0
      %1009 = vmatpush1.msra.mxu0 %v957
      %1010 = vmatprep.subr.mxu0 0.0
      %1011 = vmatpush1.msra.mxu0 %v958
      %1012 = vmatprep.subr.mxu0 0.0
      %1013 = vmatpush1.msra.mxu0 %v959
      %1014 = vmatprep.subr.mxu0 0.0
      %1015 = vmatpush1.msra.mxu0 %v960
      %1016 = vmatprep.subr.mxu0 0.0
      %1017 = vmatpush1.msra.mxu0 %v961
      %1018 = vmatprep.subr.mxu0 0.0
      %1019 = vmatpush1.msra.mxu0 %v962
      %1020 = vmatprep.subr.mxu0 0.0
      %1021 = vmatpush1.msra.mxu0 %v963
      %1022 = vmatprep.subr.mxu0 0.0
      %1023 = vmatpush1.msra.mxu0 %v964
      %1024 = vmatprep.subr.mxu0 0.0
      %1025 = vmatpush1.msra.mxu0 %v965
      %1026 = vmatprep.subr.mxu0 0.0
      %1027 = vmatpush1.msra.mxu0 %v966
      %1028 = vmatprep.subr.mxu0 0.0
      %1029 = vmatpush1.msra.mxu0 %v967
      %1030 = vmatprep.subr.mxu0 0.0
      %1031 = vmatpush1.msra.mxu0 %v968
      %1032 = vmatprep.subr.mxu0 0.0
      %1033 = vmatpush1.msra.mxu0 %v969
      %1034 = vmatprep.mubr.f32.mxu0 %v814
      %1035 = vmatmul.mubr.f32.gmra.mrb[0].mxu0 %v813
      %v1036 = vpop.f32.mrb[0].mxu0
      %v1037 = vadd.f32 0.0, %v1036
      %v1038 = vpop.f32.mrb[0].mxu0
      %1039 = vmatprep.mubr.f32.mxu0 %v816
      %1040 = vmatmul.mubr.f32.gmra.mrb[0].mxu0 %v815
      %v1041 = vpop.f32.mrb[0].mxu0
      %v1042 = vadd.f32 0.0, %v1041
      %v1043 = vpop.f32.mrb[0].mxu0
      %1044 = vmatprep.mubr.f32.mxu0 %v818
      %1045 = vmatmul.mubr.f32.gmra.mrb[0].mxu0 %v817
      %v1046 = vpop.f32.mrb[0].mxu0
      %v1047 = vadd.f32 0.0, %v1046
      %v1048 = vpop.f32.mrb[0].mxu0
      %1049 = vmatprep.mubr.f32.mxu0 %v820
      %1050 = vmatmul.mubr.f32.gmra.mrb[0].mxu0 %v819
      %v1051 = vpop.f32.mrb[0].mxu0
      %v1052 = vadd.f32 0.0, %v1051
      %v1053 = vpop.f32.mrb[0].mxu0
      %1054 = vdwg.mxu0
      %v1055 = vld [vmem:[%s5] sm:$0xff]
      %v1056 = vld [vmem:[%s5 + $0x8] sm:$0xff]
      %v1057 = vld [vmem:[%s5 + $0x10] sm:$0xff]
      %v1058 = vld [vmem:[%s5 + $0x18] sm:$0xff]
      %v1059 = vld [vmem:[%s5 + $0x20] sm:$0xff]
      %v1060 = vld [vmem:[%s5 + $0x28] sm:$0xff]
      %v1061 = vld [vmem:[%s5 + $0x30] sm:$0xff]
      %v1062 = vld [vmem:[%s5 + $0x38] sm:$0xff]
      %v1063 = vld [vmem:[%s5 + $0x40] sm:$0xff]
      %v1064 = vld [vmem:[%s5 + $0x48] sm:$0xff]
      %v1065 = vld [vmem:[%s5 + $0x50] sm:$0xff]
      %v1066 = vld [vmem:[%s5 + $0x58] sm:$0xff]
      %v1067 = vld [vmem:[%s5 + $0x60] sm:$0xff]
      %v1068 = vld [vmem:[%s5 + $0x68] sm:$0xff]
      %v1069 = vld [vmem:[%s5 + $0x70] sm:$0xff]
      %v1070 = vld [vmem:[%s5 + $0x78] sm:$0xff]
      %v1071 = vld [vmem:[%s5 + $0x80] sm:$0xff]
      %v1072 = vld [vmem:[%s5 + $0x88] sm:$0xff]
      %v1073 = vld [vmem:[%s5 + $0x90] sm:$0xff]
      %v1074 = vld [vmem:[%s5 + $0x98] sm:$0xff]
      %v1075 = vld [vmem:[%s5 + $0xa0] sm:$0xff]
      %v1076 = vld [vmem:[%s5 + $0xa8] sm:$0xff]
      %v1077 = vld [vmem:[%s5 + $0xb0] sm:$0xff]
      %v1078 = vld [vmem:[%s5 + $0xb8] sm:$0xff]
      %v1079 = vld [vmem:[%s5 + $0xc0] sm:$0xff]
      %v1080 = vld [vmem:[%s5 + $0xc8] sm:$0xff]
      %v1081 = vld [vmem:[%s5 + $0xd0] sm:$0xff]
      %v1082 = vld [vmem:[%s5 + $0xd8] sm:$0xff]
      %v1083 = vld [vmem:[%s5 + $0xe0] sm:$0xff]
      %v1084 = vld [vmem:[%s5 + $0xe8] sm:$0xff]
      %v1085 = vld [vmem:[%s5 + $0xf0] sm:$0xff]
      %v1086 = vld [vmem:[%s5 + $0xf8] sm:$0xff]
      %1087 = vmatprep.subr.mxu0 0.0
      %1088 = vmatpush1.msra.mxu0 %v1055
      %1089 = vmatprep.subr.mxu0 0.0
      %1090 = vmatpush1.msra.mxu0 %v1056
      %1091 = vmatprep.subr.mxu0 0.0
      %1092 = vmatpush1.msra.mxu0 %v1057
      %1093 = vmatprep.subr.mxu0 0.0
      %1094 = vmatpush1.msra.mxu0 %v1058
      %1095 = vmatprep.subr.mxu0 0.0
      %1096 = vmatpush1.msra.mxu0 %v1059
      %1097 = vmatprep.subr.mxu0 0.0
      %1098 = vmatpush1.msra.mxu0 %v1060
      %1099 = vmatprep.subr.mxu0 0.0
      %1100 = vmatpush1.msra.mxu0 %v1061
      %1101 = vmatprep.subr.mxu0 0.0
      %1102 = vmatpush1.msra.mxu0 %v1062
      %1103 = vmatprep.subr.mxu0 0.0
      %1104 = vmatpush1.msra.mxu0 %v1063
      %1105 = vmatprep.subr.mxu0 0.0
      %1106 = vmatpush1.msra.mxu0 %v1064
      %1107 = vmatprep.subr.mxu0 0.0
      %1108 = vmatpush1.msra.mxu0 %v1065
      %1109 = vmatprep.subr.mxu0 0.0
      %1110 = vmatpush1.msra.mxu0 %v1066
      %1111 = vmatprep.subr.mxu0 0.0
      %1112 = vmatpush1.msra.mxu0 %v1067
      %1113 = vmatprep.subr.mxu0 0.0
      %1114 = vmatpush1.msra.mxu0 %v1068
      %1115 = vmatprep.subr.mxu0 0.0
      %1116 = vmatpush1.msra.mxu0 %v1069
      %1117 = vmatprep.subr.mxu0 0.0
      %1118 = vmatpush1.msra.mxu0 %v1070
      %1119 = vmatprep.subr.mxu0 0.0
      %1120 = vmatpush1.msra.mxu0 %v1071
      %1121 = vmatprep.subr.mxu0 0.0
      %1122 = vmatpush1.msra.mxu0 %v1072
      %1123 = vmatprep.subr.mxu0 0.0
      %1124 = vmatpush1.msra.mxu0 %v1073
      %1125 = vmatprep.subr.mxu0 0.0
      %1126 = vmatpush1.msra.mxu0 %v1074
      %1127 = vmatprep.subr.mxu0 0.0
      %1128 = vmatpush1.msra.mxu0 %v1075
      %1129 = vmatprep.subr.mxu0 0.0
      %1130 = vmatpush1.msra.mxu0 %v1076
      %1131 = vmatprep.subr.mxu0 0.0
      %1132 = vmatpush1.msra.mxu0 %v1077
      %1133 = vmatprep.subr.mxu0 0.0
      %1134 = vmatpush1.msra.mxu0 %v1078
      %1135 = vmatprep.subr.mxu0 0.0
      %1136 = vmatpush1.msra.mxu0 %v1079
      %1137 = vmatprep.subr.mxu0 0.0
      %1138 = vmatpush1.msra.mxu0 %v1080
      %1139 = vmatprep.subr.mxu0 0.0
      %1140 = vmatpush1.msra.mxu0 %v1081
      %1141 = vmatprep.subr.mxu0 0.0
      %1142 = vmatpush1.msra.mxu0 %v1082
      %1143 = vmatprep.subr.mxu0 0.0
      %1144 = vmatpush1.msra.mxu0 %v1083
      %1145 = vmatprep.subr.mxu0 0.0
      %1146 = vmatpush1.msra.mxu0 %v1084
      %1147 = vmatprep.subr.mxu0 0.0
      %1148 = vmatpush1.msra.mxu0 %v1085
      %1149 = vmatprep.subr.mxu0 0.0
      %1150 = vmatpush1.msra.mxu0 %v1086
      %1151 = vmatprep.mubr.f32.mxu0 %v814
      %1152 = vmatmul.mubr.f32.gmra.mrb[0].mxu0 %v813
      %v1153 = vpop.f32.mrb[0].mxu0
      %v1154 = vadd.f32 0.0, %v1153
      %v1155 = vpop.f32.mrb[0].mxu0
      %1156 = vmatprep.mubr.f32.mxu0 %v816
      %1157 = vmatmul.mubr.f32.gmra.mrb[0].mxu0 %v815
      %v1158 = vpop.f32.mrb[0].mxu0
      %v1159 = vadd.f32 0.0, %v1158
      %v1160 = vpop.f32.mrb[0].mxu0
      %1161 = vmatprep.mubr.f32.mxu0 %v818
      %1162 = vmatmul.mubr.f32.gmra.mrb[0].mxu0 %v817
      %v1163 = vpop.f32.mrb[0].mxu0
      %v1164 = vadd.f32 0.0, %v1163
      %v1165 = vpop.f32.mrb[0].mxu0
      %1166 = vmatprep.mubr.f32.mxu0 %v820
      %1167 = vmatmul.mubr.f32.gmra.mrb[0].mxu0 %v819
      %v1168 = vpop.f32.mrb[0].mxu0
      %v1169 = vadd.f32 0.0, %v1168
      %v1170 = vpop.f32.mrb[0].mxu0
      %1171 = vdwg.mxu0
      %v1172 = vld [vmem:[%s6] sm:$0xff]
      %v1173 = vld [vmem:[%s6 + $0x8] sm:$0xff]
      %v1174 = vld [vmem:[%s6 + $0x10] sm:$0xff]
      %v1175 = vld [vmem:[%s6 + $0x18] sm:$0xff]
      %v1176 = vld [vmem:[%s6 + $0x20] sm:$0xff]
      %v1177 = vld [vmem:[%s6 + $0x28] sm:$0xff]
      %v1178 = vld [vmem:[%s6 + $0x30] sm:$0xff]
      %v1179 = vld [vmem:[%s6 + $0x38] sm:$0xff]
      %v1180 = vld [vmem:[%s6 + $0x40] sm:$0xff]
      %v1181 = vld [vmem:[%s6 + $0x48] sm:$0xff]
      %v1182 = vld [vmem:[%s6 + $0x50] sm:$0xff]
      %v1183 = vld [vmem:[%s6 + $0x58] sm:$0xff]
      %v1184 = vld [vmem:[%s6 + $0x60] sm:$0xff]
      %v1185 = vld [vmem:[%s6 + $0x68] sm:$0xff]
      %v1186 = vld [vmem:[%s6 + $0x70] sm:$0xff]
      %v1187 = vld [vmem:[%s6 + $0x78] sm:$0xff]
      %v1188 = vld [vmem:[%s6 + $0x80] sm:$0xff]
      %v1189 = vld [vmem:[%s6 + $0x88] sm:$0xff]
      %v1190 = vld [vmem:[%s6 + $0x90] sm:$0xff]
      %v1191 = vld [vmem:[%s6 + $0x98] sm:$0xff]
      %v1192 = vld [vmem:[%s6 + $0xa0] sm:$0xff]
      %v1193 = vld [vmem:[%s6 + $0xa8] sm:$0xff]
      %v1194 = vld [vmem:[%s6 + $0xb0] sm:$0xff]
      %v1195 = vld [vmem:[%s6 + $0xb8] sm:$0xff]
      %v1196 = vld [vmem:[%s6 + $0xc0] sm:$0xff]
      %v1197 = vld [vmem:[%s6 + $0xc8] sm:$0xff]
      %v1198 = vld [vmem:[%s6 + $0xd0] sm:$0xff]
      %v1199 = vld [vmem:[%s6 + $0xd8] sm:$0xff]
      %v1200 = vld [vmem:[%s6 + $0xe0] sm:$0xff]
      %v1201 = vld [vmem:[%s6 + $0xe8] sm:$0xff]
      %v1202 = vld [vmem:[%s6 + $0xf0] sm:$0xff]
      %v1203 = vld [vmem:[%s6 + $0xf8] sm:$0xff]
      %1204 = vmatprep.subr.mxu0 0.0
      %1205 = vmatpush1.msra.mxu0 %v1172
      %1206 = vmatprep.subr.mxu0 0.0
      %1207 = vmatpush1.msra.mxu0 %v1173
      %1208 = vmatprep.subr.mxu0 0.0
      %1209 = vmatpush1.msra.mxu0 %v1174
      %1210 = vmatprep.subr.mxu0 0.0
      %1211 = vmatpush1.msra.mxu0 %v1175
      %1212 = vmatprep.subr.mxu0 0.0
      %1213 = vmatpush1.msra.mxu0 %v1176
      %1214 = vmatprep.subr.mxu0 0.0
      %1215 = vmatpush1.msra.mxu0 %v1177
      %1216 = vmatprep.subr.mxu0 0.0
      %1217 = vmatpush1.msra.mxu0 %v1178
      %1218 = vmatprep.subr.mxu0 0.0
      %1219 = vmatpush1.msra.mxu0 %v1179
      %1220 = vmatprep.subr.mxu0 0.0
      %1221 = vmatpush1.msra.mxu0 %v1180
      %1222 = vmatprep.subr.mxu0 0.0
      %1223 = vmatpush1.msra.mxu0 %v1181
      %1224 = vmatprep.subr.mxu0 0.0
      %1225 = vmatpush1.msra.mxu0 %v1182
      %1226 = vmatprep.subr.mxu0 0.0
      %1227 = vmatpush1.msra.mxu0 %v1183
      %1228 = vmatprep.subr.mxu0 0.0
      %1229 = vmatpush1.msra.mxu0 %v1184
      %1230 = vmatprep.subr.mxu0 0.0
      %1231 = vmatpush1.msra.mxu0 %v1185
      %1232 = vmatprep.subr.mxu0 0.0
      %1233 = vmatpush1.msra.mxu0 %v1186
      %1234 = vmatprep.subr.mxu0 0.0
      %1235 = vmatpush1.msra.mxu0 %v1187
      %1236 = vmatprep.subr.mxu0 0.0
      %1237 = vmatpush1.msra.mxu0 %v1188
      %1238 = vmatprep.subr.mxu0 0.0
      %1239 = vmatpush1.msra.mxu0 %v1189
      %1240 = vmatprep.subr.mxu0 0.0
      %1241 = vmatpush1.msra.mxu0 %v1190
      %1242 = vmatprep.subr.mxu0 0.0
      %1243 = vmatpush1.msra.mxu0 %v1191
      %1244 = vmatprep.subr.mxu0 0.0
      %1245 = vmatpush1.msra.mxu0 %v1192
      %1246 = vmatprep.subr.mxu0 0.0
      %1247 = vmatpush1.msra.mxu0 %v1193
      %1248 = vmatprep.subr.mxu0 0.0
      %1249 = vmatpush1.msra.mxu0 %v1194
      %1250 = vmatprep.subr.mxu0 0.0
      %1251 = vmatpush1.msra.mxu0 %v1195
      %1252 = vmatprep.subr.mxu0 0.0
      %1253 = vmatpush1.msra.mxu0 %v1196
      %1254 = vmatprep.subr.mxu0 0.0
      %1255 = vmatpush1.msra.mxu0 %v1197
      %1256 = vmatprep.subr.mxu0 0.0
      %1257 = vmatpush1.msra.mxu0 %v1198
      %1258 = vmatprep.subr.mxu0 0.0
      %1259 = vmatpush1.msra.mxu0 %v1199
      %1260 = vmatprep.subr.mxu0 0.0
      %1261 = vmatpush1.msra.mxu0 %v1200
      %1262 = vmatprep.subr.mxu0 0.0
      %1263 = vmatpush1.msra.mxu0 %v1201
      %1264 = vmatprep.subr.mxu0 0.0
      %1265 = vmatpush1.msra.mxu0 %v1202
      %1266 = vmatprep.subr.mxu0 0.0
      %1267 = vmatpush1.msra.mxu0 %v1203
      %1268 = vmatprep.mubr.f32.mxu0 %v814
      %1269 = vmatmul.mubr.f32.gmra.mrb[0].mxu0 %v813
      %v1270 = vpop.f32.mrb[0].mxu0
      %v1271 = vadd.f32 0.0, %v1270
      %v1272 = vpop.f32.mrb[0].mxu0
      %1273 = vmatprep.mubr.f32.mxu0 %v816
      %1274 = vmatmul.mubr.f32.gmra.mrb[0].mxu0 %v815
      %v1275 = vpop.f32.mrb[0].mxu0
      %v1276 = vadd.f32 0.0, %v1275
      %v1277 = vpop.f32.mrb[0].mxu0
      %1278 = vmatprep.mubr.f32.mxu0 %v818
      %1279 = vmatmul.mubr.f32.gmra.mrb[0].mxu0 %v817
      %v1280 = vpop.f32.mrb[0].mxu0
      %v1281 = vadd.f32 0.0, %v1280
      %v1282 = vpop.f32.mrb[0].mxu0
      %1283 = vmatprep.mubr.f32.mxu0 %v820
      %1284 = vmatmul.mubr.f32.gmra.mrb[0].mxu0 %v819
      %v1285 = vpop.f32.mrb[0].mxu0
      %v1286 = vadd.f32 0.0, %v1285
      %v1287 = vpop.f32.mrb[0].mxu0
      %1288 = vdwg.mxu0
      %v1289 = vmax.f32 %v920, %v1037
      %v1290 = vmax.f32 %v925, %v1042
      %v1291 = vmax.f32 %v930, %v1047
      %v1292 = vmax.f32 %v935, %v1052
      %v1293 = vmax.f32 %v1154, %v1271
      %v1294 = vmax.f32 %v1159, %v1276
      %v1295 = vmax.f32 %v1164, %v1281
      %v1296 = vmax.f32 %v1169, %v1286
      %v1297 = vmax.f32 %v1289, %v1293
      %v1298 = vmax.f32 %v1290, %v1294
      %v1299 = vmax.f32 %v1291, %v1295
      %v1300 = vmax.f32 %v1292, %v1296
      %vm1301 = vcmask 523264
      %1302 = vst.msk [vmem:[%s278] sm:$0xff] %vm1301, %v1297
      %1303 = vst.msk [vmem:[%s278 + $0x8] sm:$0xff] %vm1301, %v1298
      %1304 = vst.msk [vmem:[%s278 + $0x10] sm:$0xff] %vm1301, %v1299
      %1305 = vst.msk [vmem:[%s278 + $0x18] sm:$0xff] %vm1301, %v1300
      %p1306 = scmp.lt.s32.totalorder %s18, 1
      %s1307 = scalar_select %p1306, %s18, 1
      %s1308 = smul.addr %s1307, 4
      %s1309 = smul.addr %s1308, 8
      %s1310 = scalar_lea.vmem %s7, %s1309
      // Predicated region
      $region49: #{residual_cnn_forward.5} parent=47 // pred_check
        %p1311 = pneg %p188
      $region50: #{residual_cnn_forward.5} parent=47 // pred_check_branch
        %1313 = sbr.rel (%p1311) target = $region52
      $region51: #{residual_cnn_forward.5} parent=47 // pred_region
        _
      $region52: #{residual_cnn_forward.5} parent=47 // pred_fallthru
        _
    $region48: #{residual_cnn_forward.5} parent=5 // pred_fallthru
      _
    %p1314 = scmp.le.s32.totalorder 2, %s13
    // Predicated region
    $region53: #{residual_cnn_forward.5} parent=5 // pred_check
      %p1315 = pneg %p1314
    $region54: #{residual_cnn_forward.5} parent=5 // pred_check_branch
      %1317 = sbr.rel (%p1315) target = $region56
    $region55: #{residual_cnn_forward.5} parent=5 // pred_region
      %s1318 = ssub.s32 %s13, 2
      // Predicated region
      $region57: #{residual_cnn_forward.5} parent=55 // pred_check
        %p1319 = pneg %p194
      $region58: #{residual_cnn_forward.5} parent=55 // pred_check_branch
        %1321 = sbr.rel (%p1319) target = $region60
      $region59: #{residual_cnn_forward.5} parent=55 // pred_region
        %p1322 = scmp.lt.s32.totalorder %s19, 1
        %s1323 = scalar_select %p1322, %s19, 1
        %s1324 = smul.addr %s1323, 4
        %s1325 = smul.addr %s1324, 8
        %s1326 = scalar_lea.vmem %s7, %s1325
      $region60: #{residual_cnn_forward.5} parent=55 // pred_fallthru
        _
    $region56: #{residual_cnn_forward.5} parent=5 // pred_fallthru
      _
  $region6: #{residual_cnn_forward.5} parent=0 // loop_footer
    %s17 = sadd.s32 1, %s13
  $region7: #{residual_cnn_forward.5} parent=0 // loop_footer_branch
    %12 = sbr.rel target = $region3
  $region8: #{residual_cnn_forward.5} parent=0 // loop_exit
    _

// kernel: residual_cnn_forward.6
$region0: #{residual_cnn_forward.6}
  #allocation0 [shape = 'u32[]', space=smem, size = 0x4, offset = 0x4, fixed_abs, tag = 'smem constant byte address 0x4 - core index']
  #allocation1 [shape = 'u32[144,128]{1,0:T(1,128)}', space=vmem, size = 0x12000, scoped, tag = 'internal scratch']
  %s0 = inlined_call_operand.vmem [shape: bf16[16,800], index: 0, kind: input, shape index: {}]
  %s1 = inlined_call_operand.vmem [shape: bf16[2,800,64], index: 1, kind: input, shape index: {}]
  %s2 = inlined_call_operand.vmem [shape: f32[16,1], index: 2, kind: input, shape index: {}]
  %s3 = inlined_call_operand.vmem [shape: f32[2,16,256], index: 3, kind: input, shape index: {}]
  %s4 = inlined_call_operand.vmem [shape: f32[256,64], index: 4, kind: input, shape index: {}]
  %s5 = inlined_call_operand.vmem [shape: f32[256,64], index: 5, kind: input, shape index: {}]
  %s6 = inlined_call_operand.vmem [shape: f32[256,64], index: 6, kind: input, shape index: {}]
  %s7 = inlined_call_operand.vmem [shape: f32[256,64], index: 7, kind: input, shape index: {}]
  %s8 = inlined_call_operand.vmem [shape: f32[2,16,64], index: 8, kind: output, shape index: {}]
  %s9 = sld [smem:[#allocation0]]
  $region65: #{residual_cnn_forward.6} parent=0
    _
  %s11 = ssub.s32 1, %s9
  %s12 = scalar_select 0, %s11, %s9
  loop: start=0, step=1, limit=4
  $region2: #{residual_cnn_forward.6} parent=0 // loop_pre_header
    _
  $region3: #{residual_cnn_forward.6} parent=0 // loop_header
    %s14 = sphi 0, %s18
    %p15 = scmp.ge.s32.totalorder %s14, 4
    %s22 = sphi 0, %s22
    %s24 = sphi 0, %s22
    %s25 = sphi 0, %s24
    %s39 = sphi 0, %s25
    %s45 = sphi 0, %s47
    %s48 = sphi 0, %s45
    %s49 = sphi 0, %s48
    %s65 = sphi 0, %s49
    %s69 = sphi 0, %s69
    %s71 = sphi 0, %s69
    %s72 = sphi 0, %s71
    %s86 = sphi 0, %s72
    %s92 = sphi 0, %s94
    %s95 = sphi 0, %s92
    %s96 = sphi 0, %s95
    %s112 = sphi 0, %s96
    %s116 = sphi 0, %s116
    %s118 = sphi 0, %s116
    %s119 = sphi 0, %s118
    %s133 = sphi 0, %s119
    %s137 = sphi 0, %s137
    %s139 = sphi 0, %s137
    %s140 = sphi 0, %s139
    %s154 = sphi 0, %s140
    %s158 = sphi 0, %s158
    %s160 = sphi 0, %s158
    %s161 = sphi 0, %s160
    %s175 = sphi 0, %s161
    %s179 = sphi 0, %s179
    %s181 = sphi 0, %s179
    %s182 = sphi 0, %s181
    %s196 = sphi 0, %s182
    %s202 = sphi 0, %s204
    %s205 = sphi 0, %s202
    %s206 = sphi 0, %s205
    %s222 = sphi 0, %s206
  $region4: #{residual_cnn_forward.6} parent=0 // loop_header_branch
    %17 = sbr.rel (%p15) target = $region8
  $region5: #{residual_cnn_forward.6} parent=0 // loop_body
    %s19 = ssub.s32 %s14, 1
    %s20 = ssub.s32 %s14, 2
    %s21 = sadd.s32 %s14, 1
    %s23 = sadd.s32 %s22, 1
    %p26 = scmp.eq.s32.totalorder %s14, 1
    %p27 = scmp.ne.s32.totalorder %s22, %s24
    %p28 = scmp.eq.s32.totalorder %s14, 0
    %p29 = por %p27, %p28
    %p30 = scmp.ne.s32.totalorder %s22, %s24
    %p31 = scmp.eq.s32.totalorder %s19, 1
    %p32 = por %p30, %p31
    %p33 = scmp.ne.s32.totalorder %s24, %s25
    %p34 = scmp.eq.s32.totalorder %s19, 0
    %p35 = por %p33, %p34
    %p36 = scmp.ne.s32.totalorder %s24, %s25
    %p37 = scmp.eq.s32.totalorder %s20, 1
    %p38 = por %p36, %p37
    %p40 = scmp.ne.s32.totalorder %s25, %s39
    %p41 = scmp.eq.s32.totalorder %s20, 0
    %p42 = por %p40, %p41
    %s43 = ssub.s32 %s14, %s21
    %p44 = scmp.eq.s32.totalorder %s43, 0
    %s46 = sadd.s32 %s45, 1
    %s47 = scalar_select %p44, %s45, %s46
    %p50 = pneg %p44
    %p51 = scmp.eq.s32.totalorder %s14, 1
    %p52 = por %p50, %p51
    %p53 = scmp.ne.s32.totalorder %s45, %s48
    %p54 = scmp.eq.s32.totalorder %s14, 0
    %p55 = por %p53, %p54
    %p56 = scmp.ne.s32.totalorder %s45, %s48
    %p57 = scmp.eq.s32.totalorder %s19, 1
    %p58 = por %p56, %p57
    %p59 = scmp.ne.s32.totalorder %s48, %s49
    %p60 = scmp.eq.s32.totalorder %s19, 0
    %p61 = por %p59, %p60
    %p62 = scmp.ne.s32.totalorder %s48, %s49
    %p63 = scmp.eq.s32.totalorder %s20, 1
    %p64 = por %p62, %p63
    %p66 = scmp.ne.s32.totalorder %s49, %s65
    %p67 = scmp.eq.s32.totalorder %s20, 0
    %p68 = por %p66, %p67
    %s70 = sadd.s32 %s69, 1
    %p73 = scmp.eq.s32.totalorder %s14, 1
    %p74 = scmp.ne.s32.totalorder %s69, %s71
    %p75 = scmp.eq.s32.totalorder %s14, 0
    %p76 = por %p74, %p75
    %p77 = scmp.ne.s32.totalorder %s69, %s71
    %p78 = scmp.eq.s32.totalorder %s19, 1
    %p79 = por %p77, %p78
    %p80 = scmp.ne.s32.totalorder %s71, %s72
    %p81 = scmp.eq.s32.totalorder %s19, 0
    %p82 = por %p80, %p81
    %p83 = scmp.ne.s32.totalorder %s71, %s72
    %p84 = scmp.eq.s32.totalorder %s20, 1
    %p85 = por %p83, %p84
    %p87 = scmp.ne.s32.totalorder %s72, %s86
    %p88 = scmp.eq.s32.totalorder %s20, 0
    %p89 = por %p87, %p88
    %s90 = ssub.s32 %s14, %s21
    %p91 = scmp.eq.s32.totalorder %s90, 0
    %s93 = sadd.s32 %s92, 1
    %s94 = scalar_select %p91, %s92, %s93
    %p97 = pneg %p91
    %p98 = scmp.eq.s32.totalorder %s14, 1
    %p99 = por %p97, %p98
    %p100 = scmp.ne.s32.totalorder %s92, %s95
    %p101 = scmp.eq.s32.totalorder %s14, 0
    %p102 = por %p100, %p101
    %p103 = scmp.ne.s32.totalorder %s92, %s95
    %p104 = scmp.eq.s32.totalorder %s19, 1
    %p105 = por %p103, %p104
    %p106 = scmp.ne.s32.totalorder %s95, %s96
    %p107 = scmp.eq.s32.totalorder %s19, 0
    %p108 = por %p106, %p107
    %p109 = scmp.ne.s32.totalorder %s95, %s96
    %p110 = scmp.eq.s32.totalorder %s20, 1
    %p111 = por %p109, %p110
    %p113 = scmp.ne.s32.totalorder %s96, %s112
    %p114 = scmp.eq.s32.totalorder %s20, 0
    %p115 = por %p113, %p114
    %s117 = sadd.s32 %s116, 1
    %p120 = scmp.eq.s32.totalorder %s14, 1
    %p121 = scmp.ne.s32.totalorder %s116, %s118
    %p122 = scmp.eq.s32.totalorder %s14, 0
    %p123 = por %p121, %p122
    %p124 = scmp.ne.s32.totalorder %s116, %s118
    %p125 = scmp.eq.s32.totalorder %s19, 1
    %p126 = por %p124, %p125
    %p127 = scmp.ne.s32.totalorder %s118, %s119
    %p128 = scmp.eq.s32.totalorder %s19, 0
    %p129 = por %p127, %p128
    %p130 = scmp.ne.s32.totalorder %s118, %s119
    %p131 = scmp.eq.s32.totalorder %s20, 1
    %p132 = por %p130, %p131
    %p134 = scmp.ne.s32.totalorder %s119, %s133
    %p135 = scmp.eq.s32.totalorder %s20, 0
    %p136 = por %p134, %p135
    %s138 = sadd.s32 %s137, 1
    %p141 = scmp.eq.s32.totalorder %s14, 1
    %p142 = scmp.ne.s32.totalorder %s137, %s139
    %p143 = scmp.eq.s32.totalorder %s14, 0
    %p144 = por %p142, %p143
    %p145 = scmp.ne.s32.totalorder %s137, %s139
    %p146 = scmp.eq.s32.totalorder %s19, 1
    %p147 = por %p145, %p146
    %p148 = scmp.ne.s32.totalorder %s139, %s140
    %p149 = scmp.eq.s32.totalorder %s19, 0
    %p150 = por %p148, %p149
    %p151 = scmp.ne.s32.totalorder %s139, %s140
    %p152 = scmp.eq.s32.totalorder %s20, 1
    %p153 = por %p151, %p152
    %p155 = scmp.ne.s32.totalorder %s140, %s154
    %p156 = scmp.eq.s32.totalorder %s20, 0
    %p157 = por %p155, %p156
    %s159 = sadd.s32 %s158, 1
    %p162 = scmp.eq.s32.totalorder %s14, 1
    %p163 = scmp.ne.s32.totalorder %s158, %s160
    %p164 = scmp.eq.s32.totalorder %s14, 0
    %p165 = por %p163, %p164
    %p166 = scmp.ne.s32.totalorder %s158, %s160
    %p167 = scmp.eq.s32.totalorder %s19, 1
    %p168 = por %p166, %p167
    %p169 = scmp.ne.s32.totalorder %s160, %s161
    %p170 = scmp.eq.s32.totalorder %s19, 0
    %p171 = por %p169, %p170
    %p172 = scmp.ne.s32.totalorder %s160, %s161
    %p173 = scmp.eq.s32.totalorder %s20, 1
    %p174 = por %p172, %p173
    %p176 = scmp.ne.s32.totalorder %s161, %s175
    %p177 = scmp.eq.s32.totalorder %s20, 0
    %p178 = por %p176, %p177
    %s180 = sadd.s32 %s179, 1
    %p183 = scmp.eq.s32.totalorder %s14, 1
    %p184 = scmp.ne.s32.totalorder %s179, %s181
    %p185 = scmp.eq.s32.totalorder %s14, 0
    %p186 = por %p184, %p185
    %p187 = scmp.ne.s32.totalorder %s179, %s181
    %p188 = scmp.eq.s32.totalorder %s19, 1
    %p189 = por %p187, %p188
    %p190 = scmp.ne.s32.totalorder %s181, %s182
    %p191 = scmp.eq.s32.totalorder %s19, 0
    %p192 = por %p190, %p191
    %p193 = scmp.ne.s32.totalorder %s181, %s182
    %p194 = scmp.eq.s32.totalorder %s20, 1
    %p195 = por %p193, %p194
    %p197 = scmp.ne.s32.totalorder %s182, %s196
    %p198 = scmp.eq.s32.totalorder %s20, 0
    %p199 = por %p197, %p198
    %s200 = ssub.s32 %s14, %s21
    %p201 = scmp.eq.s32.totalorder %s200, 0
    %s203 = sadd.s32 %s202, 1
    %s204 = scalar_select %p201, %s202, %s203
    %p207 = pneg %p201
    %p208 = scmp.eq.s32.totalorder %s14, 1
    %p209 = por %p207, %p208
    %p210 = scmp.ne.s32.totalorder %s202, %s205
    %p211 = scmp.eq.s32.totalorder %s14, 0
    %p212 = por %p210, %p211
    %p213 = scmp.ne.s32.totalorder %s202, %s205
    %p214 = scmp.eq.s32.totalorder %s19, 1
    %p215 = por %p213, %p214
    %p216 = scmp.ne.s32.totalorder %s205, %s206
    %p217 = scmp.eq.s32.totalorder %s19, 0
    %p218 = por %p216, %p217
    %p219 = scmp.ne.s32.totalorder %s205, %s206
    %p220 = scmp.eq.s32.totalorder %s20, 1
    %p221 = por %p219, %p220
    %p223 = scmp.ne.s32.totalorder %s206, %s222
    %p224 = scmp.eq.s32.totalorder %s20, 0
    %p225 = por %p223, %p224
    %p226 = scmp.le.s32.totalorder 1, %s14
    %p227 = scmp.lt.s32.totalorder %s14, 3
    %p228 = pnand %p226, %p227
    %p229 = pneg %p228
    // Predicated region
    $region9: #{residual_cnn_forward.6} parent=5 // pred_check
      _
    $region10: #{residual_cnn_forward.6} parent=5 // pred_check_branch
      %231 = sbr.rel (%p228) target = $region12
    $region11: #{residual_cnn_forward.6} parent=5 // pred_region
      %s232 = ssub.s32 %s14, 1
      // Predicated region
      $region13: #{residual_cnn_forward.6} parent=11 // pred_check
        %p233 = pneg %p35
      $region14: #{residual_cnn_forward.6} parent=11 // pred_check_branch
        %235 = sbr.rel (%p233) target = $region16
      $region15: #{residual_cnn_forward.6} parent=11 // pred_region
        _
      $region16: #{residual_cnn_forward.6} parent=11 // pred_fallthru
        _
      // Predicated region
      $region17: #{residual_cnn_forward.6} parent=11 // pred_check
        %p236 = pneg %p82
      $region18: #{residual_cnn_forward.6} parent=11 // pred_check_branch
        %238 = sbr.rel (%p236) target = $region20
      $region19: #{residual_cnn_forward.6} parent=11 // pred_region
        _
      $region20: #{residual_cnn_forward.6} parent=11 // pred_fallthru
        _
      // Predicated region
      $region21: #{residual_cnn_forward.6} parent=11 // pred_check
        %p239 = pneg %p129
      $region22: #{residual_cnn_forward.6} parent=11 // pred_check_branch
        %241 = sbr.rel (%p239) target = $region24
      $region23: #{residual_cnn_forward.6} parent=11 // pred_region
        _
      $region24: #{residual_cnn_forward.6} parent=11 // pred_fallthru
        _
      // Predicated region
      $region25: #{residual_cnn_forward.6} parent=11 // pred_check
        %p242 = pneg %p150
      $region26: #{residual_cnn_forward.6} parent=11 // pred_check_branch
        %244 = sbr.rel (%p242) target = $region28
      $region27: #{residual_cnn_forward.6} parent=11 // pred_region
        _
      $region28: #{residual_cnn_forward.6} parent=11 // pred_fallthru
        _
      // Predicated region
      $region29: #{residual_cnn_forward.6} parent=11 // pred_check
        %p245 = pneg %p171
      $region30: #{residual_cnn_forward.6} parent=11 // pred_check_branch
        %247 = sbr.rel (%p245) target = $region32
      $region31: #{residual_cnn_forward.6} parent=11 // pred_region
        _
      $region32: #{residual_cnn_forward.6} parent=11 // pred_fallthru
        _
      // Predicated region
      $region33: #{residual_cnn_forward.6} parent=11 // pred_check
        %p248 = pneg %p192
      $region34: #{residual_cnn_forward.6} parent=11 // pred_check_branch
        %250 = sbr.rel (%p248) target = $region36
      $region35: #{residual_cnn_forward.6} parent=11 // pred_region
        _
      $region36: #{residual_cnn_forward.6} parent=11 // pred_fallthru
        _
    $region12: #{residual_cnn_forward.6} parent=5 // pred_fallthru
      _
    %p251 = scmp.lt.s32.totalorder %s14, 2
    // Predicated region
    $region37: #{residual_cnn_forward.6} parent=5 // pred_check
      %p252 = pneg %p251
    $region38: #{residual_cnn_forward.6} parent=5 // pred_check_branch
      %254 = sbr.rel (%p252) target = $region40
    $region39: #{residual_cnn_forward.6} parent=5 // pred_region
      // Predicated region
      $region41: #{residual_cnn_forward.6} parent=39 // pred_check
        %p255 = pneg %p55
      $region42: #{residual_cnn_forward.6} parent=39 // pred_check_branch
        %257 = sbr.rel (%p255) target = $region44
      $region43: #{residual_cnn_forward.6} parent=39 // pred_region
        %p258 = scmp.lt.s32.totalorder %s14, 1
        %s259 = scalar_select %p258, %s14, 1
        %s260 = smul.addr %s259, 100
        %s261 = smul.addr %s260, 4
        %s262 = scalar_lea.vmem %s1, %s261
      $region44: #{residual_cnn_forward.6} parent=39 // pred_fallthru
        _
      // Predicated region
      $region45: #{residual_cnn_forward.6} parent=39 // pred_check
        %p263 = pneg %p102
      $region46: #{residual_cnn_forward.6} parent=39 // pred_check_branch
        %265 = sbr.rel (%p263) target = $region48
      $region47: #{residual_cnn_forward.6} parent=39 // pred_region
        %p266 = scmp.lt.s32.totalorder %s14, 1
        %s267 = scalar_select %p266, %s14, 1
        %s268 = smul.addr %s267, 4
        %s269 = smul.addr %s268, 8
        %s270 = scalar_lea.vmem %s3, %s269
      $region48: #{residual_cnn_forward.6} parent=39 // pred_fallthru
        _
    $region40: #{residual_cnn_forward.6} parent=5 // pred_fallthru
      _
    %p271 = scmp.le.s32.totalorder 1, %s14
    %p272 = scmp.lt.s32.totalorder %s14, 3
    %p273 = pnand %p271, %p272
    %p274 = pneg %p273
    // Predicated region
    $region49: #{residual_cnn_forward.6} parent=5 // pred_check
      _
    $region50: #{residual_cnn_forward.6} parent=5 // pred_check_branch
      %276 = sbr.rel (%p273) target = $region52
    $region51: #{residual_cnn_forward.6} parent=5 // pred_region
      %s277 = ssub.s32 %s14, 1
      %p278 = pneg %p35
      %p279 = pneg %p32
      %p280 = scmp.lt.s32.totalorder %s19, 1
      %s281 = scalar_select %p280, %s19, 1
      %s282 = smul.addr %s281, 100
      %s283 = smul.addr %s282, 4
      %s284 = scalar_lea.vmem %s1, %s283
      %p285 = pneg %p61
      %p286 = pneg %p58
      %p287 = pneg %p82
      %p288 = pneg %p79
      %p289 = scmp.lt.s32.totalorder %s19, 1
      %s290 = scalar_select %p289, %s19, 1
      %s291 = smul.addr %s290, 4
      %s292 = smul.addr %s291, 8
      %s293 = scalar_lea.vmem %s3, %s292
      %p294 = pneg %p108
      %p295 = pneg %p105
      %p296 = pneg %p129
      %p297 = pneg %p126
      %p298 = pneg %p150
      %p299 = pneg %p147
      %p300 = pneg %p171
      %p301 = pneg %p168
      %p302 = pneg %p192
      %p303 = pneg %p189
      %p304 = pneg %p218
      %p305 = pneg %p215
      %p306 = scmp.lt.s32.totalorder %s19, 1
      %s307 = scalar_select %p306, %s19, 1
      %s308 = smul.addr %s307, 2
      %s309 = smul.addr %s308, 8
      %s310 = scalar_lea.vmem %s8, %s309
      %p311 = scmp.lt.s32.totalorder %s19, 1
      %s312 = scalar_select %p311, %s19, 1
      %s313 = smul.addr %s312, 100
      %s314 = smul.addr %s313, 4
      %s315 = scalar_lea.vmem %s1, %s314
      %p316 = scmp.lt.s32.totalorder %s19, 1
      %s317 = scalar_select %p316, %s19, 1
      %s318 = smul.addr %s317, 4
      %s319 = smul.addr %s318, 8
      %s320 = scalar_lea.vmem %s3, %s319
      %p321 = scmp.lt.s32.totalorder %s19, 1
      %s322 = scalar_select %p321, %s19, 1
      %s323 = smul.addr %s322, 2
      %s324 = smul.addr %s323, 8
      %s325 = scalar_lea.vmem %s8, %s324
      %v327 = vld [vmem:[%s0] sm:$0xff]
      %v328 = vld [vmem:[%s0 + $0x8] sm:$0xff]
      %v329 = vld [vmem:[%s0 + $0x10] sm:$0xff]
      %v330 = vld [vmem:[%s0 + $0x18] sm:$0xf]
      %v331 = vld [vmem:[%s0 + $0x1c] sm:$0xff]
      %v332 = vld [vmem:[%s0 + $0x24] sm:$0xff]
      %v333 = vld [vmem:[%s0 + $0x2c] sm:$0xff]
      %v334 = vld [vmem:[%s0 + $0x34] sm:$0xf]
      %v335 = vld [vmem:[%s315] sm:$0xf]
      %v336 = vld [vmem:[%s315 + $0x4] sm:$0xf]
      %v337 = vld [vmem:[%s315 + $0x8] sm:$0xf]
      %v338 = vld [vmem:[%s315 + $0xc] sm:$0xf]
      %v339 = vld [vmem:[%s315 + $0x10] sm:$0xf]
      %v340 = vld [vmem:[%s315 + $0x14] sm:$0xf]
      %v341 = vld [vmem:[%s315 + $0x18] sm:$0xf]
      %v342 = vld [vmem:[%s315 + $0x1c] sm:$0xf]
      %v343 = vld [vmem:[%s315 + $0x20] sm:$0xf]
      %v344 = vld [vmem:[%s315 + $0x24] sm:$0xf]
      %v345 = vld [vmem:[%s315 + $0x28] sm:$0xf]
      %v346 = vld [vmem:[%s315 + $0x2c] sm:$0xf]
      %v347 = vld [vmem:[%s315 + $0x30] sm:$0xf]
      %v348 = vld [vmem:[%s315 + $0x34] sm:$0xf]
      %v349 = vld [vmem:[%s315 + $0x38] sm:$0xf]
      %v350 = vld [vmem:[%s315 + $0x3c] sm:$0xf]
      %v351 = vld [vmem:[%s315 + $0x40] sm:$0xf]
      %v352 = vld [vmem:[%s315 + $0x44] sm:$0xf]
      %v353 = vld [vmem:[%s315 + $0x48] sm:$0xf]
      %v354 = vld [vmem:[%s315 + $0x4c] sm:$0xf]
      %v355 = vld [vmem:[%s315 + $0x50] sm:$0xf]
      %v356 = vld [vmem:[%s315 + $0x54] sm:$0xf]
      %v357 = vld [vmem:[%s315 + $0x58] sm:$0xf]
      %v358 = vld [vmem:[%s315 + $0x5c] sm:$0xf]
      %v359 = vld [vmem:[%s315 + $0x60] sm:$0xf]
      %v360 = vld [vmem:[%s315 + $0x64] sm:$0xf]
      %v361 = vld [vmem:[%s315 + $0x68] sm:$0xf]
      %v362 = vld [vmem:[%s315 + $0x6c] sm:$0xf]
      %v363 = vld [vmem:[%s315 + $0x70] sm:$0xf]
      %v364 = vld [vmem:[%s315 + $0x74] sm:$0xf]
      %v365 = vld [vmem:[%s315 + $0x78] sm:$0xf]
      %v366 = vld [vmem:[%s315 + $0x7c] sm:$0xf]
      %v367 = vld [vmem:[%s315 + $0x80] sm:$0xf]
      %v368 = vld [vmem:[%s315 + $0x84] sm:$0xf]
      %v369 = vld [vmem:[%s315 + $0x88] sm:$0xf]
      %v370 = vld [vmem:[%s315 + $0x8c] sm:$0xf]
      %v371 = vld [vmem:[%s315 + $0x90] sm:$0xf]
      %v372 = vld [vmem:[%s315 + $0x94] sm:$0xf]
      %v373 = vld [vmem:[%s315 + $0x98] sm:$0xf]
      %v374 = vld [vmem:[%s315 + $0x9c] sm:$0xf]
      %v375 = vld [vmem:[%s315 + $0xa0] sm:$0xf]
      %v376 = vld [vmem:[%s315 + $0xa4] sm:$0xf]
      %v377 = vld [vmem:[%s315 + $0xa8] sm:$0xf]
      %v378 = vld [vmem:[%s315 + $0xac] sm:$0xf]
      %v379 = vld [vmem:[%s315 + $0xb0] sm:$0xf]
      %v380 = vld [vmem:[%s315 + $0xb4] sm:$0xf]
      %v381 = vld [vmem:[%s315 + $0xb8] sm:$0xf]
      %v382 = vld [vmem:[%s315 + $0xbc] sm:$0xf]
      %v383 = vld [vmem:[%s315 + $0xc0] sm:$0xf]
      %v384 = vld [vmem:[%s315 + $0xc4] sm:$0xf]
      %v385 = vld [vmem:[%s315 + $0xc8] sm:$0xf]
      %v386 = vld [vmem:[%s315 + $0xcc] sm:$0xf]
      %v387 = vld [vmem:[%s315 + $0xd0] sm:$0xf]
      %v388 = vld [vmem:[%s315 + $0xd4] sm:$0xf]
      %v389 = vld [vmem:[%s315 + $0xd8] sm:$0xf]
      %v390 = vld [vmem:[%s315 + $0xdc] sm:$0xf]
      %v391 = vld [vmem:[%s315 + $0xe0] sm:$0xf]
      %v392 = vld [vmem:[%s315 + $0xe4] sm:$0xf]
      %v393 = vld [vmem:[%s315 + $0xe8] sm:$0xf]
      %v394 = vld [vmem:[%s315 + $0xec] sm:$0xf]
      %v395 = vld [vmem:[%s315 + $0xf0] sm:$0xf]
      %v396 = vld [vmem:[%s315 + $0xf4] sm:$0xf]
      %v397 = vld [vmem:[%s315 + $0xf8] sm:$0xf]
      %v398 = vld [vmem:[%s315 + $0xfc] sm:$0xf]
      %v399 = vld [vmem:[%s315 + $0x100] sm:$0xf]
      %v400 = vld [vmem:[%s315 + $0x104] sm:$0xf]
      %v401 = vld [vmem:[%s315 + $0x108] sm:$0xf]
      %v402 = vld [vmem:[%s315 + $0x10c] sm:$0xf]
      %v403 = vld [vmem:[%s315 + $0x110] sm:$0xf]
      %v404 = vld [vmem:[%s315 + $0x114] sm:$0xf]
      %v405 = vld [vmem:[%s315 + $0x118] sm:$0xf]
      %v406 = vld [vmem:[%s315 + $0x11c] sm:$0xf]
      %v407 = vld [vmem:[%s315 + $0x120] sm:$0xf]
      %v408 = vld [vmem:[%s315 + $0x124] sm:$0xf]
      %v409 = vld [vmem:[%s315 + $0x128] sm:$0xf]
      %v410 = vld [vmem:[%s315 + $0x12c] sm:$0xf]
      %v411 = vld [vmem:[%s315 + $0x130] sm:$0xf]
      %v412 = vld [vmem:[%s315 + $0x134] sm:$0xf]
      %v413 = vld [vmem:[%s315 + $0x138] sm:$0xf]
      %v414 = vld [vmem:[%s315 + $0x13c] sm:$0xf]
      %v415 = vld [vmem:[%s315 + $0x140] sm:$0xf]
      %v416 = vld [vmem:[%s315 + $0x144] sm:$0xf]
      %v417 = vld [vmem:[%s315 + $0x148] sm:$0xf]
      %v418 = vld [vmem:[%s315 + $0x14c] sm:$0xf]
      %v419 = vld [vmem:[%s315 + $0x150] sm:$0xf]
      %v420 = vld [vmem:[%s315 + $0x154] sm:$0xf]
      %v421 = vld [vmem:[%s315 + $0x158] sm:$0xf]
      %v422 = vld [vmem:[%s315 + $0x15c] sm:$0xf]
      %v423 = vld [vmem:[%s315 + $0x160] sm:$0xf]
      %v424 = vld [vmem:[%s315 + $0x164] sm:$0xf]
      %v425 = vld [vmem:[%s315 + $0x168] sm:$0xf]
      %v426 = vld [vmem:[%s315 + $0x16c] sm:$0xf]
      %v427 = vld [vmem:[%s315 + $0x170] sm:$0xf]
      %v428 = vld [vmem:[%s315 + $0x174] sm:$0xf]
      %v429 = vld [vmem:[%s315 + $0x178] sm:$0xf]
      %v430 = vld [vmem:[%s315 + $0x17c] sm:$0xf]
      %v431 = vld [vmem:[%s315 + $0x180] sm:$0xf]
      %v432 = vld [vmem:[%s315 + $0x184] sm:$0xf]
      %v433 = vld [vmem:[%s315 + $0x188] sm:$0xf]
      %v434 = vld [vmem:[%s315 + $0x18c] sm:$0xf]
      %v435 = vld [vmem:[%s2] sm:$0xff]
      %v436 = vld [vmem:[%s2 + $0x8] sm:$0xff]
      %438 = vset.pattern.permute.xlu0 0
      %439 = vperm.xlu0 %438, %v435
      %v440 = vpop.permute.xlu0 %439
      %443 = vset.pattern.permute.xlu0 0
      %444 = vperm.xlu0 %443, %v436
      %v445 = vpop.permute.xlu0 %444
      %v455 = vunpack.c.l.b16 %v327
      %v456 = vunpack.c.h.b16 %v327
      %v457 = vunpack.c.l.b16 %v328
      %v458 = vunpack.c.h.b16 %v328
      %v459 = vunpack.c.l.b16 %v329
      %v460 = vunpack.c.h.b16 %v329
      %v461 = vunpack.c.l.b16 %v330
      %v462 = vunpack.c.l.b16 %v331
      %v463 = vunpack.c.h.b16 %v331
      %v464 = vunpack.c.l.b16 %v332
      %v465 = vunpack.c.h.b16 %v332
      %v466 = vunpack.c.l.b16 %v333
      %v467 = vunpack.c.h.b16 %v333
      %v468 = vunpack.c.l.b16 %v334
      %v469 = vpack.c.b16 %v462, %v455
      %v470 = vpack.c.b16 %v463, %v456
      %v471 = vpack.c.b16 %v464, %v457
      %v472 = vpack.c.b16 %v465, %v458
      %v473 = vpack.c.b16 %v466, %v459
      %v474 = vpack.c.b16 %v467, %v460
      %v475 = vpack.c.b16 %v468, %v461
      %v582 = vunpack.c.l.b16 %v335
      %v583 = vunpack.c.l.b16 %v336
      %v584 = vunpack.c.l.b16 %v337
      %v585 = vunpack.c.l.b16 %v338
      %v586 = vunpack.c.l.b16 %v339
      %v587 = vunpack.c.l.b16 %v340
      %v588 = vunpack.c.l.b16 %v341
      %v589 = vunpack.c.l.b16 %v342
      %v590 = vunpack.c.l.b16 %v343
      %v591 = vunpack.c.l.b16 %v344
      %v592 = vunpack.c.l.b16 %v345
      %v593 = vunpack.c.l.b16 %v346
      %v594 = vunpack.c.l.b16 %v347
      %v595 = vunpack.c.l.b16 %v348
      %v596 = vunpack.c.l.b16 %v349
      %v597 = vunpack.c.l.b16 %v350
      %v598 = vunpack.c.l.b16 %v351
      %v599 = vunpack.c.l.b16 %v352
      %v600 = vunpack.c.l.b16 %v353
      %v601 = vunpack.c.l.b16 %v354
      %v602 = vunpack.c.l.b16 %v355
      %v603 = vunpack.c.l.b16 %v356
      %v604 = vunpack.c.l.b16 %v357
      %v605 = vunpack.c.l.b16 %v358
      %v606 = vunpack.c.l.b16 %v359
      %v607 = vunpack.c.l.b16 %v360
      %v608 = vunpack.c.l.b16 %v361
      %v609 = vunpack.c.l.b16 %v362
      %v610 = vunpack.c.l.b16 %v363
      %v611 = vunpack.c.l.b16 %v364
      %v612 = vunpack.c.l.b16 %v365
      %v613 = vunpack.c.l.b16 %v366
      %v614 = vunpack.c.l.b16 %v367
      %v615 = vunpack.c.l.b16 %v368
      %v616 = vunpack.c.l.b16 %v369
      %v617 = vunpack.c.l.b16 %v370
      %v618 = vunpack.c.l.b16 %v371
      %v619 = vunpack.c.l.b16 %v372
      %v620 = vunpack.c.l.b16 %v373
      %v621 = vunpack.c.l.b16 %v374
      %v622 = vunpack.c.l.b16 %v375
      %v623 = vunpack.c.l.b16 %v376
      %v624 = vunpack.c.l.b16 %v377
      %v625 = vunpack.c.l.b16 %v378
      %v626 = vunpack.c.l.b16 %v379
      %v627 = vunpack.c.l.b16 %v380
      %v628 = vunpack.c.l.b16 %v381
      %v629 = vunpack.c.l.b16 %v382
      %v630 = vunpack.c.l.b16 %v383
      %v631 = vunpack.c.l.b16 %v384
      %v632 = vunpack.c.l.b16 %v385
      %v633 = vunpack.c.l.b16 %v386
      %v634 = vunpack.c.l.b16 %v387
      %v635 = vunpack.c.l.b16 %v388
      %v636 = vunpack.c.l.b16 %v389
      %v637 = vunpack.c.l.b16 %v390
      %v638 = vunpack.c.l.b16 %v391
      %v639 = vunpack.c.l.b16 %v392
      %v640 = vunpack.c.l.b16 %v393
      %v641 = vunpack.c.l.b16 %v394
      %v642 = vunpack.c.l.b16 %v395
      %v643 = vunpack.c.l.b16 %v396
      %v644 = vunpack.c.l.b16 %v397
      %v645 = vunpack.c.l.b16 %v398
      %v646 = vunpack.c.l.b16 %v399
      %v647 = vunpack.c.l.b16 %v400
      %v648 = vunpack.c.l.b16 %v401
      %v649 = vunpack.c.l.b16 %v402
      %v650 = vunpack.c.l.b16 %v403
      %v651 = vunpack.c.l.b16 %v404
      %v652 = vunpack.c.l.b16 %v405
      %v653 = vunpack.c.l.b16 %v406
      %v654 = vunpack.c.l.b16 %v407
      %v655 = vunpack.c.l.b16 %v408
      %v656 = vunpack.c.l.b16 %v409
      %v657 = vunpack.c.l.b16 %v410
      %v658 = vunpack.c.l.b16 %v411
      %v659 = vunpack.c.l.b16 %v412
      %v660 = vunpack.c.l.b16 %v413
      %v661 = vunpack.c.l.b16 %v414
      %v662 = vunpack.c.l.b16 %v415
      %v663 = vunpack.c.l.b16 %v416
      %v664 = vunpack.c.l.b16 %v417
      %v665 = vunpack.c.l.b16 %v418
      %v666 = vunpack.c.l.b16 %v419
      %v667 = vunpack.c.l.b16 %v420
      %v668 = vunpack.c.l.b16 %v421
      %v669 = vunpack.c.l.b16 %v422
      %v670 = vunpack.c.l.b16 %v423
      %v671 = vunpack.c.l.b16 %v424
      %v672 = vunpack.c.l.b16 %v425
      %v673 = vunpack.c.l.b16 %v426
      %v674 = vunpack.c.l.b16 %v427
      %v675 = vunpack.c.l.b16 %v428
      %v676 = vunpack.c.l.b16 %v429
      %v677 = vunpack.c.l.b16 %v430
      %v678 = vunpack.c.l.b16 %v431
      %v679 = vunpack.c.l.b16 %v432
      %v680 = vunpack.c.l.b16 %v433
      %v681 = vunpack.c.l.b16 %v434
      %v682 = vpack.c.b16 %v583, %v582
      %v683 = vpack.c.b16 %v585, %v584
      %v684 = vpack.c.b16 %v587, %v586
      %v685 = vpack.c.b16 %v589, %v588
      %v686 = vpack.c.b16 %v591, %v590
      %v687 = vpack.c.b16 %v593, %v592
      %v688 = vpack.c.b16 %v595, %v594
      %v689 = vpack.c.b16 %v597, %v596
      %v690 = vpack.c.b16 %v599, %v598
      %v691 = vpack.c.b16 %v601, %v600
      %v692 = vpack.c.b16 %v603, %v602
      %v693 = vpack.c.b16 %v605, %v604
      %v694 = vpack.c.b16 %v607, %v606
      %v695 = vpack.c.b16 %v609, %v608
      %v696 = vpack.c.b16 %v611, %v610
      %v697 = vpack.c.b16 %v613, %v612
      %v698 = vpack.c.b16 %v615, %v614
      %v699 = vpack.c.b16 %v617, %v616
      %v700 = vpack.c.b16 %v619, %v618
      %v701 = vpack.c.b16 %v621, %v620
      %v702 = vpack.c.b16 %v623, %v622
      %v703 = vpack.c.b16 %v625, %v624
      %v704 = vpack.c.b16 %v627, %v626
      %v705 = vpack.c.b16 %v629, %v628
      %v706 = vpack.c.b16 %v631, %v630
      %v707 = vpack.c.b16 %v633, %v632
      %v708 = vpack.c.b16 %v635, %v634
      %v709 = vpack.c.b16 %v637, %v636
      %v710 = vpack.c.b16 %v639, %v638
      %v711 = vpack.c.b16 %v641, %v640
      %v712 = vpack.c.b16 %v643, %v642
      %v713 = vpack.c.b16 %v645, %v644
      %v714 = vpack.c.b16 %v647, %v646
      %v715 = vpack.c.b16 %v649, %v648
      %v716 = vpack.c.b16 %v651, %v650
      %v717 = vpack.c.b16 %v653, %v652
      %v718 = vpack.c.b16 %v655, %v654
      %v719 = vpack.c.b16 %v657, %v656
      %v720 = vpack.c.b16 %v659, %v658
      %v721 = vpack.c.b16 %v661, %v660
      %v722 = vpack.c.b16 %v663, %v662
      %v723 = vpack.c.b16 %v665, %v664
      %v724 = vpack.c.b16 %v667, %v666
      %v725 = vpack.c.b16 %v669, %v668
      %v726 = vpack.c.b16 %v671, %v670
      %v727 = vpack.c.b16 %v673, %v672
      %v728 = vpack.c.b16 %v675, %v674
      %v729 = vpack.c.b16 %v677, %v676
      %v730 = vpack.c.b16 %v679, %v678
      %v731 = vpack.c.b16 %v681, %v680
      %vm782 = vcmask 261120
      %v784 = vsel %vm782, %v475, 0
      %786 = vmatprep.subr.bf16.mxu0 0
      %787 = vmatpush1.bf16.msra.mxu0 %v682
      %788 = vmatprep.subr.bf16.mxu0 0
      %789 = vmatpush1.bf16.msra.mxu0 %v683
      %790 = vmatprep.subr.bf16.mxu0 0
      %791 = vmatpush1.bf16.msra.mxu0 %v684
      %792 = vmatprep.subr.bf16.mxu0 0
      %793 = vmatpush1.bf16.msra.mxu0 %v685
      %794 = vmatprep.subr.bf16.mxu0 0
      %795 = vmatpush1.bf16.msra.mxu0 %v686
      %796 = vmatprep.subr.bf16.mxu0 0
      %797 = vmatpush1.bf16.msra.mxu0 %v687
      %798 = vmatprep.subr.bf16.mxu0 0
      %799 = vmatpush1.bf16.msra.mxu0 %v688
      %800 = vmatprep.subr.bf16.mxu0 0
      %801 = vmatpush1.bf16.msra.mxu0 %v689
      %802 = vmatprep.subr.bf16.mxu0 0
      %803 = vmatpush1.bf16.msra.mxu0 %v690
      %804 = vmatprep.subr.bf16.mxu0 0
      %805 = vmatpush1.bf16.msra.mxu0 %v691
      %806 = vmatprep.subr.bf16.mxu0 0
      %807 = vmatpush1.bf16.msra.mxu0 %v692
      %808 = vmatprep.subr.bf16.mxu0 0
      %809 = vmatpush1.bf16.msra.mxu0 %v693
      %810 = vmatprep.subr.bf16.mxu0 0
      %811 = vmatpush1.bf16.msra.mxu0 %v694
      %812 = vmatprep.subr.bf16.mxu0 0
      %813 = vmatpush1.bf16.msra.mxu0 %v695
      %814 = vmatprep.subr.bf16.mxu0 0
      %815 = vmatpush1.bf16.msra.mxu0 %v696
      %816 = vmatprep.subr.bf16.mxu0 0
      %817 = vmatpush1.bf16.msra.mxu0 %v697
      %818 = vmatprep.mubr.bf16.mxu0 %v470
      %819 = vmatmul.mubr.bf16.gmra.mrb[0].mxu0 %v469
      %v820 = vpop.f32.mrb[0].mxu0
      %v821 = vadd.f32 %v440, %v820
      %v822 = vpop.f32.mrb[0].mxu0
      %v823 = vpop.f32.mrb[0].mxu0
      %v824 = vadd.f32 %v445, %v823
      %v825 = vpop.f32.mrb[0].mxu0
      %826 = vdwg.mxu0
      %827 = vmatprep.subr.bf16.mxu0 0
      %828 = vmatpush1.bf16.msra.mxu0 %v698
      %829 = vmatprep.subr.bf16.mxu0 0
      %830 = vmatpush1.bf16.msra.mxu0 %v699
      %831 = vmatprep.subr.bf16.mxu0 0
      %832 = vmatpush1.bf16.msra.mxu0 %v700
      %833 = vmatprep.subr.bf16.mxu0 0
      %834 = vmatpush1.bf16.msra.mxu0 %v701
      %835 = vmatprep.subr.bf16.mxu0 0
      %836 = vmatpush1.bf16.msra.mxu0 %v702
      %837 = vmatprep.subr.bf16.mxu0 0
      %838 = vmatpush1.bf16.msra.mxu0 %v703
      %839 = vmatprep.subr.bf16.mxu0 0
      %840 = vmatpush1.bf16.msra.mxu0 %v704
      %841 = vmatprep.subr.bf16.mxu0 0
      %842 = vmatpush1.bf16.msra.mxu0 %v705
      %843 = vmatprep.subr.bf16.mxu0 0
      %844 = vmatpush1.bf16.msra.mxu0 %v706
      %845 = vmatprep.subr.bf16.mxu0 0
      %846 = vmatpush1.bf16.msra.mxu0 %v707
      %847 = vmatprep.subr.bf16.mxu0 0
      %848 = vmatpush1.bf16.msra.mxu0 %v708
      %849 = vmatprep.subr.bf16.mxu0 0
      %850 = vmatpush1.bf16.msra.mxu0 %v709
      %851 = vmatprep.subr.bf16.mxu0 0
      %852 = vmatpush1.bf16.msra.mxu0 %v710
      %853 = vmatprep.subr.bf16.mxu0 0
      %854 = vmatpush1.bf16.msra.mxu0 %v711
      %855 = vmatprep.subr.bf16.mxu0 0
      %856 = vmatpush1.bf16.msra.mxu0 %v712
      %857 = vmatprep.subr.bf16.mxu0 0
      %858 = vmatpush1.bf16.msra.mxu0 %v713
      %859 = vmatprep.mubr.bf16.mxu0 %v472
      %860 = vmatmul.mubr.bf16.gmra.mrb[0].mxu0 %v471
      %v861 = vpop.f32.mrb[0].mxu0
      %v862 = vadd.f32 %v821, %v861
      %v863 = vpop.f32.mrb[0].mxu0
      %v864 = vpop.f32.mrb[0].mxu0
      %v865 = vadd.f32 %v824, %v864
      %v866 = vpop.f32.mrb[0].mxu0
      %867 = vdwg.mxu0
      %868 = vmatprep.subr.bf16.mxu0 0
      %869 = vmatpush1.bf16.msra.mxu0 %v714
      %870 = vmatprep.subr.bf16.mxu0 0
      %871 = vmatpush1.bf16.msra.mxu0 %v715
      %872 = vmatprep.subr.bf16.mxu0 0
      %873 = vmatpush1.bf16.msra.mxu0 %v716
      %874 = vmatprep.subr.bf16.mxu0 0
      %875 = vmatpush1.bf16.msra.mxu0 %v717
      %876 = vmatprep.subr.bf16.mxu0 0
      %877 = vmatpush1.bf16.msra.mxu0 %v718
      %878 = vmatprep.subr.bf16.mxu0 0
      %879 = vmatpush1.bf16.msra.mxu0 %v719
      %880 = vmatprep.subr.bf16.mxu0 0
      %881 = vmatpush1.bf16.msra.mxu0 %v720
      %882 = vmatprep.subr.bf16.mxu0 0
      %883 = vmatpush1.bf16.msra.mxu0 %v721
      %884 = vmatprep.subr.bf16.mxu0 0
      %885 = vmatpush1.bf16.msra.mxu0 %v722
      %886 = vmatprep.subr.bf16.mxu0 0
      %887 = vmatpush1.bf16.msra.mxu0 %v723
      %888 = vmatprep.subr.bf16.mxu0 0
      %889 = vmatpush1.bf16.msra.mxu0 %v724
      %890 = vmatprep.subr.bf16.mxu0 0
      %891 = vmatpush1.bf16.msra.mxu0 %v725
      %892 = vmatprep.subr.bf16.mxu0 0
      %893 = vmatpush1.bf16.msra.mxu0 %v726
      %894 = vmatprep.subr.bf16.mxu0 0
      %895 = vmatpush1.bf16.msra.mxu0 %v727
      %896 = vmatprep.subr.bf16.mxu0 0
      %897 = vmatpush1.bf16.msra.mxu0 %v728
      %898 = vmatprep.subr.bf16.mxu0 0
      %899 = vmatpush1.bf16.msra.mxu0 %v729
      %900 = vmatprep.mubr.bf16.mxu0 %v474
      %901 = vmatmul.mubr.bf16.gmra.mrb[0].mxu0 %v473
      %v902 = vpop.f32.mrb[0].mxu0
      %v903 = vadd.f32 %v862, %v902
      %v904 = vpop.f32.mrb[0].mxu0
      %v905 = vpop.f32.mrb[0].mxu0
      %v906 = vadd.f32 %v865, %v905
      %v907 = vpop.f32.mrb[0].mxu0
      %908 = vdwg.mxu0
      %909 = vmatprep.subr.bf16.mxu0 0
      %910 = vmatpush1.bf16.msra.mxu0 %v730
      %911 = vmatprep.subr.bf16.mxu0 0
      %912 = vmatpush1.bf16.msra.mxu0 %v731
      %913 = vmatprep.subr.bf16.mxu0 0
      %914 = vmatpush1.bf16.msra.mxu0 0
      %915 = vmatprep.subr.bf16.mxu0 0
      %916 = vmatpush1.bf16.msra.mxu0 0
      %917 = vmatprep.subr.bf16.mxu0 0
      %918 = vmatpush1.bf16.msra.mxu0 0
      %919 = vmatprep.subr.bf16.mxu0 0
      %920 = vmatpush1.bf16.msra.mxu0 0
      %921 = vmatprep.subr.bf16.mxu0 0
      %922 = vmatpush1.bf16.msra.mxu0 0
      %923 = vmatprep.subr.bf16.mxu0 0
      %924 = vmatpush1.bf16.msra.mxu0 0
      %925 = vmatprep.subr.bf16.mxu0 0
      %926 = vmatpush1.bf16.msra.mxu0 0
      %927 = vmatprep.subr.bf16.mxu0 0
      %928 = vmatpush1.bf16.msra.mxu0 0
      %929 = vmatprep.subr.bf16.mxu0 0
      %930 = vmatpush1.bf16.msra.mxu0 0
      %931 = vmatprep.subr.bf16.mxu0 0
      %932 = vmatpush1.bf16.msra.mxu0 0
      %933 = vmatprep.subr.bf16.mxu0 0
      %934 = vmatpush1.bf16.msra.mxu0 0
      %935 = vmatprep.subr.bf16.mxu0 0
      %936 = vmatpush1.bf16.msra.mxu0 0
      %937 = vmatprep.subr.bf16.mxu0 0
      %938 = vmatpush1.bf16.msra.mxu0 0
      %939 = vmatprep.subr.bf16.mxu0 0
      %940 = vmatpush1.bf16.msra.mxu0 0
      %941 = vmatprep.mubr.bf16.mxu0 0
      %942 = vmatmul.mubr.bf16.gmra.mrb[0].mxu0 %v784
      %v943 = vpop.f32.mrb[0].mxu0
      %v944 = vadd.f32 %v903, %v943
      %v945 = vpop.f32.mrb[0].mxu0
      %v946 = vpop.f32.mrb[0].mxu0
      %v947 = vadd.f32 %v906, %v946
      %v948 = vpop.f32.mrb[0].mxu0
      %949 = vdwg.mxu0
      %v950 = vld [vmem:[%s320] sm:$0xff]
      %v951 = vld [vmem:[%s320 + $0x8] sm:$0xff]
      %v952 = vld [vmem:[%s320 + $0x10] sm:$0xff]
      %v953 = vld [vmem:[%s320 + $0x18] sm:$0xff]
      %v954 = vld [vmem:[%s4] sm:$0xff]
      %v955 = vld [vmem:[%s4 + $0x8] sm:$0xff]
      %v956 = vld [vmem:[%s4 + $0x10] sm:$0xff]
      %v957 = vld [vmem:[%s4 + $0x18] sm:$0xff]
      %v958 = vld [vmem:[%s4 + $0x20] sm:$0xff]
      %v959 = vld [vmem:[%s4 + $0x28] sm:$0xff]
      %v960 = vld [vmem:[%s4 + $0x30] sm:$0xff]
      %v961 = vld [vmem:[%s4 + $0x38] sm:$0xff]
      %v962 = vld [vmem:[%s4 + $0x40] sm:$0xff]
      %v963 = vld [vmem:[%s4 + $0x48] sm:$0xff]
      %v964 = vld [vmem:[%s4 + $0x50] sm:$0xff]
      %v965 = vld [vmem:[%s4 + $0x58] sm:$0xff]
      %v966 = vld [vmem:[%s4 + $0x60] sm:$0xff]
      %v967 = vld [vmem:[%s4 + $0x68] sm:$0xff]
      %v968 = vld [vmem:[%s4 + $0x70] sm:$0xff]
      %v969 = vld [vmem:[%s4 + $0x78] sm:$0xff]
      %v970 = vld [vmem:[%s4 + $0x80] sm:$0xff]
      %v971 = vld [vmem:[%s4 + $0x88] sm:$0xff]
      %v972 = vld [vmem:[%s4 + $0x90] sm:$0xff]
      %v973 = vld [vmem:[%s4 + $0x98] sm:$0xff]
      %v974 = vld [vmem:[%s4 + $0xa0] sm:$0xff]
      %v975 = vld [vmem:[%s4 + $0xa8] sm:$0xff]
      %v976 = vld [vmem:[%s4 + $0xb0] sm:$0xff]
      %v977 = vld [vmem:[%s4 + $0xb8] sm:$0xff]
      %v978 = vld [vmem:[%s4 + $0xc0] sm:$0xff]
      %v979 = vld [vmem:[%s4 + $0xc8] sm:$0xff]
      %v980 = vld [vmem:[%s4 + $0xd0] sm:$0xff]
      %v981 = vld [vmem:[%s4 + $0xd8] sm:$0xff]
      %v982 = vld [vmem:[%s4 + $0xe0] sm:$0xff]
      %v983 = vld [vmem:[%s4 + $0xe8] sm:$0xff]
      %v984 = vld [vmem:[%s4 + $0xf0] sm:$0xff]
      %v985 = vld [vmem:[%s4 + $0xf8] sm:$0xff]
      %986 = vmatprep.subr.mxu0 0.0
      %987 = vmatpush1.msra.mxu0 %v954
      %988 = vmatprep.subr.mxu0 0.0
      %989 = vmatpush1.msra.mxu0 %v955
      %990 = vmatprep.subr.mxu0 0.0
      %991 = vmatpush1.msra.mxu0 %v956
      %992 = vmatprep.subr.mxu0 0.0
      %993 = vmatpush1.msra.mxu0 %v957
      %994 = vmatprep.subr.mxu0 0.0
      %995 = vmatpush1.msra.mxu0 %v958
      %996 = vmatprep.subr.mxu0 0.0
      %997 = vmatpush1.msra.mxu0 %v959
      %998 = vmatprep.subr.mxu0 0.0
      %999 = vmatpush1.msra.mxu0 %v960
      %1000 = vmatprep.subr.mxu0 0.0
      %1001 = vmatpush1.msra.mxu0 %v961
      %1002 = vmatprep.subr.mxu0 0.0
      %1003 = vmatpush1.msra.mxu0 %v962
      %1004 = vmatprep.subr.mxu0 0.0
      %1005 = vmatpush1.msra.mxu0 %v963
      %1006 = vmatprep.subr.mxu0 0.0
      %1007 = vmatpush1.msra.mxu0 %v964
      %1008 = vmatprep.subr.mxu0 0.0
      %1009 = vmatpush1.msra.mxu0 %v965
      %1010 = vmatprep.subr.mxu0 0.0
      %1011 = vmatpush1.msra.mxu0 %v966
      %1012 = vmatprep.subr.mxu0 0.0
      %1013 = vmatpush1.msra.mxu0 %v967
      %1014 = vmatprep.subr.mxu0 0.0
      %1015 = vmatpush1.msra.mxu0 %v968
      %1016 = vmatprep.subr.mxu0 0.0
      %1017 = vmatpush1.msra.mxu0 %v969
      %1018 = vmatprep.subr.mxu0 0.0
      %1019 = vmatpush1.msra.mxu0 %v970
      %1020 = vmatprep.subr.mxu0 0.0
      %1021 = vmatpush1.msra.mxu0 %v971
      %1022 = vmatprep.subr.mxu0 0.0
      %1023 = vmatpush1.msra.mxu0 %v972
      %1024 = vmatprep.subr.mxu0 0.0
      %1025 = vmatpush1.msra.mxu0 %v973
      %1026 = vmatprep.subr.mxu0 0.0
      %1027 = vmatpush1.msra.mxu0 %v974
      %1028 = vmatprep.subr.mxu0 0.0
      %1029 = vmatpush1.msra.mxu0 %v975
      %1030 = vmatprep.subr.mxu0 0.0
      %1031 = vmatpush1.msra.mxu0 %v976
      %1032 = vmatprep.subr.mxu0 0.0
      %1033 = vmatpush1.msra.mxu0 %v977
      %1034 = vmatprep.subr.mxu0 0.0
      %1035 = vmatpush1.msra.mxu0 %v978
      %1036 = vmatprep.subr.mxu0 0.0
      %1037 = vmatpush1.msra.mxu0 %v979
      %1038 = vmatprep.subr.mxu0 0.0
      %1039 = vmatpush1.msra.mxu0 %v980
      %1040 = vmatprep.subr.mxu0 0.0
      %1041 = vmatpush1.msra.mxu0 %v981
      %1042 = vmatprep.subr.mxu0 0.0
      %1043 = vmatpush1.msra.mxu0 %v982
      %1044 = vmatprep.subr.mxu0 0.0
      %1045 = vmatpush1.msra.mxu0 %v983
      %1046 = vmatprep.subr.mxu0 0.0
      %1047 = vmatpush1.msra.mxu0 %v984
      %1048 = vmatprep.subr.mxu0 0.0
      %1049 = vmatpush1.msra.mxu0 %v985
      %1050 = vmatprep.mubr.f32.mxu0 %v951
      %1051 = vmatmul.mubr.f32.gmra.mrb[0].mxu0 %v950
      %v1052 = vpop.f32.mrb[0].mxu0
      %v1053 = vadd.f32 0.0, %v1052
      %v1054 = vpop.f32.mrb[0].mxu0
      %1055 = vmatprep.mubr.f32.mxu0 %v953
      %1056 = vmatmul.mubr.f32.gmra.mrb[0].mxu0 %v952
      %v1057 = vpop.f32.mrb[0].mxu0
      %v1058 = vadd.f32 0.0, %v1057
      %v1059 = vpop.f32.mrb[0].mxu0
      %1060 = vdwg.mxu0
      %v1061 = vld [vmem:[%s5] sm:$0xff]
      %v1062 = vld [vmem:[%s5 + $0x8] sm:$0xff]
      %v1063 = vld [vmem:[%s5 + $0x10] sm:$0xff]
      %v1064 = vld [vmem:[%s5 + $0x18] sm:$0xff]
      %v1065 = vld [vmem:[%s5 + $0x20] sm:$0xff]
      %v1066 = vld [vmem:[%s5 + $0x28] sm:$0xff]
      %v1067 = vld [vmem:[%s5 + $0x30] sm:$0xff]
      %v1068 = vld [vmem:[%s5 + $0x38] sm:$0xff]
      %v1069 = vld [vmem:[%s5 + $0x40] sm:$0xff]
      %v1070 = vld [vmem:[%s5 + $0x48] sm:$0xff]
      %v1071 = vld [vmem:[%s5 + $0x50] sm:$0xff]
      %v1072 = vld [vmem:[%s5 + $0x58] sm:$0xff]
      %v1073 = vld [vmem:[%s5 + $0x60] sm:$0xff]
      %v1074 = vld [vmem:[%s5 + $0x68] sm:$0xff]
      %v1075 = vld [vmem:[%s5 + $0x70] sm:$0xff]
      %v1076 = vld [vmem:[%s5 + $0x78] sm:$0xff]
      %v1077 = vld [vmem:[%s5 + $0x80] sm:$0xff]
      %v1078 = vld [vmem:[%s5 + $0x88] sm:$0xff]
      %v1079 = vld [vmem:[%s5 + $0x90] sm:$0xff]
      %v1080 = vld [vmem:[%s5 + $0x98] sm:$0xff]
      %v1081 = vld [vmem:[%s5 + $0xa0] sm:$0xff]
      %v1082 = vld [vmem:[%s5 + $0xa8] sm:$0xff]
      %v1083 = vld [vmem:[%s5 + $0xb0] sm:$0xff]
      %v1084 = vld [vmem:[%s5 + $0xb8] sm:$0xff]
      %v1085 = vld [vmem:[%s5 + $0xc0] sm:$0xff]
      %v1086 = vld [vmem:[%s5 + $0xc8] sm:$0xff]
      %v1087 = vld [vmem:[%s5 + $0xd0] sm:$0xff]
      %v1088 = vld [vmem:[%s5 + $0xd8] sm:$0xff]
      %v1089 = vld [vmem:[%s5 + $0xe0] sm:$0xff]
      %v1090 = vld [vmem:[%s5 + $0xe8] sm:$0xff]
      %v1091 = vld [vmem:[%s5 + $0xf0] sm:$0xff]
      %v1092 = vld [vmem:[%s5 + $0xf8] sm:$0xff]
      %1093 = vmatprep.subr.mxu0 0.0
      %1094 = vmatpush1.msra.mxu0 %v1061
      %1095 = vmatprep.subr.mxu0 0.0
      %1096 = vmatpush1.msra.mxu0 %v1062
      %1097 = vmatprep.subr.mxu0 0.0
      %1098 = vmatpush1.msra.mxu0 %v1063
      %1099 = vmatprep.subr.mxu0 0.0
      %1100 = vmatpush1.msra.mxu0 %v1064
      %1101 = vmatprep.subr.mxu0 0.0
      %1102 = vmatpush1.msra.mxu0 %v1065
      %1103 = vmatprep.subr.mxu0 0.0
      %1104 = vmatpush1.msra.mxu0 %v1066
      %1105 = vmatprep.subr.mxu0 0.0
      %1106 = vmatpush1.msra.mxu0 %v1067
      %1107 = vmatprep.subr.mxu0 0.0
      %1108 = vmatpush1.msra.mxu0 %v1068
      %1109 = vmatprep.subr.mxu0 0.0
      %1110 = vmatpush1.msra.mxu0 %v1069
      %1111 = vmatprep.subr.mxu0 0.0
      %1112 = vmatpush1.msra.mxu0 %v1070
      %1113 = vmatprep.subr.mxu0 0.0
      %1114 = vmatpush1.msra.mxu0 %v1071
      %1115 = vmatprep.subr.mxu0 0.0
      %1116 = vmatpush1.msra.mxu0 %v1072
      %1117 = vmatprep.subr.mxu0 0.0
      %1118 = vmatpush1.msra.mxu0 %v1073
      %1119 = vmatprep.subr.mxu0 0.0
      %1120 = vmatpush1.msra.mxu0 %v1074
      %1121 = vmatprep.subr.mxu0 0.0
      %1122 = vmatpush1.msra.mxu0 %v1075
      %1123 = vmatprep.subr.mxu0 0.0
      %1124 = vmatpush1.msra.mxu0 %v1076
      %1125 = vmatprep.subr.mxu0 0.0
      %1126 = vmatpush1.msra.mxu0 %v1077
      %1127 = vmatprep.subr.mxu0 0.0
      %1128 = vmatpush1.msra.mxu0 %v1078
      %1129 = vmatprep.subr.mxu0 0.0
      %1130 = vmatpush1.msra.mxu0 %v1079
      %1131 = vmatprep.subr.mxu0 0.0
      %1132 = vmatpush1.msra.mxu0 %v1080
      %1133 = vmatprep.subr.mxu0 0.0
      %1134 = vmatpush1.msra.mxu0 %v1081
      %1135 = vmatprep.subr.mxu0 0.0
      %1136 = vmatpush1.msra.mxu0 %v1082
      %1137 = vmatprep.subr.mxu0 0.0
      %1138 = vmatpush1.msra.mxu0 %v1083
      %1139 = vmatprep.subr.mxu0 0.0
      %1140 = vmatpush1.msra.mxu0 %v1084
      %1141 = vmatprep.subr.mxu0 0.0
      %1142 = vmatpush1.msra.mxu0 %v1085
      %1143 = vmatprep.subr.mxu0 0.0
      %1144 = vmatpush1.msra.mxu0 %v1086
      %1145 = vmatprep.subr.mxu0 0.0
      %1146 = vmatpush1.msra.mxu0 %v1087
      %1147 = vmatprep.subr.mxu0 0.0
      %1148 = vmatpush1.msra.mxu0 %v1088
      %1149 = vmatprep.subr.mxu0 0.0
      %1150 = vmatpush1.msra.mxu0 %v1089
      %1151 = vmatprep.subr.mxu0 0.0
      %1152 = vmatpush1.msra.mxu0 %v1090
      %1153 = vmatprep.subr.mxu0 0.0
      %1154 = vmatpush1.msra.mxu0 %v1091
      %1155 = vmatprep.subr.mxu0 0.0
      %1156 = vmatpush1.msra.mxu0 %v1092
      %1157 = vmatprep.mubr.f32.mxu0 %v951
      %1158 = vmatmul.mubr.f32.gmra.mrb[0].mxu0 %v950
      %v1159 = vpop.f32.mrb[0].mxu0
      %v1160 = vadd.f32 0.0, %v1159
      %v1161 = vpop.f32.mrb[0].mxu0
      %1162 = vmatprep.mubr.f32.mxu0 %v953
      %1163 = vmatmul.mubr.f32.gmra.mrb[0].mxu0 %v952
      %v1164 = vpop.f32.mrb[0].mxu0
      %v1165 = vadd.f32 0.0, %v1164
      %v1166 = vpop.f32.mrb[0].mxu0
      %1167 = vdwg.mxu0
      %v1168 = vld [vmem:[%s6] sm:$0xff]
      %v1169 = vld [vmem:[%s6 + $0x8] sm:$0xff]
      %v1170 = vld [vmem:[%s6 + $0x10] sm:$0xff]
      %v1171 = vld [vmem:[%s6 + $0x18] sm:$0xff]
      %v1172 = vld [vmem:[%s6 + $0x20] sm:$0xff]
      %v1173 = vld [vmem:[%s6 + $0x28] sm:$0xff]
      %v1174 = vld [vmem:[%s6 + $0x30] sm:$0xff]
      %v1175 = vld [vmem:[%s6 + $0x38] sm:$0xff]
      %v1176 = vld [vmem:[%s6 + $0x40] sm:$0xff]
      %v1177 = vld [vmem:[%s6 + $0x48] sm:$0xff]
      %v1178 = vld [vmem:[%s6 + $0x50] sm:$0xff]
      %v1179 = vld [vmem:[%s6 + $0x58] sm:$0xff]
      %v1180 = vld [vmem:[%s6 + $0x60] sm:$0xff]
      %v1181 = vld [vmem:[%s6 + $0x68] sm:$0xff]
      %v1182 = vld [vmem:[%s6 + $0x70] sm:$0xff]
      %v1183 = vld [vmem:[%s6 + $0x78] sm:$0xff]
      %v1184 = vld [vmem:[%s6 + $0x80] sm:$0xff]
      %v1185 = vld [vmem:[%s6 + $0x88] sm:$0xff]
      %v1186 = vld [vmem:[%s6 + $0x90] sm:$0xff]
      %v1187 = vld [vmem:[%s6 + $0x98] sm:$0xff]
      %v1188 = vld [vmem:[%s6 + $0xa0] sm:$0xff]
      %v1189 = vld [vmem:[%s6 + $0xa8] sm:$0xff]
      %v1190 = vld [vmem:[%s6 + $0xb0] sm:$0xff]
      %v1191 = vld [vmem:[%s6 + $0xb8] sm:$0xff]
      %v1192 = vld [vmem:[%s6 + $0xc0] sm:$0xff]
      %v1193 = vld [vmem:[%s6 + $0xc8] sm:$0xff]
      %v1194 = vld [vmem:[%s6 + $0xd0] sm:$0xff]
      %v1195 = vld [vmem:[%s6 + $0xd8] sm:$0xff]
      %v1196 = vld [vmem:[%s6 + $0xe0] sm:$0xff]
      %v1197 = vld [vmem:[%s6 + $0xe8] sm:$0xff]
      %v1198 = vld [vmem:[%s6 + $0xf0] sm:$0xff]
      %v1199 = vld [vmem:[%s6 + $0xf8] sm:$0xff]
      %1200 = vmatprep.subr.mxu0 0.0
      %1201 = vmatpush1.msra.mxu0 %v1168
      %1202 = vmatprep.subr.mxu0 0.0
      %1203 = vmatpush1.msra.mxu0 %v1169
      %1204 = vmatprep.subr.mxu0 0.0
      %1205 = vmatpush1.msra.mxu0 %v1170
      %1206 = vmatprep.subr.mxu0 0.0
      %1207 = vmatpush1.msra.mxu0 %v1171
      %1208 = vmatprep.subr.mxu0 0.0
      %1209 = vmatpush1.msra.mxu0 %v1172
      %1210 = vmatprep.subr.mxu0 0.0
      %1211 = vmatpush1.msra.mxu0 %v1173
      %1212 = vmatprep.subr.mxu0 0.0
      %1213 = vmatpush1.msra.mxu0 %v1174
      %1214 = vmatprep.subr.mxu0 0.0
      %1215 = vmatpush1.msra.mxu0 %v1175
      %1216 = vmatprep.subr.mxu0 0.0
      %1217 = vmatpush1.msra.mxu0 %v1176
      %1218 = vmatprep.subr.mxu0 0.0
      %1219 = vmatpush1.msra.mxu0 %v1177
      %1220 = vmatprep.subr.mxu0 0.0
      %1221 = vmatpush1.msra.mxu0 %v1178
      %1222 = vmatprep.subr.mxu0 0.0
      %1223 = vmatpush1.msra.mxu0 %v1179
      %1224 = vmatprep.subr.mxu0 0.0
      %1225 = vmatpush1.msra.mxu0 %v1180
      %1226 = vmatprep.subr.mxu0 0.0
      %1227 = vmatpush1.msra.mxu0 %v1181
      %1228 = vmatprep.subr.mxu0 0.0
      %1229 = vmatpush1.msra.mxu0 %v1182
      %1230 = vmatprep.subr.mxu0 0.0
      %1231 = vmatpush1.msra.mxu0 %v1183
      %1232 = vmatprep.subr.mxu0 0.0
      %1233 = vmatpush1.msra.mxu0 %v1184
      %1234 = vmatprep.subr.mxu0 0.0
      %1235 = vmatpush1.msra.mxu0 %v1185
      %1236 = vmatprep.subr.mxu0 0.0
      %1237 = vmatpush1.msra.mxu0 %v1186
      %1238 = vmatprep.subr.mxu0 0.0
      %1239 = vmatpush1.msra.mxu0 %v1187
      %1240 = vmatprep.subr.mxu0 0.0
      %1241 = vmatpush1.msra.mxu0 %v1188
      %1242 = vmatprep.subr.mxu0 0.0
      %1243 = vmatpush1.msra.mxu0 %v1189
      %1244 = vmatprep.subr.mxu0 0.0
      %1245 = vmatpush1.msra.mxu0 %v1190
      %1246 = vmatprep.subr.mxu0 0.0
      %1247 = vmatpush1.msra.mxu0 %v1191
      %1248 = vmatprep.subr.mxu0 0.0
      %1249 = vmatpush1.msra.mxu0 %v1192
      %1250 = vmatprep.subr.mxu0 0.0
      %1251 = vmatpush1.msra.mxu0 %v1193
      %1252 = vmatprep.subr.mxu0 0.0
      %1253 = vmatpush1.msra.mxu0 %v1194
      %1254 = vmatprep.subr.mxu0 0.0
      %1255 = vmatpush1.msra.mxu0 %v1195
      %1256 = vmatprep.subr.mxu0 0.0
      %1257 = vmatpush1.msra.mxu0 %v1196
      %1258 = vmatprep.subr.mxu0 0.0
      %1259 = vmatpush1.msra.mxu0 %v1197
      %1260 = vmatprep.subr.mxu0 0.0
      %1261 = vmatpush1.msra.mxu0 %v1198
      %1262 = vmatprep.subr.mxu0 0.0
      %1263 = vmatpush1.msra.mxu0 %v1199
      %1264 = vmatprep.mubr.f32.mxu0 %v951
      %1265 = vmatmul.mubr.f32.gmra.mrb[0].mxu0 %v950
      %v1266 = vpop.f32.mrb[0].mxu0
      %v1267 = vadd.f32 0.0, %v1266
      %v1268 = vpop.f32.mrb[0].mxu0
      %1269 = vmatprep.mubr.f32.mxu0 %v953
      %1270 = vmatmul.mubr.f32.gmra.mrb[0].mxu0 %v952
      %v1271 = vpop.f32.mrb[0].mxu0
      %v1272 = vadd.f32 0.0, %v1271
      %v1273 = vpop.f32.mrb[0].mxu0
      %1274 = vdwg.mxu0
      %v1275 = vld [vmem:[%s7] sm:$0xff]
      %v1276 = vld [vmem:[%s7 + $0x8] sm:$0xff]
      %v1277 = vld [vmem:[%s7 + $0x10] sm:$0xff]
      %v1278 = vld [vmem:[%s7 + $0x18] sm:$0xff]
      %v1279 = vld [vmem:[%s7 + $0x20] sm:$0xff]
      %v1280 = vld [vmem:[%s7 + $0x28] sm:$0xff]
      %v1281 = vld [vmem:[%s7 + $0x30] sm:$0xff]
      %v1282 = vld [vmem:[%s7 + $0x38] sm:$0xff]
      %v1283 = vld [vmem:[%s7 + $0x40] sm:$0xff]
      %v1284 = vld [vmem:[%s7 + $0x48] sm:$0xff]
      %v1285 = vld [vmem:[%s7 + $0x50] sm:$0xff]
      %v1286 = vld [vmem:[%s7 + $0x58] sm:$0xff]
      %v1287 = vld [vmem:[%s7 + $0x60] sm:$0xff]
      %v1288 = vld [vmem:[%s7 + $0x68] sm:$0xff]
      %v1289 = vld [vmem:[%s7 + $0x70] sm:$0xff]
      %v1290 = vld [vmem:[%s7 + $0x78] sm:$0xff]
      %v1291 = vld [vmem:[%s7 + $0x80] sm:$0xff]
      %v1292 = vld [vmem:[%s7 + $0x88] sm:$0xff]
      %v1293 = vld [vmem:[%s7 + $0x90] sm:$0xff]
      %v1294 = vld [vmem:[%s7 + $0x98] sm:$0xff]
      %v1295 = vld [vmem:[%s7 + $0xa0] sm:$0xff]
      %v1296 = vld [vmem:[%s7 + $0xa8] sm:$0xff]
      %v1297 = vld [vmem:[%s7 + $0xb0] sm:$0xff]
      %v1298 = vld [vmem:[%s7 + $0xb8] sm:$0xff]
      %v1299 = vld [vmem:[%s7 + $0xc0] sm:$0xff]
      %v1300 = vld [vmem:[%s7 + $0xc8] sm:$0xff]
      %v1301 = vld [vmem:[%s7 + $0xd0] sm:$0xff]
      %v1302 = vld [vmem:[%s7 + $0xd8] sm:$0xff]
      %v1303 = vld [vmem:[%s7 + $0xe0] sm:$0xff]
      %v1304 = vld [vmem:[%s7 + $0xe8] sm:$0xff]
      %v1305 = vld [vmem:[%s7 + $0xf0] sm:$0xff]
      %v1306 = vld [vmem:[%s7 + $0xf8] sm:$0xff]
      %1307 = vmatprep.subr.mxu0 0.0
      %1308 = vmatpush1.msra.mxu0 %v1275
      %1309 = vmatprep.subr.mxu0 0.0
      %1310 = vmatpush1.msra.mxu0 %v1276
      %1311 = vmatprep.subr.mxu0 0.0
      %1312 = vmatpush1.msra.mxu0 %v1277
      %1313 = vmatprep.subr.mxu0 0.0
      %1314 = vmatpush1.msra.mxu0 %v1278
      %1315 = vmatprep.subr.mxu0 0.0
      %1316 = vmatpush1.msra.mxu0 %v1279
      %1317 = vmatprep.subr.mxu0 0.0
      %1318 = vmatpush1.msra.mxu0 %v1280
      %1319 = vmatprep.subr.mxu0 0.0
      %1320 = vmatpush1.msra.mxu0 %v1281
      %1321 = vmatprep.subr.mxu0 0.0
      %1322 = vmatpush1.msra.mxu0 %v1282
      %1323 = vmatprep.subr.mxu0 0.0
      %1324 = vmatpush1.msra.mxu0 %v1283
      %1325 = vmatprep.subr.mxu0 0.0
      %1326 = vmatpush1.msra.mxu0 %v1284
      %1327 = vmatprep.subr.mxu0 0.0
      %1328 = vmatpush1.msra.mxu0 %v1285
      %1329 = vmatprep.subr.mxu0 0.0
      %1330 = vmatpush1.msra.mxu0 %v1286
      %1331 = vmatprep.subr.mxu0 0.0
      %1332 = vmatpush1.msra.mxu0 %v1287
      %1333 = vmatprep.subr.mxu0 0.0
      %1334 = vmatpush1.msra.mxu0 %v1288
      %1335 = vmatprep.subr.mxu0 0.0
      %1336 = vmatpush1.msra.mxu0 %v1289
      %1337 = vmatprep.subr.mxu0 0.0
      %1338 = vmatpush1.msra.mxu0 %v1290
      %1339 = vmatprep.subr.mxu0 0.0
      %1340 = vmatpush1.msra.mxu0 %v1291
      %1341 = vmatprep.subr.mxu0 0.0
      %1342 = vmatpush1.msra.mxu0 %v1292
      %1343 = vmatprep.subr.mxu0 0.0
      %1344 = vmatpush1.msra.mxu0 %v1293
      %1345 = vmatprep.subr.mxu0 0.0
      %1346 = vmatpush1.msra.mxu0 %v1294
      %1347 = vmatprep.subr.mxu0 0.0
      %1348 = vmatpush1.msra.mxu0 %v1295
      %1349 = vmatprep.subr.mxu0 0.0
      %1350 = vmatpush1.msra.mxu0 %v1296
      %1351 = vmatprep.subr.mxu0 0.0
      %1352 = vmatpush1.msra.mxu0 %v1297
      %1353 = vmatprep.subr.mxu0 0.0
      %1354 = vmatpush1.msra.mxu0 %v1298
      %1355 = vmatprep.subr.mxu0 0.0
      %1356 = vmatpush1.msra.mxu0 %v1299
      %1357 = vmatprep.subr.mxu0 0.0
      %1358 = vmatpush1.msra.mxu0 %v1300
      %1359 = vmatprep.subr.mxu0 0.0
      %1360 = vmatpush1.msra.mxu0 %v1301
      %1361 = vmatprep.subr.mxu0 0.0
      %1362 = vmatpush1.msra.mxu0 %v1302
      %1363 = vmatprep.subr.mxu0 0.0
      %1364 = vmatpush1.msra.mxu0 %v1303
      %1365 = vmatprep.subr.mxu0 0.0
      %1366 = vmatpush1.msra.mxu0 %v1304
      %1367 = vmatprep.subr.mxu0 0.0
      %1368 = vmatpush1.msra.mxu0 %v1305
      %1369 = vmatprep.subr.mxu0 0.0
      %1370 = vmatpush1.msra.mxu0 %v1306
      %1371 = vmatprep.mubr.f32.mxu0 %v951
      %1372 = vmatmul.mubr.f32.gmra.mrb[0].mxu0 %v950
      %v1373 = vpop.f32.mrb[0].mxu0
      %v1374 = vadd.f32 0.0, %v1373
      %v1375 = vpop.f32.mrb[0].mxu0
      %1376 = vmatprep.mubr.f32.mxu0 %v953
      %1377 = vmatmul.mubr.f32.gmra.mrb[0].mxu0 %v952
      %v1378 = vpop.f32.mrb[0].mxu0
      %v1379 = vadd.f32 0.0, %v1378
      %v1380 = vpop.f32.mrb[0].mxu0
      %1381 = vdwg.mxu0
      %v1382 = vmax.f32 %v1053, %v1160
      %v1383 = vmax.f32 %v1058, %v1165
      %v1384 = vmax.f32 %v1267, %v1374
      %v1385 = vmax.f32 %v1272, %v1379
      %v1386 = vmax.f32 %v1382, %v1384
      %v1387 = vmax.f32 %v1383, %v1385
      %v1388 = vadd.f32 %v944, %v1386
      %v1389 = vadd.f32 %v947, %v1387
      %v1390 = vmax.f32 %v1388, 0.0
      %v1391 = vmax.f32 %v1389, 0.0
      %vm1392 = vcmask 523264
      %1393 = vst.msk [vmem:[%s325] sm:$0xff] %vm1392, %v1390
      %1394 = vst.msk [vmem:[%s325 + $0x8] sm:$0xff] %vm1392, %v1391
      %p1395 = scmp.lt.s32.totalorder %s19, 1
      %s1396 = scalar_select %p1395, %s19, 1
      %s1397 = smul.addr %s1396, 2
      %s1398 = smul.addr %s1397, 8
      %s1399 = scalar_lea.vmem %s8, %s1398
      // Predicated region
      $region53: #{residual_cnn_forward.6} parent=51 // pred_check
        %p1400 = pneg %p215
      $region54: #{residual_cnn_forward.6} parent=51 // pred_check_branch
        %1402 = sbr.rel (%p1400) target = $region56
      $region55: #{residual_cnn_forward.6} parent=51 // pred_region
        _
      $region56: #{residual_cnn_forward.6} parent=51 // pred_fallthru
        _
    $region52: #{residual_cnn_forward.6} parent=5 // pred_fallthru
      _
    %p1403 = scmp.le.s32.totalorder 2, %s14
    // Predicated region
    $region57: #{residual_cnn_forward.6} parent=5 // pred_check
      %p1404 = pneg %p1403
    $region58: #{residual_cnn_forward.6} parent=5 // pred_check_branch
      %1406 = sbr.rel (%p1404) target = $region60
    $region59: #{residual_cnn_forward.6} parent=5 // pred_region
      %s1407 = ssub.s32 %s14, 2
      // Predicated region
      $region61: #{residual_cnn_forward.6} parent=59 // pred_check
        %p1408 = pneg %p221
      $region62: #{residual_cnn_forward.6} parent=59 // pred_check_branch
        %1410 = sbr.rel (%p1408) target = $region64
      $region63: #{residual_cnn_forward.6} parent=59 // pred_region
        %p1411 = scmp.lt.s32.totalorder %s20, 1
        %s1412 = scalar_select %p1411, %s20, 1
        %s1413 = smul.addr %s1412, 2
        %s1414 = smul.addr %s1413, 8
        %s1415 = scalar_lea.vmem %s8, %s1414
      $region64: #{residual_cnn_forward.6} parent=59 // pred_fallthru
        _
    $region60: #{residual_cnn_forward.6} parent=5 // pred_fallthru
      _
  $region6: #{residual_cnn_forward.6} parent=0 // loop_footer
    %s18 = sadd.s32 1, %s14
  $region7: #{residual_cnn_forward.6} parent=0 // loop_footer_branch
    %13 = sbr.rel target = $region3
  $region8: #{residual_cnn_forward.6} parent=0 // loop_exit
    _

// kernel: residual_cnn_forward.7
$region0: #{residual_cnn_forward.7}
  #allocation0 [shape = 'u32[]', space=smem, size = 0x4, offset = 0x4, fixed_abs, tag = 'smem constant byte address 0x4 - core index']
  #allocation1 [shape = 'u32[144,128]{1,0:T(1,128)}', space=vmem, size = 0x12000, scoped, tag = 'internal scratch']
  %s0 = inlined_call_operand.vmem [shape: bf16[2,1024], index: 0, kind: input, shape index: {}]
  %s1 = inlined_call_operand.vmem [shape: bf16[1024,64], index: 1, kind: input, shape index: {}]
  %s2 = inlined_call_operand.vmem [shape: f32[1,64], index: 2, kind: input, shape index: {}]
  %s3 = inlined_call_operand.vmem [shape: bf16[64,32], index: 3, kind: input, shape index: {}]
  %s4 = inlined_call_operand.vmem [shape: f32[1,32], index: 4, kind: input, shape index: {}]
  %s5 = inlined_call_operand.vmem [shape: bf16[32,10], index: 5, kind: input, shape index: {}]
  %s6 = inlined_call_operand.vmem [shape: f32[1,10], index: 6, kind: input, shape index: {}]
  %s7 = inlined_call_operand.hbm [shape: f32[2,10], index: 7, kind: output, shape index: {}]
  %s8 = sld [smem:[#allocation0]]
  $region38: #{residual_cnn_forward.7} parent=0
    _
  %s10 = ssub.s32 1, %s8
  %s11 = scalar_select 0, %s10, %s8
  $region1: #{residual_cnn_forward.7} parent=0
    #allocation2 [shape = 'u8[1024]{0}', space=vmem, size = 0x400, scoped, tag = 'output window, operand 0, single buffered']
    #allocation3 [shape = 's32[1]{0}', space=sflag, size = 0x4, scoped, tag = 'scoped memory for residual_cnn_forward.7']
    %12 = vsyncpa [#allocation3], 0
    // Predicated region
    $region2: #{residual_cnn_forward.7} parent=1 // pred_check
      _
    $region3: #{residual_cnn_forward.7} parent=1 // pred_check_branch
      %14 = sbr.rel (0) target = $region5
    $region4: #{residual_cnn_forward.7} parent=1 // pred_region
      _
    $region5: #{residual_cnn_forward.7} parent=1 // pred_fallthru
      _
    // Predicated region
    $region6: #{residual_cnn_forward.7} parent=1 // pred_check
      _
    $region7: #{residual_cnn_forward.7} parent=1 // pred_check_branch
      %16 = sbr.rel (0) target = $region9
    $region8: #{residual_cnn_forward.7} parent=1 // pred_region
      _
    $region9: #{residual_cnn_forward.7} parent=1 // pred_fallthru
      _
    // Predicated region
    $region10: #{residual_cnn_forward.7} parent=1 // pred_check
      _
    $region11: #{residual_cnn_forward.7} parent=1 // pred_check_branch
      %18 = sbr.rel (0) target = $region13
    $region12: #{residual_cnn_forward.7} parent=1 // pred_region
      _
    $region13: #{residual_cnn_forward.7} parent=1 // pred_fallthru
      _
    // Predicated region
    $region14: #{residual_cnn_forward.7} parent=1 // pred_check
      _
    $region15: #{residual_cnn_forward.7} parent=1 // pred_check_branch
      %20 = sbr.rel (0) target = $region17
    $region16: #{residual_cnn_forward.7} parent=1 // pred_region
      _
    $region17: #{residual_cnn_forward.7} parent=1 // pred_fallthru
      _
    // Predicated region
    $region18: #{residual_cnn_forward.7} parent=1 // pred_check
      _
    $region19: #{residual_cnn_forward.7} parent=1 // pred_check_branch
      %22 = sbr.rel (0) target = $region21
    $region20: #{residual_cnn_forward.7} parent=1 // pred_region
      _
    $region21: #{residual_cnn_forward.7} parent=1 // pred_fallthru
      _
    // Predicated region
    $region22: #{residual_cnn_forward.7} parent=1 // pred_check
      _
    $region23: #{residual_cnn_forward.7} parent=1 // pred_check_branch
      %24 = sbr.rel (0) target = $region25
    $region24: #{residual_cnn_forward.7} parent=1 // pred_region
      _
    $region25: #{residual_cnn_forward.7} parent=1 // pred_fallthru
      _
    // Predicated region
    $region26: #{residual_cnn_forward.7} parent=1 // pred_check
      _
    $region27: #{residual_cnn_forward.7} parent=1 // pred_check_branch
      %26 = sbr.rel (0) target = $region29
    $region28: #{residual_cnn_forward.7} parent=1 // pred_region
      _
    $region29: #{residual_cnn_forward.7} parent=1 // pred_fallthru
      _
    %v28 = vld [vmem:[%s0] sm:$0xff]
    %v29 = vld [vmem:[%s1] sm:$0xf]
    %v30 = vld [vmem:[%s1 + $0x4] sm:$0xf]
    %v31 = vld [vmem:[%s1 + $0x8] sm:$0xf]
    %v32 = vld [vmem:[%s1 + $0xc] sm:$0xf]
    %v33 = vld [vmem:[%s1 + $0x10] sm:$0xf]
    %v34 = vld [vmem:[%s1 + $0x14] sm:$0xf]
    %v35 = vld [vmem:[%s1 + $0x18] sm:$0xf]
    %v36 = vld [vmem:[%s1 + $0x1c] sm:$0xf]
    %v37 = vld [vmem:[%s1 + $0x20] sm:$0xf]
    %v38 = vld [vmem:[%s1 + $0x24] sm:$0xf]
    %v39 = vld [vmem:[%s1 + $0x28] sm:$0xf]
    %v40 = vld [vmem:[%s1 + $0x2c] sm:$0xf]
    %v41 = vld [vmem:[%s1 + $0x30] sm:$0xf]
    %v42 = vld [vmem:[%s1 + $0x34] sm:$0xf]
    %v43 = vld [vmem:[%s1 + $0x38] sm:$0xf]
    %v44 = vld [vmem:[%s1 + $0x3c] sm:$0xf]
    %v45 = vld [vmem:[%s1 + $0x40] sm:$0xf]
    %v46 = vld [vmem:[%s1 + $0x44] sm:$0xf]
    %v47 = vld [vmem:[%s1 + $0x48] sm:$0xf]
    %v48 = vld [vmem:[%s1 + $0x4c] sm:$0xf]
    %v49 = vld [vmem:[%s1 + $0x50] sm:$0xf]
    %v50 = vld [vmem:[%s1 + $0x54] sm:$0xf]
    %v51 = vld [vmem:[%s1 + $0x58] sm:$0xf]
    %v52 = vld [vmem:[%s1 + $0x5c] sm:$0xf]
    %v53 = vld [vmem:[%s1 + $0x60] sm:$0xf]
    %v54 = vld [vmem:[%s1 + $0x64] sm:$0xf]
    %v55 = vld [vmem:[%s1 + $0x68] sm:$0xf]
    %v56 = vld [vmem:[%s1 + $0x6c] sm:$0xf]
    %v57 = vld [vmem:[%s1 + $0x70] sm:$0xf]
    %v58 = vld [vmem:[%s1 + $0x74] sm:$0xf]
    %v59 = vld [vmem:[%s1 + $0x78] sm:$0xf]
    %v60 = vld [vmem:[%s1 + $0x7c] sm:$0xf]
    %v61 = vld [vmem:[%s1 + $0x80] sm:$0xf]
    %v62 = vld [vmem:[%s1 + $0x84] sm:$0xf]
    %v63 = vld [vmem:[%s1 + $0x88] sm:$0xf]
    %v64 = vld [vmem:[%s1 + $0x8c] sm:$0xf]
    %v65 = vld [vmem:[%s1 + $0x90] sm:$0xf]
    %v66 = vld [vmem:[%s1 + $0x94] sm:$0xf]
    %v67 = vld [vmem:[%s1 + $0x98] sm:$0xf]
    %v68 = vld [vmem:[%s1 + $0x9c] sm:$0xf]
    %v69 = vld [vmem:[%s1 + $0xa0] sm:$0xf]
    %v70 = vld [vmem:[%s1 + $0xa4] sm:$0xf]
    %v71 = vld [vmem:[%s1 + $0xa8] sm:$0xf]
    %v72 = vld [vmem:[%s1 + $0xac] sm:$0xf]
    %v73 = vld [vmem:[%s1 + $0xb0] sm:$0xf]
    %v74 = vld [vmem:[%s1 + $0xb4] sm:$0xf]
    %v75 = vld [vmem:[%s1 + $0xb8] sm:$0xf]
    %v76 = vld [vmem:[%s1 + $0xbc] sm:$0xf]
    %v77 = vld [vmem:[%s1 + $0xc0] sm:$0xf]
    %v78 = vld [vmem:[%s1 + $0xc4] sm:$0xf]
    %v79 = vld [vmem:[%s1 + $0xc8] sm:$0xf]
    %v80 = vld [vmem:[%s1 + $0xcc] sm:$0xf]
    %v81 = vld [vmem:[%s1 + $0xd0] sm:$0xf]
    %v82 = vld [vmem:[%s1 + $0xd4] sm:$0xf]
    %v83 = vld [vmem:[%s1 + $0xd8] sm:$0xf]
    %v84 = vld [vmem:[%s1 + $0xdc] sm:$0xf]
    %v85 = vld [vmem:[%s1 + $0xe0] sm:$0xf]
    %v86 = vld [vmem:[%s1 + $0xe4] sm:$0xf]
    %v87 = vld [vmem:[%s1 + $0xe8] sm:$0xf]
    %v88 = vld [vmem:[%s1 + $0xec] sm:$0xf]
    %v89 = vld [vmem:[%s1 + $0xf0] sm:$0xf]
    %v90 = vld [vmem:[%s1 + $0xf4] sm:$0xf]
    %v91 = vld [vmem:[%s1 + $0xf8] sm:$0xf]
    %v92 = vld [vmem:[%s1 + $0xfc] sm:$0xf]
    %v93 = vld [vmem:[%s1 + $0x100] sm:$0xf]
    %v94 = vld [vmem:[%s1 + $0x104] sm:$0xf]
    %v95 = vld [vmem:[%s1 + $0x108] sm:$0xf]
    %v96 = vld [vmem:[%s1 + $0x10c] sm:$0xf]
    %v97 = vld [vmem:[%s1 + $0x110] sm:$0xf]
    %v98 = vld [vmem:[%s1 + $0x114] sm:$0xf]
    %v99 = vld [vmem:[%s1 + $0x118] sm:$0xf]
    %v100 = vld [vmem:[%s1 + $0x11c] sm:$0xf]
    %v101 = vld [vmem:[%s1 + $0x120] sm:$0xf]
    %v102 = vld [vmem:[%s1 + $0x124] sm:$0xf]
    %v103 = vld [vmem:[%s1 + $0x128] sm:$0xf]
    %v104 = vld [vmem:[%s1 + $0x12c] sm:$0xf]
    %v105 = vld [vmem:[%s1 + $0x130] sm:$0xf]
    %v106 = vld [vmem:[%s1 + $0x134] sm:$0xf]
    %v107 = vld [vmem:[%s1 + $0x138] sm:$0xf]
    %v108 = vld [vmem:[%s1 + $0x13c] sm:$0xf]
    %v109 = vld [vmem:[%s1 + $0x140] sm:$0xf]
    %v110 = vld [vmem:[%s1 + $0x144] sm:$0xf]
    %v111 = vld [vmem:[%s1 + $0x148] sm:$0xf]
    %v112 = vld [vmem:[%s1 + $0x14c] sm:$0xf]
    %v113 = vld [vmem:[%s1 + $0x150] sm:$0xf]
    %v114 = vld [vmem:[%s1 + $0x154] sm:$0xf]
    %v115 = vld [vmem:[%s1 + $0x158] sm:$0xf]
    %v116 = vld [vmem:[%s1 + $0x15c] sm:$0xf]
    %v117 = vld [vmem:[%s1 + $0x160] sm:$0xf]
    %v118 = vld [vmem:[%s1 + $0x164] sm:$0xf]
    %v119 = vld [vmem:[%s1 + $0x168] sm:$0xf]
    %v120 = vld [vmem:[%s1 + $0x16c] sm:$0xf]
    %v121 = vld [vmem:[%s1 + $0x170] sm:$0xf]
    %v122 = vld [vmem:[%s1 + $0x174] sm:$0xf]
    %v123 = vld [vmem:[%s1 + $0x178] sm:$0xf]
    %v124 = vld [vmem:[%s1 + $0x17c] sm:$0xf]
    %v125 = vld [vmem:[%s1 + $0x180] sm:$0xf]
    %v126 = vld [vmem:[%s1 + $0x184] sm:$0xf]
    %v127 = vld [vmem:[%s1 + $0x188] sm:$0xf]
    %v128 = vld [vmem:[%s1 + $0x18c] sm:$0xf]
    %v129 = vld [vmem:[%s1 + $0x190] sm:$0xf]
    %v130 = vld [vmem:[%s1 + $0x194] sm:$0xf]
    %v131 = vld [vmem:[%s1 + $0x198] sm:$0xf]
    %v132 = vld [vmem:[%s1 + $0x19c] sm:$0xf]
    %v133 = vld [vmem:[%s1 + $0x1a0] sm:$0xf]
    %v134 = vld [vmem:[%s1 + $0x1a4] sm:$0xf]
    %v135 = vld [vmem:[%s1 + $0x1a8] sm:$0xf]
    %v136 = vld [vmem:[%s1 + $0x1ac] sm:$0xf]
    %v137 = vld [vmem:[%s1 + $0x1b0] sm:$0xf]
    %v138 = vld [vmem:[%s1 + $0x1b4] sm:$0xf]
    %v139 = vld [vmem:[%s1 + $0x1b8] sm:$0xf]
    %v140 = vld [vmem:[%s1 + $0x1bc] sm:$0xf]
    %v141 = vld [vmem:[%s1 + $0x1c0] sm:$0xf]
    %v142 = vld [vmem:[%s1 + $0x1c4] sm:$0xf]
    %v143 = vld [vmem:[%s1 + $0x1c8] sm:$0xf]
    %v144 = vld [vmem:[%s1 + $0x1cc] sm:$0xf]
    %v145 = vld [vmem:[%s1 + $0x1d0] sm:$0xf]
    %v146 = vld [vmem:[%s1 + $0x1d4] sm:$0xf]
    %v147 = vld [vmem:[%s1 + $0x1d8] sm:$0xf]
    %v148 = vld [vmem:[%s1 + $0x1dc] sm:$0xf]
    %v149 = vld [vmem:[%s1 + $0x1e0] sm:$0xf]
    %v150 = vld [vmem:[%s1 + $0x1e4] sm:$0xf]
    %v151 = vld [vmem:[%s1 + $0x1e8] sm:$0xf]
    %v152 = vld [vmem:[%s1 + $0x1ec] sm:$0xf]
    %v153 = vld [vmem:[%s1 + $0x1f0] sm:$0xf]
    %v154 = vld [vmem:[%s1 + $0x1f4] sm:$0xf]
    %v155 = vld [vmem:[%s1 + $0x1f8] sm:$0xf]
    %v156 = vld [vmem:[%s1 + $0x1fc] sm:$0xf]
    %v157 = vld [vmem:[%s2] sm:$0x1]
    %v159 = vlaneseq
    %v160 = vshrl.u32 %v159, 7
    %v161 = vsub.s32 0, %v160
    %v162 = vrot.slane %v157, %v161
    %v165 = vcombine.high %v28, %v28
    %v167 = vunpack.c.l.s4 1966171168
    %v168 = vunpack.c.0.s8 %v167
    %v169 = vlaneseq
    %v170 = vshrl.u32 %v169, 7
    %v171 = vsub.s32 %v168, %v170
    %v172 = vrot.slane %v28, %v171
    %v174 = vunpack.c.l.s4 1966171168
    %v175 = vunpack.c.0.s8 %v174
    %v176 = vlaneseq
    %v177 = vshrl.u32 %v176, 7
    %v178 = vsub.s32 %v175, %v177
    %v179 = vrot.slane %v165, %v178
    %v180 = vcombine.high %v172, %v172
    %v181 = vcombine.high %v179, %v179
    %v183 = vunpack.c.l.s4 1966171168
    %v184 = vunpack.c.0.s8 %v183
    %v185 = vlaneseq
    %v186 = vshrl.u32 %v185, 7
    %v187 = vsub.s32 %v184, %v186
    %v188 = vrot.slane %v172, %v187
    %v190 = vunpack.c.l.s4 1966171168
    %v191 = vunpack.c.0.s8 %v190
    %v192 = vlaneseq
    %v193 = vshrl.u32 %v192, 7
    %v194 = vsub.s32 %v191, %v193
    %v195 = vrot.slane %v179, %v194
    %v197 = vunpack.c.l.s4 1966171168
    %v198 = vunpack.c.0.s8 %v197
    %v199 = vlaneseq
    %v200 = vshrl.u32 %v199, 7
    %v201 = vsub.s32 %v198, %v200
    %v202 = vrot.slane %v180, %v201
    %v204 = vunpack.c.l.s4 1966171168
    %v205 = vunpack.c.0.s8 %v204
    %v206 = vlaneseq
    %v207 = vshrl.u32 %v206, 7
    %v208 = vsub.s32 %v205, %v207
    %v209 = vrot.slane %v181, %v208
    %v210 = vcombine.high %v188, %v188
    %v211 = vcombine.high %v195, %v195
    %v212 = vcombine.high %v202, %v202
    %v213 = vcombine.high %v209, %v209
    %v350 = vunpack.c.l.b16 %v29
    %v351 = vunpack.c.l.b16 %v30
    %v352 = vunpack.c.l.b16 %v31
    %v353 = vunpack.c.l.b16 %v32
    %v354 = vunpack.c.l.b16 %v33
    %v355 = vunpack.c.l.b16 %v34
    %v356 = vunpack.c.l.b16 %v35
    %v357 = vunpack.c.l.b16 %v36
    %v358 = vunpack.c.l.b16 %v37
    %v359 = vunpack.c.l.b16 %v38
    %v360 = vunpack.c.l.b16 %v39
    %v361 = vunpack.c.l.b16 %v40
    %v362 = vunpack.c.l.b16 %v41
    %v363 = vunpack.c.l.b16 %v42
    %v364 = vunpack.c.l.b16 %v43
    %v365 = vunpack.c.l.b16 %v44
    %v366 = vunpack.c.l.b16 %v45
    %v367 = vunpack.c.l.b16 %v46
    %v368 = vunpack.c.l.b16 %v47
    %v369 = vunpack.c.l.b16 %v48
    %v370 = vunpack.c.l.b16 %v49
    %v371 = vunpack.c.l.b16 %v50
    %v372 = vunpack.c.l.b16 %v51
    %v373 = vunpack.c.l.b16 %v52
    %v374 = vunpack.c.l.b16 %v53
    %v375 = vunpack.c.l.b16 %v54
    %v376 = vunpack.c.l.b16 %v55
    %v377 = vunpack.c.l.b16 %v56
    %v378 = vunpack.c.l.b16 %v57
    %v379 = vunpack.c.l.b16 %v58
    %v380 = vunpack.c.l.b16 %v59
    %v381 = vunpack.c.l.b16 %v60
    %v382 = vunpack.c.l.b16 %v61
    %v383 = vunpack.c.l.b16 %v62
    %v384 = vunpack.c.l.b16 %v63
    %v385 = vunpack.c.l.b16 %v64
    %v386 = vunpack.c.l.b16 %v65
    %v387 = vunpack.c.l.b16 %v66
    %v388 = vunpack.c.l.b16 %v67
    %v389 = vunpack.c.l.b16 %v68
    %v390 = vunpack.c.l.b16 %v69
    %v391 = vunpack.c.l.b16 %v70
    %v392 = vunpack.c.l.b16 %v71
    %v393 = vunpack.c.l.b16 %v72
    %v394 = vunpack.c.l.b16 %v73
    %v395 = vunpack.c.l.b16 %v74
    %v396 = vunpack.c.l.b16 %v75
    %v397 = vunpack.c.l.b16 %v76
    %v398 = vunpack.c.l.b16 %v77
    %v399 = vunpack.c.l.b16 %v78
    %v400 = vunpack.c.l.b16 %v79
    %v401 = vunpack.c.l.b16 %v80
    %v402 = vunpack.c.l.b16 %v81
    %v403 = vunpack.c.l.b16 %v82
    %v404 = vunpack.c.l.b16 %v83
    %v405 = vunpack.c.l.b16 %v84
    %v406 = vunpack.c.l.b16 %v85
    %v407 = vunpack.c.l.b16 %v86
    %v408 = vunpack.c.l.b16 %v87
    %v409 = vunpack.c.l.b16 %v88
    %v410 = vunpack.c.l.b16 %v89
    %v411 = vunpack.c.l.b16 %v90
    %v412 = vunpack.c.l.b16 %v91
    %v413 = vunpack.c.l.b16 %v92
    %v414 = vunpack.c.l.b16 %v93
    %v415 = vunpack.c.l.b16 %v94
    %v416 = vunpack.c.l.b16 %v95
    %v417 = vunpack.c.l.b16 %v96
    %v418 = vunpack.c.l.b16 %v97
    %v419 = vunpack.c.l.b16 %v98
    %v420 = vunpack.c.l.b16 %v99
    %v421 = vunpack.c.l.b16 %v100
    %v422 = vunpack.c.l.b16 %v101
    %v423 = vunpack.c.l.b16 %v102
    %v424 = vunpack.c.l.b16 %v103
    %v425 = vunpack.c.l.b16 %v104
    %v426 = vunpack.c.l.b16 %v105
    %v427 = vunpack.c.l.b16 %v106
    %v428 = vunpack.c.l.b16 %v107
    %v429 = vunpack.c.l.b16 %v108
    %v430 = vunpack.c.l.b16 %v109
    %v431 = vunpack.c.l.b16 %v110
    %v432 = vunpack.c.l.b16 %v111
    %v433 = vunpack.c.l.b16 %v112
    %v434 = vunpack.c.l.b16 %v113
    %v435 = vunpack.c.l.b16 %v114
    %v436 = vunpack.c.l.b16 %v115
    %v437 = vunpack.c.l.b16 %v116
    %v438 = vunpack.c.l.b16 %v117
    %v439 = vunpack.c.l.b16 %v118
    %v440 = vunpack.c.l.b16 %v119
    %v441 = vunpack.c.l.b16 %v120
    %v442 = vunpack.c.l.b16 %v121
    %v443 = vunpack.c.l.b16 %v122
    %v444 = vunpack.c.l.b16 %v123
    %v445 = vunpack.c.l.b16 %v124
    %v446 = vunpack.c.l.b16 %v125
    %v447 = vunpack.c.l.b16 %v126
    %v448 = vunpack.c.l.b16 %v127
    %v449 = vunpack.c.l.b16 %v128
    %v450 = vunpack.c.l.b16 %v129
    %v451 = vunpack.c.l.b16 %v130
    %v452 = vunpack.c.l.b16 %v131
    %v453 = vunpack.c.l.b16 %v132
    %v454 = vunpack.c.l.b16 %v133
    %v455 = vunpack.c.l.b16 %v134
    %v456 = vunpack.c.l.b16 %v135
    %v457 = vunpack.c.l.b16 %v136
    %v458 = vunpack.c.l.b16 %v137
    %v459 = vunpack.c.l.b16 %v138
    %v460 = vunpack.c.l.b16 %v139
    %v461 = vunpack.c.l.b16 %v140
    %v462 = vunpack.c.l.b16 %v141
    %v463 = vunpack.c.l.b16 %v142
    %v464 = vunpack.c.l.b16 %v143
    %v465 = vunpack.c.l.b16 %v144
    %v466 = vunpack.c.l.b16 %v145
    %v467 = vunpack.c.l.b16 %v146
    %v468 = vunpack.c.l.b16 %v147
    %v469 = vunpack.c.l.b16 %v148
    %v470 = vunpack.c.l.b16 %v149
    %v471 = vunpack.c.l.b16 %v150
    %v472 = vunpack.c.l.b16 %v151
    %v473 = vunpack.c.l.b16 %v152
    %v474 = vunpack.c.l.b16 %v153
    %v475 = vunpack.c.l.b16 %v154
    %v476 = vunpack.c.l.b16 %v155
    %v477 = vunpack.c.l.b16 %v156
    %v478 = vpack.c.b16 %v351, %v350
    %v479 = vpack.c.b16 %v353, %v352
    %v480 = vpack.c.b16 %v355, %v354
    %v481 = vpack.c.b16 %v357, %v356
    %v482 = vpack.c.b16 %v359, %v358
    %v483 = vpack.c.b16 %v361, %v360
    %v484 = vpack.c.b16 %v363, %v362
    %v485 = vpack.c.b16 %v365, %v364
    %v486 = vpack.c.b16 %v367, %v366
    %v487 = vpack.c.b16 %v369, %v368
    %v488 = vpack.c.b16 %v371, %v370
    %v489 = vpack.c.b16 %v373, %v372
    %v490 = vpack.c.b16 %v375, %v374
    %v491 = vpack.c.b16 %v377, %v376
    %v492 = vpack.c.b16 %v379, %v378
    %v493 = vpack.c.b16 %v381, %v380
    %v494 = vpack.c.b16 %v383, %v382
    %v495 = vpack.c.b16 %v385, %v384
    %v496 = vpack.c.b16 %v387, %v386
    %v497 = vpack.c.b16 %v389, %v388
    %v498 = vpack.c.b16 %v391, %v390
    %v499 = vpack.c.b16 %v393, %v392
    %v500 = vpack.c.b16 %v395, %v394
    %v501 = vpack.c.b16 %v397, %v396
    %v502 = vpack.c.b16 %v399, %v398
    %v503 = vpack.c.b16 %v401, %v400
    %v504 = vpack.c.b16 %v403, %v402
    %v505 = vpack.c.b16 %v405, %v404
    %v506 = vpack.c.b16 %v407, %v406
    %v507 = vpack.c.b16 %v409, %v408
    %v508 = vpack.c.b16 %v411, %v410
    %v509 = vpack.c.b16 %v413, %v412
    %v510 = vpack.c.b16 %v415, %v414
    %v511 = vpack.c.b16 %v417, %v416
    %v512 = vpack.c.b16 %v419, %v418
    %v513 = vpack.c.b16 %v421, %v420
    %v514 = vpack.c.b16 %v423, %v422
    %v515 = vpack.c.b16 %v425, %v424
    %v516 = vpack.c.b16 %v427, %v426
    %v517 = vpack.c.b16 %v429, %v428
    %v518 = vpack.c.b16 %v431, %v430
    %v519 = vpack.c.b16 %v433, %v432
    %v520 = vpack.c.b16 %v435, %v434
    %v521 = vpack.c.b16 %v437, %v436
    %v522 = vpack.c.b16 %v439, %v438
    %v523 = vpack.c.b16 %v441, %v440
    %v524 = vpack.c.b16 %v443, %v442
    %v525 = vpack.c.b16 %v445, %v444
    %v526 = vpack.c.b16 %v447, %v446
    %v527 = vpack.c.b16 %v449, %v448
    %v528 = vpack.c.b16 %v451, %v450
    %v529 = vpack.c.b16 %v453, %v452
    %v530 = vpack.c.b16 %v455, %v454
    %v531 = vpack.c.b16 %v457, %v456
    %v532 = vpack.c.b16 %v459, %v458
    %v533 = vpack.c.b16 %v461, %v460
    %v534 = vpack.c.b16 %v463, %v462
    %v535 = vpack.c.b16 %v465, %v464
    %v536 = vpack.c.b16 %v467, %v466
    %v537 = vpack.c.b16 %v469, %v468
    %v538 = vpack.c.b16 %v471, %v470
    %v539 = vpack.c.b16 %v473, %v472
    %v540 = vpack.c.b16 %v475, %v474
    %v541 = vpack.c.b16 %v477, %v476
    %606 = vmatprep.subr.bf16.mxu0 0
    %607 = vmatpush1.bf16.msra.mxu0 %v478
    %608 = vmatprep.subr.bf16.mxu0 0
    %609 = vmatpush1.bf16.msra.mxu0 %v479
    %610 = vmatprep.subr.bf16.mxu0 0
    %611 = vmatpush1.bf16.msra.mxu0 %v480
    %612 = vmatprep.subr.bf16.mxu0 0
    %613 = vmatpush1.bf16.msra.mxu0 %v481
    %614 = vmatprep.subr.bf16.mxu0 0
    %615 = vmatpush1.bf16.msra.mxu0 %v482
    %616 = vmatprep.subr.bf16.mxu0 0
    %617 = vmatpush1.bf16.msra.mxu0 %v483
    %618 = vmatprep.subr.bf16.mxu0 0
    %619 = vmatpush1.bf16.msra.mxu0 %v484
    %620 = vmatprep.subr.bf16.mxu0 0
    %621 = vmatpush1.bf16.msra.mxu0 %v485
    %622 = vmatprep.subr.bf16.mxu0 0
    %623 = vmatpush1.bf16.msra.mxu0 %v486
    %624 = vmatprep.subr.bf16.mxu0 0
    %625 = vmatpush1.bf16.msra.mxu0 %v487
    %626 = vmatprep.subr.bf16.mxu0 0
    %627 = vmatpush1.bf16.msra.mxu0 %v488
    %628 = vmatprep.subr.bf16.mxu0 0
    %629 = vmatpush1.bf16.msra.mxu0 %v489
    %630 = vmatprep.subr.bf16.mxu0 0
    %631 = vmatpush1.bf16.msra.mxu0 %v490
    %632 = vmatprep.subr.bf16.mxu0 0
    %633 = vmatpush1.bf16.msra.mxu0 %v491
    %634 = vmatprep.subr.bf16.mxu0 0
    %635 = vmatpush1.bf16.msra.mxu0 %v492
    %636 = vmatprep.subr.bf16.mxu0 0
    %637 = vmatpush1.bf16.msra.mxu0 %v493
    %638 = vmatprep.mubr.bf16.mxu0 %v202
    %639 = vmatmul.mubr.bf16.gmra.mrb[0].mxu0 %v188
    %v640 = vpop.f32.mrb[0].mxu0
    %v641 = vadd.f32 %v162, %v640
    %v642 = vpop.f32.mrb[0].mxu0
    %v643 = vpop.f32.mrb[0].mxu0
    %v644 = vpop.f32.mrb[0].mxu0
    %645 = vdwg.mxu0
    %646 = vmatprep.subr.bf16.mxu0 0
    %647 = vmatpush1.bf16.msra.mxu0 %v494
    %648 = vmatprep.subr.bf16.mxu0 0
    %649 = vmatpush1.bf16.msra.mxu0 %v495
    %650 = vmatprep.subr.bf16.mxu0 0
    %651 = vmatpush1.bf16.msra.mxu0 %v496
    %652 = vmatprep.subr.bf16.mxu0 0
    %653 = vmatpush1.bf16.msra.mxu0 %v497
    %654 = vmatprep.subr.bf16.mxu0 0
    %655 = vmatpush1.bf16.msra.mxu0 %v498
    %656 = vmatprep.subr.bf16.mxu0 0
    %657 = vmatpush1.bf16.msra.mxu0 %v499
    %658 = vmatprep.subr.bf16.mxu0 0
    %659 = vmatpush1.bf16.msra.mxu0 %v500
    %660 = vmatprep.subr.bf16.mxu0 0
    %661 = vmatpush1.bf16.msra.mxu0 %v501
    %662 = vmatprep.subr.bf16.mxu0 0
    %663 = vmatpush1.bf16.msra.mxu0 %v502
    %664 = vmatprep.subr.bf16.mxu0 0
    %665 = vmatpush1.bf16.msra.mxu0 %v503
    %666 = vmatprep.subr.bf16.mxu0 0
    %667 = vmatpush1.bf16.msra.mxu0 %v504
    %668 = vmatprep.subr.bf16.mxu0 0
    %669 = vmatpush1.bf16.msra.mxu0 %v505
    %670 = vmatprep.subr.bf16.mxu0 0
    %671 = vmatpush1.bf16.msra.mxu0 %v506
    %672 = vmatprep.subr.bf16.mxu0 0
    %673 = vmatpush1.bf16.msra.mxu0 %v507
    %674 = vmatprep.subr.bf16.mxu0 0
    %675 = vmatpush1.bf16.msra.mxu0 %v508
    %676 = vmatprep.subr.bf16.mxu0 0
    %677 = vmatpush1.bf16.msra.mxu0 %v509
    %678 = vmatprep.mubr.bf16.mxu0 %v212
    %679 = vmatmul.mubr.bf16.gmra.mrb[0].mxu0 %v210
    %v680 = vpop.f32.mrb[0].mxu0
    %v681 = vadd.f32 %v641, %v680
    %v682 = vpop.f32.mrb[0].mxu0
    %v683 = vpop.f32.mrb[0].mxu0
    %v684 = vpop.f32.mrb[0].mxu0
    %685 = vdwg.mxu0
    %686 = vmatprep.subr.bf16.mxu0 0
    %687 = vmatpush1.bf16.msra.mxu0 %v510
    %688 = vmatprep.subr.bf16.mxu0 0
    %689 = vmatpush1.bf16.msra.mxu0 %v511
    %690 = vmatprep.subr.bf16.mxu0 0
    %691 = vmatpush1.bf16.msra.mxu0 %v512
    %692 = vmatprep.subr.bf16.mxu0 0
    %693 = vmatpush1.bf16.msra.mxu0 %v513
    %694 = vmatprep.subr.bf16.mxu0 0
    %695 = vmatpush1.bf16.msra.mxu0 %v514
    %696 = vmatprep.subr.bf16.mxu0 0
    %697 = vmatpush1.bf16.msra.mxu0 %v515
    %698 = vmatprep.subr.bf16.mxu0 0
    %699 = vmatpush1.bf16.msra.mxu0 %v516
    %700 = vmatprep.subr.bf16.mxu0 0
    %701 = vmatpush1.bf16.msra.mxu0 %v517
    %702 = vmatprep.subr.bf16.mxu0 0
    %703 = vmatpush1.bf16.msra.mxu0 %v518
    %704 = vmatprep.subr.bf16.mxu0 0
    %705 = vmatpush1.bf16.msra.mxu0 %v519
    %706 = vmatprep.subr.bf16.mxu0 0
    %707 = vmatpush1.bf16.msra.mxu0 %v520
    %708 = vmatprep.subr.bf16.mxu0 0
    %709 = vmatpush1.bf16.msra.mxu0 %v521
    %710 = vmatprep.subr.bf16.mxu0 0
    %711 = vmatpush1.bf16.msra.mxu0 %v522
    %712 = vmatprep.subr.bf16.mxu0 0
    %713 = vmatpush1.bf16.msra.mxu0 %v523
    %714 = vmatprep.subr.bf16.mxu0 0
    %715 = vmatpush1.bf16.msra.mxu0 %v524
    %716 = vmatprep.subr.bf16.mxu0 0
    %717 = vmatpush1.bf16.msra.mxu0 %v525
    %718 = vmatprep.mubr.bf16.mxu0 %v209
    %719 = vmatmul.mubr.bf16.gmra.mrb[0].mxu0 %v195
    %v720 = vpop.f32.mrb[0].mxu0
    %v721 = vadd.f32 %v681, %v720
    %v722 = vpop.f32.mrb[0].mxu0
    %v723 = vpop.f32.mrb[0].mxu0
    %v724 = vpop.f32.mrb[0].mxu0
    %725 = vdwg.mxu0
    %726 = vmatprep.subr.bf16.mxu0 0
    %727 = vmatpush1.bf16.msra.mxu0 %v526
    %728 = vmatprep.subr.bf16.mxu0 0
    %729 = vmatpush1.bf16.msra.mxu0 %v527
    %730 = vmatprep.subr.bf16.mxu0 0
    %731 = vmatpush1.bf16.msra.mxu0 %v528
    %732 = vmatprep.subr.bf16.mxu0 0
    %733 = vmatpush1.bf16.msra.mxu0 %v529
    %734 = vmatprep.subr.bf16.mxu0 0
    %735 = vmatpush1.bf16.msra.mxu0 %v530
    %736 = vmatprep.subr.bf16.mxu0 0
    %737 = vmatpush1.bf16.msra.mxu0 %v531
    %738 = vmatprep.subr.bf16.mxu0 0
    %739 = vmatpush1.bf16.msra.mxu0 %v532
    %740 = vmatprep.subr.bf16.mxu0 0
    %741 = vmatpush1.bf16.msra.mxu0 %v533
    %742 = vmatprep.subr.bf16.mxu0 0
    %743 = vmatpush1.bf16.msra.mxu0 %v534
    %744 = vmatprep.subr.bf16.mxu0 0
    %745 = vmatpush1.bf16.msra.mxu0 %v535
    %746 = vmatprep.subr.bf16.mxu0 0
    %747 = vmatpush1.bf16.msra.mxu0 %v536
    %748 = vmatprep.subr.bf16.mxu0 0
    %749 = vmatpush1.bf16.msra.mxu0 %v537
    %750 = vmatprep.subr.bf16.mxu0 0
    %751 = vmatpush1.bf16.msra.mxu0 %v538
    %752 = vmatprep.subr.bf16.mxu0 0
    %753 = vmatpush1.bf16.msra.mxu0 %v539
    %754 = vmatprep.subr.bf16.mxu0 0
    %755 = vmatpush1.bf16.msra.mxu0 %v540
    %756 = vmatprep.subr.bf16.mxu0 0
    %757 = vmatpush1.bf16.msra.mxu0 %v541
    %758 = vmatprep.mubr.bf16.mxu0 %v213
    %759 = vmatmul.mubr.bf16.gmra.mrb[0].mxu0 %v211
    %v760 = vpop.f32.mrb[0].mxu0
    %v761 = vadd.f32 %v721, %v760
    %v762 = vpop.f32.mrb[0].mxu0
    %v763 = vpop.f32.mrb[0].mxu0
    %v764 = vpop.f32.mrb[0].mxu0
    %765 = vdwg.mxu0
    %v766 = vmax.f32 %v761, 0.0
    %v767 = vpack.c.bf16 %v766, %v766
    %v768 = vld [vmem:[%s3] sm:$0xf]
    %v769 = vld [vmem:[%s3 + $0x4] sm:$0xf]
    %v770 = vld [vmem:[%s3 + $0x8] sm:$0xf]
    %v771 = vld [vmem:[%s3 + $0xc] sm:$0xf]
    %v772 = vld [vmem:[%s3 + $0x10] sm:$0xf]
    %v773 = vld [vmem:[%s3 + $0x14] sm:$0xf]
    %v774 = vld [vmem:[%s3 + $0x18] sm:$0xf]
    %v775 = vld [vmem:[%s3 + $0x1c] sm:$0xf]
    %v776 = vld [vmem:[%s4] sm:$0x1]
    %v778 = vlaneseq
    %v779 = vshrl.u32 %v778, 7
    %v780 = vsub.s32 0, %v779
    %v781 = vrot.slane %v776, %v780
    %v791 = vunpack.c.l.b16 %v768
    %v792 = vunpack.c.l.b16 %v769
    %v793 = vunpack.c.l.b16 %v770
    %v794 = vunpack.c.l.b16 %v771
    %v795 = vunpack.c.l.b16 %v772
    %v796 = vunpack.c.l.b16 %v773
    %v797 = vunpack.c.l.b16 %v774
    %v798 = vunpack.c.l.b16 %v775
    %v799 = vpack.c.b16 %v792, %v791
    %v800 = vpack.c.b16 %v794, %v793
    %v801 = vpack.c.b16 %v796, %v795
    %v802 = vpack.c.b16 %v798, %v797
    %vm807 = vcmask 523264
    %v809 = vsel %vm807, %v767, 0
    %811 = vmatprep.subr.bf16.mxu0 0
    %812 = vmatpush1.bf16.msra.mxu0 %v799
    %813 = vmatprep.subr.bf16.mxu0 0
    %814 = vmatpush1.bf16.msra.mxu0 %v800
    %815 = vmatprep.subr.bf16.mxu0 0
    %816 = vmatpush1.bf16.msra.mxu0 %v801
    %817 = vmatprep.subr.bf16.mxu0 0
    %818 = vmatpush1.bf16.msra.mxu0 %v802
    %819 = vmatprep.subr.bf16.mxu0 0
    %820 = vmatpush1.bf16.msra.mxu0 0
    %821 = vmatprep.subr.bf16.mxu0 0
    %822 = vmatpush1.bf16.msra.mxu0 0
    %823 = vmatprep.subr.bf16.mxu0 0
    %824 = vmatpush1.bf16.msra.mxu0 0
    %825 = vmatprep.subr.bf16.mxu0 0
    %826 = vmatpush1.bf16.msra.mxu0 0
    %827 = vmatprep.subr.bf16.mxu0 0
    %828 = vmatpush1.bf16.msra.mxu0 0
    %829 = vmatprep.subr.bf16.mxu0 0
    %830 = vmatpush1.bf16.msra.mxu0 0
    %831 = vmatprep.subr.bf16.mxu0 0
    %832 = vmatpush1.bf16.msra.mxu0 0
    %833 = vmatprep.subr.bf16.mxu0 0
    %834 = vmatpush1.bf16.msra.mxu0 0
    %835 = vmatprep.subr.bf16.mxu0 0
    %836 = vmatpush1.bf16.msra.mxu0 0
    %837 = vmatprep.subr.bf16.mxu0 0
    %838 = vmatpush1.bf16.msra.mxu0 0
    %839 = vmatprep.subr.bf16.mxu0 0
    %840 = vmatpush1.bf16.msra.mxu0 0
    %841 = vmatprep.subr.bf16.mxu0 0
    %842 = vmatpush1.bf16.msra.mxu0 0
    %843 = vmatprep.mubr.bf16.mxu0 0
    %844 = vmatmul.mubr.bf16.gmra.mrb[0].mxu0 %v809
    %v845 = vpop.f32.mrb[0].mxu0
    %v846 = vadd.f32 %v781, %v845
    %v847 = vpop.f32.mrb[0].mxu0
    %v848 = vpop.f32.mrb[0].mxu0
    %v849 = vpop.f32.mrb[0].mxu0
    %850 = vdwg.mxu0
    %v851 = vmax.f32 %v846, 0.0
    %v852 = vpack.c.bf16 %v851, %v851
    %v853 = vld [vmem:[%s5] sm:$0xf]
    %v854 = vld [vmem:[%s5 + $0x4] sm:$0xf]
    %v855 = vld [vmem:[%s5 + $0x8] sm:$0xf]
    %v856 = vld [vmem:[%s5 + $0xc] sm:$0xf]
    %v857 = vld [vmem:[%s6] sm:$0x1]
    %v859 = vlaneseq
    %v860 = vshrl.u32 %v859, 7
    %v861 = vsub.s32 0, %v860
    %v862 = vrot.slane %v857, %v861
    %v868 = vunpack.c.l.b16 %v853
    %v869 = vunpack.c.l.b16 %v854
    %v870 = vunpack.c.l.b16 %v855
    %v871 = vunpack.c.l.b16 %v856
    %v872 = vpack.c.b16 %v869, %v868
    %v873 = vpack.c.b16 %v871, %v870
    %vm876 = vcmask 261120
    %v878 = vsel %vm876, %v852, 0
    %880 = vmatprep.subr.bf16.mxu0 0
    %881 = vmatpush1.bf16.msra.mxu0 %v872
    %882 = vmatprep.subr.bf16.mxu0 0
    %883 = vmatpush1.bf16.msra.mxu0 %v873
    %884 = vmatprep.subr.bf16.mxu0 0
    %885 = vmatpush1.bf16.msra.mxu0 0
    %886 = vmatprep.subr.bf16.mxu0 0
    %887 = vmatpush1.bf16.msra.mxu0 0
    %888 = vmatprep.subr.bf16.mxu0 0
    %889 = vmatpush1.bf16.msra.mxu0 0
    %890 = vmatprep.subr.bf16.mxu0 0
    %891 = vmatpush1.bf16.msra.mxu0 0
    %892 = vmatprep.subr.bf16.mxu0 0
    %893 = vmatpush1.bf16.msra.mxu0 0
    %894 = vmatprep.subr.bf16.mxu0 0
    %895 = vmatpush1.bf16.msra.mxu0 0
    %896 = vmatprep.subr.bf16.mxu0 0
    %897 = vmatpush1.bf16.msra.mxu0 0
    %898 = vmatprep.subr.bf16.mxu0 0
    %899 = vmatpush1.bf16.msra.mxu0 0
    %900 = vmatprep.subr.bf16.mxu0 0
    %901 = vmatpush1.bf16.msra.mxu0 0
    %902 = vmatprep.subr.bf16.mxu0 0
    %903 = vmatpush1.bf16.msra.mxu0 0
    %904 = vmatprep.subr.bf16.mxu0 0
    %905 = vmatpush1.bf16.msra.mxu0 0
    %906 = vmatprep.subr.bf16.mxu0 0
    %907 = vmatpush1.bf16.msra.mxu0 0
    %908 = vmatprep.subr.bf16.mxu0 0
    %909 = vmatpush1.bf16.msra.mxu0 0
    %910 = vmatprep.subr.bf16.mxu0 0
    %911 = vmatpush1.bf16.msra.mxu0 0
    %912 = vmatprep.mubr.bf16.mxu0 0
    %913 = vmatmul.mubr.bf16.gmra.mrb[0].mxu0 %v878
    %v914 = vpop.f32.mrb[0].mxu0
    %v915 = vadd.f32 %v862, %v914
    %v916 = vpop.f32.mrb[0].mxu0
    %v917 = vpop.f32.mrb[0].mxu0
    %v918 = vpop.f32.mrb[0].mxu0
    %919 = vdwg.mxu0
    %vm920 = vcmask 74752
    %921 = vst.msk [vmem:[#allocation2] sm:$0x3] %vm920, %v915
    // Predicated region
    $region30: #{residual_cnn_forward.7} parent=1 // pred_check
      _
    $region31: #{residual_cnn_forward.7} parent=1 // pred_check_branch
      %923 = sbr.rel (0) target = $region33
    $region32: #{residual_cnn_forward.7} parent=1 // pred_region
      %s925 = ssub.s32 32, 32
      %926 = vsyncadd [#allocation3], %s925
      %s928 = sshll.u32 [#allocation2], 4
      %s929 = int_to_ptr.vmem [resolvable:$true] %s928
      %931 = dma.vmem_to_hbm [thread:$0]  %s929, 32, %s7, [#allocation3]
    $region33: #{residual_cnn_forward.7} parent=1 // pred_fallthru
      _
    // Predicated region
    $region34: #{residual_cnn_forward.7} parent=1 // pred_check
      _
    $region35: #{residual_cnn_forward.7} parent=1 // pred_check_branch
      %933 = sbr.rel (0) target = $region37
    $region36: #{residual_cnn_forward.7} parent=1 // pred_region
      %934 = dma.done [#allocation3], 32
    $region37: #{residual_cnn_forward.7} parent=1 // pred_fallthru
      _
    %935 = vsyncpa [#allocation3], 1

</llo_original>
